<compile_context>
chip_gen: v7x
topology: tpu7x:2x2x1
jax: 0.10.0
libtpu: 0.0.40
codegen_flags: <defaults>
</compile_context>

<pallas_src>
import functools

import jax
import jax.numpy as jnp
from jax.experimental import pallas as pl
from jax.experimental.pallas import tpu as pltpu

BN_EPS = 1e-5


# --------------------------------------------------------------------------
# small helpers
# --------------------------------------------------------------------------
@functools.lru_cache(maxsize=1)
def _vmem_limit_bytes():
    """Generation-aware scoped-VMEM limit."""
    try:
        cap = getattr(pltpu.get_tpu_info(), "vmem_capacity_bytes", None)
        if cap is not None and int(cap) >= 100 * 1024 * 1024:
            return 96 * 1024 * 1024          # v5e / v6e: 128 MiB physical VMEM
    except Exception:
        pass
    return 32 * 1024 * 1024                  # v7x-class: 64 MiB physical per TC


def _largest_divisor_leq(n, cap):
    cap = int(max(1, min(n, cap)))
    for d in range(cap, 0, -1):
        if n % d == 0:
            return d
    return 1


# --------------------------------------------------------------------------
# Kernel 1: fused subpixel ConvTranspose2d + BN1 partial statistics
# --------------------------------------------------------------------------
def _deconv_phase_kernel(xb_ref, xh_ref, w_ref, y_ref, s_ref, ss_ref, *, th, W, cout):
    xb = xb_ref[0]                                     # (th, W+1, Cin) rows a
    xh = xh_ref[0]                                     # (1,  W+1, Cin) row  a_last+1
    if th > 1:
        xdn = jnp.concatenate([xb[1:], xh], axis=0)    # rows a+1
    else:
        xdn = xh
    cin = xb.shape[-1]

    def flat(t):                                       # (th, W, Cin) -> (th*W, Cin)
        return t.reshape(th * W, cin)

    xc, xr = flat(xb[:, :W, :]), flat(xb[:, 1:W + 1, :])
    xd, xdr = flat(xdn[:, :W, :]), flat(xdn[:, 1:W + 1, :])

    def mm(a, kh, kw):
        return jnp.dot(a, w_ref[kh, kw], preferred_element_type=jnp.float32)

    # ConvTranspose2d(k=3, s=2, p=1, out_p=1) subpixel phases:
    #   out[2a  , 2b  ] = x[a,b]@W11
    #   out[2a  , 2b+1] = x[a,b]@W12 + x[a,b+1]@W10
    #   out[2a+1, 2b  ] = x[a,b]@W21 + x[a+1,b]@W01
    #   out[2a+1, 2b+1] = x[a,b]@W22 + x[a,b+1]@W20 + x[a+1,b]@W02 + x[a+1,b+1]@W00
    p00 = mm(xc, 1, 1)
    p01 = mm(xc, 1, 2) + mm(xr, 1, 0)
    p10 = mm(xc, 2, 1) + mm(xd, 0, 1)
    p11 = mm(xc, 2, 2) + mm(xr, 2, 0) + mm(xd, 0, 2) + mm(xdr, 0, 0)

    # BN1 partial statistics (f32, real pixels only; border columns excluded).
    s = jnp.sum(p00, 0) + jnp.sum(p01, 0) + jnp.sum(p10, 0) + jnp.sum(p11, 0)
    ss = (jnp.sum(p00 * p00, 0) + jnp.sum(p01 * p01, 0)
          + jnp.sum(p10 * p10, 0) + jnp.sum(p11 * p11, 0))
    s_ref[...] = s.reshape(1, 1, 1, cout)
    ss_ref[...] = ss.reshape(1, 1, 1, cout)

    def interleave_rows(a, b):                         # even/odd fine rows
        a3 = a.reshape(th, W, cout)
        b3 = b.reshape(th, W, cout)
        return jnp.stack([a3, b3], axis=1).reshape(2 * th, W, cout)

    plane0 = interleave_rows(p00, p10)                 # column phase 0 (even cols)
    plane1 = interleave_rows(p01, p11)                 # column phase 1 (odd cols)
    blk = jnp.stack([plane0, plane1], axis=1)          # (2*th, 2, W, cout) f32

    zero_col = jnp.zeros((2 * th, 2, 1, cout), y_ref.dtype)
    y_ref[0, :, :, 0:1, :] = zero_col                  # conv zero border (b = -1)
    y_ref[0, :, :, W + 1:W + 2, :] = zero_col          # conv zero border (b = W)
    y_ref[0, :, :, 1:W + 1, :] = blk.astype(y_ref.dtype)


# --------------------------------------------------------------------------
# Kernel 2: fused cat([bn_relu(deconv), x_pre]) -> 3x3 conv + BN2 partial stats
# --------------------------------------------------------------------------
def _concat_conv_kernel(sc1_ref, bi1_ref,
                        yb_ref, ya_ref, yv_ref,
                        xb_ref, xa_ref, xv_ref,
                        wy_ref, wx_ref,
                        o_ref, s_ref, ss_ref, *, tr, W, cout, relu, cdt):
    i = pl.program_id(1)
    last = pl.num_programs(1) - 1
    top_keep = jnp.where(i == 0, 0.0, 1.0).astype(jnp.float32)     # zero-pad row above
    bot_keep = jnp.where(i == last, 0.0, 1.0).astype(jnp.float32)  # zero-pad row below

    scale1 = sc1_ref[0]                                # (cout,)
    bias1 = bi1_ref[0]

    # deconv branch: BN1 affine + ReLU fused on load
    def bn1(piece, keep):
        v = piece.astype(jnp.float32) * scale1 + bias1
        if relu:
            v = jnp.maximum(v, 0.0)
        return (v * keep).astype(cdt)

    yall = jnp.concatenate([bn1(ya_ref[0], top_keep),
                            bn1(yb_ref[0], 1.0),
                            bn1(yv_ref[0], bot_keep)], axis=0)     # (tr+2, 2, W+2, C)
    # re-zero the conv padding columns (they got normalized above)
    col = jax.lax.broadcasted_iota(jnp.int32, yall.shape, 2)
    yall = jnp.where((col >= 1) & (col <= W), yall, jnp.zeros_like(yall))

    # skip branch (x_pre): raw; its border columns are stored as real zeros
    xall = jnp.concatenate([xa_ref[0] * top_keep.astype(cdt),
                            xb_ref[0],
                            xv_ref[0] * bot_keep.astype(cdt)], axis=0)

    # fine-column tap views of a (tr+2, 2, W+2, C) tile:
    #   kw=0 -> fine col q-1, kw=1 -> q, kw=2 -> q+1
    def taps(vall):
        p0, p1 = vall[:, 0], vall[:, 1]                             # (tr+2, W+2, C)
        v_m = jnp.stack([p1[:, 0:W], p0[:, 1:W + 1]], axis=1)       # kw = 0
        v_c = jnp.stack([p0[:, 1:W + 1], p1[:, 1:W + 1]], axis=1)   # kw = 1
        v_p = jnp.stack([p1[:, 1:W + 1], p0[:, 2:W + 2]], axis=1)   # kw = 2
        return (v_m, v_c, v_p)                                      # (tr+2, 2, W, C)

    y_taps = taps(yall)
    x_taps = taps(xall)

    acc = jnp.zeros((tr * 2 * W, cout), jnp.float32)
    for kh in range(3):
        for kw in range(3):
            yrows = y_taps[kw][kh:kh + tr].reshape(tr * 2 * W, cout)
            xrows = x_taps[kw][kh:kh + tr].reshape(tr * 2 * W, cout)
            acc = acc + jnp.dot(yrows, wy_ref[kh, kw], preferred_element_type=jnp.float32)
            acc = acc + jnp.dot(xrows, wx_ref[kh, kw], preferred_element_type=jnp.float32)

    s_ref[...] = jnp.sum(acc, axis=0).reshape(1, 1, 1, cout)
    ss_ref[...] = jnp.sum(acc * acc, axis=0).reshape(1, 1, 1, cout)
    o_ref[...] = acc.reshape(1, tr, 2, W, cout).astype(o_ref.dtype)


# --------------------------------------------------------------------------
# Kernel 3: per-channel affine (folded BatchNorm) + ReLU
# --------------------------------------------------------------------------
def _bn_affine_kernel(y_ref, sc_ref, bi_ref, o_ref, *, relu):
    v = y_ref[...].astype(jnp.float32) * sc_ref[0] + bi_ref[0]
    if relu:
        v = jnp.maximum(v, 0.0)
    o_ref[...] = v


def _bn_scale_bias(colsum, colsqsum, count, gamma, beta):
    """Finish training-mode BN stats (biased var) and fold into per-channel affine."""
    mean = colsum / count
    var = jnp.maximum(colsqsum / count - mean * mean, 0.0)   # clamp; no negative var
    scale = gamma * jax.lax.rsqrt(var + BN_EPS)
    bias = beta - mean * scale
    return scale[None, :].astype(jnp.float32), bias[None, :].astype(jnp.float32)


# --------------------------------------------------------------------------
# Deconv2dBlock forward  (deconv -> bn -> relu -> concat -> conv -> bn -> relu)
# --------------------------------------------------------------------------
def deconv2d_block_forward(x_pre, x, params, *, relu=True, compute_dtype=jnp.bfloat16):
    """x_pre: (N, Cout, 2H, 2W) NCHW skip feature.  x: (N, Cin, H, W) NCHW."""
    wt = params["deconv_w"]              # (Cin, Cout, 3, 3)  nn.ConvTranspose2d layout
    wc = params["conv_w"]                # (Cout, 2*Cout, 3, 3)  nn.Conv2d layout
    cin, cout = wt.shape[0], wt.shape[1]
    N, _, H, W = x.shape
    H2, W2 = 2 * H, 2 * W
    cdt = compute_dtype                  # matmul operand dtype
    sdt = compute_dtype                  # storage dtype of large intermediates
    isz = jnp.dtype(cdt).itemsize
    vmem_limit = _vmem_limit_bytes()
    budget = vmem_limit // 3             # counts inputs (x2 buffers), outputs, temps

    # ---------------- K1: fused subpixel deconv ----------------------------
    xn = jnp.transpose(x, (0, 2, 3, 1))                                # (N, H, W, Cin)
    xpad = jnp.pad(xn, ((0, 0), (0, 1), (0, 1), (0, 0))).astype(cdt)   # (N, H+1, W+1, Cin)
    wA = jnp.transpose(wt, (2, 3, 0, 1)).astype(cdt)                   # (3, 3, Cin, Cout)

    row_bytes_a = (2 * (W + 1) * cin * isz          # double-buffered body rows
                   + 4 * W * cin * isz              # shifted input slices
                   + 12 * W * cout * 4              # f32 phase results + assembly
                   + 4 * (W + 2) * cout * isz)      # double-buffered output rows
    th = _largest_divisor_leq(H, max(1, budget // max(row_bytes_a, 1)))
    Ht = H // th

    kernel_a = functools.partial(_deconv_phase_kernel, th=th, W=W, cout=cout)
    y_raw, s1, ss1 = pl.pallas_call(
        kernel_a,
        out_shape=(jax.ShapeDtypeStruct((N, H2, 2, W + 2, cout), sdt),
                   jax.ShapeDtypeStruct((N, Ht, 1, cout), jnp.float32),
                   jax.ShapeDtypeStruct((N, Ht, 1, cout), jnp.float32)),
        grid=(N, Ht),
        in_specs=[
            pl.BlockSpec((1, th, W + 1, cin), lambda n, i: (n, i, 0, 0)),
            pl.BlockSpec((1, 1, W + 1, cin), lambda n, i: (n, i * th + th, 0, 0)),
            pl.BlockSpec((3, 3, cin, cout), lambda n, i: (0, 0, 0, 0)),
        ],
        out_specs=(
            pl.BlockSpec((1, 2 * th, 2, W + 2, cout), lambda n, i: (n, i, 0, 0, 0)),
            pl.BlockSpec((1, 1, 1, cout), lambda n, i: (n, i, 0, 0)),
            pl.BlockSpec((1, 1, 1, cout), lambda n, i: (n, i, 0, 0)),
        ),
        compiler_params=pltpu.CompilerParams(
            dimension_semantics=("parallel", "parallel"),
            vmem_limit_bytes=vmem_limit),
        cost_estimate=pl.CostEstimate(
            flops=int(2 * N * H * W * cin * cout * 9), transcendentals=0,
            bytes_accessed=int(N * H * W * cin * isz
                               + N * H2 * 2 * (W + 2) * cout * isz)),
    )(xpad, xpad, wA)

    count = float(N * H2 * W2)
    # NOTE: E[x^2]-mean^2 in f32; clamped at 0 (fine for BN-scale activations).
    scale1, bias1 = _bn_scale_bias(jnp.sum(s1, axis=(0, 1, 2)),
                                   jnp.sum(ss1, axis=(0, 1, 2)),
                                   count, params["deconv_gamma"], params["deconv_beta"])

    # ---------------- K2: fused concat + 3x3 conv ---------------------------
    # x_pre into the same column-phase layout (N, 2H, 2, W+2, Cout), zero border cols
    xp = jnp.transpose(x_pre, (0, 2, 3, 1)).reshape(N, H2, W, 2, cout)
    xp = jnp.transpose(xp, (0, 1, 3, 2, 4))
    xp = jnp.pad(xp, ((0, 0), (0, 0), (0, 0), (1, 1), (0, 0))).astype(cdt)

    wBy = jnp.transpose(wc[:, :cout], (2, 3, 1, 0)).astype(cdt)       # (3,3,Cout,Cout)
    wBx = jnp.transpose(wc[:, cout:], (2, 3, 1, 0)).astype(cdt)

    row_bytes_b = (4 * 2 * (W + 2) * cout * isz     # double-buffered y + x_pre rows
                   + 2 * 2 * W * cout * isz         # double-buffered output rows
                   + 2 * (W + 2) * cout * (4 + isz)  # normalized rows
                   + 6 * 2 * W * cout * isz         # 3 tap views per operand
                   + 4 * 2 * W * cout * 4)          # f32 accumulator + matmul temp
    tr = _largest_divisor_leq(H2, max(1, budget // max(row_bytes_b, 1)))
    Rt = H2 // tr

    kernel_b = functools.partial(_concat_conv_kernel, tr=tr, W=W, cout=cout,
                                 relu=relu, cdt=cdt)
    y2_raw, s2, ss2 = pl.pallas_call(
        kernel_b,
        out_shape=(jax.ShapeDtypeStruct((N, H2, 2, W, cout), sdt),
                   jax.ShapeDtypeStruct((N, Rt, 1, cout), jnp.float32),
                   jax.ShapeDtypeStruct((N, Rt, 1, cout), jnp.float32)),
        grid=(N, Rt),
        in_specs=[
            pl.BlockSpec((1, cout), lambda n, i: (0, 0)),            # scale1
            pl.BlockSpec((1, cout), lambda n, i: (0, 0)),            # bias1
            pl.BlockSpec((1, tr, 2, W + 2, cout), lambda n, i: (n, i, 0, 0, 0)),
            pl.BlockSpec((1, 1, 2, W + 2, cout),
                         lambda n, i: (n, jnp.maximum(i * tr - 1, 0), 0, 0, 0)),
            pl.BlockSpec((1, 1, 2, W + 2, cout),
                         lambda n, i: (n, jnp.minimum(i * tr + tr, H2 - 1), 0, 0, 0)),
            pl.BlockSpec((1, tr, 2, W + 2, cout), lambda n, i: (n, i, 0, 0, 0)),
            pl.BlockSpec((1, 1, 2, W + 2, cout),
                         lambda n, i: (n, jnp.maximum(i * tr - 1, 0), 0, 0, 0)),
            pl.BlockSpec((1, 1, 2, W + 2, cout),
                         lambda n, i: (n, jnp.minimum(i * tr + tr, H2 - 1), 0, 0, 0)),
            pl.BlockSpec((3, 3, cout, cout), lambda n, i: (0, 0, 0, 0)),
            pl.BlockSpec((3, 3, cout, cout), lambda n, i: (0, 0, 0, 0)),
        ],
        out_specs=(
            pl.BlockSpec((1, tr, 2, W, cout), lambda n, i: (n, i, 0, 0, 0)),
            pl.BlockSpec((1, 1, 1, cout), lambda n, i: (n, i, 0, 0)),
            pl.BlockSpec((1, 1, 1, cout), lambda n, i: (n, i, 0, 0)),
        ),
        compiler_params=pltpu.CompilerParams(
            dimension_semantics=("parallel", "parallel"),
            vmem_limit_bytes=vmem_limit),
        cost_estimate=pl.CostEstimate(
            flops=int(2 * N * H2 * W2 * (2 * cout) * cout * 9), transcendentals=0,
            bytes_accessed=int(2 * N * H2 * 2 * (W + 2) * cout * isz
                               + N * H2 * 2 * W * cout * isz)),
    )(scale1, bias1, y_raw, y_raw, y_raw, xp, xp, xp, wBy, wBx)

    scale2, bias2 = _bn_scale_bias(jnp.sum(s2, axis=(0, 1, 2)),
                                   jnp.sum(ss2, axis=(0, 1, 2)),
                                   count, params["conv_gamma"], params["conv_beta"])

    # ---------------- K3: BN2 affine + ReLU ---------------------------------
    kernel_c = functools.partial(_bn_affine_kernel, relu=relu)
    out_perm = pl.pallas_call(
        kernel_c,
        out_shape=jax.ShapeDtypeStruct((N, H2, 2, W, cout), jnp.float32),
        grid=(N, Rt),
        in_specs=[
            pl.BlockSpec((1, tr, 2, W, cout), lambda n, i: (n, i, 0, 0, 0)),
            pl.BlockSpec((1, cout), lambda n, i: (0, 0)),
            pl.BlockSpec((1, cout), lambda n, i: (0, 0)),
        ],
        out_specs=pl.BlockSpec((1, tr, 2, W, cout), lambda n, i: (n, i, 0, 0, 0)),
        compiler_params=pltpu.CompilerParams(
            dimension_semantics=("parallel", "parallel"),
            vmem_limit_bytes=vmem_limit),
        cost_estimate=pl.CostEstimate(
            flops=int(2 * N * H2 * W2 * cout), transcendentals=0,
            bytes_accessed=int(N * H2 * W2 * cout * (isz + 4))),
    )(y2_raw, scale2, bias2)

    # (N, 2H, 2, W, C) -> (N, C, 2H, W, 2) -> (N, C, 2H, 2W)
    out = jnp.transpose(out_perm, (0, 4, 1, 3, 2)).reshape(N, cout, H2, W2)
    return out


# --------------------------------------------------------------------------
# parameters + plain-JAX reference (numerical self-check)
# --------------------------------------------------------------------------
def init_params(key, in_channels, out_channels):
    ks = jax.random.split(key, 6)
    return {
        # nn.ConvTranspose2d weight: (in_channels, out_channels, 3, 3)
        "deconv_w": 0.1 * jax.random.normal(ks[0], (in_channels, out_channels, 3, 3), jnp.float32),
        "deconv_gamma": 1.0 + 0.1 * jax.random.normal(ks[1], (out_channels,), jnp.float32),
        "deconv_beta": 0.1 * jax.random.normal(ks[2], (out_channels,), jnp.float32),
        # nn.Conv2d weight: (out_channels, 2*out_channels, 3, 3)
        "conv_w": 0.1 * jax.random.normal(ks[3], (out_channels, 2 * out_channels, 3, 3), jnp.float32),
        "conv_gamma": 1.0 + 0.1 * jax.random.normal(ks[4], (out_channels,), jnp.float32),
        "conv_beta": 0.1 * jax.random.normal(ks[5], (out_channels,), jnp.float32),
    }


def _reference_forward(x_pre, x, params, relu=True):
    """Pure-JAX (XLA conv) reference of the PyTorch module's forward pass."""
    def bn(t, gamma, beta):
        mean = jnp.mean(t, axis=(0, 2, 3), keepdims=True)
        var = jnp.mean((t - mean) ** 2, axis=(0, 2, 3), keepdims=True)
        return ((t - mean) * jax.lax.rsqrt(var + BN_EPS)
                * gamma[None, :, None, None] + beta[None, :, None, None])

    wt = params["deconv_w"]
    y = jax.lax.conv_general_dilated(
        x, jnp.transpose(wt, (1, 0, 2, 3))[:, :, ::-1, ::-1],
        window_strides=(1, 1), padding=((1, 2), (1, 2)), lhs_dilation=(2, 2),
        dimension_numbers=("NCHW", "OIHW", "NCHW"))
    H, W = x.shape[2], x.shape[3]
    y = y[:, :, :2 * H, :2 * W]
    y = bn(y, params["deconv_gamma"], params["deconv_beta"])
    if relu:
        y = jnp.maximum(y, 0.0)
    z = jnp.concatenate([y, x_pre], axis=1)
    out = jax.lax.conv_general_dilated(
        z, params["conv_w"], window_strides=(1, 1), padding=((1, 1), (1, 1)),
        dimension_numbers=("NCHW", "OIHW", "NCHW"))
    out = bn(out, params["conv_gamma"], params["conv_beta"])
    if relu:
        out = jnp.maximum(out, 0.0)
    return out


if __name__ == "__main__":
    key = jax.random.PRNGKey(0)
    k_params, k_x, k_xpre = jax.random.split(key, 3)

    N, Cin, Cout, H, W = 2, 4, 4, 8, 8
    params = init_params(k_params, Cin, Cout)

    x = jax.random.normal(k_x, (N, Cin, H, W), jnp.float32)                   # low-res input
    x_pre = jax.random.normal(k_xpre, (N, Cout, 2 * H, 2 * W), jnp.float32)   # skip feature

    ref = _reference_forward(x_pre, x, params, relu=True)

    # default path: bf16 MXU operands / bf16 intermediates, f32 accum + BN stats
    fwd_bf16 = jax.jit(functools.partial(deconv2d_block_forward, relu=True))
    out_bf16 = jax.block_until_ready(fwd_bf16(x_pre, x, params))
    assert out_bf16.shape == (N, Cout, 2 * H, 2 * W), out_bf16.shape
    assert bool(jnp.all(jnp.isfinite(out_bf16)))
    max_err_bf16 = float(jnp.max(jnp.abs(out_bf16 - ref)))
    mean_err_bf16 = float(jnp.mean(jnp.abs(out_bf16 - ref)))
    assert max_err_bf16 < 1e-1, f"bf16 mismatch vs reference: {max_err_bf16}"
    assert mean_err_bf16 < 1e-2, f"bf16 mean mismatch vs reference: {mean_err_bf16}"

    # float32 path: tight check of the kernel algorithm itself
    fwd_f32 = jax.jit(functools.partial(deconv2d_block_forward, relu=True,
                                        compute_dtype=jnp.float32))
    out_f32 = jax.block_until_ready(fwd_f32(x_pre, x, params))
    max_err_f32 = float(jnp.max(jnp.abs(out_f32 - ref)))
    assert max_err_f32 < 2e-3, f"f32 mismatch vs reference: {max_err_f32}"

    print("KERNEL_OK")
</pallas_src>

<mosaic_0001>
module attributes {stable_mosaic.version = 11 : i64} {
  func.func @_deconv_phase_kernel(%arg0: i32, %arg1: i32, %arg2: memref<1x8x9x4xbf16, #tpu.memory_space<vmem>>, %arg3: memref<1x1x9x4xbf16, #tpu.memory_space<vmem>>, %arg4: memref<3x3x4x4xbf16, #tpu.memory_space<vmem>>, %arg5: memref<1x16x2x10x4xbf16, #tpu.memory_space<vmem>>, %arg6: memref<1x1x1x4xf32, #tpu.memory_space<vmem>>, %arg7: memref<1x1x1x4xf32, #tpu.memory_space<vmem>>) attributes {dimension_semantics = [#tpu.dimension_semantics<parallel>, #tpu.dimension_semantics<parallel>], iteration_bounds = array<i64: 2, 1>, scalar_prefetch = 0 : i64, scratch_operands = 0 : i64, tpu.core_type = #tpu.core_type<tc>, window_params = [{transform_indices = @transform_0, window_bounds = array<i64: 1, 8, 9, 4>}, {transform_indices = @transform_1, window_bounds = array<i64: 1, 1, 9, 4>}, {pipeline_mode = #tpu.pipeline_mode<synchronous>, transform_indices = @transform_2, window_bounds = array<i64: 3, 3, 4, 4>}, {transform_indices = @transform_3, window_bounds = array<i64: 1, 16, 2, 10, 4>}, {transform_indices = @transform_4, window_bounds = array<i64: 1, 1, 1, 4>}, {transform_indices = @transform_5, window_bounds = array<i64: 1, 1, 1, 4>}]} {
    %c0 = arith.constant 0 : index
    %c0_0 = arith.constant 0 : index
    %c0_1 = arith.constant 0 : index
    %c0_2 = arith.constant 0 : index
    %0 = vector.load %arg2[%c0, %c0_0, %c0_1, %c0_2] : memref<1x8x9x4xbf16, #tpu.memory_space<vmem>>, vector<1x8x9x4xbf16>
    %1 = vector.shape_cast %0 : vector<1x8x9x4xbf16> to vector<8x9x4xbf16>
    %c0_3 = arith.constant 0 : index
    %c0_4 = arith.constant 0 : index
    %c0_5 = arith.constant 0 : index
    %c0_6 = arith.constant 0 : index
    %2 = vector.load %arg3[%c0_3, %c0_4, %c0_5, %c0_6] : memref<1x1x9x4xbf16, #tpu.memory_space<vmem>>, vector<1x1x9x4xbf16>
    %3 = vector.shape_cast %2 : vector<1x1x9x4xbf16> to vector<1x9x4xbf16>
    %4 = vector.extract_strided_slice %1 {offsets = [1, 0, 0], sizes = [7, 9, 4], strides = [1, 1, 1]} : vector<8x9x4xbf16> to vector<7x9x4xbf16>
    %5 = tpu.concatenate %4, %3 in 0 : vector<7x9x4xbf16>, vector<1x9x4xbf16> -> vector<8x9x4xbf16>
    %6 = vector.extract_strided_slice %1 {offsets = [0, 0, 0], sizes = [8, 8, 4], strides = [1, 1, 1]} : vector<8x9x4xbf16> to vector<8x8x4xbf16>
    %7 = vector.shape_cast %6 : vector<8x8x4xbf16> to vector<64x4xbf16>
    %8 = vector.extract_strided_slice %1 {offsets = [0, 1, 0], sizes = [8, 8, 4], strides = [1, 1, 1]} : vector<8x9x4xbf16> to vector<8x8x4xbf16>
    %9 = vector.shape_cast %8 : vector<8x8x4xbf16> to vector<64x4xbf16>
    %10 = vector.extract_strided_slice %5 {offsets = [0, 0, 0], sizes = [8, 8, 4], strides = [1, 1, 1]} : vector<8x9x4xbf16> to vector<8x8x4xbf16>
    %11 = vector.shape_cast %10 : vector<8x8x4xbf16> to vector<64x4xbf16>
    %12 = vector.extract_strided_slice %5 {offsets = [0, 1, 0], sizes = [8, 8, 4], strides = [1, 1, 1]} : vector<8x9x4xbf16> to vector<8x8x4xbf16>
    %13 = vector.shape_cast %12 : vector<8x8x4xbf16> to vector<64x4xbf16>
    %c1 = arith.constant 1 : index
    %c1_7 = arith.constant 1 : index
    %c0_8 = arith.constant 0 : index
    %c0_9 = arith.constant 0 : index
    %14 = vector.load %arg4[%c1, %c1_7, %c0_8, %c0_9] : memref<3x3x4x4xbf16, #tpu.memory_space<vmem>>, vector<1x1x4x4xbf16>
    %15 = vector.shape_cast %14 : vector<1x1x4x4xbf16> to vector<4x4xbf16>
    %cst = arith.constant dense<0.000000e+00> : vector<64x4xf32>
    %16 = tpu.matmul %7, %15, %cst {dimension_numbers = #tpu.dot_dimension_numbers<[1], [0], [0], [1], [0, 0, 1, 1], [], []>} : vector<64x4xbf16>, vector<4x4xbf16>, vector<64x4xf32> -> vector<64x4xf32>
    %c1_10 = arith.constant 1 : index
    %c2 = arith.constant 2 : index
    %c0_11 = arith.constant 0 : index
    %c0_12 = arith.constant 0 : index
    %17 = vector.load %arg4[%c1_10, %c2, %c0_11, %c0_12] : memref<3x3x4x4xbf16, #tpu.memory_space<vmem>>, vector<1x1x4x4xbf16>
    %18 = vector.shape_cast %17 : vector<1x1x4x4xbf16> to vector<4x4xbf16>
    %cst_13 = arith.constant dense<0.000000e+00> : vector<64x4xf32>
    %19 = tpu.matmul %7, %18, %cst_13 {dimension_numbers = #tpu.dot_dimension_numbers<[1], [0], [0], [1], [0, 0, 1, 1], [], []>} : vector<64x4xbf16>, vector<4x4xbf16>, vector<64x4xf32> -> vector<64x4xf32>
    %c1_14 = arith.constant 1 : index
    %c0_15 = arith.constant 0 : index
    %c0_16 = arith.constant 0 : index
    %c0_17 = arith.constant 0 : index
    %20 = vector.load %arg4[%c1_14, %c0_15, %c0_16, %c0_17] : memref<3x3x4x4xbf16, #tpu.memory_space<vmem>>, vector<1x1x4x4xbf16>
    %21 = vector.shape_cast %20 : vector<1x1x4x4xbf16> to vector<4x4xbf16>
    %cst_18 = arith.constant dense<0.000000e+00> : vector<64x4xf32>
    %22 = tpu.matmul %9, %21, %cst_18 {dimension_numbers = #tpu.dot_dimension_numbers<[1], [0], [0], [1], [0, 0, 1, 1], [], []>} : vector<64x4xbf16>, vector<4x4xbf16>, vector<64x4xf32> -> vector<64x4xf32>
    %23 = arith.addf %19, %22 : vector<64x4xf32>
    %c2_19 = arith.constant 2 : index
    %c1_20 = arith.constant 1 : index
    %c0_21 = arith.constant 0 : index
    %c0_22 = arith.constant 0 : index
    %24 = vector.load %arg4[%c2_19, %c1_20, %c0_21, %c0_22] : memref<3x3x4x4xbf16, #tpu.memory_space<vmem>>, vector<1x1x4x4xbf16>
    %25 = vector.shape_cast %24 : vector<1x1x4x4xbf16> to vector<4x4xbf16>
    %cst_23 = arith.constant dense<0.000000e+00> : vector<64x4xf32>
    %26 = tpu.matmul %7, %25, %cst_23 {dimension_numbers = #tpu.dot_dimension_numbers<[1], [0], [0], [1], [0, 0, 1, 1], [], []>} : vector<64x4xbf16>, vector<4x4xbf16>, vector<64x4xf32> -> vector<64x4xf32>
    %c0_24 = arith.constant 0 : index
    %c1_25 = arith.constant 1 : index
    %c0_26 = arith.constant 0 : index
    %c0_27 = arith.constant 0 : index
    %27 = vector.load %arg4[%c0_24, %c1_25, %c0_26, %c0_27] : memref<3x3x4x4xbf16, #tpu.memory_space<vmem>>, vector<1x1x4x4xbf16>
    %28 = vector.shape_cast %27 : vector<1x1x4x4xbf16> to vector<4x4xbf16>
    %cst_28 = arith.constant dense<0.000000e+00> : vector<64x4xf32>
    %29 = tpu.matmul %11, %28, %cst_28 {dimension_numbers = #tpu.dot_dimension_numbers<[1], [0], [0], [1], [0, 0, 1, 1], [], []>} : vector<64x4xbf16>, vector<4x4xbf16>, vector<64x4xf32> -> vector<64x4xf32>
    %30 = arith.addf %26, %29 : vector<64x4xf32>
    %c2_29 = arith.constant 2 : index
    %c2_30 = arith.constant 2 : index
    %c0_31 = arith.constant 0 : index
    %c0_32 = arith.constant 0 : index
    %31 = vector.load %arg4[%c2_29, %c2_30, %c0_31, %c0_32] : memref<3x3x4x4xbf16, #tpu.memory_space<vmem>>, vector<1x1x4x4xbf16>
    %32 = vector.shape_cast %31 : vector<1x1x4x4xbf16> to vector<4x4xbf16>
    %cst_33 = arith.constant dense<0.000000e+00> : vector<64x4xf32>
    %33 = tpu.matmul %7, %32, %cst_33 {dimension_numbers = #tpu.dot_dimension_numbers<[1], [0], [0], [1], [0, 0, 1, 1], [], []>} : vector<64x4xbf16>, vector<4x4xbf16>, vector<64x4xf32> -> vector<64x4xf32>
    %c2_34 = arith.constant 2 : index
    %c0_35 = arith.constant 0 : index
    %c0_36 = arith.constant 0 : index
    %c0_37 = arith.constant 0 : index
    %34 = vector.load %arg4[%c2_34, %c0_35, %c0_36, %c0_37] : memref<3x3x4x4xbf16, #tpu.memory_space<vmem>>, vector<1x1x4x4xbf16>
    %35 = vector.shape_cast %34 : vector<1x1x4x4xbf16> to vector<4x4xbf16>
    %cst_38 = arith.constant dense<0.000000e+00> : vector<64x4xf32>
    %36 = tpu.matmul %9, %35, %cst_38 {dimension_numbers = #tpu.dot_dimension_numbers<[1], [0], [0], [1], [0, 0, 1, 1], [], []>} : vector<64x4xbf16>, vector<4x4xbf16>, vector<64x4xf32> -> vector<64x4xf32>
    %37 = arith.addf %33, %36 : vector<64x4xf32>
    %c0_39 = arith.constant 0 : index
    %c2_40 = arith.constant 2 : index
    %c0_41 = arith.constant 0 : index
    %c0_42 = arith.constant 0 : index
    %38 = vector.load %arg4[%c0_39, %c2_40, %c0_41, %c0_42] : memref<3x3x4x4xbf16, #tpu.memory_space<vmem>>, vector<1x1x4x4xbf16>
    %39 = vector.shape_cast %38 : vector<1x1x4x4xbf16> to vector<4x4xbf16>
    %cst_43 = arith.constant dense<0.000000e+00> : vector<64x4xf32>
    %40 = tpu.matmul %11, %39, %cst_43 {dimension_numbers = #tpu.dot_dimension_numbers<[1], [0], [0], [1], [0, 0, 1, 1], [], []>} : vector<64x4xbf16>, vector<4x4xbf16>, vector<64x4xf32> -> vector<64x4xf32>
    %41 = arith.addf %37, %40 : vector<64x4xf32>
    %c0_44 = arith.constant 0 : index
    %c0_45 = arith.constant 0 : index
    %c0_46 = arith.constant 0 : index
    %c0_47 = arith.constant 0 : index
    %42 = vector.load %arg4[%c0_44, %c0_45, %c0_46, %c0_47] : memref<3x3x4x4xbf16, #tpu.memory_space<vmem>>, vector<1x1x4x4xbf16>
    %43 = vector.shape_cast %42 : vector<1x1x4x4xbf16> to vector<4x4xbf16>
    %cst_48 = arith.constant dense<0.000000e+00> : vector<64x4xf32>
    %44 = tpu.matmul %13, %43, %cst_48 {dimension_numbers = #tpu.dot_dimension_numbers<[1], [0], [0], [1], [0, 0, 1, 1], [], []>} : vector<64x4xbf16>, vector<4x4xbf16>, vector<64x4xf32> -> vector<64x4xf32>
    %45 = arith.addf %41, %44 : vector<64x4xf32>
    %cst_49 = arith.constant dense<0.000000e+00> : vector<4xf32>
    %46 = vector.multi_reduction <add>, %16, %cst_49 [0] : vector<64x4xf32> to vector<4xf32>
    %cst_50 = arith.constant dense<0.000000e+00> : vector<4xf32>
    %47 = vector.multi_reduction <add>, %23, %cst_50 [0] : vector<64x4xf32> to vector<4xf32>
    %48 = arith.addf %46, %47 : vector<4xf32>
    %cst_51 = arith.constant dense<0.000000e+00> : vector<4xf32>
    %49 = vector.multi_reduction <add>, %30, %cst_51 [0] : vector<64x4xf32> to vector<4xf32>
    %50 = arith.addf %48, %49 : vector<4xf32>
    %cst_52 = arith.constant dense<0.000000e+00> : vector<4xf32>
    %51 = vector.multi_reduction <add>, %45, %cst_52 [0] : vector<64x4xf32> to vector<4xf32>
    %52 = arith.addf %50, %51 : vector<4xf32>
    %53 = arith.mulf %16, %16 : vector<64x4xf32>
    %cst_53 = arith.constant dense<0.000000e+00> : vector<4xf32>
    %54 = vector.multi_reduction <add>, %53, %cst_53 [0] : vector<64x4xf32> to vector<4xf32>
    %55 = arith.mulf %23, %23 : vector<64x4xf32>
    %cst_54 = arith.constant dense<0.000000e+00> : vector<4xf32>
    %56 = vector.multi_reduction <add>, %55, %cst_54 [0] : vector<64x4xf32> to vector<4xf32>
    %57 = arith.addf %54, %56 : vector<4xf32>
    %58 = arith.mulf %30, %30 : vector<64x4xf32>
    %cst_55 = arith.constant dense<0.000000e+00> : vector<4xf32>
    %59 = vector.multi_reduction <add>, %58, %cst_55 [0] : vector<64x4xf32> to vector<4xf32>
    %60 = arith.addf %57, %59 : vector<4xf32>
    %61 = arith.mulf %45, %45 : vector<64x4xf32>
    %cst_56 = arith.constant dense<0.000000e+00> : vector<4xf32>
    %62 = vector.multi_reduction <add>, %61, %cst_56 [0] : vector<64x4xf32> to vector<4xf32>
    %63 = arith.addf %60, %62 : vector<4xf32>
    %64 = vector.shape_cast %52 : vector<4xf32> to vector<1x1x1x4xf32>
    %c0_57 = arith.constant 0 : index
    %c0_58 = arith.constant 0 : index
    %c0_59 = arith.constant 0 : index
    %c0_60 = arith.constant 0 : index
    %65 = vector.load %arg6[%c0_57, %c0_58, %c0_59, %c0_60] : memref<1x1x1x4xf32, #tpu.memory_space<vmem>>, vector<1x1x1x4xf32>
    tpu.vector_store %arg6[%c0_57, %c0_58, %c0_59, %c0_60], %64 {strides = array<i32>} : memref<1x1x1x4xf32, #tpu.memory_space<vmem>>, vector<1x1x1x4xf32>,
    %66 = vector.shape_cast %63 : vector<4xf32> to vector<1x1x1x4xf32>
    %c0_61 = arith.constant 0 : index
    %c0_62 = arith.constant 0 : index
    %c0_63 = arith.constant 0 : index
    %c0_64 = arith.constant 0 : index
    %67 = vector.load %arg7[%c0_61, %c0_62, %c0_63, %c0_64] : memref<1x1x1x4xf32, #tpu.memory_space<vmem>>, vector<1x1x1x4xf32>
    tpu.vector_store %arg7[%c0_61, %c0_62, %c0_63, %c0_64], %66 {strides = array<i32>} : memref<1x1x1x4xf32, #tpu.memory_space<vmem>>, vector<1x1x1x4xf32>,
    %68 = vector.shape_cast %16 : vector<64x4xf32> to vector<8x8x4xf32>
    %69 = vector.shape_cast %30 : vector<64x4xf32> to vector<8x8x4xf32>
    %70 = vector.shape_cast %68 : vector<8x8x4xf32> to vector<8x1x8x4xf32>
    %71 = vector.shape_cast %69 : vector<8x8x4xf32> to vector<8x1x8x4xf32>
    %72 = tpu.concatenate %70, %71 in 1 : vector<8x1x8x4xf32>, vector<8x1x8x4xf32> -> vector<8x2x8x4xf32>
    %73 = vector.shape_cast %72 : vector<8x2x8x4xf32> to vector<16x8x4xf32>
    %74 = vector.shape_cast %23 : vector<64x4xf32> to vector<8x8x4xf32>
    %75 = vector.shape_cast %45 : vector<64x4xf32> to vector<8x8x4xf32>
    %76 = vector.shape_cast %74 : vector<8x8x4xf32> to vector<8x1x8x4xf32>
    %77 = vector.shape_cast %75 : vector<8x8x4xf32> to vector<8x1x8x4xf32>
    %78 = tpu.concatenate %76, %77 in 1 : vector<8x1x8x4xf32>, vector<8x1x8x4xf32> -> vector<8x2x8x4xf32>
    %79 = vector.shape_cast %78 : vector<8x2x8x4xf32> to vector<16x8x4xf32>
    %80 = vector.shape_cast %73 : vector<16x8x4xf32> to vector<16x1x8x4xf32>
    %81 = vector.shape_cast %79 : vector<16x8x4xf32> to vector<16x1x8x4xf32>
    %82 = tpu.concatenate %80, %81 in 1 : vector<16x1x8x4xf32>, vector<16x1x8x4xf32> -> vector<16x2x8x4xf32>
    %cst_65 = arith.constant 0.000000e+00 : bf16
    %83 = vector.broadcast %cst_65 : bf16 to vector<16x2x1x4xbf16>
    %c0_66 = arith.constant 0 : index
    %c0_67 = arith.constant 0 : index
    %c0_68 = arith.constant 0 : index
    %c0_69 = arith.constant 0 : index
    %c0_70 = arith.constant 0 : index
    %84 = vector.load %arg5[%c0_66, %c0_67, %c0_68, %c0_69, %c0_70] : memref<1x16x2x10x4xbf16, #tpu.memory_space<vmem>>, vector<1x16x2x1x4xbf16>
    %85 = vector.shape_cast %84 : vector<1x16x2x1x4xbf16> to vector<16x2x1x4xbf16>
    %86 = vector.shape_cast %83 : vector<16x2x1x4xbf16> to vector<1x16x2x1x4xbf16>
    tpu.vector_store %arg5[%c0_66, %c0_67, %c0_68, %c0_69, %c0_70], %86 {strides = array<i32>} : memref<1x16x2x10x4xbf16, #tpu.memory_space<vmem>>, vector<1x16x2x1x4xbf16>,
    %c0_71 = arith.constant 0 : index
    %c0_72 = arith.constant 0 : index
    %c0_73 = arith.constant 0 : index
    %c9 = arith.constant 9 : index
    %c0_74 = arith.constant 0 : index
    %87 = vector.load %arg5[%c0_71, %c0_72, %c0_73, %c9, %c0_74] : memref<1x16x2x10x4xbf16, #tpu.memory_space<vmem>>, vector<1x16x2x1x4xbf16>
    %88 = vector.shape_cast %87 : vector<1x16x2x1x4xbf16> to vector<16x2x1x4xbf16>
    %89 = vector.shape_cast %83 : vector<16x2x1x4xbf16> to vector<1x16x2x1x4xbf16>
    tpu.vector_store %arg5[%c0_71, %c0_72, %c0_73, %c9, %c0_74], %89 {strides = array<i32>} : memref<1x16x2x10x4xbf16, #tpu.memory_space<vmem>>, vector<1x16x2x1x4xbf16>,
    %90 = arith.truncf %82 : vector<16x2x8x4xf32> to vector<16x2x8x4xbf16>
    %c0_75 = arith.constant 0 : index
    %c0_76 = arith.constant 0 : index
    %c0_77 = arith.constant 0 : index
    %c1_78 = arith.constant 1 : index
    %c0_79 = arith.constant 0 : index
    %91 = vector.load %arg5[%c0_75, %c0_76, %c0_77, %c1_78, %c0_79] : memref<1x16x2x10x4xbf16, #tpu.memory_space<vmem>>, vector<1x16x2x8x4xbf16>
    %92 = vector.shape_cast %91 : vector<1x16x2x8x4xbf16> to vector<16x2x8x4xbf16>
    %93 = vector.shape_cast %90 : vector<16x2x8x4xbf16> to vector<1x16x2x8x4xbf16>
    tpu.vector_store %arg5[%c0_75, %c0_76, %c0_77, %c1_78, %c0_79], %93 {strides = array<i32>} : memref<1x16x2x10x4xbf16, #tpu.memory_space<vmem>>, vector<1x16x2x8x4xbf16>,
    return
  }
  func.func @transform_0(%arg0: i32, %arg1: i32) -> (i32, i32, i32, i32) {
    %c0_i32 = arith.constant 0 : i32
    %c0_i32_0 = arith.constant 0 : i32
    %c0_i32_1 = arith.constant 0 : i32
    return %arg0, %arg1, %c0_i32, %c0_i32_0 : i32, i32, i32, i32
  }
  func.func @transform_1(%arg0: i32, %arg1: i32) -> (i32, i32, i32, i32) {
    %c8_i32 = arith.constant 8 : i32
    %0 = arith.muli %arg1, %c8_i32 : i32
    %c8_i32_0 = arith.constant 8 : i32
    %1 = arith.addi %0, %c8_i32_0 : i32
    %c0_i32 = arith.constant 0 : i32
    %c0_i32_1 = arith.constant 0 : i32
    %c0_i32_2 = arith.constant 0 : i32
    return %arg0, %1, %c0_i32, %c0_i32_1 : i32, i32, i32, i32
  }
  func.func @transform_2(%arg0: i32, %arg1: i32) -> (i32, i32, i32, i32) {
    %c0_i32 = arith.constant 0 : i32
    %c0_i32_0 = arith.constant 0 : i32
    %c0_i32_1 = arith.constant 0 : i32
    %c0_i32_2 = arith.constant 0 : i32
    %c0_i32_3 = arith.constant 0 : i32
    return %c0_i32, %c0_i32_0, %c0_i32_1, %c0_i32_2 : i32, i32, i32, i32
  }
  func.func @transform_3(%arg0: i32, %arg1: i32) -> (i32, i32, i32, i32, i32) {
    %c0_i32 = arith.constant 0 : i32
    %c0_i32_0 = arith.constant 0 : i32
    %c0_i32_1 = arith.constant 0 : i32
    %c0_i32_2 = arith.constant 0 : i32
    return %arg0, %arg1, %c0_i32, %c0_i32_0, %c0_i32_1 : i32, i32, i32, i32, i32
  }
  func.func @transform_4(%arg0: i32, %arg1: i32) -> (i32, i32, i32, i32) {
    %c0_i32 = arith.constant 0 : i32
    %c0_i32_0 = arith.constant 0 : i32
    %c0_i32_1 = arith.constant 0 : i32
    return %arg0, %arg1, %c0_i32, %c0_i32_0 : i32, i32, i32, i32
  }
  func.func @transform_5(%arg0: i32, %arg1: i32) -> (i32, i32, i32, i32) {
    %c0_i32 = arith.constant 0 : i32
    %c0_i32_0 = arith.constant 0 : i32
    %c0_i32_1 = arith.constant 0 : i32
    return %arg0, %arg1, %c0_i32, %c0_i32_0 : i32, i32, i32, i32
  }
}

module attributes {stable_mosaic.version = 11 : i64} {
  func.func @_concat_conv_kernel(%arg0: i32, %arg1: i32, %arg2: memref<1x4xf32, #tpu.memory_space<vmem>>, %arg3: memref<1x4xf32, #tpu.memory_space<vmem>>, %arg4: memref<1x16x2x10x4xbf16, #tpu.memory_space<vmem>>, %arg5: memref<1x1x2x10x4xbf16, #tpu.memory_space<vmem>>, %arg6: memref<1x1x2x10x4xbf16, #tpu.memory_space<vmem>>, %arg7: memref<1x16x2x10x4xbf16, #tpu.memory_space<vmem>>, %arg8: memref<1x1x2x10x4xbf16, #tpu.memory_space<vmem>>, %arg9: memref<1x1x2x10x4xbf16, #tpu.memory_space<vmem>>, %arg10: memref<3x3x4x4xbf16, #tpu.memory_space<vmem>>, %arg11: memref<3x3x4x4xbf16, #tpu.memory_space<vmem>>, %arg12: memref<1x16x2x8x4xbf16, #tpu.memory_space<vmem>>, %arg13: memref<1x1x1x4xf32, #tpu.memory_space<vmem>>, %arg14: memref<1x1x1x4xf32, #tpu.memory_space<vmem>>) attributes {dimension_semantics = [#tpu.dimension_semantics<parallel>, #tpu.dimension_semantics<parallel>], iteration_bounds = array<i64: 2, 1>, scalar_prefetch = 0 : i64, scratch_operands = 0 : i64, tpu.core_type = #tpu.core_type<tc>, window_params = [{pipeline_mode = #tpu.pipeline_mode<synchronous>, transform_indices = @transform_0, window_bounds = array<i64: 1, 4>}, {pipeline_mode = #tpu.pipeline_mode<synchronous>, transform_indices = @transform_1, window_bounds = array<i64: 1, 4>}, {transform_indices = @transform_2, window_bounds = array<i64: 1, 16, 2, 10, 4>}, {transform_indices = @transform_3, window_bounds = array<i64: 1, 1, 2, 10, 4>}, {transform_indices = @transform_4, window_bounds = array<i64: 1, 1, 2, 10, 4>}, {transform_indices = @transform_5, window_bounds = array<i64: 1, 16, 2, 10, 4>}, {transform_indices = @transform_6, window_bounds = array<i64: 1, 1, 2, 10, 4>}, {transform_indices = @transform_7, window_bounds = array<i64: 1, 1, 2, 10, 4>}, {pipeline_mode = #tpu.pipeline_mode<synchronous>, transform_indices = @transform_8, window_bounds = array<i64: 3, 3, 4, 4>}, {pipeline_mode = #tpu.pipeline_mode<synchronous>, transform_indices = @transform_9, window_bounds = array<i64: 3, 3, 4, 4>}, {transform_indices = @transform_10, window_bounds = array<i64: 1, 16, 2, 8, 4>}, {transform_indices = @transform_11, window_bounds = array<i64: 1, 1, 1, 4>}, {transform_indices = @transform_12, window_bounds = array<i64: 1, 1, 1, 4>}]} {
    %c0_i32 = arith.constant 0 : i32
    %0 = arith.cmpi eq, %arg1, %c0_i32 : i32
    %cst = arith.constant 0.000000e+00 : f32
    %cst_0 = arith.constant 1.000000e+00 : f32
    %1 = arith.select %0, %cst, %cst_0 : f32
    %c0_i32_1 = arith.constant 0 : i32
    %2 = arith.cmpi eq, %arg1, %c0_i32_1 : i32
    %cst_2 = arith.constant 0.000000e+00 : f32
    %cst_3 = arith.constant 1.000000e+00 : f32
    %3 = arith.select %2, %cst_2, %cst_3 : f32
    %c0 = arith.constant 0 : index
    %c0_4 = arith.constant 0 : index
    %4 = vector.load %arg2[%c0, %c0_4] : memref<1x4xf32, #tpu.memory_space<vmem>>, vector<1x4xf32>
    %5 = vector.shape_cast %4 : vector<1x4xf32> to vector<4xf32>
    %c0_5 = arith.constant 0 : index
    %c0_6 = arith.constant 0 : index
    %6 = vector.load %arg3[%c0_5, %c0_6] : memref<1x4xf32, #tpu.memory_space<vmem>>, vector<1x4xf32>
    %7 = vector.shape_cast %6 : vector<1x4xf32> to vector<4xf32>
    %c0_7 = arith.constant 0 : index
    %c0_8 = arith.constant 0 : index
    %c0_9 = arith.constant 0 : index
    %c0_10 = arith.constant 0 : index
    %c0_11 = arith.constant 0 : index
    %8 = vector.load %arg5[%c0_7, %c0_8, %c0_9, %c0_10, %c0_11] : memref<1x1x2x10x4xbf16, #tpu.memory_space<vmem>>, vector<1x1x2x10x4xbf16>
    %9 = vector.shape_cast %8 : vector<1x1x2x10x4xbf16> to vector<1x2x10x4xbf16>
    %10 = arith.extf %9 : vector<1x2x10x4xbf16> to vector<1x2x10x4xf32>
    %11 = vector.shape_cast %5 : vector<4xf32> to vector<1x1x1x4xf32>
    %12 = vector.broadcast %11 : vector<1x1x1x4xf32> to vector<1x2x10x4xf32>
    %13 = arith.mulf %10, %12 : vector<1x2x10x4xf32>
    %14 = vector.shape_cast %7 : vector<4xf32> to vector<1x1x1x4xf32>
    %15 = vector.broadcast %14 : vector<1x1x1x4xf32> to vector<1x2x10x4xf32>
    %16 = arith.addf %13, %15 : vector<1x2x10x4xf32>
    %cst_12 = arith.constant 0.000000e+00 : f32
    %17 = vector.broadcast %cst_12 : f32 to vector<1x2x10x4xf32>
    %18 = arith.maximumf %16, %17 : vector<1x2x10x4xf32>
    %19 = vector.broadcast %1 : f32 to vector<1x2x10x4xf32>
    %20 = arith.mulf %18, %19 : vector<1x2x10x4xf32>
    %21 = arith.truncf %20 : vector<1x2x10x4xf32> to vector<1x2x10x4xbf16>
    %c0_13 = arith.constant 0 : index
    %c0_14 = arith.constant 0 : index
    %c0_15 = arith.constant 0 : index
    %c0_16 = arith.constant 0 : index
    %c0_17 = arith.constant 0 : index
    %22 = vector.load %arg4[%c0_13, %c0_14, %c0_15, %c0_16, %c0_17] : memref<1x16x2x10x4xbf16, #tpu.memory_space<vmem>>, vector<1x16x2x10x4xbf16>
    %23 = vector.shape_cast %22 : vector<1x16x2x10x4xbf16> to vector<16x2x10x4xbf16>
    %24 = arith.extf %23 : vector<16x2x10x4xbf16> to vector<16x2x10x4xf32>
    %25 = vector.shape_cast %5 : vector<4xf32> to vector<1x1x1x4xf32>
    %26 = vector.broadcast %25 : vector<1x1x1x4xf32> to vector<16x2x10x4xf32>
    %27 = arith.mulf %24, %26 : vector<16x2x10x4xf32>
    %28 = vector.shape_cast %7 : vector<4xf32> to vector<1x1x1x4xf32>
    %29 = vector.broadcast %28 : vector<1x1x1x4xf32> to vector<16x2x10x4xf32>
    %30 = arith.addf %27, %29 : vector<16x2x10x4xf32>
    %cst_18 = arith.constant 0.000000e+00 : f32
    %31 = vector.broadcast %cst_18 : f32 to vector<16x2x10x4xf32>
    %32 = arith.maximumf %30, %31 : vector<16x2x10x4xf32>
    %cst_19 = arith.constant 1.000000e+00 : f32
    %33 = vector.broadcast %cst_19 : f32 to vector<16x2x10x4xf32>
    %34 = arith.mulf %32, %33 : vector<16x2x10x4xf32>
    %35 = arith.truncf %34 : vector<16x2x10x4xf32> to vector<16x2x10x4xbf16>
    %c0_20 = arith.constant 0 : index
    %c0_21 = arith.constant 0 : index
    %c0_22 = arith.constant 0 : index
    %c0_23 = arith.constant 0 : index
    %c0_24 = arith.constant 0 : index
    %36 = vector.load %arg6[%c0_20, %c0_21, %c0_22, %c0_23, %c0_24] : memref<1x1x2x10x4xbf16, #tpu.memory_space<vmem>>, vector<1x1x2x10x4xbf16>
    %37 = vector.shape_cast %36 : vector<1x1x2x10x4xbf16> to vector<1x2x10x4xbf16>
    %38 = arith.extf %37 : vector<1x2x10x4xbf16> to vector<1x2x10x4xf32>
    %39 = vector.shape_cast %5 : vector<4xf32> to vector<1x1x1x4xf32>
    %40 = vector.broadcast %39 : vector<1x1x1x4xf32> to vector<1x2x10x4xf32>
    %41 = arith.mulf %38, %40 : vector<1x2x10x4xf32>
    %42 = vector.shape_cast %7 : vector<4xf32> to vector<1x1x1x4xf32>
    %43 = vector.broadcast %42 : vector<1x1x1x4xf32> to vector<1x2x10x4xf32>
    %44 = arith.addf %41, %43 : vector<1x2x10x4xf32>
    %cst_25 = arith.constant 0.000000e+00 : f32
    %45 = vector.broadcast %cst_25 : f32 to vector<1x2x10x4xf32>
    %46 = arith.maximumf %44, %45 : vector<1x2x10x4xf32>
    %47 = vector.broadcast %3 : f32 to vector<1x2x10x4xf32>
    %48 = arith.mulf %46, %47 : vector<1x2x10x4xf32>
    %49 = arith.truncf %48 : vector<1x2x10x4xf32> to vector<1x2x10x4xbf16>
    %50 = tpu.concatenate %21, %35, %49 in 0 : vector<1x2x10x4xbf16>, vector<16x2x10x4xbf16>, vector<1x2x10x4xbf16> -> vector<18x2x10x4xbf16>
    %51 = tpu.iota {dimensions = array<i32: 2>} : vector<18x2x10x4xi32>
    %c1_i32 = arith.constant 1 : i32
    %52 = vector.broadcast %c1_i32 : i32 to vector<18x2x10x4xi32>
    %53 = arith.cmpi sge, %51, %52 : vector<18x2x10x4xi32>
    %c8_i32 = arith.constant 8 : i32
    %54 = vector.broadcast %c8_i32 : i32 to vector<18x2x10x4xi32>
    %55 = arith.cmpi sle, %51, %54 : vector<18x2x10x4xi32>
    %56 = arith.andi %53, %55 : vector<18x2x10x4xi1>
    %cst_26 = arith.constant 0.000000e+00 : bf16
    %57 = vector.broadcast %cst_26 : bf16 to vector<18x2x10x4xbf16>
    %58 = arith.select %56, %50, %57 : vector<18x2x10x4xi1>, vector<18x2x10x4xbf16>
    %c0_27 = arith.constant 0 : index
    %c0_28 = arith.constant 0 : index
    %c0_29 = arith.constant 0 : index
    %c0_30 = arith.constant 0 : index
    %c0_31 = arith.constant 0 : index
    %59 = vector.load %arg8[%c0_27, %c0_28, %c0_29, %c0_30, %c0_31] : memref<1x1x2x10x4xbf16, #tpu.memory_space<vmem>>, vector<1x1x2x10x4xbf16>
    %60 = vector.shape_cast %59 : vector<1x1x2x10x4xbf16> to vector<1x2x10x4xbf16>
    %61 = arith.truncf %1 : f32 to bf16
    %62 = vector.broadcast %61 : bf16 to vector<1x2x10x4xbf16>
    %63 = arith.mulf %60, %62 : vector<1x2x10x4xbf16>
    %c0_32 = arith.constant 0 : index
    %c0_33 = arith.constant 0 : index
    %c0_34 = arith.constant 0 : index
    %c0_35 = arith.constant 0 : index
    %c0_36 = arith.constant 0 : index
    %64 = vector.load %arg7[%c0_32, %c0_33, %c0_34, %c0_35, %c0_36] : memref<1x16x2x10x4xbf16, #tpu.memory_space<vmem>>, vector<1x16x2x10x4xbf16>
    %65 = vector.shape_cast %64 : vector<1x16x2x10x4xbf16> to vector<16x2x10x4xbf16>
    %c0_37 = arith.constant 0 : index
    %c0_38 = arith.constant 0 : index
    %c0_39 = arith.constant 0 : index
    %c0_40 = arith.constant 0 : index
    %c0_41 = arith.constant 0 : index
    %66 = vector.load %arg9[%c0_37, %c0_38, %c0_39, %c0_40, %c0_41] : memref<1x1x2x10x4xbf16, #tpu.memory_space<vmem>>, vector<1x1x2x10x4xbf16>
    %67 = vector.shape_cast %66 : vector<1x1x2x10x4xbf16> to vector<1x2x10x4xbf16>
    %68 = arith.truncf %3 : f32 to bf16
    %69 = vector.broadcast %68 : bf16 to vector<1x2x10x4xbf16>
    %70 = arith.mulf %67, %69 : vector<1x2x10x4xbf16>
    %71 = tpu.concatenate %63, %65, %70 in 0 : vector<1x2x10x4xbf16>, vector<16x2x10x4xbf16>, vector<1x2x10x4xbf16> -> vector<18x2x10x4xbf16>
    %72 = vector.extract_strided_slice %58 {offsets = [0, 0, 0, 0], sizes = [18, 1, 10, 4], strides = [1, 1, 1, 1]} : vector<18x2x10x4xbf16> to vector<18x1x10x4xbf16>
    %73 = vector.shape_cast %72 : vector<18x1x10x4xbf16> to vector<18x10x4xbf16>
    %74 = vector.extract_strided_slice %58 {offsets = [0, 1, 0, 0], sizes = [18, 1, 10, 4], strides = [1, 1, 1, 1]} : vector<18x2x10x4xbf16> to vector<18x1x10x4xbf16>
    %75 = vector.shape_cast %74 : vector<18x1x10x4xbf16> to vector<18x10x4xbf16>
    %76 = vector.extract_strided_slice %75 {offsets = [0, 0, 0], sizes = [18, 8, 4], strides = [1, 1, 1]} : vector<18x10x4xbf16> to vector<18x8x4xbf16>
    %77 = vector.extract_strided_slice %73 {offsets = [0, 1, 0], sizes = [18, 8, 4], strides = [1, 1, 1]} : vector<18x10x4xbf16> to vector<18x8x4xbf16>
    %78 = vector.shape_cast %76 : vector<18x8x4xbf16> to vector<18x1x8x4xbf16>
    %79 = vector.shape_cast %77 : vector<18x8x4xbf16> to vector<18x1x8x4xbf16>
    %80 = tpu.concatenate %78, %79 in 1 : vector<18x1x8x4xbf16>, vector<18x1x8x4xbf16> -> vector<18x2x8x4xbf16>
    %81 = vector.extract_strided_slice %73 {offsets = [0, 1, 0], sizes = [18, 8, 4], strides = [1, 1, 1]} : vector<18x10x4xbf16> to vector<18x8x4xbf16>
    %82 = vector.extract_strided_slice %75 {offsets = [0, 1, 0], sizes = [18, 8, 4], strides = [1, 1, 1]} : vector<18x10x4xbf16> to vector<18x8x4xbf16>
    %83 = vector.shape_cast %81 : vector<18x8x4xbf16> to vector<18x1x8x4xbf16>
    %84 = vector.shape_cast %82 : vector<18x8x4xbf16> to vector<18x1x8x4xbf16>
    %85 = tpu.concatenate %83, %84 in 1 : vector<18x1x8x4xbf16>, vector<18x1x8x4xbf16> -> vector<18x2x8x4xbf16>
    %86 = vector.extract_strided_slice %75 {offsets = [0, 1, 0], sizes = [18, 8, 4], strides = [1, 1, 1]} : vector<18x10x4xbf16> to vector<18x8x4xbf16>
    %87 = vector.extract_strided_slice %73 {offsets = [0, 2, 0], sizes = [18, 8, 4], strides = [1, 1, 1]} : vector<18x10x4xbf16> to vector<18x8x4xbf16>
    %88 = vector.shape_cast %86 : vector<18x8x4xbf16> to vector<18x1x8x4xbf16>
    %89 = vector.shape_cast %87 : vector<18x8x4xbf16> to vector<18x1x8x4xbf16>
    %90 = tpu.concatenate %88, %89 in 1 : vector<18x1x8x4xbf16>, vector<18x1x8x4xbf16> -> vector<18x2x8x4xbf16>
    %91 = vector.extract_strided_slice %71 {offsets = [0, 0, 0, 0], sizes = [18, 1, 10, 4], strides = [1, 1, 1, 1]} : vector<18x2x10x4xbf16> to vector<18x1x10x4xbf16>
    %92 = vector.shape_cast %91 : vector<18x1x10x4xbf16> to vector<18x10x4xbf16>
    %93 = vector.extract_strided_slice %71 {offsets = [0, 1, 0, 0], sizes = [18, 1, 10, 4], strides = [1, 1, 1, 1]} : vector<18x2x10x4xbf16> to vector<18x1x10x4xbf16>
    %94 = vector.shape_cast %93 : vector<18x1x10x4xbf16> to vector<18x10x4xbf16>
    %95 = vector.extract_strided_slice %94 {offsets = [0, 0, 0], sizes = [18, 8, 4], strides = [1, 1, 1]} : vector<18x10x4xbf16> to vector<18x8x4xbf16>
    %96 = vector.extract_strided_slice %92 {offsets = [0, 1, 0], sizes = [18, 8, 4], strides = [1, 1, 1]} : vector<18x10x4xbf16> to vector<18x8x4xbf16>
    %97 = vector.shape_cast %95 : vector<18x8x4xbf16> to vector<18x1x8x4xbf16>
    %98 = vector.shape_cast %96 : vector<18x8x4xbf16> to vector<18x1x8x4xbf16>
    %99 = tpu.concatenate %97, %98 in 1 : vector<18x1x8x4xbf16>, vector<18x1x8x4xbf16> -> vector<18x2x8x4xbf16>
    %100 = vector.extract_strided_slice %92 {offsets = [0, 1, 0], sizes = [18, 8, 4], strides = [1, 1, 1]} : vector<18x10x4xbf16> to vector<18x8x4xbf16>
    %101 = vector.extract_strided_slice %94 {offsets = [0, 1, 0], sizes = [18, 8, 4], strides = [1, 1, 1]} : vector<18x10x4xbf16> to vector<18x8x4xbf16>
    %102 = vector.shape_cast %100 : vector<18x8x4xbf16> to vector<18x1x8x4xbf16>
    %103 = vector.shape_cast %101 : vector<18x8x4xbf16> to vector<18x1x8x4xbf16>
    %104 = tpu.concatenate %102, %103 in 1 : vector<18x1x8x4xbf16>, vector<18x1x8x4xbf16> -> vector<18x2x8x4xbf16>
    %105 = vector.extract_strided_slice %94 {offsets = [0, 1, 0], sizes = [18, 8, 4], strides = [1, 1, 1]} : vector<18x10x4xbf16> to vector<18x8x4xbf16>
    %106 = vector.extract_strided_slice %92 {offsets = [0, 2, 0], sizes = [18, 8, 4], strides = [1, 1, 1]} : vector<18x10x4xbf16> to vector<18x8x4xbf16>
    %107 = vector.shape_cast %105 : vector<18x8x4xbf16> to vector<18x1x8x4xbf16>
    %108 = vector.shape_cast %106 : vector<18x8x4xbf16> to vector<18x1x8x4xbf16>
    %109 = tpu.concatenate %107, %108 in 1 : vector<18x1x8x4xbf16>, vector<18x1x8x4xbf16> -> vector<18x2x8x4xbf16>
    %cst_42 = arith.constant 0.000000e+00 : f32
    %110 = vector.broadcast %cst_42 : f32 to vector<256x4xf32>
    %111 = vector.extract_strided_slice %80 {offsets = [0, 0, 0, 0], sizes = [16, 2, 8, 4], strides = [1, 1, 1, 1]} : vector<18x2x8x4xbf16> to vector<16x2x8x4xbf16>
    %112 = vector.shape_cast %111 : vector<16x2x8x4xbf16> to vector<256x4xbf16>
    %113 = vector.extract_strided_slice %99 {offsets = [0, 0, 0, 0], sizes = [16, 2, 8, 4], strides = [1, 1, 1, 1]} : vector<18x2x8x4xbf16> to vector<16x2x8x4xbf16>
    %114 = vector.shape_cast %113 : vector<16x2x8x4xbf16> to vector<256x4xbf16>
    %c0_43 = arith.constant 0 : index
    %c0_44 = arith.constant 0 : index
    %c0_45 = arith.constant 0 : index
    %c0_46 = arith.constant 0 : index
    %115 = vector.load %arg10[%c0_43, %c0_44, %c0_45, %c0_46] : memref<3x3x4x4xbf16, #tpu.memory_space<vmem>>, vector<1x1x4x4xbf16>
    %116 = vector.shape_cast %115 : vector<1x1x4x4xbf16> to vector<4x4xbf16>
    %cst_47 = arith.constant dense<0.000000e+00> : vector<256x4xf32>
    %117 = tpu.matmul %112, %116, %cst_47 {dimension_numbers = #tpu.dot_dimension_numbers<[1], [0], [0], [1], [0, 0, 1, 1], [], []>} : vector<256x4xbf16>, vector<4x4xbf16>, vector<256x4xf32> -> vector<256x4xf32>
    %118 = arith.addf %110, %117 : vector<256x4xf32>
    %c0_48 = arith.constant 0 : index
    %c0_49 = arith.constant 0 : index
    %c0_50 = arith.constant 0 : index
    %c0_51 = arith.constant 0 : index
    %119 = vector.load %arg11[%c0_48, %c0_49, %c0_50, %c0_51] : memref<3x3x4x4xbf16, #tpu.memory_space<vmem>>, vector<1x1x4x4xbf16>
    %120 = vector.shape_cast %119 : vector<1x1x4x4xbf16> to vector<4x4xbf16>
    %cst_52 = arith.constant dense<0.000000e+00> : vector<256x4xf32>
    %121 = tpu.matmul %114, %120, %cst_52 {dimension_numbers = #tpu.dot_dimension_numbers<[1], [0], [0], [1], [0, 0, 1, 1], [], []>} : vector<256x4xbf16>, vector<4x4xbf16>, vector<256x4xf32> -> vector<256x4xf32>
    %122 = arith.addf %118, %121 : vector<256x4xf32>
    %123 = vector.extract_strided_slice %85 {offsets = [0, 0, 0, 0], sizes = [16, 2, 8, 4], strides = [1, 1, 1, 1]} : vector<18x2x8x4xbf16> to vector<16x2x8x4xbf16>
    %124 = vector.shape_cast %123 : vector<16x2x8x4xbf16> to vector<256x4xbf16>
    %125 = vector.extract_strided_slice %104 {offsets = [0, 0, 0, 0], sizes = [16, 2, 8, 4], strides = [1, 1, 1, 1]} : vector<18x2x8x4xbf16> to vector<16x2x8x4xbf16>
    %126 = vector.shape_cast %125 : vector<16x2x8x4xbf16> to vector<256x4xbf16>
    %c0_53 = arith.constant 0 : index
    %c1 = arith.constant 1 : index
    %c0_54 = arith.constant 0 : index
    %c0_55 = arith.constant 0 : index
    %127 = vector.load %arg10[%c0_53, %c1, %c0_54, %c0_55] : memref<3x3x4x4xbf16, #tpu.memory_space<vmem>>, vector<1x1x4x4xbf16>
    %128 = vector.shape_cast %127 : vector<1x1x4x4xbf16> to vector<4x4xbf16>
    %cst_56 = arith.constant dense<0.000000e+00> : vector<256x4xf32>
    %129 = tpu.matmul %124, %128, %cst_56 {dimension_numbers = #tpu.dot_dimension_numbers<[1], [0], [0], [1], [0, 0, 1, 1], [], []>} : vector<256x4xbf16>, vector<4x4xbf16>, vector<256x4xf32> -> vector<256x4xf32>
    %130 = arith.addf %122, %129 : vector<256x4xf32>
    %c0_57 = arith.constant 0 : index
    %c1_58 = arith.constant 1 : index
    %c0_59 = arith.constant 0 : index
    %c0_60 = arith.constant 0 : index
    %131 = vector.load %arg11[%c0_57, %c1_58, %c0_59, %c0_60] : memref<3x3x4x4xbf16, #tpu.memory_space<vmem>>, vector<1x1x4x4xbf16>
    %132 = vector.shape_cast %131 : vector<1x1x4x4xbf16> to vector<4x4xbf16>
    %cst_61 = arith.constant dense<0.000000e+00> : vector<256x4xf32>
    %133 = tpu.matmul %126, %132, %cst_61 {dimension_numbers = #tpu.dot_dimension_numbers<[1], [0], [0], [1], [0, 0, 1, 1], [], []>} : vector<256x4xbf16>, vector<4x4xbf16>, vector<256x4xf32> -> vector<256x4xf32>
    %134 = arith.addf %130, %133 : vector<256x4xf32>
    %135 = vector.extract_strided_slice %90 {offsets = [0, 0, 0, 0], sizes = [16, 2, 8, 4], strides = [1, 1, 1, 1]} : vector<18x2x8x4xbf16> to vector<16x2x8x4xbf16>
    %136 = vector.shape_cast %135 : vector<16x2x8x4xbf16> to vector<256x4xbf16>
    %137 = vector.extract_strided_slice %109 {offsets = [0, 0, 0, 0], sizes = [16, 2, 8, 4], strides = [1, 1, 1, 1]} : vector<18x2x8x4xbf16> to vector<16x2x8x4xbf16>
    %138 = vector.shape_cast %137 : vector<16x2x8x4xbf16> to vector<256x4xbf16>
    %c0_62 = arith.constant 0 : index
    %c2 = arith.constant 2 : index
    %c0_63 = arith.constant 0 : index
    %c0_64 = arith.constant 0 : index
    %139 = vector.load %arg10[%c0_62, %c2, %c0_63, %c0_64] : memref<3x3x4x4xbf16, #tpu.memory_space<vmem>>, vector<1x1x4x4xbf16>
    %140 = vector.shape_cast %139 : vector<1x1x4x4xbf16> to vector<4x4xbf16>
    %cst_65 = arith.constant dense<0.000000e+00> : vector<256x4xf32>
    %141 = tpu.matmul %136, %140, %cst_65 {dimension_numbers = #tpu.dot_dimension_numbers<[1], [0], [0], [1], [0, 0, 1, 1], [], []>} : vector<256x4xbf16>, vector<4x4xbf16>, vector<256x4xf32> -> vector<256x4xf32>
    %142 = arith.addf %134, %141 : vector<256x4xf32>
    %c0_66 = arith.constant 0 : index
    %c2_67 = arith.constant 2 : index
    %c0_68 = arith.constant 0 : index
    %c0_69 = arith.constant 0 : index
    %143 = vector.load %arg11[%c0_66, %c2_67, %c0_68, %c0_69] : memref<3x3x4x4xbf16, #tpu.memory_space<vmem>>, vector<1x1x4x4xbf16>
    %144 = vector.shape_cast %143 : vector<1x1x4x4xbf16> to vector<4x4xbf16>
    %cst_70 = arith.constant dense<0.000000e+00> : vector<256x4xf32>
    %145 = tpu.matmul %138, %144, %cst_70 {dimension_numbers = #tpu.dot_dimension_numbers<[1], [0], [0], [1], [0, 0, 1, 1], [], []>} : vector<256x4xbf16>, vector<4x4xbf16>, vector<256x4xf32> -> vector<256x4xf32>
    %146 = arith.addf %142, %145 : vector<256x4xf32>
    %147 = vector.extract_strided_slice %80 {offsets = [1, 0, 0, 0], sizes = [16, 2, 8, 4], strides = [1, 1, 1, 1]} : vector<18x2x8x4xbf16> to vector<16x2x8x4xbf16>
    %148 = vector.shape_cast %147 : vector<16x2x8x4xbf16> to vector<256x4xbf16>
    %149 = vector.extract_strided_slice %99 {offsets = [1, 0, 0, 0], sizes = [16, 2, 8, 4], strides = [1, 1, 1, 1]} : vector<18x2x8x4xbf16> to vector<16x2x8x4xbf16>
    %150 = vector.shape_cast %149 : vector<16x2x8x4xbf16> to vector<256x4xbf16>
    %c1_71 = arith.constant 1 : index
    %c0_72 = arith.constant 0 : index
    %c0_73 = arith.constant 0 : index
    %c0_74 = arith.constant 0 : index
    %151 = vector.load %arg10[%c1_71, %c0_72, %c0_73, %c0_74] : memref<3x3x4x4xbf16, #tpu.memory_space<vmem>>, vector<1x1x4x4xbf16>
    %152 = vector.shape_cast %151 : vector<1x1x4x4xbf16> to vector<4x4xbf16>
    %cst_75 = arith.constant dense<0.000000e+00> : vector<256x4xf32>
    %153 = tpu.matmul %148, %152, %cst_75 {dimension_numbers = #tpu.dot_dimension_numbers<[1], [0], [0], [1], [0, 0, 1, 1], [], []>} : vector<256x4xbf16>, vector<4x4xbf16>, vector<256x4xf32> -> vector<256x4xf32>
    %154 = arith.addf %146, %153 : vector<256x4xf32>
    %c1_76 = arith.constant 1 : index
    %c0_77 = arith.constant 0 : index
    %c0_78 = arith.constant 0 : index
    %c0_79 = arith.constant 0 : index
    %155 = vector.load %arg11[%c1_76, %c0_77, %c0_78, %c0_79] : memref<3x3x4x4xbf16, #tpu.memory_space<vmem>>, vector<1x1x4x4xbf16>
    %156 = vector.shape_cast %155 : vector<1x1x4x4xbf16> to vector<4x4xbf16>
    %cst_80 = arith.constant dense<0.000000e+00> : vector<256x4xf32>
    %157 = tpu.matmul %150, %156, %cst_80 {dimension_numbers = #tpu.dot_dimension_numbers<[1], [0], [0], [1], [0, 0, 1, 1], [], []>} : vector<256x4xbf16>, vector<4x4xbf16>, vector<256x4xf32> -> vector<256x4xf32>
    %158 = arith.addf %154, %157 : vector<256x4xf32>
    %159 = vector.extract_strided_slice %85 {offsets = [1, 0, 0, 0], sizes = [16, 2, 8, 4], strides = [1, 1, 1, 1]} : vector<18x2x8x4xbf16> to vector<16x2x8x4xbf16>
    %160 = vector.shape_cast %159 : vector<16x2x8x4xbf16> to vector<256x4xbf16>
    %161 = vector.extract_strided_slice %104 {offsets = [1, 0, 0, 0], sizes = [16, 2, 8, 4], strides = [1, 1, 1, 1]} : vector<18x2x8x4xbf16> to vector<16x2x8x4xbf16>
    %162 = vector.shape_cast %161 : vector<16x2x8x4xbf16> to vector<256x4xbf16>
    %c1_81 = arith.constant 1 : index
    %c1_82 = arith.constant 1 : index
    %c0_83 = arith.constant 0 : index
    %c0_84 = arith.constant 0 : index
    %163 = vector.load %arg10[%c1_81, %c1_82, %c0_83, %c0_84] : memref<3x3x4x4xbf16, #tpu.memory_space<vmem>>, vector<1x1x4x4xbf16>
    %164 = vector.shape_cast %163 : vector<1x1x4x4xbf16> to vector<4x4xbf16>
    %cst_85 = arith.constant dense<0.000000e+00> : vector<256x4xf32>
    %165 = tpu.matmul %160, %164, %cst_85 {dimension_numbers = #tpu.dot_dimension_numbers<[1], [0], [0], [1], [0, 0, 1, 1], [], []>} : vector<256x4xbf16>, vector<4x4xbf16>, vector<256x4xf32> -> vector<256x4xf32>
    %166 = arith.addf %158, %165 : vector<256x4xf32>
    %c1_86 = arith.constant 1 : index
    %c1_87 = arith.constant 1 : index
    %c0_88 = arith.constant 0 : index
    %c0_89 = arith.constant 0 : index
    %167 = vector.load %arg11[%c1_86, %c1_87, %c0_88, %c0_89] : memref<3x3x4x4xbf16, #tpu.memory_space<vmem>>, vector<1x1x4x4xbf16>
    %168 = vector.shape_cast %167 : vector<1x1x4x4xbf16> to vector<4x4xbf16>
    %cst_90 = arith.constant dense<0.000000e+00> : vector<256x4xf32>
    %169 = tpu.matmul %162, %168, %cst_90 {dimension_numbers = #tpu.dot_dimension_numbers<[1], [0], [0], [1], [0, 0, 1, 1], [], []>} : vector<256x4xbf16>, vector<4x4xbf16>, vector<256x4xf32> -> vector<256x4xf32>
    %170 = arith.addf %166, %169 : vector<256x4xf32>
    %171 = vector.extract_strided_slice %90 {offsets = [1, 0, 0, 0], sizes = [16, 2, 8, 4], strides = [1, 1, 1, 1]} : vector<18x2x8x4xbf16> to vector<16x2x8x4xbf16>
    %172 = vector.shape_cast %171 : vector<16x2x8x4xbf16> to vector<256x4xbf16>
    %173 = vector.extract_strided_slice %109 {offsets = [1, 0, 0, 0], sizes = [16, 2, 8, 4], strides = [1, 1, 1, 1]} : vector<18x2x8x4xbf16> to vector<16x2x8x4xbf16>
    %174 = vector.shape_cast %173 : vector<16x2x8x4xbf16> to vector<256x4xbf16>
    %c1_91 = arith.constant 1 : index
    %c2_92 = arith.constant 2 : index
    %c0_93 = arith.constant 0 : index
    %c0_94 = arith.constant 0 : index
    %175 = vector.load %arg10[%c1_91, %c2_92, %c0_93, %c0_94] : memref<3x3x4x4xbf16, #tpu.memory_space<vmem>>, vector<1x1x4x4xbf16>
    %176 = vector.shape_cast %175 : vector<1x1x4x4xbf16> to vector<4x4xbf16>
    %cst_95 = arith.constant dense<0.000000e+00> : vector<256x4xf32>
    %177 = tpu.matmul %172, %176, %cst_95 {dimension_numbers = #tpu.dot_dimension_numbers<[1], [0], [0], [1], [0, 0, 1, 1], [], []>} : vector<256x4xbf16>, vector<4x4xbf16>, vector<256x4xf32> -> vector<256x4xf32>
    %178 = arith.addf %170, %177 : vector<256x4xf32>
    %c1_96 = arith.constant 1 : index
    %c2_97 = arith.constant 2 : index
    %c0_98 = arith.constant 0 : index
    %c0_99 = arith.constant 0 : index
    %179 = vector.load %arg11[%c1_96, %c2_97, %c0_98, %c0_99] : memref<3x3x4x4xbf16, #tpu.memory_space<vmem>>, vector<1x1x4x4xbf16>
    %180 = vector.shape_cast %179 : vector<1x1x4x4xbf16> to vector<4x4xbf16>
    %cst_100 = arith.constant dense<0.000000e+00> : vector<256x4xf32>
    %181 = tpu.matmul %174, %180, %cst_100 {dimension_numbers = #tpu.dot_dimension_numbers<[1], [0], [0], [1], [0, 0, 1, 1], [], []>} : vector<256x4xbf16>, vector<4x4xbf16>, vector<256x4xf32> -> vector<256x4xf32>
    %182 = arith.addf %178, %181 : vector<256x4xf32>
    %183 = vector.extract_strided_slice %80 {offsets = [2, 0, 0, 0], sizes = [16, 2, 8, 4], strides = [1, 1, 1, 1]} : vector<18x2x8x4xbf16> to vector<16x2x8x4xbf16>
    %184 = vector.shape_cast %183 : vector<16x2x8x4xbf16> to vector<256x4xbf16>
    %185 = vector.extract_strided_slice %99 {offsets = [2, 0, 0, 0], sizes = [16, 2, 8, 4], strides = [1, 1, 1, 1]} : vector<18x2x8x4xbf16> to vector<16x2x8x4xbf16>
    %186 = vector.shape_cast %185 : vector<16x2x8x4xbf16> to vector<256x4xbf16>
    %c2_101 = arith.constant 2 : index
    %c0_102 = arith.constant 0 : index
    %c0_103 = arith.constant 0 : index
    %c0_104 = arith.constant 0 : index
    %187 = vector.load %arg10[%c2_101, %c0_102, %c0_103, %c0_104] : memref<3x3x4x4xbf16, #tpu.memory_space<vmem>>, vector<1x1x4x4xbf16>
    %188 = vector.shape_cast %187 : vector<1x1x4x4xbf16> to vector<4x4xbf16>
    %cst_105 = arith.constant dense<0.000000e+00> : vector<256x4xf32>
    %189 = tpu.matmul %184, %188, %cst_105 {dimension_numbers = #tpu.dot_dimension_numbers<[1], [0], [0], [1], [0, 0, 1, 1], [], []>} : vector<256x4xbf16>, vector<4x4xbf16>, vector<256x4xf32> -> vector<256x4xf32>
    %190 = arith.addf %182, %189 : vector<256x4xf32>
    %c2_106 = arith.constant 2 : index
    %c0_107 = arith.constant 0 : index
    %c0_108 = arith.constant 0 : index
    %c0_109 = arith.constant 0 : index
    %191 = vector.load %arg11[%c2_106, %c0_107, %c0_108, %c0_109] : memref<3x3x4x4xbf16, #tpu.memory_space<vmem>>, vector<1x1x4x4xbf16>
    %192 = vector.shape_cast %191 : vector<1x1x4x4xbf16> to vector<4x4xbf16>
    %cst_110 = arith.constant dense<0.000000e+00> : vector<256x4xf32>
    %193 = tpu.matmul %186, %192, %cst_110 {dimension_numbers = #tpu.dot_dimension_numbers<[1], [0], [0], [1], [0, 0, 1, 1], [], []>} : vector<256x4xbf16>, vector<4x4xbf16>, vector<256x4xf32> -> vector<256x4xf32>
    %194 = arith.addf %190, %193 : vector<256x4xf32>
    %195 = vector.extract_strided_slice %85 {offsets = [2, 0, 0, 0], sizes = [16, 2, 8, 4], strides = [1, 1, 1, 1]} : vector<18x2x8x4xbf16> to vector<16x2x8x4xbf16>
    %196 = vector.shape_cast %195 : vector<16x2x8x4xbf16> to vector<256x4xbf16>
    %197 = vector.extract_strided_slice %104 {offsets = [2, 0, 0, 0], sizes = [16, 2, 8, 4], strides = [1, 1, 1, 1]} : vector<18x2x8x4xbf16> to vector<16x2x8x4xbf16>
    %198 = vector.shape_cast %197 : vector<16x2x8x4xbf16> to vector<256x4xbf16>
    %c2_111 = arith.constant 2 : index
    %c1_112 = arith.constant 1 : index
    %c0_113 = arith.constant 0 : index
    %c0_114 = arith.constant 0 : index
    %199 = vector.load %arg10[%c2_111, %c1_112, %c0_113, %c0_114] : memref<3x3x4x4xbf16, #tpu.memory_space<vmem>>, vector<1x1x4x4xbf16>
    %200 = vector.shape_cast %199 : vector<1x1x4x4xbf16> to vector<4x4xbf16>
    %cst_115 = arith.constant dense<0.000000e+00> : vector<256x4xf32>
    %201 = tpu.matmul %196, %200, %cst_115 {dimension_numbers = #tpu.dot_dimension_numbers<[1], [0], [0], [1], [0, 0, 1, 1], [], []>} : vector<256x4xbf16>, vector<4x4xbf16>, vector<256x4xf32> -> vector<256x4xf32>
    %202 = arith.addf %194, %201 : vector<256x4xf32>
    %c2_116 = arith.constant 2 : index
    %c1_117 = arith.constant 1 : index
    %c0_118 = arith.constant 0 : index
    %c0_119 = arith.constant 0 : index
    %203 = vector.load %arg11[%c2_116, %c1_117, %c0_118, %c0_119] : memref<3x3x4x4xbf16, #tpu.memory_space<vmem>>, vector<1x1x4x4xbf16>
    %204 = vector.shape_cast %203 : vector<1x1x4x4xbf16> to vector<4x4xbf16>
    %cst_120 = arith.constant dense<0.000000e+00> : vector<256x4xf32>
    %205 = tpu.matmul %198, %204, %cst_120 {dimension_numbers = #tpu.dot_dimension_numbers<[1], [0], [0], [1], [0, 0, 1, 1], [], []>} : vector<256x4xbf16>, vector<4x4xbf16>, vector<256x4xf32> -> vector<256x4xf32>
    %206 = arith.addf %202, %205 : vector<256x4xf32>
    %207 = vector.extract_strided_slice %90 {offsets = [2, 0, 0, 0], sizes = [16, 2, 8, 4], strides = [1, 1, 1, 1]} : vector<18x2x8x4xbf16> to vector<16x2x8x4xbf16>
    %208 = vector.shape_cast %207 : vector<16x2x8x4xbf16> to vector<256x4xbf16>
    %209 = vector.extract_strided_slice %109 {offsets = [2, 0, 0, 0], sizes = [16, 2, 8, 4], strides = [1, 1, 1, 1]} : vector<18x2x8x4xbf16> to vector<16x2x8x4xbf16>
    %210 = vector.shape_cast %209 : vector<16x2x8x4xbf16> to vector<256x4xbf16>
    %c2_121 = arith.constant 2 : index
    %c2_122 = arith.constant 2 : index
    %c0_123 = arith.constant 0 : index
    %c0_124 = arith.constant 0 : index
    %211 = vector.load %arg10[%c2_121, %c2_122, %c0_123, %c0_124] : memref<3x3x4x4xbf16, #tpu.memory_space<vmem>>, vector<1x1x4x4xbf16>
    %212 = vector.shape_cast %211 : vector<1x1x4x4xbf16> to vector<4x4xbf16>
    %cst_125 = arith.constant dense<0.000000e+00> : vector<256x4xf32>
    %213 = tpu.matmul %208, %212, %cst_125 {dimension_numbers = #tpu.dot_dimension_numbers<[1], [0], [0], [1], [0, 0, 1, 1], [], []>} : vector<256x4xbf16>, vector<4x4xbf16>, vector<256x4xf32> -> vector<256x4xf32>
    %214 = arith.addf %206, %213 : vector<256x4xf32>
    %c2_126 = arith.constant 2 : index
    %c2_127 = arith.constant 2 : index
    %c0_128 = arith.constant 0 : index
    %c0_129 = arith.constant 0 : index
    %215 = vector.load %arg11[%c2_126, %c2_127, %c0_128, %c0_129] : memref<3x3x4x4xbf16, #tpu.memory_space<vmem>>, vector<1x1x4x4xbf16>
    %216 = vector.shape_cast %215 : vector<1x1x4x4xbf16> to vector<4x4xbf16>
    %cst_130 = arith.constant dense<0.000000e+00> : vector<256x4xf32>
    %217 = tpu.matmul %210, %216, %cst_130 {dimension_numbers = #tpu.dot_dimension_numbers<[1], [0], [0], [1], [0, 0, 1, 1], [], []>} : vector<256x4xbf16>, vector<4x4xbf16>, vector<256x4xf32> -> vector<256x4xf32>
    %218 = arith.addf %214, %217 : vector<256x4xf32>
    %cst_131 = arith.constant dense<0.000000e+00> : vector<4xf32>
    %219 = vector.multi_reduction <add>, %218, %cst_131 [0] : vector<256x4xf32> to vector<4xf32>
    %220 = vector.shape_cast %219 : vector<4xf32> to vector<1x1x1x4xf32>
    %c0_132 = arith.constant 0 : index
    %c0_133 = arith.constant 0 : index
    %c0_134 = arith.constant 0 : index
    %c0_135 = arith.constant 0 : index
    %221 = vector.load %arg13[%c0_132, %c0_133, %c0_134, %c0_135] : memref<1x1x1x4xf32, #tpu.memory_space<vmem>>, vector<1x1x1x4xf32>
    tpu.vector_store %arg13[%c0_132, %c0_133, %c0_134, %c0_135], %220 {strides = array<i32>} : memref<1x1x1x4xf32, #tpu.memory_space<vmem>>, vector<1x1x1x4xf32>,
    %222 = arith.mulf %218, %218 : vector<256x4xf32>
    %cst_136 = arith.constant dense<0.000000e+00> : vector<4xf32>
    %223 = vector.multi_reduction <add>, %222, %cst_136 [0] : vector<256x4xf32> to vector<4xf32>
    %224 = vector.shape_cast %223 : vector<4xf32> to vector<1x1x1x4xf32>
    %c0_137 = arith.constant 0 : index
    %c0_138 = arith.constant 0 : index
    %c0_139 = arith.constant 0 : index
    %c0_140 = arith.constant 0 : index
    %225 = vector.load %arg14[%c0_137, %c0_138, %c0_139, %c0_140] : memref<1x1x1x4xf32, #tpu.memory_space<vmem>>, vector<1x1x1x4xf32>
    tpu.vector_store %arg14[%c0_137, %c0_138, %c0_139, %c0_140], %224 {strides = array<i32>} : memref<1x1x1x4xf32, #tpu.memory_space<vmem>>, vector<1x1x1x4xf32>,
    %226 = vector.shape_cast %218 : vector<256x4xf32> to vector<1x16x2x8x4xf32>
    %227 = arith.truncf %226 : vector<1x16x2x8x4xf32> to vector<1x16x2x8x4xbf16>
    %c0_141 = arith.constant 0 : index
    %c0_142 = arith.constant 0 : index
    %c0_143 = arith.constant 0 : index
    %c0_144 = arith.constant 0 : index
    %c0_145 = arith.constant 0 : index
    %228 = vector.load %arg12[%c0_141, %c0_142, %c0_143, %c0_144, %c0_145] : memref<1x16x2x8x4xbf16, #tpu.memory_space<vmem>>, vector<1x16x2x8x4xbf16>
    tpu.vector_store %arg12[%c0_141, %c0_142, %c0_143, %c0_144, %c0_145], %227 {strides = array<i32>} : memref<1x16x2x8x4xbf16, #tpu.memory_space<vmem>>, vector<1x16x2x8x4xbf16>,
    return
  }
  func.func @transform_0(%arg0: i32, %arg1: i32) -> (i32, i32) {
    %c0_i32 = arith.constant 0 : i32
    %c0_i32_0 = arith.constant 0 : i32
    %c0_i32_1 = arith.constant 0 : i32
    return %c0_i32, %c0_i32_0 : i32, i32
  }
  func.func @transform_1(%arg0: i32, %arg1: i32) -> (i32, i32) {
    %c0_i32 = arith.constant 0 : i32
    %c0_i32_0 = arith.constant 0 : i32
    %c0_i32_1 = arith.constant 0 : i32
    return %c0_i32, %c0_i32_0 : i32, i32
  }
  func.func @transform_2(%arg0: i32, %arg1: i32) -> (i32, i32, i32, i32, i32) {
    %c0_i32 = arith.constant 0 : i32
    %c0_i32_0 = arith.constant 0 : i32
    %c0_i32_1 = arith.constant 0 : i32
    %c0_i32_2 = arith.constant 0 : i32
    return %arg0, %arg1, %c0_i32, %c0_i32_0, %c0_i32_1 : i32, i32, i32, i32, i32
  }
  func.func @transform_3(%arg0: i32, %arg1: i32) -> (i32, i32, i32, i32, i32) {
    %c16_i32 = arith.constant 16 : i32
    %0 = arith.muli %arg1, %c16_i32 : i32
    %c1_i32 = arith.constant 1 : i32
    %1 = arith.subi %0, %c1_i32 : i32
    %c0_i32 = arith.constant 0 : i32
    %2 = arith.maxsi %1, %c0_i32 : i32
    %c0_i32_0 = arith.constant 0 : i32
    %c0_i32_1 = arith.constant 0 : i32
    %c0_i32_2 = arith.constant 0 : i32
    %c0_i32_3 = arith.constant 0 : i32
    return %arg0, %2, %c0_i32_0, %c0_i32_1, %c0_i32_2 : i32, i32, i32, i32, i32
  }
  func.func @transform_4(%arg0: i32, %arg1: i32) -> (i32, i32, i32, i32, i32) {
    %c16_i32 = arith.constant 16 : i32
    %0 = arith.muli %arg1, %c16_i32 : i32
    %c16_i32_0 = arith.constant 16 : i32
    %1 = arith.addi %0, %c16_i32_0 : i32
    %c15_i32 = arith.constant 15 : i32
    %2 = arith.minsi %1, %c15_i32 : i32
    %c0_i32 = arith.constant 0 : i32
    %c0_i32_1 = arith.constant 0 : i32
    %c0_i32_2 = arith.constant 0 : i32
    %c0_i32_3 = arith.constant 0 : i32
    return %arg0, %2, %c0_i32, %c0_i32_1, %c0_i32_2 : i32, i32, i32, i32, i32
  }
  func.func @transform_5(%arg0: i32, %arg1: i32) -> (i32, i32, i32, i32, i32) {
    %c0_i32 = arith.constant 0 : i32
    %c0_i32_0 = arith.constant 0 : i32
    %c0_i32_1 = arith.constant 0 : i32
    %c0_i32_2 = arith.constant 0 : i32
    return %arg0, %arg1, %c0_i32, %c0_i32_0, %c0_i32_1 : i32, i32, i32, i32, i32
  }
  func.func @transform_6(%arg0: i32, %arg1: i32) -> (i32, i32, i32, i32, i32) {
    %c16_i32 = arith.constant 16 : i32
    %0 = arith.muli %arg1, %c16_i32 : i32
    %c1_i32 = arith.constant 1 : i32
    %1 = arith.subi %0, %c1_i32 : i32
    %c0_i32 = arith.constant 0 : i32
    %2 = arith.maxsi %1, %c0_i32 : i32
    %c0_i32_0 = arith.constant 0 : i32
    %c0_i32_1 = arith.constant 0 : i32
    %c0_i32_2 = arith.constant 0 : i32
    %c0_i32_3 = arith.constant 0 : i32
    return %arg0, %2, %c0_i32_0, %c0_i32_1, %c0_i32_2 : i32, i32, i32, i32, i32
  }
  func.func @transform_7(%arg0: i32, %arg1: i32) -> (i32, i32, i32, i32, i32) {
    %c16_i32 = arith.constant 16 : i32
    %0 = arith.muli %arg1, %c16_i32 : i32
    %c16_i32_0 = arith.constant 16 : i32
    %1 = arith.addi %0, %c16_i32_0 : i32
    %c15_i32 = arith.constant 15 : i32
    %2 = arith.minsi %1, %c15_i32 : i32
    %c0_i32 = arith.constant 0 : i32
    %c0_i32_1 = arith.constant 0 : i32
    %c0_i32_2 = arith.constant 0 : i32
    %c0_i32_3 = arith.constant 0 : i32
    return %arg0, %2, %c0_i32, %c0_i32_1, %c0_i32_2 : i32, i32, i32, i32, i32
  }
  func.func @transform_8(%arg0: i32, %arg1: i32) -> (i32, i32, i32, i32) {
    %c0_i32 = arith.constant 0 : i32
    %c0_i32_0 = arith.constant 0 : i32
    %c0_i32_1 = arith.constant 0 : i32
    %c0_i32_2 = arith.constant 0 : i32
    %c0_i32_3 = arith.constant 0 : i32
    return %c0_i32, %c0_i32_0, %c0_i32_1, %c0_i32_2 : i32, i32, i32, i32
  }
  func.func @transform_9(%arg0: i32, %arg1: i32) -> (i32, i32, i32, i32) {
    %c0_i32 = arith.constant 0 : i32
    %c0_i32_0 = arith.constant 0 : i32
    %c0_i32_1 = arith.constant 0 : i32
    %c0_i32_2 = arith.constant 0 : i32
    %c0_i32_3 = arith.constant 0 : i32
    return %c0_i32, %c0_i32_0, %c0_i32_1, %c0_i32_2 : i32, i32, i32, i32
  }
  func.func @transform_10(%arg0: i32, %arg1: i32) -> (i32, i32, i32, i32, i32) {
    %c0_i32 = arith.constant 0 : i32
    %c0_i32_0 = arith.constant 0 : i32
    %c0_i32_1 = arith.constant 0 : i32
    %c0_i32_2 = arith.constant 0 : i32
    return %arg0, %arg1, %c0_i32, %c0_i32_0, %c0_i32_1 : i32, i32, i32, i32, i32
  }
  func.func @transform_11(%arg0: i32, %arg1: i32) -> (i32, i32, i32, i32) {
    %c0_i32 = arith.constant 0 : i32
    %c0_i32_0 = arith.constant 0 : i32
    %c0_i32_1 = arith.constant 0 : i32
    return %arg0, %arg1, %c0_i32, %c0_i32_0 : i32, i32, i32, i32
  }
  func.func @transform_12(%arg0: i32, %arg1: i32) -> (i32, i32, i32, i32) {
    %c0_i32 = arith.constant 0 : i32
    %c0_i32_0 = arith.constant 0 : i32
    %c0_i32_1 = arith.constant 0 : i32
    return %arg0, %arg1, %c0_i32, %c0_i32_0 : i32, i32, i32, i32
  }
}

module attributes {stable_mosaic.version = 11 : i64} {
  func.func @_bn_affine_kernel(%arg0: i32, %arg1: i32, %arg2: memref<1x16x2x8x4xbf16, #tpu.memory_space<vmem>>, %arg3: memref<1x4xf32, #tpu.memory_space<vmem>>, %arg4: memref<1x4xf32, #tpu.memory_space<vmem>>, %arg5: memref<1x16x2x8x4xf32, #tpu.memory_space<vmem>>) attributes {dimension_semantics = [#tpu.dimension_semantics<parallel>, #tpu.dimension_semantics<parallel>], iteration_bounds = array<i64: 2, 1>, scalar_prefetch = 0 : i64, scratch_operands = 0 : i64, tpu.core_type = #tpu.core_type<tc>, window_params = [{transform_indices = @transform_0, window_bounds = array<i64: 1, 16, 2, 8, 4>}, {pipeline_mode = #tpu.pipeline_mode<synchronous>, transform_indices = @transform_1, window_bounds = array<i64: 1, 4>}, {pipeline_mode = #tpu.pipeline_mode<synchronous>, transform_indices = @transform_2, window_bounds = array<i64: 1, 4>}, {transform_indices = @transform_3, window_bounds = array<i64: 1, 16, 2, 8, 4>}]} {
    %c0 = arith.constant 0 : index
    %c0_0 = arith.constant 0 : index
    %c0_1 = arith.constant 0 : index
    %c0_2 = arith.constant 0 : index
    %c0_3 = arith.constant 0 : index
    %0 = vector.load %arg2[%c0, %c0_0, %c0_1, %c0_2, %c0_3] : memref<1x16x2x8x4xbf16, #tpu.memory_space<vmem>>, vector<1x16x2x8x4xbf16>
    %1 = arith.extf %0 : vector<1x16x2x8x4xbf16> to vector<1x16x2x8x4xf32>
    %c0_4 = arith.constant 0 : index
    %c0_5 = arith.constant 0 : index
    %2 = vector.load %arg3[%c0_4, %c0_5] : memref<1x4xf32, #tpu.memory_space<vmem>>, vector<1x4xf32>
    %3 = vector.shape_cast %2 : vector<1x4xf32> to vector<4xf32>
    %4 = vector.shape_cast %3 : vector<4xf32> to vector<1x1x1x1x4xf32>
    %5 = vector.broadcast %4 : vector<1x1x1x1x4xf32> to vector<1x16x2x8x4xf32>
    %6 = arith.mulf %1, %5 : vector<1x16x2x8x4xf32>
    %c0_6 = arith.constant 0 : index
    %c0_7 = arith.constant 0 : index
    %7 = vector.load %arg4[%c0_6, %c0_7] : memref<1x4xf32, #tpu.memory_space<vmem>>, vector<1x4xf32>
    %8 = vector.shape_cast %7 : vector<1x4xf32> to vector<4xf32>
    %9 = vector.shape_cast %8 : vector<4xf32> to vector<1x1x1x1x4xf32>
    %10 = vector.broadcast %9 : vector<1x1x1x1x4xf32> to vector<1x16x2x8x4xf32>
    %11 = arith.addf %6, %10 : vector<1x16x2x8x4xf32>
    %cst = arith.constant 0.000000e+00 : f32
    %12 = vector.broadcast %cst : f32 to vector<1x16x2x8x4xf32>
    %13 = arith.maximumf %11, %12 : vector<1x16x2x8x4xf32>
    %c0_8 = arith.constant 0 : index
    %c0_9 = arith.constant 0 : index
    %c0_10 = arith.constant 0 : index
    %c0_11 = arith.constant 0 : index
    %c0_12 = arith.constant 0 : index
    %14 = vector.load %arg5[%c0_8, %c0_9, %c0_10, %c0_11, %c0_12] : memref<1x16x2x8x4xf32, #tpu.memory_space<vmem>>, vector<1x16x2x8x4xf32>
    tpu.vector_store %arg5[%c0_8, %c0_9, %c0_10, %c0_11, %c0_12], %13 {strides = array<i32>} : memref<1x16x2x8x4xf32, #tpu.memory_space<vmem>>, vector<1x16x2x8x4xf32>,
    return
  }
  func.func @transform_0(%arg0: i32, %arg1: i32) -> (i32, i32, i32, i32, i32) {
    %c0_i32 = arith.constant 0 : i32
    %c0_i32_0 = arith.constant 0 : i32
    %c0_i32_1 = arith.constant 0 : i32
    %c0_i32_2 = arith.constant 0 : i32
    return %arg0, %arg1, %c0_i32, %c0_i32_0, %c0_i32_1 : i32, i32, i32, i32, i32
  }
  func.func @transform_1(%arg0: i32, %arg1: i32) -> (i32, i32) {
    %c0_i32 = arith.constant 0 : i32
    %c0_i32_0 = arith.constant 0 : i32
    %c0_i32_1 = arith.constant 0 : i32
    return %c0_i32, %c0_i32_0 : i32, i32
  }
  func.func @transform_2(%arg0: i32, %arg1: i32) -> (i32, i32) {
    %c0_i32 = arith.constant 0 : i32
    %c0_i32_0 = arith.constant 0 : i32
    %c0_i32_1 = arith.constant 0 : i32
    return %c0_i32, %c0_i32_0 : i32, i32
  }
  func.func @transform_3(%arg0: i32, %arg1: i32) -> (i32, i32, i32, i32, i32) {
    %c0_i32 = arith.constant 0 : i32
    %c0_i32_0 = arith.constant 0 : i32
    %c0_i32_1 = arith.constant 0 : i32
    %c0_i32_2 = arith.constant 0 : i32
    return %arg0, %arg1, %c0_i32, %c0_i32_0, %c0_i32_1 : i32, i32, i32, i32, i32
  }
}

</mosaic_0001>

<llo_original>
// kernel: deconv2d_block_forward.5
$region0: #{deconv2d_block_forward.5}
  #allocation0 [shape = 'u32[]', space=smem, size = 0x4, offset = 0x4, fixed_abs, tag = 'smem constant byte address 0x4 - core index']
  #allocation1 [shape = 'u32[144,128]{1,0:T(1,128)}', space=vmem, size = 0x12000, scoped, tag = 'internal scratch']
  %s0 = inlined_call_operand.vmem [shape: bf16[2,16,2,8,4], index: 0, kind: input, shape index: {}]
  %s1 = inlined_call_operand.vmem [shape: f32[1,4], index: 1, kind: input, shape index: {}]
  %s2 = inlined_call_operand.vmem [shape: f32[1,4], index: 2, kind: input, shape index: {}]
  %s3 = inlined_call_operand.vmem [shape: f32[2,16,2,8,4], index: 3, kind: output, shape index: {}]
  %s4 = sld [smem:[#allocation0]]
  $region45: #{deconv2d_block_forward.5} parent=0
    _
  %s6 = ssub.s32 1, %s4
  %s7 = scalar_select 0, %s6, %s4
  loop: start=0, step=1, limit=4
  $region2: #{deconv2d_block_forward.5} parent=0 // loop_pre_header
    _
  $region3: #{deconv2d_block_forward.5} parent=0 // loop_header
    %s9 = sphi 0, %s13
    %p10 = scmp.ge.s32.totalorder %s9, 4
    %s16 = sphi 0, %s28
    %s17 = sphi 0, %s24
    %s18 = sphi 0, %s16
    %s19 = sphi 0, %s17
    %s20 = sphi 0, %s18
    %s21 = sphi 0, %s19
    %s33 = sphi 0, %s35
    %s36 = sphi 0, %s33
    %s37 = sphi 0, %s36
    %s53 = sphi 0, %s37
    %s57 = sphi 0, %s57
    %s59 = sphi 0, %s57
    %s60 = sphi 0, %s59
    %s74 = sphi 0, %s60
    %s78 = sphi 0, %s78
    %s80 = sphi 0, %s78
    %s81 = sphi 0, %s80
    %s95 = sphi 0, %s81
    %s103 = sphi 0, %s105
    %s106 = sphi 0, %s103
    %s107 = sphi 0, %s106
    %s123 = sphi 0, %s107
  $region4: #{deconv2d_block_forward.5} parent=0 // loop_header_branch
    %12 = sbr.rel (%p10) target = $region8
  $region5: #{deconv2d_block_forward.5} parent=0 // loop_body
    %s14 = ssub.s32 %s9, 1
    %s15 = ssub.s32 %s9, 2
    %s22 = sadd.s32 1, %s17
    %p23 = scmp.ge.s32.totalorder %s22, 1
    %s24 = scalar_select %p23, 0, %s22
    %s25 = sadd.s32 1, %s16
    %s26 = scalar_select %p23, %s25, %s16
    %p27 = scmp.ge.s32.totalorder %s26, 2
    %s28 = scalar_select %p27, 0, %s26
    %s29 = ssub.s32 %s16, %s28
    %s30 = ssub.s32 %s17, %s24
    %s31 = sor.u32 %s29, %s30
    %p32 = scmp.eq.s32.totalorder %s31, 0
    %s34 = sadd.s32 %s33, 1
    %s35 = scalar_select %p32, %s33, %s34
    %p38 = pneg %p32
    %p39 = scmp.eq.s32.totalorder %s9, 1
    %p40 = por %p38, %p39
    %p41 = scmp.ne.s32.totalorder %s33, %s36
    %p42 = scmp.eq.s32.totalorder %s9, 0
    %p43 = por %p41, %p42
    %p44 = scmp.ne.s32.totalorder %s33, %s36
    %p45 = scmp.eq.s32.totalorder %s14, 1
    %p46 = por %p44, %p45
    %p47 = scmp.ne.s32.totalorder %s36, %s37
    %p48 = scmp.eq.s32.totalorder %s14, 0
    %p49 = por %p47, %p48
    %p50 = scmp.ne.s32.totalorder %s36, %s37
    %p51 = scmp.eq.s32.totalorder %s15, 1
    %p52 = por %p50, %p51
    %p54 = scmp.ne.s32.totalorder %s37, %s53
    %p55 = scmp.eq.s32.totalorder %s15, 0
    %p56 = por %p54, %p55
    %s58 = sadd.s32 %s57, 1
    %p61 = scmp.eq.s32.totalorder %s9, 1
    %p62 = scmp.ne.s32.totalorder %s57, %s59
    %p63 = scmp.eq.s32.totalorder %s9, 0
    %p64 = por %p62, %p63
    %p65 = scmp.ne.s32.totalorder %s57, %s59
    %p66 = scmp.eq.s32.totalorder %s14, 1
    %p67 = por %p65, %p66
    %p68 = scmp.ne.s32.totalorder %s59, %s60
    %p69 = scmp.eq.s32.totalorder %s14, 0
    %p70 = por %p68, %p69
    %p71 = scmp.ne.s32.totalorder %s59, %s60
    %p72 = scmp.eq.s32.totalorder %s15, 1
    %p73 = por %p71, %p72
    %p75 = scmp.ne.s32.totalorder %s60, %s74
    %p76 = scmp.eq.s32.totalorder %s15, 0
    %p77 = por %p75, %p76
    %s79 = sadd.s32 %s78, 1
    %p82 = scmp.eq.s32.totalorder %s9, 1
    %p83 = scmp.ne.s32.totalorder %s78, %s80
    %p84 = scmp.eq.s32.totalorder %s9, 0
    %p85 = por %p83, %p84
    %p86 = scmp.ne.s32.totalorder %s78, %s80
    %p87 = scmp.eq.s32.totalorder %s14, 1
    %p88 = por %p86, %p87
    %p89 = scmp.ne.s32.totalorder %s80, %s81
    %p90 = scmp.eq.s32.totalorder %s14, 0
    %p91 = por %p89, %p90
    %p92 = scmp.ne.s32.totalorder %s80, %s81
    %p93 = scmp.eq.s32.totalorder %s15, 1
    %p94 = por %p92, %p93
    %p96 = scmp.ne.s32.totalorder %s81, %s95
    %p97 = scmp.eq.s32.totalorder %s15, 0
    %p98 = por %p96, %p97
    %s99 = ssub.s32 %s16, %s28
    %s100 = ssub.s32 %s17, %s24
    %s101 = sor.u32 %s99, %s100
    %p102 = scmp.eq.s32.totalorder %s101, 0
    %s104 = sadd.s32 %s103, 1
    %s105 = scalar_select %p102, %s103, %s104
    %p108 = pneg %p102
    %p109 = scmp.eq.s32.totalorder %s9, 1
    %p110 = por %p108, %p109
    %p111 = scmp.ne.s32.totalorder %s103, %s106
    %p112 = scmp.eq.s32.totalorder %s9, 0
    %p113 = por %p111, %p112
    %p114 = scmp.ne.s32.totalorder %s103, %s106
    %p115 = scmp.eq.s32.totalorder %s14, 1
    %p116 = por %p114, %p115
    %p117 = scmp.ne.s32.totalorder %s106, %s107
    %p118 = scmp.eq.s32.totalorder %s14, 0
    %p119 = por %p117, %p118
    %p120 = scmp.ne.s32.totalorder %s106, %s107
    %p121 = scmp.eq.s32.totalorder %s15, 1
    %p122 = por %p120, %p121
    %p124 = scmp.ne.s32.totalorder %s107, %s123
    %p125 = scmp.eq.s32.totalorder %s15, 0
    %p126 = por %p124, %p125
    %p127 = scmp.le.s32.totalorder 1, %s9
    %p128 = scmp.lt.s32.totalorder %s9, 3
    %p129 = pnand %p127, %p128
    %p130 = pneg %p129
    // Predicated region
    $region9: #{deconv2d_block_forward.5} parent=5 // pred_check
      _
    $region10: #{deconv2d_block_forward.5} parent=5 // pred_check_branch
      %132 = sbr.rel (%p129) target = $region12
    $region11: #{deconv2d_block_forward.5} parent=5 // pred_region
      %s133 = ssub.s32 %s9, 1
      // Predicated region
      $region13: #{deconv2d_block_forward.5} parent=11 // pred_check
        %p134 = pneg %p70
      $region14: #{deconv2d_block_forward.5} parent=11 // pred_check_branch
        %136 = sbr.rel (%p134) target = $region16
      $region15: #{deconv2d_block_forward.5} parent=11 // pred_region
        _
      $region16: #{deconv2d_block_forward.5} parent=11 // pred_fallthru
        _
      // Predicated region
      $region17: #{deconv2d_block_forward.5} parent=11 // pred_check
        %p137 = pneg %p91
      $region18: #{deconv2d_block_forward.5} parent=11 // pred_check_branch
        %139 = sbr.rel (%p137) target = $region20
      $region19: #{deconv2d_block_forward.5} parent=11 // pred_region
        _
      $region20: #{deconv2d_block_forward.5} parent=11 // pred_fallthru
        _
    $region12: #{deconv2d_block_forward.5} parent=5 // pred_fallthru
      _
    %p140 = scmp.lt.s32.totalorder %s9, 2
    // Predicated region
    $region21: #{deconv2d_block_forward.5} parent=5 // pred_check
      %p141 = pneg %p140
    $region22: #{deconv2d_block_forward.5} parent=5 // pred_check_branch
      %143 = sbr.rel (%p141) target = $region24
    $region23: #{deconv2d_block_forward.5} parent=5 // pred_region
      // Predicated region
      $region25: #{deconv2d_block_forward.5} parent=23 // pred_check
        %p144 = pneg %p43
      $region26: #{deconv2d_block_forward.5} parent=23 // pred_check_branch
        %146 = sbr.rel (%p144) target = $region28
      $region27: #{deconv2d_block_forward.5} parent=23 // pred_region
        %s147 = smul.u32 16, %s17
        %p148 = scmp.lt.s32.totalorder %s16, 1
        %s149 = scalar_select %p148, %s16, 1
        %p150 = scmp.lt.s32.totalorder %s147, 15
        %s151 = scalar_select %p150, %s147, 15
        %s152 = smul.addr %s151, 2
        %s153 = smul.addr %s149, 32
        %s154 = sadd.s32 %s152, %s153
        %s155 = smul.addr %s154, 4
        %s156 = scalar_lea.vmem %s0, %s155
        %s157 = smul.u32 16, %s17
      $region28: #{deconv2d_block_forward.5} parent=23 // pred_fallthru
        _
    $region24: #{deconv2d_block_forward.5} parent=5 // pred_fallthru
      _
    %p158 = scmp.le.s32.totalorder 1, %s9
    %p159 = scmp.lt.s32.totalorder %s9, 3
    %p160 = pnand %p158, %p159
    %p161 = pneg %p160
    // Predicated region
    $region29: #{deconv2d_block_forward.5} parent=5 // pred_check
      _
    $region30: #{deconv2d_block_forward.5} parent=5 // pred_check_branch
      %163 = sbr.rel (%p160) target = $region32
    $region31: #{deconv2d_block_forward.5} parent=5 // pred_region
      %s164 = ssub.s32 %s9, 1
      %s165 = smul.u32 16, %s19
      %p166 = scmp.lt.s32.totalorder %s18, 1
      %s167 = scalar_select %p166, %s18, 1
      %p168 = scmp.lt.s32.totalorder %s165, 15
      %s169 = scalar_select %p168, %s165, 15
      %s170 = smul.addr %s169, 2
      %s171 = smul.addr %s167, 32
      %s172 = sadd.s32 %s170, %s171
      %s173 = smul.addr %s172, 4
      %s174 = scalar_lea.vmem %s0, %s173
      %p175 = pneg %p49
      %p176 = pneg %p46
      %p177 = pneg %p70
      %p178 = pneg %p67
      %p179 = pneg %p91
      %p180 = pneg %p88
      %p181 = pneg %p119
      %p182 = pneg %p116
      %s183 = smul.u32 16, %s19
      %p184 = scmp.lt.s32.totalorder %s18, 1
      %s185 = scalar_select %p184, %s18, 1
      %p186 = scmp.lt.s32.totalorder %s183, 15
      %s187 = scalar_select %p186, %s183, 15
      %s188 = smul.addr %s187, 2
      %s189 = smul.addr %s185, 32
      %s190 = sadd.s32 %s188, %s189
      %s191 = smul.addr %s190, 8
      %s192 = scalar_lea.vmem %s3, %s191
      %s193 = smul.u32 16, %s19
      %p194 = scmp.lt.s32.totalorder %s18, 1
      %s195 = scalar_select %p194, %s18, 1
      %p196 = scmp.lt.s32.totalorder %s193, 15
      %s197 = scalar_select %p196, %s193, 15
      %s198 = smul.addr %s197, 2
      %s199 = smul.addr %s195, 32
      %s200 = sadd.s32 %s198, %s199
      %s201 = smul.addr %s200, 4
      %s202 = scalar_lea.vmem %s0, %s201
      %s203 = smul.u32 16, %s19
      %s204 = smul.u32 16, %s19
      %p205 = scmp.lt.s32.totalorder %s18, 1
      %s206 = scalar_select %p205, %s18, 1
      %p207 = scmp.lt.s32.totalorder %s204, 15
      %s208 = scalar_select %p207, %s204, 15
      %s209 = smul.addr %s208, 2
      %s210 = smul.addr %s206, 32
      %s211 = sadd.s32 %s209, %s210
      %s212 = smul.addr %s211, 8
      %s213 = scalar_lea.vmem %s3, %s212
      %s214 = smul.u32 16, %s19
      %v215 = vld [vmem:[%s202] sm:$0xf]
      %v216 = vld [vmem:[%s202 + $0x4] sm:$0xf]
      %v217 = vld [vmem:[%s202 + $0x8] sm:$0xf]
      %v218 = vld [vmem:[%s202 + $0xc] sm:$0xf]
      %v219 = vld [vmem:[%s202 + $0x10] sm:$0xf]
      %v220 = vld [vmem:[%s202 + $0x14] sm:$0xf]
      %v221 = vld [vmem:[%s202 + $0x18] sm:$0xf]
      %v222 = vld [vmem:[%s202 + $0x1c] sm:$0xf]
      %v223 = vld [vmem:[%s202 + $0x20] sm:$0xf]
      %v224 = vld [vmem:[%s202 + $0x24] sm:$0xf]
      %v225 = vld [vmem:[%s202 + $0x28] sm:$0xf]
      %v226 = vld [vmem:[%s202 + $0x2c] sm:$0xf]
      %v227 = vld [vmem:[%s202 + $0x30] sm:$0xf]
      %v228 = vld [vmem:[%s202 + $0x34] sm:$0xf]
      %v229 = vld [vmem:[%s202 + $0x38] sm:$0xf]
      %v230 = vld [vmem:[%s202 + $0x3c] sm:$0xf]
      %v231 = vld [vmem:[%s202 + $0x40] sm:$0xf]
      %v232 = vld [vmem:[%s202 + $0x44] sm:$0xf]
      %v233 = vld [vmem:[%s202 + $0x48] sm:$0xf]
      %v234 = vld [vmem:[%s202 + $0x4c] sm:$0xf]
      %v235 = vld [vmem:[%s202 + $0x50] sm:$0xf]
      %v236 = vld [vmem:[%s202 + $0x54] sm:$0xf]
      %v237 = vld [vmem:[%s202 + $0x58] sm:$0xf]
      %v238 = vld [vmem:[%s202 + $0x5c] sm:$0xf]
      %v239 = vld [vmem:[%s202 + $0x60] sm:$0xf]
      %v240 = vld [vmem:[%s202 + $0x64] sm:$0xf]
      %v241 = vld [vmem:[%s202 + $0x68] sm:$0xf]
      %v242 = vld [vmem:[%s202 + $0x6c] sm:$0xf]
      %v243 = vld [vmem:[%s202 + $0x70] sm:$0xf]
      %v244 = vld [vmem:[%s202 + $0x74] sm:$0xf]
      %v245 = vld [vmem:[%s202 + $0x78] sm:$0xf]
      %v246 = vld [vmem:[%s202 + $0x7c] sm:$0xf]
      %v247 = vunpack.c.l.bf16 %v215
      %v248 = vunpack.c.l.bf16 %v216
      %v249 = vunpack.c.l.bf16 %v217
      %v250 = vunpack.c.l.bf16 %v218
      %v251 = vunpack.c.l.bf16 %v219
      %v252 = vunpack.c.l.bf16 %v220
      %v253 = vunpack.c.l.bf16 %v221
      %v254 = vunpack.c.l.bf16 %v222
      %v255 = vunpack.c.l.bf16 %v223
      %v256 = vunpack.c.l.bf16 %v224
      %v257 = vunpack.c.l.bf16 %v225
      %v258 = vunpack.c.l.bf16 %v226
      %v259 = vunpack.c.l.bf16 %v227
      %v260 = vunpack.c.l.bf16 %v228
      %v261 = vunpack.c.l.bf16 %v229
      %v262 = vunpack.c.l.bf16 %v230
      %v263 = vunpack.c.l.bf16 %v231
      %v264 = vunpack.c.l.bf16 %v232
      %v265 = vunpack.c.l.bf16 %v233
      %v266 = vunpack.c.l.bf16 %v234
      %v267 = vunpack.c.l.bf16 %v235
      %v268 = vunpack.c.l.bf16 %v236
      %v269 = vunpack.c.l.bf16 %v237
      %v270 = vunpack.c.l.bf16 %v238
      %v271 = vunpack.c.l.bf16 %v239
      %v272 = vunpack.c.l.bf16 %v240
      %v273 = vunpack.c.l.bf16 %v241
      %v274 = vunpack.c.l.bf16 %v242
      %v275 = vunpack.c.l.bf16 %v243
      %v276 = vunpack.c.l.bf16 %v244
      %v277 = vunpack.c.l.bf16 %v245
      %v278 = vunpack.c.l.bf16 %v246
      %v279 = vld [vmem:[%s1] sm:$0x1]
      %v281 = vlaneseq
      %v282 = vshrl.u32 %v281, 7
      %v283 = vsub.s32 0, %v282
      %v284 = vrot.slane %v279, %v283
      %v286 = vmul.f32 %v247, %v284
      %v287 = vmul.f32 %v248, %v284
      %v288 = vmul.f32 %v249, %v284
      %v289 = vmul.f32 %v250, %v284
      %v290 = vmul.f32 %v251, %v284
      %v291 = vmul.f32 %v252, %v284
      %v292 = vmul.f32 %v253, %v284
      %v293 = vmul.f32 %v254, %v284
      %v294 = vmul.f32 %v255, %v284
      %v295 = vmul.f32 %v256, %v284
      %v296 = vmul.f32 %v257, %v284
      %v297 = vmul.f32 %v258, %v284
      %v298 = vmul.f32 %v259, %v284
      %v299 = vmul.f32 %v260, %v284
      %v300 = vmul.f32 %v261, %v284
      %v301 = vmul.f32 %v262, %v284
      %v302 = vmul.f32 %v263, %v284
      %v303 = vmul.f32 %v264, %v284
      %v304 = vmul.f32 %v265, %v284
      %v305 = vmul.f32 %v266, %v284
      %v306 = vmul.f32 %v267, %v284
      %v307 = vmul.f32 %v268, %v284
      %v308 = vmul.f32 %v269, %v284
      %v309 = vmul.f32 %v270, %v284
      %v310 = vmul.f32 %v271, %v284
      %v311 = vmul.f32 %v272, %v284
      %v312 = vmul.f32 %v273, %v284
      %v313 = vmul.f32 %v274, %v284
      %v314 = vmul.f32 %v275, %v284
      %v315 = vmul.f32 %v276, %v284
      %v316 = vmul.f32 %v277, %v284
      %v317 = vmul.f32 %v278, %v284
      %v318 = vld [vmem:[%s2] sm:$0x1]
      %v320 = vlaneseq
      %v321 = vshrl.u32 %v320, 7
      %v322 = vsub.s32 0, %v321
      %v323 = vrot.slane %v318, %v322
      %v325 = vadd.f32 %v286, %v323
      %v326 = vadd.f32 %v287, %v323
      %v327 = vadd.f32 %v288, %v323
      %v328 = vadd.f32 %v289, %v323
      %v329 = vadd.f32 %v290, %v323
      %v330 = vadd.f32 %v291, %v323
      %v331 = vadd.f32 %v292, %v323
      %v332 = vadd.f32 %v293, %v323
      %v333 = vadd.f32 %v294, %v323
      %v334 = vadd.f32 %v295, %v323
      %v335 = vadd.f32 %v296, %v323
      %v336 = vadd.f32 %v297, %v323
      %v337 = vadd.f32 %v298, %v323
      %v338 = vadd.f32 %v299, %v323
      %v339 = vadd.f32 %v300, %v323
      %v340 = vadd.f32 %v301, %v323
      %v341 = vadd.f32 %v302, %v323
      %v342 = vadd.f32 %v303, %v323
      %v343 = vadd.f32 %v304, %v323
      %v344 = vadd.f32 %v305, %v323
      %v345 = vadd.f32 %v306, %v323
      %v346 = vadd.f32 %v307, %v323
      %v347 = vadd.f32 %v308, %v323
      %v348 = vadd.f32 %v309, %v323
      %v349 = vadd.f32 %v310, %v323
      %v350 = vadd.f32 %v311, %v323
      %v351 = vadd.f32 %v312, %v323
      %v352 = vadd.f32 %v313, %v323
      %v353 = vadd.f32 %v314, %v323
      %v354 = vadd.f32 %v315, %v323
      %v355 = vadd.f32 %v316, %v323
      %v356 = vadd.f32 %v317, %v323
      %v357 = vmax.f32 %v325, 0.0
      %v358 = vmax.f32 %v326, 0.0
      %v359 = vmax.f32 %v327, 0.0
      %v360 = vmax.f32 %v328, 0.0
      %v361 = vmax.f32 %v329, 0.0
      %v362 = vmax.f32 %v330, 0.0
      %v363 = vmax.f32 %v331, 0.0
      %v364 = vmax.f32 %v332, 0.0
      %v365 = vmax.f32 %v333, 0.0
      %v366 = vmax.f32 %v334, 0.0
      %v367 = vmax.f32 %v335, 0.0
      %v368 = vmax.f32 %v336, 0.0
      %v369 = vmax.f32 %v337, 0.0
      %v370 = vmax.f32 %v338, 0.0
      %v371 = vmax.f32 %v339, 0.0
      %v372 = vmax.f32 %v340, 0.0
      %v373 = vmax.f32 %v341, 0.0
      %v374 = vmax.f32 %v342, 0.0
      %v375 = vmax.f32 %v343, 0.0
      %v376 = vmax.f32 %v344, 0.0
      %v377 = vmax.f32 %v345, 0.0
      %v378 = vmax.f32 %v346, 0.0
      %v379 = vmax.f32 %v347, 0.0
      %v380 = vmax.f32 %v348, 0.0
      %v381 = vmax.f32 %v349, 0.0
      %v382 = vmax.f32 %v350, 0.0
      %v383 = vmax.f32 %v351, 0.0
      %v384 = vmax.f32 %v352, 0.0
      %v385 = vmax.f32 %v353, 0.0
      %v386 = vmax.f32 %v354, 0.0
      %v387 = vmax.f32 %v355, 0.0
      %v388 = vmax.f32 %v356, 0.0
      %vm389 = vcmask 31744
      %390 = vst.msk [vmem:[%s213] sm:$0xff] %vm389, %v357
      %391 = vst.msk [vmem:[%s213 + $0x8] sm:$0xff] %vm389, %v358
      %392 = vst.msk [vmem:[%s213 + $0x10] sm:$0xff] %vm389, %v359
      %393 = vst.msk [vmem:[%s213 + $0x18] sm:$0xff] %vm389, %v360
      %394 = vst.msk [vmem:[%s213 + $0x20] sm:$0xff] %vm389, %v361
      %395 = vst.msk [vmem:[%s213 + $0x28] sm:$0xff] %vm389, %v362
      %396 = vst.msk [vmem:[%s213 + $0x30] sm:$0xff] %vm389, %v363
      %397 = vst.msk [vmem:[%s213 + $0x38] sm:$0xff] %vm389, %v364
      %398 = vst.msk [vmem:[%s213 + $0x40] sm:$0xff] %vm389, %v365
      %399 = vst.msk [vmem:[%s213 + $0x48] sm:$0xff] %vm389, %v366
      %400 = vst.msk [vmem:[%s213 + $0x50] sm:$0xff] %vm389, %v367
      %401 = vst.msk [vmem:[%s213 + $0x58] sm:$0xff] %vm389, %v368
      %402 = vst.msk [vmem:[%s213 + $0x60] sm:$0xff] %vm389, %v369
      %403 = vst.msk [vmem:[%s213 + $0x68] sm:$0xff] %vm389, %v370
      %404 = vst.msk [vmem:[%s213 + $0x70] sm:$0xff] %vm389, %v371
      %405 = vst.msk [vmem:[%s213 + $0x78] sm:$0xff] %vm389, %v372
      %406 = vst.msk [vmem:[%s213 + $0x80] sm:$0xff] %vm389, %v373
      %407 = vst.msk [vmem:[%s213 + $0x88] sm:$0xff] %vm389, %v374
      %408 = vst.msk [vmem:[%s213 + $0x90] sm:$0xff] %vm389, %v375
      %409 = vst.msk [vmem:[%s213 + $0x98] sm:$0xff] %vm389, %v376
      %410 = vst.msk [vmem:[%s213 + $0xa0] sm:$0xff] %vm389, %v377
      %411 = vst.msk [vmem:[%s213 + $0xa8] sm:$0xff] %vm389, %v378
      %412 = vst.msk [vmem:[%s213 + $0xb0] sm:$0xff] %vm389, %v379
      %413 = vst.msk [vmem:[%s213 + $0xb8] sm:$0xff] %vm389, %v380
      %414 = vst.msk [vmem:[%s213 + $0xc0] sm:$0xff] %vm389, %v381
      %415 = vst.msk [vmem:[%s213 + $0xc8] sm:$0xff] %vm389, %v382
      %416 = vst.msk [vmem:[%s213 + $0xd0] sm:$0xff] %vm389, %v383
      %417 = vst.msk [vmem:[%s213 + $0xd8] sm:$0xff] %vm389, %v384
      %418 = vst.msk [vmem:[%s213 + $0xe0] sm:$0xff] %vm389, %v385
      %419 = vst.msk [vmem:[%s213 + $0xe8] sm:$0xff] %vm389, %v386
      %420 = vst.msk [vmem:[%s213 + $0xf0] sm:$0xff] %vm389, %v387
      %421 = vst.msk [vmem:[%s213 + $0xf8] sm:$0xff] %vm389, %v388
      %s422 = smul.u32 16, %s19
      %p423 = scmp.lt.s32.totalorder %s18, 1
      %s424 = scalar_select %p423, %s18, 1
      %p425 = scmp.lt.s32.totalorder %s422, 15
      %s426 = scalar_select %p425, %s422, 15
      %s427 = smul.addr %s426, 2
      %s428 = smul.addr %s424, 32
      %s429 = sadd.s32 %s427, %s428
      %s430 = smul.addr %s429, 8
      %s431 = scalar_lea.vmem %s3, %s430
      // Predicated region
      $region33: #{deconv2d_block_forward.5} parent=31 // pred_check
        %p432 = pneg %p116
      $region34: #{deconv2d_block_forward.5} parent=31 // pred_check_branch
        %434 = sbr.rel (%p432) target = $region36
      $region35: #{deconv2d_block_forward.5} parent=31 // pred_region
        %s435 = smul.u32 16, %s19
      $region36: #{deconv2d_block_forward.5} parent=31 // pred_fallthru
        _
    $region32: #{deconv2d_block_forward.5} parent=5 // pred_fallthru
      _
    %p436 = scmp.le.s32.totalorder 2, %s9
    // Predicated region
    $region37: #{deconv2d_block_forward.5} parent=5 // pred_check
      %p437 = pneg %p436
    $region38: #{deconv2d_block_forward.5} parent=5 // pred_check_branch
      %439 = sbr.rel (%p437) target = $region40
    $region39: #{deconv2d_block_forward.5} parent=5 // pred_region
      %s440 = ssub.s32 %s9, 2
      // Predicated region
      $region41: #{deconv2d_block_forward.5} parent=39 // pred_check
        %p441 = pneg %p122
      $region42: #{deconv2d_block_forward.5} parent=39 // pred_check_branch
        %443 = sbr.rel (%p441) target = $region44
      $region43: #{deconv2d_block_forward.5} parent=39 // pred_region
        %s444 = smul.u32 16, %s21
        %p445 = scmp.lt.s32.totalorder %s20, 1
        %s446 = scalar_select %p445, %s20, 1
        %p447 = scmp.lt.s32.totalorder %s444, 15
        %s448 = scalar_select %p447, %s444, 15
        %s449 = smul.addr %s448, 2
        %s450 = smul.addr %s446, 32
        %s451 = sadd.s32 %s449, %s450
        %s452 = smul.addr %s451, 8
        %s453 = scalar_lea.vmem %s3, %s452
      $region44: #{deconv2d_block_forward.5} parent=39 // pred_fallthru
        _
    $region40: #{deconv2d_block_forward.5} parent=5 // pred_fallthru
      _
  $region6: #{deconv2d_block_forward.5} parent=0 // loop_footer
    %s13 = sadd.s32 1, %s9
  $region7: #{deconv2d_block_forward.5} parent=0 // loop_footer_branch
    %8 = sbr.rel target = $region3
  $region8: #{deconv2d_block_forward.5} parent=0 // loop_exit
    _

// kernel: deconv2d_block_forward.3
$region0: #{deconv2d_block_forward.3}
  #allocation0 [shape = 'u32[]', space=smem, size = 0x4, offset = 0x4, fixed_abs, tag = 'smem constant byte address 0x4 - core index']
  #allocation1 [shape = 'u32[144,128]{1,0:T(1,128)}', space=vmem, size = 0x12000, scoped, tag = 'internal scratch']
  %s0 = inlined_call_operand.vmem [shape: bf16[2,9,9,4], index: 0, kind: input, shape index: {}, may-alias: {0,1}]
  %s1 = inlined_call_operand.vmem [shape: bf16[2,9,9,4], index: 1, kind: input, shape index: {}, may-alias: {0,1}]
  %s2 = inlined_call_operand.vmem [shape: bf16[3,3,4,4], index: 2, kind: input, shape index: {}]
  %s3 = inlined_call_operand.vmem [shape: bf16[2,16,2,10,4], index: 3, kind: output, shape index: {0}]
  %s4 = inlined_call_operand.vmem [shape: f32[2,1,1,4], index: 4, kind: output, shape index: {1}]
  %s5 = inlined_call_operand.vmem [shape: f32[2,1,1,4], index: 5, kind: output, shape index: {2}]
  %6 = xla_tuple %s3, %s4, %s5
  %s7 = sld [smem:[#allocation0]]
  $region61: #{deconv2d_block_forward.3} parent=0
    _
  %s9 = ssub.s32 1, %s7
  %s10 = scalar_select 0, %s9, %s7
  loop: start=0, step=1, limit=4
  $region2: #{deconv2d_block_forward.3} parent=0 // loop_pre_header
    _
  $region3: #{deconv2d_block_forward.3} parent=0 // loop_header
    %s12 = sphi 0, %s16
    %p13 = scmp.ge.s32.totalorder %s12, 4
    %s19 = sphi 0, %s31
    %s20 = sphi 0, %s27
    %s21 = sphi 0, %s19
    %s22 = sphi 0, %s20
    %s23 = sphi 0, %s21
    %s24 = sphi 0, %s22
    %s36 = sphi 0, %s38
    %s39 = sphi 0, %s36
    %s40 = sphi 0, %s39
    %s56 = sphi 0, %s40
    %s68 = sphi 0, %s70
    %s71 = sphi 0, %s68
    %s72 = sphi 0, %s71
    %s88 = sphi 0, %s72
    %s92 = sphi 0, %s92
    %s94 = sphi 0, %s92
    %s95 = sphi 0, %s94
    %s109 = sphi 0, %s95
    %s117 = sphi 0, %s119
    %s120 = sphi 0, %s117
    %s121 = sphi 0, %s120
    %s137 = sphi 0, %s121
    %s145 = sphi 0, %s147
    %s148 = sphi 0, %s145
    %s149 = sphi 0, %s148
    %s165 = sphi 0, %s149
    %s173 = sphi 0, %s175
    %s176 = sphi 0, %s173
    %s177 = sphi 0, %s176
    %s193 = sphi 0, %s177
  $region4: #{deconv2d_block_forward.3} parent=0 // loop_header_branch
    %15 = sbr.rel (%p13) target = $region8
  $region5: #{deconv2d_block_forward.3} parent=0 // loop_body
    %s17 = ssub.s32 %s12, 1
    %s18 = ssub.s32 %s12, 2
    %s25 = sadd.s32 1, %s20
    %p26 = scmp.ge.s32.totalorder %s25, 1
    %s27 = scalar_select %p26, 0, %s25
    %s28 = sadd.s32 1, %s19
    %s29 = scalar_select %p26, %s28, %s19
    %p30 = scmp.ge.s32.totalorder %s29, 2
    %s31 = scalar_select %p30, 0, %s29
    %s32 = ssub.s32 %s19, %s31
    %s33 = ssub.s32 %s20, %s27
    %s34 = sor.u32 %s32, %s33
    %p35 = scmp.eq.s32.totalorder %s34, 0
    %s37 = sadd.s32 %s36, 1
    %s38 = scalar_select %p35, %s36, %s37
    %p41 = pneg %p35
    %p42 = scmp.eq.s32.totalorder %s12, 1
    %p43 = por %p41, %p42
    %p44 = scmp.ne.s32.totalorder %s36, %s39
    %p45 = scmp.eq.s32.totalorder %s12, 0
    %p46 = por %p44, %p45
    %p47 = scmp.ne.s32.totalorder %s36, %s39
    %p48 = scmp.eq.s32.totalorder %s17, 1
    %p49 = por %p47, %p48
    %p50 = scmp.ne.s32.totalorder %s39, %s40
    %p51 = scmp.eq.s32.totalorder %s17, 0
    %p52 = por %p50, %p51
    %p53 = scmp.ne.s32.totalorder %s39, %s40
    %p54 = scmp.eq.s32.totalorder %s18, 1
    %p55 = por %p53, %p54
    %p57 = scmp.ne.s32.totalorder %s40, %s56
    %p58 = scmp.eq.s32.totalorder %s18, 0
    %p59 = por %p57, %p58
    %s60 = smul.u32 %s20, 8
    %s61 = sadd.s32 %s60, 8
    %s62 = smul.u32 %s27, 8
    %s63 = sadd.s32 %s62, 8
    %s64 = ssub.s32 %s19, %s31
    %s65 = ssub.s32 %s61, %s63
    %s66 = sor.u32 %s64, %s65
    %p67 = scmp.eq.s32.totalorder %s66, 0
    %s69 = sadd.s32 %s68, 1
    %s70 = scalar_select %p67, %s68, %s69
    %p73 = pneg %p67
    %p74 = scmp.eq.s32.totalorder %s12, 1
    %p75 = por %p73, %p74
    %p76 = scmp.ne.s32.totalorder %s68, %s71
    %p77 = scmp.eq.s32.totalorder %s12, 0
    %p78 = por %p76, %p77
    %p79 = scmp.ne.s32.totalorder %s68, %s71
    %p80 = scmp.eq.s32.totalorder %s17, 1
    %p81 = por %p79, %p80
    %p82 = scmp.ne.s32.totalorder %s71, %s72
    %p83 = scmp.eq.s32.totalorder %s17, 0
    %p84 = por %p82, %p83
    %p85 = scmp.ne.s32.totalorder %s71, %s72
    %p86 = scmp.eq.s32.totalorder %s18, 1
    %p87 = por %p85, %p86
    %p89 = scmp.ne.s32.totalorder %s72, %s88
    %p90 = scmp.eq.s32.totalorder %s18, 0
    %p91 = por %p89, %p90
    %s93 = sadd.s32 %s92, 1
    %p96 = scmp.eq.s32.totalorder %s12, 1
    %p97 = scmp.ne.s32.totalorder %s92, %s94
    %p98 = scmp.eq.s32.totalorder %s12, 0
    %p99 = por %p97, %p98
    %p100 = scmp.ne.s32.totalorder %s92, %s94
    %p101 = scmp.eq.s32.totalorder %s17, 1
    %p102 = por %p100, %p101
    %p103 = scmp.ne.s32.totalorder %s94, %s95
    %p104 = scmp.eq.s32.totalorder %s17, 0
    %p105 = por %p103, %p104
    %p106 = scmp.ne.s32.totalorder %s94, %s95
    %p107 = scmp.eq.s32.totalorder %s18, 1
    %p108 = por %p106, %p107
    %p110 = scmp.ne.s32.totalorder %s95, %s109
    %p111 = scmp.eq.s32.totalorder %s18, 0
    %p112 = por %p110, %p111
    %s113 = ssub.s32 %s19, %s31
    %s114 = ssub.s32 %s20, %s27
    %s115 = sor.u32 %s113, %s114
    %p116 = scmp.eq.s32.totalorder %s115, 0
    %s118 = sadd.s32 %s117, 1
    %s119 = scalar_select %p116, %s117, %s118
    %p122 = pneg %p116
    %p123 = scmp.eq.s32.totalorder %s12, 1
    %p124 = por %p122, %p123
    %p125 = scmp.ne.s32.totalorder %s117, %s120
    %p126 = scmp.eq.s32.totalorder %s12, 0
    %p127 = por %p125, %p126
    %p128 = scmp.ne.s32.totalorder %s117, %s120
    %p129 = scmp.eq.s32.totalorder %s17, 1
    %p130 = por %p128, %p129
    %p131 = scmp.ne.s32.totalorder %s120, %s121
    %p132 = scmp.eq.s32.totalorder %s17, 0
    %p133 = por %p131, %p132
    %p134 = scmp.ne.s32.totalorder %s120, %s121
    %p135 = scmp.eq.s32.totalorder %s18, 1
    %p136 = por %p134, %p135
    %p138 = scmp.ne.s32.totalorder %s121, %s137
    %p139 = scmp.eq.s32.totalorder %s18, 0
    %p140 = por %p138, %p139
    %s141 = ssub.s32 %s19, %s31
    %s142 = ssub.s32 %s20, %s27
    %s143 = sor.u32 %s141, %s142
    %p144 = scmp.eq.s32.totalorder %s143, 0
    %s146 = sadd.s32 %s145, 1
    %s147 = scalar_select %p144, %s145, %s146
    %p150 = pneg %p144
    %p151 = scmp.eq.s32.totalorder %s12, 1
    %p152 = por %p150, %p151
    %p153 = scmp.ne.s32.totalorder %s145, %s148
    %p154 = scmp.eq.s32.totalorder %s12, 0
    %p155 = por %p153, %p154
    %p156 = scmp.ne.s32.totalorder %s145, %s148
    %p157 = scmp.eq.s32.totalorder %s17, 1
    %p158 = por %p156, %p157
    %p159 = scmp.ne.s32.totalorder %s148, %s149
    %p160 = scmp.eq.s32.totalorder %s17, 0
    %p161 = por %p159, %p160
    %p162 = scmp.ne.s32.totalorder %s148, %s149
    %p163 = scmp.eq.s32.totalorder %s18, 1
    %p164 = por %p162, %p163
    %p166 = scmp.ne.s32.totalorder %s149, %s165
    %p167 = scmp.eq.s32.totalorder %s18, 0
    %p168 = por %p166, %p167
    %s169 = ssub.s32 %s19, %s31
    %s170 = ssub.s32 %s20, %s27
    %s171 = sor.u32 %s169, %s170
    %p172 = scmp.eq.s32.totalorder %s171, 0
    %s174 = sadd.s32 %s173, 1
    %s175 = scalar_select %p172, %s173, %s174
    %p178 = pneg %p172
    %p179 = scmp.eq.s32.totalorder %s12, 1
    %p180 = por %p178, %p179
    %p181 = scmp.ne.s32.totalorder %s173, %s176
    %p182 = scmp.eq.s32.totalorder %s12, 0
    %p183 = por %p181, %p182
    %p184 = scmp.ne.s32.totalorder %s173, %s176
    %p185 = scmp.eq.s32.totalorder %s17, 1
    %p186 = por %p184, %p185
    %p187 = scmp.ne.s32.totalorder %s176, %s177
    %p188 = scmp.eq.s32.totalorder %s17, 0
    %p189 = por %p187, %p188
    %p190 = scmp.ne.s32.totalorder %s176, %s177
    %p191 = scmp.eq.s32.totalorder %s18, 1
    %p192 = por %p190, %p191
    %p194 = scmp.ne.s32.totalorder %s177, %s193
    %p195 = scmp.eq.s32.totalorder %s18, 0
    %p196 = por %p194, %p195
    %p197 = scmp.le.s32.totalorder 1, %s12
    %p198 = scmp.lt.s32.totalorder %s12, 3
    %p199 = pnand %p197, %p198
    %p200 = pneg %p199
    // Predicated region
    $region9: #{deconv2d_block_forward.3} parent=5 // pred_check
      _
    $region10: #{deconv2d_block_forward.3} parent=5 // pred_check_branch
      %202 = sbr.rel (%p199) target = $region12
    $region11: #{deconv2d_block_forward.3} parent=5 // pred_region
      %s203 = ssub.s32 %s12, 1
      // Predicated region
      $region13: #{deconv2d_block_forward.3} parent=11 // pred_check
        %p204 = pneg %p105
      $region14: #{deconv2d_block_forward.3} parent=11 // pred_check_branch
        %206 = sbr.rel (%p204) target = $region16
      $region15: #{deconv2d_block_forward.3} parent=11 // pred_region
        _
      $region16: #{deconv2d_block_forward.3} parent=11 // pred_fallthru
        _
    $region12: #{deconv2d_block_forward.3} parent=5 // pred_fallthru
      _
    %p207 = scmp.lt.s32.totalorder %s12, 2
    // Predicated region
    $region17: #{deconv2d_block_forward.3} parent=5 // pred_check
      %p208 = pneg %p207
    $region18: #{deconv2d_block_forward.3} parent=5 // pred_check_branch
      %210 = sbr.rel (%p208) target = $region20
    $region19: #{deconv2d_block_forward.3} parent=5 // pred_region
      // Predicated region
      $region21: #{deconv2d_block_forward.3} parent=19 // pred_check
        %p211 = pneg %p46
      $region22: #{deconv2d_block_forward.3} parent=19 // pred_check_branch
        %213 = sbr.rel (%p211) target = $region24
      $region23: #{deconv2d_block_forward.3} parent=19 // pred_region
        %s214 = smul.u32 8, %s20
        %s215 = ssub.s32 9, %s214
        %p216 = scmp.lt.s32.totalorder %s215, 8
        %s217 = scalar_select %p216, %s215, 8
        %s218 = smul.u32 64, %s217
        %s219 = smul.u32 %s218, 2
        %p220 = scmp.lt.s32.totalorder %s19, 1
        %s221 = scalar_select %p220, %s19, 1
        %p222 = scmp.lt.s32.totalorder %s214, 8
        %s223 = scalar_select %p222, %s214, 8
        %s224 = smul.addr %s223, 2
        %s225 = smul.addr %s221, 18
        %s226 = sadd.s32 %s224, %s225
        %s227 = smul.addr %s226, 4
        %s228 = scalar_lea.vmem %s0, %s227
        %s229 = smul.u32 8, %s20
        %s230 = ssub.s32 9, %s229
        %p231 = scmp.lt.s32.totalorder %s230, 8
        %s232 = scalar_select %p231, %s230, 8
        %s233 = smul.u32 64, %s232
        %s234 = smul.u32 %s233, 2
      $region24: #{deconv2d_block_forward.3} parent=19 // pred_fallthru
        _
      // Predicated region
      $region25: #{deconv2d_block_forward.3} parent=19 // pred_check
        %p235 = pneg %p78
      $region26: #{deconv2d_block_forward.3} parent=19 // pred_check_branch
        %237 = sbr.rel (%p235) target = $region28
      $region27: #{deconv2d_block_forward.3} parent=19 // pred_region
        %s238 = smul.u32 %s20, 8
        %s239 = sadd.s32 %s238, 8
        %p240 = scmp.lt.s32.totalorder %s19, 1
        %s241 = scalar_select %p240, %s19, 1
        %p242 = scmp.lt.s32.totalorder %s239, 8
        %s243 = scalar_select %p242, %s239, 8
        %s244 = smul.addr %s243, 2
        %s245 = smul.addr %s241, 18
        %s246 = sadd.s32 %s244, %s245
        %s247 = smul.addr %s246, 4
        %s248 = scalar_lea.vmem %s1, %s247
        %s249 = smul.u32 %s20, 8
        %s250 = sadd.s32 %s249, 8
      $region28: #{deconv2d_block_forward.3} parent=19 // pred_fallthru
        _
    $region20: #{deconv2d_block_forward.3} parent=5 // pred_fallthru
      _
    %p251 = scmp.le.s32.totalorder 1, %s12
    %p252 = scmp.lt.s32.totalorder %s12, 3
    %p253 = pnand %p251, %p252
    %p254 = pneg %p253
    // Predicated region
    $region29: #{deconv2d_block_forward.3} parent=5 // pred_check
      _
    $region30: #{deconv2d_block_forward.3} parent=5 // pred_check_branch
      %256 = sbr.rel (%p253) target = $region32
    $region31: #{deconv2d_block_forward.3} parent=5 // pred_region
      %s257 = ssub.s32 %s12, 1
      %s258 = smul.u32 8, %s22
      %s259 = ssub.s32 9, %s258
      %p260 = scmp.lt.s32.totalorder %s259, 8
      %s261 = scalar_select %p260, %s259, 8
      %s262 = smul.u32 64, %s261
      %s263 = smul.u32 %s262, 2
      %p264 = scmp.lt.s32.totalorder %s21, 1
      %s265 = scalar_select %p264, %s21, 1
      %p266 = scmp.lt.s32.totalorder %s258, 8
      %s267 = scalar_select %p266, %s258, 8
      %s268 = smul.addr %s267, 2
      %s269 = smul.addr %s265, 18
      %s270 = sadd.s32 %s268, %s269
      %s271 = smul.addr %s270, 4
      %s272 = scalar_lea.vmem %s0, %s271
      %p273 = pneg %p52
      %p274 = pneg %p49
      %s275 = smul.u32 %s22, 8
      %s276 = sadd.s32 %s275, 8
      %p277 = scmp.lt.s32.totalorder %s21, 1
      %s278 = scalar_select %p277, %s21, 1
      %p279 = scmp.lt.s32.totalorder %s276, 8
      %s280 = scalar_select %p279, %s276, 8
      %s281 = smul.addr %s280, 2
      %s282 = smul.addr %s278, 18
      %s283 = sadd.s32 %s281, %s282
      %s284 = smul.addr %s283, 4
      %s285 = scalar_lea.vmem %s1, %s284
      %p286 = pneg %p84
      %p287 = pneg %p81
      %p288 = pneg %p105
      %p289 = pneg %p102
      %p290 = pneg %p133
      %p291 = pneg %p130
      %s292 = smul.u32 16, %s22
      %p293 = scmp.lt.s32.totalorder %s21, 1
      %s294 = scalar_select %p293, %s21, 1
      %p295 = scmp.lt.s32.totalorder %s292, 15
      %s296 = scalar_select %p295, %s292, 15
      %s297 = smul.addr %s296, 4
      %s298 = smul.addr %s294, 64
      %s299 = sadd.s32 %s297, %s298
      %s300 = smul.addr %s299, 4
      %s301 = scalar_lea.vmem %s3, %s300
      %p302 = pneg %p161
      %p303 = pneg %p158
      %p304 = scmp.lt.s32.totalorder %s21, 1
      %s305 = scalar_select %p304, %s21, 1
      %p306 = scmp.lt.s32.totalorder %s22, 0
      %s307 = scalar_select %p306, %s22, 0
      %s308 = sadd.s32 %s307, %s305
      %s309 = scalar_lea.vmem %s4, %s308
      %p310 = pneg %p189
      %p311 = pneg %p186
      %p312 = scmp.lt.s32.totalorder %s21, 1
      %s313 = scalar_select %p312, %s21, 1
      %p314 = scmp.lt.s32.totalorder %s22, 0
      %s315 = scalar_select %p314, %s22, 0
      %s316 = sadd.s32 %s315, %s313
      %s317 = scalar_lea.vmem %s5, %s316
      %s318 = smul.u32 8, %s22
      %s319 = ssub.s32 9, %s318
      %p320 = scmp.lt.s32.totalorder %s319, 8
      %s321 = scalar_select %p320, %s319, 8
      %s322 = smul.u32 64, %s321
      %s323 = smul.u32 %s322, 2
      %p324 = scmp.lt.s32.totalorder %s21, 1
      %s325 = scalar_select %p324, %s21, 1
      %p326 = scmp.lt.s32.totalorder %s318, 8
      %s327 = scalar_select %p326, %s318, 8
      %s328 = smul.addr %s327, 2
      %s329 = smul.addr %s325, 18
      %s330 = sadd.s32 %s328, %s329
      %s331 = smul.addr %s330, 4
      %s332 = scalar_lea.vmem %s0, %s331
      %s333 = smul.u32 8, %s22
      %s334 = ssub.s32 9, %s333
      %p335 = scmp.lt.s32.totalorder %s334, 8
      %s336 = scalar_select %p335, %s334, 8
      %s337 = smul.u32 64, %s336
      %s338 = smul.u32 %s337, 2
      %s339 = smul.u32 %s22, 8
      %s340 = sadd.s32 %s339, 8
      %p341 = scmp.lt.s32.totalorder %s21, 1
      %s342 = scalar_select %p341, %s21, 1
      %p343 = scmp.lt.s32.totalorder %s340, 8
      %s344 = scalar_select %p343, %s340, 8
      %s345 = smul.addr %s344, 2
      %s346 = smul.addr %s342, 18
      %s347 = sadd.s32 %s345, %s346
      %s348 = smul.addr %s347, 4
      %s349 = scalar_lea.vmem %s1, %s348
      %s350 = smul.u32 %s22, 8
      %s351 = sadd.s32 %s350, 8
      %s352 = smul.u32 16, %s22
      %p353 = scmp.lt.s32.totalorder %s21, 1
      %s354 = scalar_select %p353, %s21, 1
      %p355 = scmp.lt.s32.totalorder %s352, 15
      %s356 = scalar_select %p355, %s352, 15
      %s357 = smul.addr %s356, 4
      %s358 = smul.addr %s354, 64
      %s359 = sadd.s32 %s357, %s358
      %s360 = smul.addr %s359, 4
      %s361 = scalar_lea.vmem %s3, %s360
      %s362 = smul.u32 16, %s22
      %p363 = scmp.lt.s32.totalorder %s21, 1
      %s364 = scalar_select %p363, %s21, 1
      %p365 = scmp.lt.s32.totalorder %s22, 0
      %s366 = scalar_select %p365, %s22, 0
      %s367 = sadd.s32 %s366, %s364
      %s368 = scalar_lea.vmem %s4, %s367
      %p369 = scmp.lt.s32.totalorder %s21, 1
      %s370 = scalar_select %p369, %s21, 1
      %p371 = scmp.lt.s32.totalorder %s22, 0
      %s372 = scalar_select %p371, %s22, 0
      %s373 = sadd.s32 %s372, %s370
      %s374 = scalar_lea.vmem %s5, %s373
      %v376 = vld [vmem:[%s332] sm:$0xf]
      %v377 = vld [vmem:[%s332 + $0x4] sm:$0x1]
      %v378 = vld [vmem:[%s332 + $0x8] sm:$0xf]
      %v379 = vld [vmem:[%s332 + $0xc] sm:$0x1]
      %v380 = vld [vmem:[%s332 + $0x10] sm:$0xf]
      %v381 = vld [vmem:[%s332 + $0x14] sm:$0x1]
      %v382 = vld [vmem:[%s332 + $0x18] sm:$0xf]
      %v383 = vld [vmem:[%s332 + $0x1c] sm:$0x1]
      %v384 = vld [vmem:[%s332 + $0x20] sm:$0xf]
      %v385 = vld [vmem:[%s332 + $0x24] sm:$0x1]
      %v386 = vld [vmem:[%s332 + $0x28] sm:$0xf]
      %v387 = vld [vmem:[%s332 + $0x2c] sm:$0x1]
      %v388 = vld [vmem:[%s332 + $0x30] sm:$0xf]
      %v389 = vld [vmem:[%s332 + $0x34] sm:$0x1]
      %v390 = vld [vmem:[%s332 + $0x38] sm:$0xf]
      %v391 = vld [vmem:[%s332 + $0x3c] sm:$0x1]
      %v392 = vld [vmem:[%s349] sm:$0xf]
      %v393 = vld [vmem:[%s349 + $0x4] sm:$0x1]
      %vm394 = vsmask.f32 3328
      %vm395 = vsmask.f32 7440
      %vm396 = vmor %vm394, %vm395
      %v398 = vshrl.u32 %v376, 16
      %v400 = vrot.slane %v398, 4
      %v401 = vshll.u32 %v376, 16
      %v403 = vrot.slane %v401, 5
      %v404 = vor.u32 %v400, %v403
      %v405 = vrot.slane %v404, 4
      %v407 = vshll.u32 %v377, 16
      %v409 = vrot.slane %v407, 5
      %v410 = vsel %vm396, %v405, %v409
      %v412 = vshrl.u32 %v378, 16
      %v414 = vrot.slane %v412, 4
      %v415 = vshll.u32 %v378, 16
      %v417 = vrot.slane %v415, 5
      %v418 = vor.u32 %v414, %v417
      %v419 = vrot.slane %v418, 4
      %v421 = vshll.u32 %v379, 16
      %v423 = vrot.slane %v421, 5
      %v424 = vsel %vm396, %v419, %v423
      %v426 = vshrl.u32 %v380, 16
      %v428 = vrot.slane %v426, 4
      %v429 = vshll.u32 %v380, 16
      %v431 = vrot.slane %v429, 5
      %v432 = vor.u32 %v428, %v431
      %v433 = vrot.slane %v432, 4
      %v435 = vshll.u32 %v381, 16
      %v437 = vrot.slane %v435, 5
      %v438 = vsel %vm396, %v433, %v437
      %v440 = vshrl.u32 %v382, 16
      %v442 = vrot.slane %v440, 4
      %v443 = vshll.u32 %v382, 16
      %v445 = vrot.slane %v443, 5
      %v446 = vor.u32 %v442, %v445
      %v447 = vrot.slane %v446, 4
      %v449 = vshll.u32 %v383, 16
      %v451 = vrot.slane %v449, 5
      %v452 = vsel %vm396, %v447, %v451
      %v454 = vshrl.u32 %v384, 16
      %v456 = vrot.slane %v454, 4
      %v457 = vshll.u32 %v384, 16
      %v459 = vrot.slane %v457, 5
      %v460 = vor.u32 %v456, %v459
      %v461 = vrot.slane %v460, 4
      %v463 = vshll.u32 %v385, 16
      %v465 = vrot.slane %v463, 5
      %v466 = vsel %vm396, %v461, %v465
      %v468 = vshrl.u32 %v386, 16
      %v470 = vrot.slane %v468, 4
      %v471 = vshll.u32 %v386, 16
      %v473 = vrot.slane %v471, 5
      %v474 = vor.u32 %v470, %v473
      %v475 = vrot.slane %v474, 4
      %v477 = vshll.u32 %v387, 16
      %v479 = vrot.slane %v477, 5
      %v480 = vsel %vm396, %v475, %v479
      %v482 = vshrl.u32 %v388, 16
      %v484 = vrot.slane %v482, 4
      %v485 = vshll.u32 %v388, 16
      %v487 = vrot.slane %v485, 5
      %v488 = vor.u32 %v484, %v487
      %v489 = vrot.slane %v488, 4
      %v491 = vshll.u32 %v389, 16
      %v493 = vrot.slane %v491, 5
      %v494 = vsel %vm396, %v489, %v493
      %v496 = vshrl.u32 %v390, 16
      %v498 = vrot.slane %v496, 4
      %v499 = vshll.u32 %v390, 16
      %v501 = vrot.slane %v499, 5
      %v502 = vor.u32 %v498, %v501
      %v503 = vrot.slane %v502, 4
      %v505 = vshll.u32 %v391, 16
      %v507 = vrot.slane %v505, 5
      %v508 = vsel %vm396, %v503, %v507
      %v510 = vshrl.u32 %v392, 16
      %v512 = vrot.slane %v510, 4
      %v513 = vshll.u32 %v392, 16
      %v515 = vrot.slane %v513, 5
      %v516 = vor.u32 %v512, %v515
      %v517 = vrot.slane %v516, 4
      %v519 = vshll.u32 %v393, 16
      %v521 = vrot.slane %v519, 5
      %v522 = vsel %vm396, %v517, %v521
      %s523 = scalar_lea.vmem %s2, 8
      %v524 = vld [vmem:[%s523] sm:$0x3]
      %v533 = vunpack.c.l.b16 %v376
      %v534 = vunpack.c.l.b16 %v378
      %v535 = vunpack.c.l.b16 %v380
      %v536 = vunpack.c.l.b16 %v382
      %v537 = vunpack.c.l.b16 %v384
      %v538 = vunpack.c.l.b16 %v386
      %v539 = vunpack.c.l.b16 %v388
      %v540 = vunpack.c.l.b16 %v390
      %v541 = vpack.c.b16 %v534, %v533
      %v542 = vpack.c.b16 %v536, %v535
      %v543 = vpack.c.b16 %v538, %v537
      %v544 = vpack.c.b16 %v540, %v539
      %vm545 = vcmask 31744
      %v547 = vsel %vm545, %v541, 0
      %v550 = vsel %vm545, %v542, 0
      %v553 = vsel %vm545, %v543, 0
      %v556 = vsel %vm545, %v544, 0
      %vm558 = vcmask 1041408
      %v560 = vsel %vm558, %v524, 0
      %562 = vmatprep.subr.bf16.mxu0 0
      %563 = vmatpush1.bf16.msra.mxu0 %v560
      %564 = vmatprep.subr.bf16.mxu0 0
      %565 = vmatpush1.bf16.msra.mxu0 0
      %566 = vmatprep.subr.bf16.mxu0 0
      %567 = vmatpush1.bf16.msra.mxu0 0
      %568 = vmatprep.subr.bf16.mxu0 0
      %569 = vmatpush1.bf16.msra.mxu0 0
      %570 = vmatprep.subr.bf16.mxu0 0
      %571 = vmatpush1.bf16.msra.mxu0 0
      %572 = vmatprep.subr.bf16.mxu0 0
      %573 = vmatpush1.bf16.msra.mxu0 0
      %574 = vmatprep.subr.bf16.mxu0 0
      %575 = vmatpush1.bf16.msra.mxu0 0
      %576 = vmatprep.subr.bf16.mxu0 0
      %577 = vmatpush1.bf16.msra.mxu0 0
      %578 = vmatprep.subr.bf16.mxu0 0
      %579 = vmatpush1.bf16.msra.mxu0 0
      %580 = vmatprep.subr.bf16.mxu0 0
      %581 = vmatpush1.bf16.msra.mxu0 0
      %582 = vmatprep.subr.bf16.mxu0 0
      %583 = vmatpush1.bf16.msra.mxu0 0
      %584 = vmatprep.subr.bf16.mxu0 0
      %585 = vmatpush1.bf16.msra.mxu0 0
      %586 = vmatprep.subr.bf16.mxu0 0
      %587 = vmatpush1.bf16.msra.mxu0 0
      %588 = vmatprep.subr.bf16.mxu0 0
      %589 = vmatpush1.bf16.msra.mxu0 0
      %590 = vmatprep.subr.bf16.mxu0 0
      %591 = vmatpush1.bf16.msra.mxu0 0
      %592 = vmatprep.subr.bf16.mxu0 0
      %593 = vmatpush1.bf16.msra.mxu0 0
      %594 = vmatprep.mubr.bf16.mxu0 0
      %595 = vmatmul.mubr.bf16.gmra.mrb[0].mxu0 %v547
      %v596 = vpop.f32.mrb[0].mxu0
      %v597 = vadd.f32 0.0, %v596
      %v598 = vpop.f32.mrb[0].mxu0
      %v599 = vpop.f32.mrb[0].mxu0
      %v600 = vadd.f32 0.0, %v599
      %v601 = vpop.f32.mrb[0].mxu0
      %602 = vmatprep.mubr.bf16.mxu0 0
      %603 = vmatmul.mubr.bf16.gmra.mrb[0].mxu0 %v550
      %v604 = vpop.f32.mrb[0].mxu0
      %v605 = vadd.f32 0.0, %v604
      %v606 = vpop.f32.mrb[0].mxu0
      %v607 = vpop.f32.mrb[0].mxu0
      %v608 = vadd.f32 0.0, %v607
      %v609 = vpop.f32.mrb[0].mxu0
      %610 = vmatprep.mubr.bf16.mxu0 0
      %611 = vmatmul.mubr.bf16.gmra.mrb[0].mxu0 %v553
      %v612 = vpop.f32.mrb[0].mxu0
      %v613 = vadd.f32 0.0, %v612
      %v614 = vpop.f32.mrb[0].mxu0
      %v615 = vpop.f32.mrb[0].mxu0
      %v616 = vadd.f32 0.0, %v615
      %v617 = vpop.f32.mrb[0].mxu0
      %618 = vmatprep.mubr.bf16.mxu0 0
      %619 = vmatmul.mubr.bf16.gmra.mrb[0].mxu0 %v556
      %v620 = vpop.f32.mrb[0].mxu0
      %v621 = vadd.f32 0.0, %v620
      %v622 = vpop.f32.mrb[0].mxu0
      %v623 = vpop.f32.mrb[0].mxu0
      %v624 = vadd.f32 0.0, %v623
      %v625 = vpop.f32.mrb[0].mxu0
      %626 = vdwg.mxu0
      %s627 = scalar_lea.vmem %s2, 10
      %v628 = vld [vmem:[%s627] sm:$0x3]
      %s629 = scalar_lea.vmem %s2, 6
      %v630 = vld [vmem:[%s629] sm:$0x3]
      %v631 = vunpack.c.l.b16 %v410
      %v632 = vunpack.c.l.b16 %v424
      %v633 = vunpack.c.l.b16 %v438
      %v634 = vunpack.c.l.b16 %v452
      %v635 = vunpack.c.l.b16 %v466
      %v636 = vunpack.c.l.b16 %v480
      %v637 = vunpack.c.l.b16 %v494
      %v638 = vunpack.c.l.b16 %v508
      %v639 = vpack.c.b16 %v632, %v631
      %v640 = vpack.c.b16 %v634, %v633
      %v641 = vpack.c.b16 %v636, %v635
      %v642 = vpack.c.b16 %v638, %v637
      %v644 = vsel %vm545, %v639, 0
      %v647 = vsel %vm545, %v640, 0
      %v650 = vsel %vm545, %v641, 0
      %v653 = vsel %vm545, %v642, 0
      %v656 = vsel %vm558, %v630, 0
      %658 = vmatprep.subr.bf16.mxu0 0
      %659 = vmatpush1.bf16.msra.mxu0 %v656
      %660 = vmatprep.subr.bf16.mxu0 0
      %661 = vmatpush1.bf16.msra.mxu0 0
      %662 = vmatprep.subr.bf16.mxu0 0
      %663 = vmatpush1.bf16.msra.mxu0 0
      %664 = vmatprep.subr.bf16.mxu0 0
      %665 = vmatpush1.bf16.msra.mxu0 0
      %666 = vmatprep.subr.bf16.mxu0 0
      %667 = vmatpush1.bf16.msra.mxu0 0
      %668 = vmatprep.subr.bf16.mxu0 0
      %669 = vmatpush1.bf16.msra.mxu0 0
      %670 = vmatprep.subr.bf16.mxu0 0
      %671 = vmatpush1.bf16.msra.mxu0 0
      %672 = vmatprep.subr.bf16.mxu0 0
      %673 = vmatpush1.bf16.msra.mxu0 0
      %674 = vmatprep.subr.bf16.mxu0 0
      %675 = vmatpush1.bf16.msra.mxu0 0
      %676 = vmatprep.subr.bf16.mxu0 0
      %677 = vmatpush1.bf16.msra.mxu0 0
      %678 = vmatprep.subr.bf16.mxu0 0
      %679 = vmatpush1.bf16.msra.mxu0 0
      %680 = vmatprep.subr.bf16.mxu0 0
      %681 = vmatpush1.bf16.msra.mxu0 0
      %682 = vmatprep.subr.bf16.mxu0 0
      %683 = vmatpush1.bf16.msra.mxu0 0
      %684 = vmatprep.subr.bf16.mxu0 0
      %685 = vmatpush1.bf16.msra.mxu0 0
      %686 = vmatprep.subr.bf16.mxu0 0
      %687 = vmatpush1.bf16.msra.mxu0 0
      %688 = vmatprep.subr.bf16.mxu0 0
      %689 = vmatpush1.bf16.msra.mxu0 0
      %690 = vmatprep.mubr.bf16.mxu0 0
      %691 = vmatmul.mubr.bf16.gmra.mrb[0].mxu0 %v644
      %v692 = vpop.f32.mrb[0].mxu0
      %v693 = vadd.f32 0.0, %v692
      %v694 = vpop.f32.mrb[0].mxu0
      %v695 = vpop.f32.mrb[0].mxu0
      %v696 = vadd.f32 0.0, %v695
      %v697 = vpop.f32.mrb[0].mxu0
      %698 = vmatprep.mubr.bf16.mxu0 0
      %699 = vmatmul.mubr.bf16.gmra.mrb[0].mxu0 %v647
      %v700 = vpop.f32.mrb[0].mxu0
      %v701 = vadd.f32 0.0, %v700
      %v702 = vpop.f32.mrb[0].mxu0
      %v703 = vpop.f32.mrb[0].mxu0
      %v704 = vadd.f32 0.0, %v703
      %v705 = vpop.f32.mrb[0].mxu0
      %706 = vmatprep.mubr.bf16.mxu0 0
      %707 = vmatmul.mubr.bf16.gmra.mrb[0].mxu0 %v650
      %v708 = vpop.f32.mrb[0].mxu0
      %v709 = vadd.f32 0.0, %v708
      %v710 = vpop.f32.mrb[0].mxu0
      %v711 = vpop.f32.mrb[0].mxu0
      %v712 = vadd.f32 0.0, %v711
      %v713 = vpop.f32.mrb[0].mxu0
      %714 = vmatprep.mubr.bf16.mxu0 0
      %715 = vmatmul.mubr.bf16.gmra.mrb[0].mxu0 %v653
      %v716 = vpop.f32.mrb[0].mxu0
      %v717 = vadd.f32 0.0, %v716
      %v718 = vpop.f32.mrb[0].mxu0
      %v719 = vpop.f32.mrb[0].mxu0
      %v720 = vadd.f32 0.0, %v719
      %v721 = vpop.f32.mrb[0].mxu0
      %722 = vdwg.mxu0
      %v724 = vsel %vm558, %v628, 0
      %726 = vmatprep.subr.bf16.mxu0 0
      %727 = vmatpush1.bf16.msra.mxu0 %v724
      %728 = vmatprep.subr.bf16.mxu0 0
      %729 = vmatpush1.bf16.msra.mxu0 0
      %730 = vmatprep.subr.bf16.mxu0 0
      %731 = vmatpush1.bf16.msra.mxu0 0
      %732 = vmatprep.subr.bf16.mxu0 0
      %733 = vmatpush1.bf16.msra.mxu0 0
      %734 = vmatprep.subr.bf16.mxu0 0
      %735 = vmatpush1.bf16.msra.mxu0 0
      %736 = vmatprep.subr.bf16.mxu0 0
      %737 = vmatpush1.bf16.msra.mxu0 0
      %738 = vmatprep.subr.bf16.mxu0 0
      %739 = vmatpush1.bf16.msra.mxu0 0
      %740 = vmatprep.subr.bf16.mxu0 0
      %741 = vmatpush1.bf16.msra.mxu0 0
      %742 = vmatprep.subr.bf16.mxu0 0
      %743 = vmatpush1.bf16.msra.mxu0 0
      %744 = vmatprep.subr.bf16.mxu0 0
      %745 = vmatpush1.bf16.msra.mxu0 0
      %746 = vmatprep.subr.bf16.mxu0 0
      %747 = vmatpush1.bf16.msra.mxu0 0
      %748 = vmatprep.subr.bf16.mxu0 0
      %749 = vmatpush1.bf16.msra.mxu0 0
      %750 = vmatprep.subr.bf16.mxu0 0
      %751 = vmatpush1.bf16.msra.mxu0 0
      %752 = vmatprep.subr.bf16.mxu0 0
      %753 = vmatpush1.bf16.msra.mxu0 0
      %754 = vmatprep.subr.bf16.mxu0 0
      %755 = vmatpush1.bf16.msra.mxu0 0
      %756 = vmatprep.subr.bf16.mxu0 0
      %757 = vmatpush1.bf16.msra.mxu0 0
      %758 = vmatprep.mubr.bf16.mxu0 0
      %759 = vmatmul.mubr.bf16.gmra.mrb[0].mxu0 %v547
      %v760 = vpop.f32.mrb[0].mxu0
      %v761 = vadd.f32 %v693, %v760
      %v762 = vpop.f32.mrb[0].mxu0
      %v763 = vpop.f32.mrb[0].mxu0
      %v764 = vadd.f32 %v696, %v763
      %v765 = vpop.f32.mrb[0].mxu0
      %766 = vmatprep.mubr.bf16.mxu0 0
      %767 = vmatmul.mubr.bf16.gmra.mrb[0].mxu0 %v550
      %v768 = vpop.f32.mrb[0].mxu0
      %v769 = vadd.f32 %v701, %v768
      %v770 = vpop.f32.mrb[0].mxu0
      %v771 = vpop.f32.mrb[0].mxu0
      %v772 = vadd.f32 %v704, %v771
      %v773 = vpop.f32.mrb[0].mxu0
      %774 = vmatprep.mubr.bf16.mxu0 0
      %775 = vmatmul.mubr.bf16.gmra.mrb[0].mxu0 %v553
      %v776 = vpop.f32.mrb[0].mxu0
      %v777 = vadd.f32 %v709, %v776
      %v778 = vpop.f32.mrb[0].mxu0
      %v779 = vpop.f32.mrb[0].mxu0
      %v780 = vadd.f32 %v712, %v779
      %v781 = vpop.f32.mrb[0].mxu0
      %782 = vmatprep.mubr.bf16.mxu0 0
      %783 = vmatmul.mubr.bf16.gmra.mrb[0].mxu0 %v556
      %v784 = vpop.f32.mrb[0].mxu0
      %v785 = vadd.f32 %v717, %v784
      %v786 = vpop.f32.mrb[0].mxu0
      %v787 = vpop.f32.mrb[0].mxu0
      %v788 = vadd.f32 %v720, %v787
      %v789 = vpop.f32.mrb[0].mxu0
      %790 = vdwg.mxu0
      %s791 = scalar_lea.vmem %s2, 14
      %v792 = vld [vmem:[%s791] sm:$0x3]
      %s793 = scalar_lea.vmem %s2, 2
      %v794 = vld [vmem:[%s793] sm:$0x3]
      %v796 = vunpack.c.l.b16 %v392
      %v797 = vpack.c.b16 %v535, %v534
      %v798 = vpack.c.b16 %v537, %v536
      %v799 = vpack.c.b16 %v539, %v538
      %v800 = vpack.c.b16 %v796, %v540
      %v802 = vsel %vm545, %v797, 0
      %v805 = vsel %vm545, %v798, 0
      %v808 = vsel %vm545, %v799, 0
      %v811 = vsel %vm545, %v800, 0
      %v814 = vsel %vm558, %v794, 0
      %816 = vmatprep.subr.bf16.mxu0 0
      %817 = vmatpush1.bf16.msra.mxu0 %v814
      %818 = vmatprep.subr.bf16.mxu0 0
      %819 = vmatpush1.bf16.msra.mxu0 0
      %820 = vmatprep.subr.bf16.mxu0 0
      %821 = vmatpush1.bf16.msra.mxu0 0
      %822 = vmatprep.subr.bf16.mxu0 0
      %823 = vmatpush1.bf16.msra.mxu0 0
      %824 = vmatprep.subr.bf16.mxu0 0
      %825 = vmatpush1.bf16.msra.mxu0 0
      %826 = vmatprep.subr.bf16.mxu0 0
      %827 = vmatpush1.bf16.msra.mxu0 0
      %828 = vmatprep.subr.bf16.mxu0 0
      %829 = vmatpush1.bf16.msra.mxu0 0
      %830 = vmatprep.subr.bf16.mxu0 0
      %831 = vmatpush1.bf16.msra.mxu0 0
      %832 = vmatprep.subr.bf16.mxu0 0
      %833 = vmatpush1.bf16.msra.mxu0 0
      %834 = vmatprep.subr.bf16.mxu0 0
      %835 = vmatpush1.bf16.msra.mxu0 0
      %836 = vmatprep.subr.bf16.mxu0 0
      %837 = vmatpush1.bf16.msra.mxu0 0
      %838 = vmatprep.subr.bf16.mxu0 0
      %839 = vmatpush1.bf16.msra.mxu0 0
      %840 = vmatprep.subr.bf16.mxu0 0
      %841 = vmatpush1.bf16.msra.mxu0 0
      %842 = vmatprep.subr.bf16.mxu0 0
      %843 = vmatpush1.bf16.msra.mxu0 0
      %844 = vmatprep.subr.bf16.mxu0 0
      %845 = vmatpush1.bf16.msra.mxu0 0
      %846 = vmatprep.subr.bf16.mxu0 0
      %847 = vmatpush1.bf16.msra.mxu0 0
      %848 = vmatprep.mubr.bf16.mxu0 0
      %849 = vmatmul.mubr.bf16.gmra.mrb[0].mxu0 %v802
      %v850 = vpop.f32.mrb[0].mxu0
      %v851 = vadd.f32 0.0, %v850
      %v852 = vpop.f32.mrb[0].mxu0
      %v853 = vpop.f32.mrb[0].mxu0
      %v854 = vadd.f32 0.0, %v853
      %v855 = vpop.f32.mrb[0].mxu0
      %856 = vmatprep.mubr.bf16.mxu0 0
      %857 = vmatmul.mubr.bf16.gmra.mrb[0].mxu0 %v805
      %v858 = vpop.f32.mrb[0].mxu0
      %v859 = vadd.f32 0.0, %v858
      %v860 = vpop.f32.mrb[0].mxu0
      %v861 = vpop.f32.mrb[0].mxu0
      %v862 = vadd.f32 0.0, %v861
      %v863 = vpop.f32.mrb[0].mxu0
      %864 = vmatprep.mubr.bf16.mxu0 0
      %865 = vmatmul.mubr.bf16.gmra.mrb[0].mxu0 %v808
      %v866 = vpop.f32.mrb[0].mxu0
      %v867 = vadd.f32 0.0, %v866
      %v868 = vpop.f32.mrb[0].mxu0
      %v869 = vpop.f32.mrb[0].mxu0
      %v870 = vadd.f32 0.0, %v869
      %v871 = vpop.f32.mrb[0].mxu0
      %872 = vmatprep.mubr.bf16.mxu0 0
      %873 = vmatmul.mubr.bf16.gmra.mrb[0].mxu0 %v811
      %v874 = vpop.f32.mrb[0].mxu0
      %v875 = vadd.f32 0.0, %v874
      %v876 = vpop.f32.mrb[0].mxu0
      %v877 = vpop.f32.mrb[0].mxu0
      %v878 = vadd.f32 0.0, %v877
      %v879 = vpop.f32.mrb[0].mxu0
      %880 = vdwg.mxu0
      %v882 = vsel %vm558, %v792, 0
      %884 = vmatprep.subr.bf16.mxu0 0
      %885 = vmatpush1.bf16.msra.mxu0 %v882
      %886 = vmatprep.subr.bf16.mxu0 0
      %887 = vmatpush1.bf16.msra.mxu0 0
      %888 = vmatprep.subr.bf16.mxu0 0
      %889 = vmatpush1.bf16.msra.mxu0 0
      %890 = vmatprep.subr.bf16.mxu0 0
      %891 = vmatpush1.bf16.msra.mxu0 0
      %892 = vmatprep.subr.bf16.mxu0 0
      %893 = vmatpush1.bf16.msra.mxu0 0
      %894 = vmatprep.subr.bf16.mxu0 0
      %895 = vmatpush1.bf16.msra.mxu0 0
      %896 = vmatprep.subr.bf16.mxu0 0
      %897 = vmatpush1.bf16.msra.mxu0 0
      %898 = vmatprep.subr.bf16.mxu0 0
      %899 = vmatpush1.bf16.msra.mxu0 0
      %900 = vmatprep.subr.bf16.mxu0 0
      %901 = vmatpush1.bf16.msra.mxu0 0
      %902 = vmatprep.subr.bf16.mxu0 0
      %903 = vmatpush1.bf16.msra.mxu0 0
      %904 = vmatprep.subr.bf16.mxu0 0
      %905 = vmatpush1.bf16.msra.mxu0 0
      %906 = vmatprep.subr.bf16.mxu0 0
      %907 = vmatpush1.bf16.msra.mxu0 0
      %908 = vmatprep.subr.bf16.mxu0 0
      %909 = vmatpush1.bf16.msra.mxu0 0
      %910 = vmatprep.subr.bf16.mxu0 0
      %911 = vmatpush1.bf16.msra.mxu0 0
      %912 = vmatprep.subr.bf16.mxu0 0
      %913 = vmatpush1.bf16.msra.mxu0 0
      %914 = vmatprep.subr.bf16.mxu0 0
      %915 = vmatpush1.bf16.msra.mxu0 0
      %916 = vmatprep.mubr.bf16.mxu0 0
      %917 = vmatmul.mubr.bf16.gmra.mrb[0].mxu0 %v547
      %v918 = vpop.f32.mrb[0].mxu0
      %v919 = vadd.f32 %v851, %v918
      %v920 = vpop.f32.mrb[0].mxu0
      %v921 = vpop.f32.mrb[0].mxu0
      %v922 = vadd.f32 %v854, %v921
      %v923 = vpop.f32.mrb[0].mxu0
      %924 = vmatprep.mubr.bf16.mxu0 0
      %925 = vmatmul.mubr.bf16.gmra.mrb[0].mxu0 %v550
      %v926 = vpop.f32.mrb[0].mxu0
      %v927 = vadd.f32 %v859, %v926
      %v928 = vpop.f32.mrb[0].mxu0
      %v929 = vpop.f32.mrb[0].mxu0
      %v930 = vadd.f32 %v862, %v929
      %v931 = vpop.f32.mrb[0].mxu0
      %932 = vmatprep.mubr.bf16.mxu0 0
      %933 = vmatmul.mubr.bf16.gmra.mrb[0].mxu0 %v553
      %v934 = vpop.f32.mrb[0].mxu0
      %v935 = vadd.f32 %v867, %v934
      %v936 = vpop.f32.mrb[0].mxu0
      %v937 = vpop.f32.mrb[0].mxu0
      %v938 = vadd.f32 %v870, %v937
      %v939 = vpop.f32.mrb[0].mxu0
      %940 = vmatprep.mubr.bf16.mxu0 0
      %941 = vmatmul.mubr.bf16.gmra.mrb[0].mxu0 %v556
      %v942 = vpop.f32.mrb[0].mxu0
      %v943 = vadd.f32 %v875, %v942
      %v944 = vpop.f32.mrb[0].mxu0
      %v945 = vpop.f32.mrb[0].mxu0
      %v946 = vadd.f32 %v878, %v945
      %v947 = vpop.f32.mrb[0].mxu0
      %948 = vdwg.mxu0
      %s949 = scalar_lea.vmem %s2, 16
      %v950 = vld [vmem:[%s949] sm:$0x3]
      %s951 = scalar_lea.vmem %s2, 12
      %v952 = vld [vmem:[%s951] sm:$0x3]
      %v954 = vsel %vm558, %v952, 0
      %956 = vmatprep.subr.bf16.mxu0 0
      %957 = vmatpush1.bf16.msra.mxu0 %v954
      %958 = vmatprep.subr.bf16.mxu0 0
      %959 = vmatpush1.bf16.msra.mxu0 0
      %960 = vmatprep.subr.bf16.mxu0 0
      %961 = vmatpush1.bf16.msra.mxu0 0
      %962 = vmatprep.subr.bf16.mxu0 0
      %963 = vmatpush1.bf16.msra.mxu0 0
      %964 = vmatprep.subr.bf16.mxu0 0
      %965 = vmatpush1.bf16.msra.mxu0 0
      %966 = vmatprep.subr.bf16.mxu0 0
      %967 = vmatpush1.bf16.msra.mxu0 0
      %968 = vmatprep.subr.bf16.mxu0 0
      %969 = vmatpush1.bf16.msra.mxu0 0
      %970 = vmatprep.subr.bf16.mxu0 0
      %971 = vmatpush1.bf16.msra.mxu0 0
      %972 = vmatprep.subr.bf16.mxu0 0
      %973 = vmatpush1.bf16.msra.mxu0 0
      %974 = vmatprep.subr.bf16.mxu0 0
      %975 = vmatpush1.bf16.msra.mxu0 0
      %976 = vmatprep.subr.bf16.mxu0 0
      %977 = vmatpush1.bf16.msra.mxu0 0
      %978 = vmatprep.subr.bf16.mxu0 0
      %979 = vmatpush1.bf16.msra.mxu0 0
      %980 = vmatprep.subr.bf16.mxu0 0
      %981 = vmatpush1.bf16.msra.mxu0 0
      %982 = vmatprep.subr.bf16.mxu0 0
      %983 = vmatpush1.bf16.msra.mxu0 0
      %984 = vmatprep.subr.bf16.mxu0 0
      %985 = vmatpush1.bf16.msra.mxu0 0
      %986 = vmatprep.subr.bf16.mxu0 0
      %987 = vmatpush1.bf16.msra.mxu0 0
      %988 = vmatprep.mubr.bf16.mxu0 0
      %989 = vmatmul.mubr.bf16.gmra.mrb[0].mxu0 %v644
      %v990 = vpop.f32.mrb[0].mxu0
      %v991 = vadd.f32 0.0, %v990
      %v992 = vpop.f32.mrb[0].mxu0
      %v993 = vpop.f32.mrb[0].mxu0
      %v994 = vadd.f32 0.0, %v993
      %v995 = vpop.f32.mrb[0].mxu0
      %996 = vmatprep.mubr.bf16.mxu0 0
      %997 = vmatmul.mubr.bf16.gmra.mrb[0].mxu0 %v647
      %v998 = vpop.f32.mrb[0].mxu0
      %v999 = vadd.f32 0.0, %v998
      %v1000 = vpop.f32.mrb[0].mxu0
      %v1001 = vpop.f32.mrb[0].mxu0
      %v1002 = vadd.f32 0.0, %v1001
      %v1003 = vpop.f32.mrb[0].mxu0
      %1004 = vmatprep.mubr.bf16.mxu0 0
      %1005 = vmatmul.mubr.bf16.gmra.mrb[0].mxu0 %v650
      %v1006 = vpop.f32.mrb[0].mxu0
      %v1007 = vadd.f32 0.0, %v1006
      %v1008 = vpop.f32.mrb[0].mxu0
      %v1009 = vpop.f32.mrb[0].mxu0
      %v1010 = vadd.f32 0.0, %v1009
      %v1011 = vpop.f32.mrb[0].mxu0
      %1012 = vmatprep.mubr.bf16.mxu0 0
      %1013 = vmatmul.mubr.bf16.gmra.mrb[0].mxu0 %v653
      %v1014 = vpop.f32.mrb[0].mxu0
      %v1015 = vadd.f32 0.0, %v1014
      %v1016 = vpop.f32.mrb[0].mxu0
      %v1017 = vpop.f32.mrb[0].mxu0
      %v1018 = vadd.f32 0.0, %v1017
      %v1019 = vpop.f32.mrb[0].mxu0
      %1020 = vdwg.mxu0
      %v1022 = vsel %vm558, %v950, 0
      %1024 = vmatprep.subr.bf16.mxu0 0
      %1025 = vmatpush1.bf16.msra.mxu0 %v1022
      %1026 = vmatprep.subr.bf16.mxu0 0
      %1027 = vmatpush1.bf16.msra.mxu0 0
      %1028 = vmatprep.subr.bf16.mxu0 0
      %1029 = vmatpush1.bf16.msra.mxu0 0
      %1030 = vmatprep.subr.bf16.mxu0 0
      %1031 = vmatpush1.bf16.msra.mxu0 0
      %1032 = vmatprep.subr.bf16.mxu0 0
      %1033 = vmatpush1.bf16.msra.mxu0 0
      %1034 = vmatprep.subr.bf16.mxu0 0
      %1035 = vmatpush1.bf16.msra.mxu0 0
      %1036 = vmatprep.subr.bf16.mxu0 0
      %1037 = vmatpush1.bf16.msra.mxu0 0
      %1038 = vmatprep.subr.bf16.mxu0 0
      %1039 = vmatpush1.bf16.msra.mxu0 0
      %1040 = vmatprep.subr.bf16.mxu0 0
      %1041 = vmatpush1.bf16.msra.mxu0 0
      %1042 = vmatprep.subr.bf16.mxu0 0
      %1043 = vmatpush1.bf16.msra.mxu0 0
      %1044 = vmatprep.subr.bf16.mxu0 0
      %1045 = vmatpush1.bf16.msra.mxu0 0
      %1046 = vmatprep.subr.bf16.mxu0 0
      %1047 = vmatpush1.bf16.msra.mxu0 0
      %1048 = vmatprep.subr.bf16.mxu0 0
      %1049 = vmatpush1.bf16.msra.mxu0 0
      %1050 = vmatprep.subr.bf16.mxu0 0
      %1051 = vmatpush1.bf16.msra.mxu0 0
      %1052 = vmatprep.subr.bf16.mxu0 0
      %1053 = vmatpush1.bf16.msra.mxu0 0
      %1054 = vmatprep.subr.bf16.mxu0 0
      %1055 = vmatpush1.bf16.msra.mxu0 0
      %1056 = vmatprep.mubr.bf16.mxu0 0
      %1057 = vmatmul.mubr.bf16.gmra.mrb[0].mxu0 %v547
      %v1058 = vpop.f32.mrb[0].mxu0
      %v1059 = vadd.f32 %v991, %v1058
      %v1060 = vpop.f32.mrb[0].mxu0
      %v1061 = vpop.f32.mrb[0].mxu0
      %v1062 = vadd.f32 %v994, %v1061
      %v1063 = vpop.f32.mrb[0].mxu0
      %1064 = vmatprep.mubr.bf16.mxu0 0
      %1065 = vmatmul.mubr.bf16.gmra.mrb[0].mxu0 %v550
      %v1066 = vpop.f32.mrb[0].mxu0
      %v1067 = vadd.f32 %v999, %v1066
      %v1068 = vpop.f32.mrb[0].mxu0
      %v1069 = vpop.f32.mrb[0].mxu0
      %v1070 = vadd.f32 %v1002, %v1069
      %v1071 = vpop.f32.mrb[0].mxu0
      %1072 = vmatprep.mubr.bf16.mxu0 0
      %1073 = vmatmul.mubr.bf16.gmra.mrb[0].mxu0 %v553
      %v1074 = vpop.f32.mrb[0].mxu0
      %v1075 = vadd.f32 %v1007, %v1074
      %v1076 = vpop.f32.mrb[0].mxu0
      %v1077 = vpop.f32.mrb[0].mxu0
      %v1078 = vadd.f32 %v1010, %v1077
      %v1079 = vpop.f32.mrb[0].mxu0
      %1080 = vmatprep.mubr.bf16.mxu0 0
      %1081 = vmatmul.mubr.bf16.gmra.mrb[0].mxu0 %v556
      %v1082 = vpop.f32.mrb[0].mxu0
      %v1083 = vadd.f32 %v1015, %v1082
      %v1084 = vpop.f32.mrb[0].mxu0
      %v1085 = vpop.f32.mrb[0].mxu0
      %v1086 = vadd.f32 %v1018, %v1085
      %v1087 = vpop.f32.mrb[0].mxu0
      %1088 = vdwg.mxu0
      %s1089 = scalar_lea.vmem %s2, 4
      %v1090 = vld [vmem:[%s1089] sm:$0x3]
      %v1092 = vsel %vm558, %v1090, 0
      %1094 = vmatprep.subr.bf16.mxu0 0
      %1095 = vmatpush1.bf16.msra.mxu0 %v1092
      %1096 = vmatprep.subr.bf16.mxu0 0
      %1097 = vmatpush1.bf16.msra.mxu0 0
      %1098 = vmatprep.subr.bf16.mxu0 0
      %1099 = vmatpush1.bf16.msra.mxu0 0
      %1100 = vmatprep.subr.bf16.mxu0 0
      %1101 = vmatpush1.bf16.msra.mxu0 0
      %1102 = vmatprep.subr.bf16.mxu0 0
      %1103 = vmatpush1.bf16.msra.mxu0 0
      %1104 = vmatprep.subr.bf16.mxu0 0
      %1105 = vmatpush1.bf16.msra.mxu0 0
      %1106 = vmatprep.subr.bf16.mxu0 0
      %1107 = vmatpush1.bf16.msra.mxu0 0
      %1108 = vmatprep.subr.bf16.mxu0 0
      %1109 = vmatpush1.bf16.msra.mxu0 0
      %1110 = vmatprep.subr.bf16.mxu0 0
      %1111 = vmatpush1.bf16.msra.mxu0 0
      %1112 = vmatprep.subr.bf16.mxu0 0
      %1113 = vmatpush1.bf16.msra.mxu0 0
      %1114 = vmatprep.subr.bf16.mxu0 0
      %1115 = vmatpush1.bf16.msra.mxu0 0
      %1116 = vmatprep.subr.bf16.mxu0 0
      %1117 = vmatpush1.bf16.msra.mxu0 0
      %1118 = vmatprep.subr.bf16.mxu0 0
      %1119 = vmatpush1.bf16.msra.mxu0 0
      %1120 = vmatprep.subr.bf16.mxu0 0
      %1121 = vmatpush1.bf16.msra.mxu0 0
      %1122 = vmatprep.subr.bf16.mxu0 0
      %1123 = vmatpush1.bf16.msra.mxu0 0
      %1124 = vmatprep.subr.bf16.mxu0 0
      %1125 = vmatpush1.bf16.msra.mxu0 0
      %1126 = vmatprep.mubr.bf16.mxu0 0
      %1127 = vmatmul.mubr.bf16.gmra.mrb[0].mxu0 %v802
      %v1128 = vpop.f32.mrb[0].mxu0
      %v1129 = vadd.f32 0.0, %v1128
      %v1130 = vpop.f32.mrb[0].mxu0
      %v1131 = vpop.f32.mrb[0].mxu0
      %v1132 = vadd.f32 0.0, %v1131
      %v1133 = vpop.f32.mrb[0].mxu0
      %1134 = vmatprep.mubr.bf16.mxu0 0
      %1135 = vmatmul.mubr.bf16.gmra.mrb[0].mxu0 %v805
      %v1136 = vpop.f32.mrb[0].mxu0
      %v1137 = vadd.f32 0.0, %v1136
      %v1138 = vpop.f32.mrb[0].mxu0
      %v1139 = vpop.f32.mrb[0].mxu0
      %v1140 = vadd.f32 0.0, %v1139
      %v1141 = vpop.f32.mrb[0].mxu0
      %1142 = vmatprep.mubr.bf16.mxu0 0
      %1143 = vmatmul.mubr.bf16.gmra.mrb[0].mxu0 %v808
      %v1144 = vpop.f32.mrb[0].mxu0
      %v1145 = vadd.f32 0.0, %v1144
      %v1146 = vpop.f32.mrb[0].mxu0
      %v1147 = vpop.f32.mrb[0].mxu0
      %v1148 = vadd.f32 0.0, %v1147
      %v1149 = vpop.f32.mrb[0].mxu0
      %1150 = vmatprep.mubr.bf16.mxu0 0
      %1151 = vmatmul.mubr.bf16.gmra.mrb[0].mxu0 %v811
      %v1152 = vpop.f32.mrb[0].mxu0
      %v1153 = vadd.f32 0.0, %v1152
      %v1154 = vpop.f32.mrb[0].mxu0
      %v1155 = vpop.f32.mrb[0].mxu0
      %v1156 = vadd.f32 0.0, %v1155
      %v1157 = vpop.f32.mrb[0].mxu0
      %1158 = vdwg.mxu0
      %v1159 = vadd.f32 %v1059, %v1129
      %v1160 = vadd.f32 %v1062, %v1132
      %v1161 = vadd.f32 %v1067, %v1137
      %v1162 = vadd.f32 %v1070, %v1140
      %v1163 = vadd.f32 %v1075, %v1145
      %v1164 = vadd.f32 %v1078, %v1148
      %v1165 = vadd.f32 %v1083, %v1153
      %v1166 = vadd.f32 %v1086, %v1156
      %v1167 = vld [vmem:[%s2] sm:$0x3]
      %v1168 = vunpack.c.l.b16 %v522
      %v1169 = vpack.c.b16 %v633, %v632
      %v1170 = vpack.c.b16 %v635, %v634
      %v1171 = vpack.c.b16 %v637, %v636
      %v1172 = vpack.c.b16 %v1168, %v638
      %v1174 = vsel %vm545, %v1169, 0
      %v1177 = vsel %vm545, %v1170, 0
      %v1180 = vsel %vm545, %v1171, 0
      %v1183 = vsel %vm545, %v1172, 0
      %v1186 = vsel %vm558, %v1167, 0
      %1188 = vmatprep.subr.bf16.mxu0 0
      %1189 = vmatpush1.bf16.msra.mxu0 %v1186
      %1190 = vmatprep.subr.bf16.mxu0 0
      %1191 = vmatpush1.bf16.msra.mxu0 0
      %1192 = vmatprep.subr.bf16.mxu0 0
      %1193 = vmatpush1.bf16.msra.mxu0 0
      %1194 = vmatprep.subr.bf16.mxu0 0
      %1195 = vmatpush1.bf16.msra.mxu0 0
      %1196 = vmatprep.subr.bf16.mxu0 0
      %1197 = vmatpush1.bf16.msra.mxu0 0
      %1198 = vmatprep.subr.bf16.mxu0 0
      %1199 = vmatpush1.bf16.msra.mxu0 0
      %1200 = vmatprep.subr.bf16.mxu0 0
      %1201 = vmatpush1.bf16.msra.mxu0 0
      %1202 = vmatprep.subr.bf16.mxu0 0
      %1203 = vmatpush1.bf16.msra.mxu0 0
      %1204 = vmatprep.subr.bf16.mxu0 0
      %1205 = vmatpush1.bf16.msra.mxu0 0
      %1206 = vmatprep.subr.bf16.mxu0 0
      %1207 = vmatpush1.bf16.msra.mxu0 0
      %1208 = vmatprep.subr.bf16.mxu0 0
      %1209 = vmatpush1.bf16.msra.mxu0 0
      %1210 = vmatprep.subr.bf16.mxu0 0
      %1211 = vmatpush1.bf16.msra.mxu0 0
      %1212 = vmatprep.subr.bf16.mxu0 0
      %1213 = vmatpush1.bf16.msra.mxu0 0
      %1214 = vmatprep.subr.bf16.mxu0 0
      %1215 = vmatpush1.bf16.msra.mxu0 0
      %1216 = vmatprep.subr.bf16.mxu0 0
      %1217 = vmatpush1.bf16.msra.mxu0 0
      %1218 = vmatprep.subr.bf16.mxu0 0
      %1219 = vmatpush1.bf16.msra.mxu0 0
      %1220 = vmatprep.mubr.bf16.mxu0 0
      %1221 = vmatmul.mubr.bf16.gmra.mrb[0].mxu0 %v1174
      %v1222 = vpop.f32.mrb[0].mxu0
      %v1223 = vadd.f32 0.0, %v1222
      %v1224 = vpop.f32.mrb[0].mxu0
      %v1225 = vpop.f32.mrb[0].mxu0
      %v1226 = vadd.f32 0.0, %v1225
      %v1227 = vpop.f32.mrb[0].mxu0
      %1228 = vmatprep.mubr.bf16.mxu0 0
      %1229 = vmatmul.mubr.bf16.gmra.mrb[0].mxu0 %v1177
      %v1230 = vpop.f32.mrb[0].mxu0
      %v1231 = vadd.f32 0.0, %v1230
      %v1232 = vpop.f32.mrb[0].mxu0
      %v1233 = vpop.f32.mrb[0].mxu0
      %v1234 = vadd.f32 0.0, %v1233
      %v1235 = vpop.f32.mrb[0].mxu0
      %1236 = vmatprep.mubr.bf16.mxu0 0
      %1237 = vmatmul.mubr.bf16.gmra.mrb[0].mxu0 %v1180
      %v1238 = vpop.f32.mrb[0].mxu0
      %v1239 = vadd.f32 0.0, %v1238
      %v1240 = vpop.f32.mrb[0].mxu0
      %v1241 = vpop.f32.mrb[0].mxu0
      %v1242 = vadd.f32 0.0, %v1241
      %v1243 = vpop.f32.mrb[0].mxu0
      %1244 = vmatprep.mubr.bf16.mxu0 0
      %1245 = vmatmul.mubr.bf16.gmra.mrb[0].mxu0 %v1183
      %v1246 = vpop.f32.mrb[0].mxu0
      %v1247 = vadd.f32 0.0, %v1246
      %v1248 = vpop.f32.mrb[0].mxu0
      %v1249 = vpop.f32.mrb[0].mxu0
      %v1250 = vadd.f32 0.0, %v1249
      %v1251 = vpop.f32.mrb[0].mxu0
      %1252 = vdwg.mxu0
      %v1253 = vadd.f32 %v1159, %v1223
      %v1254 = vadd.f32 %v1160, %v1226
      %v1255 = vadd.f32 %v1161, %v1231
      %v1256 = vadd.f32 %v1162, %v1234
      %v1257 = vadd.f32 %v1163, %v1239
      %v1258 = vadd.f32 %v1164, %v1242
      %v1259 = vadd.f32 %v1165, %v1247
      %v1260 = vadd.f32 %v1166, %v1250
      %v1261 = vsel %vm545, %v597, 0.0
      %v1262 = vsel %vm545, %v600, 0.0
      %v1263 = vadd.f32 %v1261, %v1262
      %v1264 = vsel %vm545, %v605, 0.0
      %v1265 = vadd.f32 %v1263, %v1264
      %v1266 = vsel %vm545, %v608, 0.0
      %v1267 = vadd.f32 %v1265, %v1266
      %v1268 = vsel %vm545, %v613, 0.0
      %v1269 = vadd.f32 %v1267, %v1268
      %v1270 = vsel %vm545, %v616, 0.0
      %v1271 = vadd.f32 %v1269, %v1270
      %v1272 = vsel %vm545, %v621, 0.0
      %v1273 = vadd.f32 %v1271, %v1272
      %v1274 = vsel %vm545, %v624, 0.0
      %v1275 = vadd.f32 %v1273, %v1274
      %v1276 = vrot.slane %v1275, 4
      %v1277 = vadd.f32 %v1275, %v1276
      %v1278 = vrot.slane %v1277, 2
      %v1279 = vadd.f32 %v1277, %v1278
      %v1280 = vrot.slane %v1279, 1
      %v1281 = vadd.f32 %v1279, %v1280
      %v1282 = vsel %vm545, %v761, 0.0
      %v1283 = vsel %vm545, %v764, 0.0
      %v1284 = vadd.f32 %v1282, %v1283
      %v1285 = vsel %vm545, %v769, 0.0
      %v1286 = vadd.f32 %v1284, %v1285
      %v1287 = vsel %vm545, %v772, 0.0
      %v1288 = vadd.f32 %v1286, %v1287
      %v1289 = vsel %vm545, %v777, 0.0
      %v1290 = vadd.f32 %v1288, %v1289
      %v1291 = vsel %vm545, %v780, 0.0
      %v1292 = vadd.f32 %v1290, %v1291
      %v1293 = vsel %vm545, %v785, 0.0
      %v1294 = vadd.f32 %v1292, %v1293
      %v1295 = vsel %vm545, %v788, 0.0
      %v1296 = vadd.f32 %v1294, %v1295
      %v1297 = vrot.slane %v1296, 4
      %v1298 = vadd.f32 %v1296, %v1297
      %v1299 = vrot.slane %v1298, 2
      %v1300 = vadd.f32 %v1298, %v1299
      %v1301 = vrot.slane %v1300, 1
      %v1302 = vadd.f32 %v1300, %v1301
      %v1303 = vadd.f32 %v1281, %v1302
      %v1304 = vsel %vm545, %v919, 0.0
      %v1305 = vsel %vm545, %v922, 0.0
      %v1306 = vadd.f32 %v1304, %v1305
      %v1307 = vsel %vm545, %v927, 0.0
      %v1308 = vadd.f32 %v1306, %v1307
      %v1309 = vsel %vm545, %v930, 0.0
      %v1310 = vadd.f32 %v1308, %v1309
      %v1311 = vsel %vm545, %v935, 0.0
      %v1312 = vadd.f32 %v1310, %v1311
      %v1313 = vsel %vm545, %v938, 0.0
      %v1314 = vadd.f32 %v1312, %v1313
      %v1315 = vsel %vm545, %v943, 0.0
      %v1316 = vadd.f32 %v1314, %v1315
      %v1317 = vsel %vm545, %v946, 0.0
      %v1318 = vadd.f32 %v1316, %v1317
      %v1319 = vrot.slane %v1318, 4
      %v1320 = vadd.f32 %v1318, %v1319
      %v1321 = vrot.slane %v1320, 2
      %v1322 = vadd.f32 %v1320, %v1321
      %v1323 = vrot.slane %v1322, 1
      %v1324 = vadd.f32 %v1322, %v1323
      %v1325 = vadd.f32 %v1303, %v1324
      %v1326 = vsel %vm545, %v1253, 0.0
      %v1327 = vsel %vm545, %v1254, 0.0
      %v1328 = vadd.f32 %v1326, %v1327
      %v1329 = vsel %vm545, %v1255, 0.0
      %v1330 = vadd.f32 %v1328, %v1329
      %v1331 = vsel %vm545, %v1256, 0.0
      %v1332 = vadd.f32 %v1330, %v1331
      %v1333 = vsel %vm545, %v1257, 0.0
      %v1334 = vadd.f32 %v1332, %v1333
      %v1335 = vsel %vm545, %v1258, 0.0
      %v1336 = vadd.f32 %v1334, %v1335
      %v1337 = vsel %vm545, %v1259, 0.0
      %v1338 = vadd.f32 %v1336, %v1337
      %v1339 = vsel %vm545, %v1260, 0.0
      %v1340 = vadd.f32 %v1338, %v1339
      %v1341 = vrot.slane %v1340, 4
      %v1342 = vadd.f32 %v1340, %v1341
      %v1343 = vrot.slane %v1342, 2
      %v1344 = vadd.f32 %v1342, %v1343
      %v1345 = vrot.slane %v1344, 1
      %v1346 = vadd.f32 %v1344, %v1345
      %v1347 = vadd.f32 %v1325, %v1346
      %v1348 = vmul.f32 %v597, %v597
      %v1349 = vmul.f32 %v600, %v600
      %v1350 = vmul.f32 %v605, %v605
      %v1351 = vmul.f32 %v608, %v608
      %v1352 = vmul.f32 %v613, %v613
      %v1353 = vmul.f32 %v616, %v616
      %v1354 = vmul.f32 %v621, %v621
      %v1355 = vmul.f32 %v624, %v624
      %v1356 = vsel %vm545, %v1348, 0.0
      %v1357 = vsel %vm545, %v1349, 0.0
      %v1358 = vadd.f32 %v1356, %v1357
      %v1359 = vsel %vm545, %v1350, 0.0
      %v1360 = vadd.f32 %v1358, %v1359
      %v1361 = vsel %vm545, %v1351, 0.0
      %v1362 = vadd.f32 %v1360, %v1361
      %v1363 = vsel %vm545, %v1352, 0.0
      %v1364 = vadd.f32 %v1362, %v1363
      %v1365 = vsel %vm545, %v1353, 0.0
      %v1366 = vadd.f32 %v1364, %v1365
      %v1367 = vsel %vm545, %v1354, 0.0
      %v1368 = vadd.f32 %v1366, %v1367
      %v1369 = vsel %vm545, %v1355, 0.0
      %v1370 = vadd.f32 %v1368, %v1369
      %v1371 = vrot.slane %v1370, 4
      %v1372 = vadd.f32 %v1370, %v1371
      %v1373 = vrot.slane %v1372, 2
      %v1374 = vadd.f32 %v1372, %v1373
      %v1375 = vrot.slane %v1374, 1
      %v1376 = vadd.f32 %v1374, %v1375
      %v1377 = vmul.f32 %v761, %v761
      %v1378 = vmul.f32 %v764, %v764
      %v1379 = vmul.f32 %v769, %v769
      %v1380 = vmul.f32 %v772, %v772
      %v1381 = vmul.f32 %v777, %v777
      %v1382 = vmul.f32 %v780, %v780
      %v1383 = vmul.f32 %v785, %v785
      %v1384 = vmul.f32 %v788, %v788
      %v1385 = vsel %vm545, %v1377, 0.0
      %v1386 = vsel %vm545, %v1378, 0.0
      %v1387 = vadd.f32 %v1385, %v1386
      %v1388 = vsel %vm545, %v1379, 0.0
      %v1389 = vadd.f32 %v1387, %v1388
      %v1390 = vsel %vm545, %v1380, 0.0
      %v1391 = vadd.f32 %v1389, %v1390
      %v1392 = vsel %vm545, %v1381, 0.0
      %v1393 = vadd.f32 %v1391, %v1392
      %v1394 = vsel %vm545, %v1382, 0.0
      %v1395 = vadd.f32 %v1393, %v1394
      %v1396 = vsel %vm545, %v1383, 0.0
      %v1397 = vadd.f32 %v1395, %v1396
      %v1398 = vsel %vm545, %v1384, 0.0
      %v1399 = vadd.f32 %v1397, %v1398
      %v1400 = vrot.slane %v1399, 4
      %v1401 = vadd.f32 %v1399, %v1400
      %v1402 = vrot.slane %v1401, 2
      %v1403 = vadd.f32 %v1401, %v1402
      %v1404 = vrot.slane %v1403, 1
      %v1405 = vadd.f32 %v1403, %v1404
      %v1406 = vadd.f32 %v1376, %v1405
      %v1407 = vmul.f32 %v919, %v919
      %v1408 = vmul.f32 %v922, %v922
      %v1409 = vmul.f32 %v927, %v927
      %v1410 = vmul.f32 %v930, %v930
      %v1411 = vmul.f32 %v935, %v935
      %v1412 = vmul.f32 %v938, %v938
      %v1413 = vmul.f32 %v943, %v943
      %v1414 = vmul.f32 %v946, %v946
      %v1415 = vsel %vm545, %v1407, 0.0
      %v1416 = vsel %vm545, %v1408, 0.0
      %v1417 = vadd.f32 %v1415, %v1416
      %v1418 = vsel %vm545, %v1409, 0.0
      %v1419 = vadd.f32 %v1417, %v1418
      %v1420 = vsel %vm545, %v1410, 0.0
      %v1421 = vadd.f32 %v1419, %v1420
      %v1422 = vsel %vm545, %v1411, 0.0
      %v1423 = vadd.f32 %v1421, %v1422
      %v1424 = vsel %vm545, %v1412, 0.0
      %v1425 = vadd.f32 %v1423, %v1424
      %v1426 = vsel %vm545, %v1413, 0.0
      %v1427 = vadd.f32 %v1425, %v1426
      %v1428 = vsel %vm545, %v1414, 0.0
      %v1429 = vadd.f32 %v1427, %v1428
      %v1430 = vrot.slane %v1429, 4
      %v1431 = vadd.f32 %v1429, %v1430
      %v1432 = vrot.slane %v1431, 2
      %v1433 = vadd.f32 %v1431, %v1432
      %v1434 = vrot.slane %v1433, 1
      %v1435 = vadd.f32 %v1433, %v1434
      %v1436 = vadd.f32 %v1406, %v1435
      %v1437 = vmul.f32 %v1253, %v1253
      %v1438 = vmul.f32 %v1254, %v1254
      %v1439 = vmul.f32 %v1255, %v1255
      %v1440 = vmul.f32 %v1256, %v1256
      %v1441 = vmul.f32 %v1257, %v1257
      %v1442 = vmul.f32 %v1258, %v1258
      %v1443 = vmul.f32 %v1259, %v1259
      %v1444 = vmul.f32 %v1260, %v1260
      %v1445 = vsel %vm545, %v1437, 0.0
      %v1446 = vsel %vm545, %v1438, 0.0
      %v1447 = vadd.f32 %v1445, %v1446
      %v1448 = vsel %vm545, %v1439, 0.0
      %v1449 = vadd.f32 %v1447, %v1448
      %v1450 = vsel %vm545, %v1440, 0.0
      %v1451 = vadd.f32 %v1449, %v1450
      %v1452 = vsel %vm545, %v1441, 0.0
      %v1453 = vadd.f32 %v1451, %v1452
      %v1454 = vsel %vm545, %v1442, 0.0
      %v1455 = vadd.f32 %v1453, %v1454
      %v1456 = vsel %vm545, %v1443, 0.0
      %v1457 = vadd.f32 %v1455, %v1456
      %v1458 = vsel %vm545, %v1444, 0.0
      %v1459 = vadd.f32 %v1457, %v1458
      %v1460 = vrot.slane %v1459, 4
      %v1461 = vadd.f32 %v1459, %v1460
      %v1462 = vrot.slane %v1461, 2
      %v1463 = vadd.f32 %v1461, %v1462
      %v1464 = vrot.slane %v1463, 1
      %v1465 = vadd.f32 %v1463, %v1464
      %v1466 = vadd.f32 %v1436, %v1465
      %vm1467 = vcmask 24576
      %1468 = vst.msk [vmem:[%s368] sm:$0x1] %vm1467, %v1347
      %1469 = vst.msk [vmem:[%s374] sm:$0x1] %vm1467, %v1466
      %vm1470 = vcmask 24576
      %vm1471 = vsmask.f32 256
      %vm1472 = vmand %vm1470, %vm1471
      %v1473 = vld [vmem:[%s361] sm:$0x1]
      %v1474 = vsel %vm1472, 0, %v1473
      %1475 = vst [vmem:[%s361] sm:$0x1] %v1474
      %v1476 = vld [vmem:[%s361 + $0x8] sm:$0x1]
      %v1477 = vsel %vm1472, 0, %v1476
      %1478 = vst [vmem:[%s361 + $0x8] sm:$0x1] %v1477
      %v1479 = vld [vmem:[%s361 + $0x10] sm:$0x1]
      %v1480 = vsel %vm1472, 0, %v1479
      %1481 = vst [vmem:[%s361 + $0x10] sm:$0x1] %v1480
      %v1482 = vld [vmem:[%s361 + $0x18] sm:$0x1]
      %v1483 = vsel %vm1472, 0, %v1482
      %1484 = vst [vmem:[%s361 + $0x18] sm:$0x1] %v1483
      %v1485 = vld [vmem:[%s361 + $0x20] sm:$0x1]
      %v1486 = vsel %vm1472, 0, %v1485
      %1487 = vst [vmem:[%s361 + $0x20] sm:$0x1] %v1486
      %v1488 = vld [vmem:[%s361 + $0x28] sm:$0x1]
      %v1489 = vsel %vm1472, 0, %v1488
      %1490 = vst [vmem:[%s361 + $0x28] sm:$0x1] %v1489
      %v1491 = vld [vmem:[%s361 + $0x30] sm:$0x1]
      %v1492 = vsel %vm1472, 0, %v1491
      %1493 = vst [vmem:[%s361 + $0x30] sm:$0x1] %v1492
      %v1494 = vld [vmem:[%s361 + $0x38] sm:$0x1]
      %v1495 = vsel %vm1472, 0, %v1494
      %1496 = vst [vmem:[%s361 + $0x38] sm:$0x1] %v1495
      %v1497 = vld [vmem:[%s361 + $0x40] sm:$0x1]
      %v1498 = vsel %vm1472, 0, %v1497
      %1499 = vst [vmem:[%s361 + $0x40] sm:$0x1] %v1498
      %v1500 = vld [vmem:[%s361 + $0x48] sm:$0x1]
      %v1501 = vsel %vm1472, 0, %v1500
      %1502 = vst [vmem:[%s361 + $0x48] sm:$0x1] %v1501
      %v1503 = vld [vmem:[%s361 + $0x50] sm:$0x1]
      %v1504 = vsel %vm1472, 0, %v1503
      %1505 = vst [vmem:[%s361 + $0x50] sm:$0x1] %v1504
      %v1506 = vld [vmem:[%s361 + $0x58] sm:$0x1]
      %v1507 = vsel %vm1472, 0, %v1506
      %1508 = vst [vmem:[%s361 + $0x58] sm:$0x1] %v1507
      %v1509 = vld [vmem:[%s361 + $0x60] sm:$0x1]
      %v1510 = vsel %vm1472, 0, %v1509
      %1511 = vst [vmem:[%s361 + $0x60] sm:$0x1] %v1510
      %v1512 = vld [vmem:[%s361 + $0x68] sm:$0x1]
      %v1513 = vsel %vm1472, 0, %v1512
      %1514 = vst [vmem:[%s361 + $0x68] sm:$0x1] %v1513
      %v1515 = vld [vmem:[%s361 + $0x70] sm:$0x1]
      %v1516 = vsel %vm1472, 0, %v1515
      %1517 = vst [vmem:[%s361 + $0x70] sm:$0x1] %v1516
      %v1518 = vld [vmem:[%s361 + $0x78] sm:$0x1]
      %v1519 = vsel %vm1472, 0, %v1518
      %1520 = vst [vmem:[%s361 + $0x78] sm:$0x1] %v1519
      %v1521 = vld [vmem:[%s361 + $0x80] sm:$0x1]
      %v1522 = vsel %vm1472, 0, %v1521
      %1523 = vst [vmem:[%s361 + $0x80] sm:$0x1] %v1522
      %v1524 = vld [vmem:[%s361 + $0x88] sm:$0x1]
      %v1525 = vsel %vm1472, 0, %v1524
      %1526 = vst [vmem:[%s361 + $0x88] sm:$0x1] %v1525
      %v1527 = vld [vmem:[%s361 + $0x90] sm:$0x1]
      %v1528 = vsel %vm1472, 0, %v1527
      %1529 = vst [vmem:[%s361 + $0x90] sm:$0x1] %v1528
      %v1530 = vld [vmem:[%s361 + $0x98] sm:$0x1]
      %v1531 = vsel %vm1472, 0, %v1530
      %1532 = vst [vmem:[%s361 + $0x98] sm:$0x1] %v1531
      %v1533 = vld [vmem:[%s361 + $0xa0] sm:$0x1]
      %v1534 = vsel %vm1472, 0, %v1533
      %1535 = vst [vmem:[%s361 + $0xa0] sm:$0x1] %v1534
      %v1536 = vld [vmem:[%s361 + $0xa8] sm:$0x1]
      %v1537 = vsel %vm1472, 0, %v1536
      %1538 = vst [vmem:[%s361 + $0xa8] sm:$0x1] %v1537
      %v1539 = vld [vmem:[%s361 + $0xb0] sm:$0x1]
      %v1540 = vsel %vm1472, 0, %v1539
      %1541 = vst [vmem:[%s361 + $0xb0] sm:$0x1] %v1540
      %v1542 = vld [vmem:[%s361 + $0xb8] sm:$0x1]
      %v1543 = vsel %vm1472, 0, %v1542
      %1544 = vst [vmem:[%s361 + $0xb8] sm:$0x1] %v1543
      %v1545 = vld [vmem:[%s361 + $0xc0] sm:$0x1]
      %v1546 = vsel %vm1472, 0, %v1545
      %1547 = vst [vmem:[%s361 + $0xc0] sm:$0x1] %v1546
      %v1548 = vld [vmem:[%s361 + $0xc8] sm:$0x1]
      %v1549 = vsel %vm1472, 0, %v1548
      %1550 = vst [vmem:[%s361 + $0xc8] sm:$0x1] %v1549
      %v1551 = vld [vmem:[%s361 + $0xd0] sm:$0x1]
      %v1552 = vsel %vm1472, 0, %v1551
      %1553 = vst [vmem:[%s361 + $0xd0] sm:$0x1] %v1552
      %v1554 = vld [vmem:[%s361 + $0xd8] sm:$0x1]
      %v1555 = vsel %vm1472, 0, %v1554
      %1556 = vst [vmem:[%s361 + $0xd8] sm:$0x1] %v1555
      %v1557 = vld [vmem:[%s361 + $0xe0] sm:$0x1]
      %v1558 = vsel %vm1472, 0, %v1557
      %1559 = vst [vmem:[%s361 + $0xe0] sm:$0x1] %v1558
      %v1560 = vld [vmem:[%s361 + $0xe8] sm:$0x1]
      %v1561 = vsel %vm1472, 0, %v1560
      %1562 = vst [vmem:[%s361 + $0xe8] sm:$0x1] %v1561
      %v1563 = vld [vmem:[%s361 + $0xf0] sm:$0x1]
      %v1564 = vsel %vm1472, 0, %v1563
      %1565 = vst [vmem:[%s361 + $0xf0] sm:$0x1] %v1564
      %v1566 = vld [vmem:[%s361 + $0xf8] sm:$0x1]
      %v1567 = vsel %vm1472, 0, %v1566
      %1568 = vst [vmem:[%s361 + $0xf8] sm:$0x1] %v1567
      %vm1569 = vsmask.f32 7938
      %vm1570 = vmand %vm1470, %vm1569
      %v1571 = vld [vmem:[%s361 + $0x4] sm:$0x1]
      %v1572 = vsel %vm1570, 0, %v1571
      %1573 = vst [vmem:[%s361 + $0x4] sm:$0x1] %v1572
      %v1574 = vld [vmem:[%s361 + $0xc] sm:$0x1]
      %v1575 = vsel %vm1570, 0, %v1574
      %1576 = vst [vmem:[%s361 + $0xc] sm:$0x1] %v1575
      %v1577 = vld [vmem:[%s361 + $0x14] sm:$0x1]
      %v1578 = vsel %vm1570, 0, %v1577
      %1579 = vst [vmem:[%s361 + $0x14] sm:$0x1] %v1578
      %v1580 = vld [vmem:[%s361 + $0x1c] sm:$0x1]
      %v1581 = vsel %vm1570, 0, %v1580
      %1582 = vst [vmem:[%s361 + $0x1c] sm:$0x1] %v1581
      %v1583 = vld [vmem:[%s361 + $0x24] sm:$0x1]
      %v1584 = vsel %vm1570, 0, %v1583
      %1585 = vst [vmem:[%s361 + $0x24] sm:$0x1] %v1584
      %v1586 = vld [vmem:[%s361 + $0x2c] sm:$0x1]
      %v1587 = vsel %vm1570, 0, %v1586
      %1588 = vst [vmem:[%s361 + $0x2c] sm:$0x1] %v1587
      %v1589 = vld [vmem:[%s361 + $0x34] sm:$0x1]
      %v1590 = vsel %vm1570, 0, %v1589
      %1591 = vst [vmem:[%s361 + $0x34] sm:$0x1] %v1590
      %v1592 = vld [vmem:[%s361 + $0x3c] sm:$0x1]
      %v1593 = vsel %vm1570, 0, %v1592
      %1594 = vst [vmem:[%s361 + $0x3c] sm:$0x1] %v1593
      %v1595 = vld [vmem:[%s361 + $0x44] sm:$0x1]
      %v1596 = vsel %vm1570, 0, %v1595
      %1597 = vst [vmem:[%s361 + $0x44] sm:$0x1] %v1596
      %v1598 = vld [vmem:[%s361 + $0x4c] sm:$0x1]
      %v1599 = vsel %vm1570, 0, %v1598
      %1600 = vst [vmem:[%s361 + $0x4c] sm:$0x1] %v1599
      %v1601 = vld [vmem:[%s361 + $0x54] sm:$0x1]
      %v1602 = vsel %vm1570, 0, %v1601
      %1603 = vst [vmem:[%s361 + $0x54] sm:$0x1] %v1602
      %v1604 = vld [vmem:[%s361 + $0x5c] sm:$0x1]
      %v1605 = vsel %vm1570, 0, %v1604
      %1606 = vst [vmem:[%s361 + $0x5c] sm:$0x1] %v1605
      %v1607 = vld [vmem:[%s361 + $0x64] sm:$0x1]
      %v1608 = vsel %vm1570, 0, %v1607
      %1609 = vst [vmem:[%s361 + $0x64] sm:$0x1] %v1608
      %v1610 = vld [vmem:[%s361 + $0x6c] sm:$0x1]
      %v1611 = vsel %vm1570, 0, %v1610
      %1612 = vst [vmem:[%s361 + $0x6c] sm:$0x1] %v1611
      %v1613 = vld [vmem:[%s361 + $0x74] sm:$0x1]
      %v1614 = vsel %vm1570, 0, %v1613
      %1615 = vst [vmem:[%s361 + $0x74] sm:$0x1] %v1614
      %v1616 = vld [vmem:[%s361 + $0x7c] sm:$0x1]
      %v1617 = vsel %vm1570, 0, %v1616
      %1618 = vst [vmem:[%s361 + $0x7c] sm:$0x1] %v1617
      %v1619 = vld [vmem:[%s361 + $0x84] sm:$0x1]
      %v1620 = vsel %vm1570, 0, %v1619
      %1621 = vst [vmem:[%s361 + $0x84] sm:$0x1] %v1620
      %v1622 = vld [vmem:[%s361 + $0x8c] sm:$0x1]
      %v1623 = vsel %vm1570, 0, %v1622
      %1624 = vst [vmem:[%s361 + $0x8c] sm:$0x1] %v1623
      %v1625 = vld [vmem:[%s361 + $0x94] sm:$0x1]
      %v1626 = vsel %vm1570, 0, %v1625
      %1627 = vst [vmem:[%s361 + $0x94] sm:$0x1] %v1626
      %v1628 = vld [vmem:[%s361 + $0x9c] sm:$0x1]
      %v1629 = vsel %vm1570, 0, %v1628
      %1630 = vst [vmem:[%s361 + $0x9c] sm:$0x1] %v1629
      %v1631 = vld [vmem:[%s361 + $0xa4] sm:$0x1]
      %v1632 = vsel %vm1570, 0, %v1631
      %1633 = vst [vmem:[%s361 + $0xa4] sm:$0x1] %v1632
      %v1634 = vld [vmem:[%s361 + $0xac] sm:$0x1]
      %v1635 = vsel %vm1570, 0, %v1634
      %1636 = vst [vmem:[%s361 + $0xac] sm:$0x1] %v1635
      %v1637 = vld [vmem:[%s361 + $0xb4] sm:$0x1]
      %v1638 = vsel %vm1570, 0, %v1637
      %1639 = vst [vmem:[%s361 + $0xb4] sm:$0x1] %v1638
      %v1640 = vld [vmem:[%s361 + $0xbc] sm:$0x1]
      %v1641 = vsel %vm1570, 0, %v1640
      %1642 = vst [vmem:[%s361 + $0xbc] sm:$0x1] %v1641
      %v1643 = vld [vmem:[%s361 + $0xc4] sm:$0x1]
      %v1644 = vsel %vm1570, 0, %v1643
      %1645 = vst [vmem:[%s361 + $0xc4] sm:$0x1] %v1644
      %v1646 = vld [vmem:[%s361 + $0xcc] sm:$0x1]
      %v1647 = vsel %vm1570, 0, %v1646
      %1648 = vst [vmem:[%s361 + $0xcc] sm:$0x1] %v1647
      %v1649 = vld [vmem:[%s361 + $0xd4] sm:$0x1]
      %v1650 = vsel %vm1570, 0, %v1649
      %1651 = vst [vmem:[%s361 + $0xd4] sm:$0x1] %v1650
      %v1652 = vld [vmem:[%s361 + $0xdc] sm:$0x1]
      %v1653 = vsel %vm1570, 0, %v1652
      %1654 = vst [vmem:[%s361 + $0xdc] sm:$0x1] %v1653
      %v1655 = vld [vmem:[%s361 + $0xe4] sm:$0x1]
      %v1656 = vsel %vm1570, 0, %v1655
      %1657 = vst [vmem:[%s361 + $0xe4] sm:$0x1] %v1656
      %v1658 = vld [vmem:[%s361 + $0xec] sm:$0x1]
      %v1659 = vsel %vm1570, 0, %v1658
      %1660 = vst [vmem:[%s361 + $0xec] sm:$0x1] %v1659
      %v1661 = vld [vmem:[%s361 + $0xf4] sm:$0x1]
      %v1662 = vsel %vm1570, 0, %v1661
      %1663 = vst [vmem:[%s361 + $0xf4] sm:$0x1] %v1662
      %v1664 = vld [vmem:[%s361 + $0xfc] sm:$0x1]
      %v1665 = vsel %vm1570, 0, %v1664
      %1666 = vst [vmem:[%s361 + $0xfc] sm:$0x1] %v1665
      %v1667 = vpack.c.bf16 %v597, %v597
      %v1668 = vpack.c.bf16 %v761, %v761
      %v1669 = vpack.c.bf16 %v919, %v919
      %v1670 = vpack.c.bf16 %v1253, %v1253
      %v1671 = vpack.c.bf16 %v600, %v600
      %v1672 = vpack.c.bf16 %v764, %v764
      %v1673 = vpack.c.bf16 %v922, %v922
      %v1674 = vpack.c.bf16 %v1254, %v1254
      %v1675 = vpack.c.bf16 %v605, %v605
      %v1676 = vpack.c.bf16 %v769, %v769
      %v1677 = vpack.c.bf16 %v927, %v927
      %v1678 = vpack.c.bf16 %v1255, %v1255
      %v1679 = vpack.c.bf16 %v608, %v608
      %v1680 = vpack.c.bf16 %v772, %v772
      %v1681 = vpack.c.bf16 %v930, %v930
      %v1682 = vpack.c.bf16 %v1256, %v1256
      %v1683 = vpack.c.bf16 %v613, %v613
      %v1684 = vpack.c.bf16 %v777, %v777
      %v1685 = vpack.c.bf16 %v935, %v935
      %v1686 = vpack.c.bf16 %v1257, %v1257
      %v1687 = vpack.c.bf16 %v616, %v616
      %v1688 = vpack.c.bf16 %v780, %v780
      %v1689 = vpack.c.bf16 %v938, %v938
      %v1690 = vpack.c.bf16 %v1258, %v1258
      %v1691 = vpack.c.bf16 %v621, %v621
      %v1692 = vpack.c.bf16 %v785, %v785
      %v1693 = vpack.c.bf16 %v943, %v943
      %v1694 = vpack.c.bf16 %v1259, %v1259
      %v1695 = vpack.c.bf16 %v624, %v624
      %v1696 = vpack.c.bf16 %v788, %v788
      %v1697 = vpack.c.bf16 %v946, %v946
      %v1698 = vpack.c.bf16 %v1260, %v1260
      %v1731 = vunpack.c.l.b16 %v1667
      %v1732 = vunpack.c.l.b16 %v1668
      %v1733 = vunpack.c.l.b16 %v1669
      %v1734 = vunpack.c.l.b16 %v1670
      %v1735 = vunpack.c.l.b16 %v1671
      %v1736 = vunpack.c.l.b16 %v1672
      %v1737 = vunpack.c.l.b16 %v1673
      %v1738 = vunpack.c.l.b16 %v1674
      %v1739 = vunpack.c.l.b16 %v1675
      %v1740 = vunpack.c.l.b16 %v1676
      %v1741 = vunpack.c.l.b16 %v1677
      %v1742 = vunpack.c.l.b16 %v1678
      %v1743 = vunpack.c.l.b16 %v1679
      %v1744 = vunpack.c.l.b16 %v1680
      %v1745 = vunpack.c.l.b16 %v1681
      %v1746 = vunpack.c.l.b16 %v1682
      %v1747 = vunpack.c.l.b16 %v1683
      %v1748 = vunpack.c.l.b16 %v1684
      %v1749 = vunpack.c.l.b16 %v1685
      %v1750 = vunpack.c.l.b16 %v1686
      %v1751 = vunpack.c.l.b16 %v1687
      %v1752 = vunpack.c.l.b16 %v1688
      %v1753 = vunpack.c.l.b16 %v1689
      %v1754 = vunpack.c.l.b16 %v1690
      %v1755 = vunpack.c.l.b16 %v1691
      %v1756 = vunpack.c.l.b16 %v1692
      %v1757 = vunpack.c.l.b16 %v1693
      %v1758 = vunpack.c.l.b16 %v1694
      %v1759 = vunpack.c.l.b16 %v1695
      %v1760 = vunpack.c.l.b16 %v1696
      %v1761 = vunpack.c.l.b16 %v1697
      %v1762 = vunpack.c.l.b16 %v1698
      %v1763 = vpack.c.b16 %v1731, %v1731
      %v1764 = vpack.c.b16 %v1732, %v1732
      %v1765 = vpack.c.b16 %v1733, %v1733
      %v1766 = vpack.c.b16 %v1734, %v1734
      %v1767 = vpack.c.b16 %v1735, %v1735
      %v1768 = vpack.c.b16 %v1736, %v1736
      %v1769 = vpack.c.b16 %v1737, %v1737
      %v1770 = vpack.c.b16 %v1738, %v1738
      %v1771 = vpack.c.b16 %v1739, %v1739
      %v1772 = vpack.c.b16 %v1740, %v1740
      %v1773 = vpack.c.b16 %v1741, %v1741
      %v1774 = vpack.c.b16 %v1742, %v1742
      %v1775 = vpack.c.b16 %v1743, %v1743
      %v1776 = vpack.c.b16 %v1744, %v1744
      %v1777 = vpack.c.b16 %v1745, %v1745
      %v1778 = vpack.c.b16 %v1746, %v1746
      %v1779 = vpack.c.b16 %v1747, %v1747
      %v1780 = vpack.c.b16 %v1748, %v1748
      %v1781 = vpack.c.b16 %v1749, %v1749
      %v1782 = vpack.c.b16 %v1750, %v1750
      %v1783 = vpack.c.b16 %v1751, %v1751
      %v1784 = vpack.c.b16 %v1752, %v1752
      %v1785 = vpack.c.b16 %v1753, %v1753
      %v1786 = vpack.c.b16 %v1754, %v1754
      %v1787 = vpack.c.b16 %v1755, %v1755
      %v1788 = vpack.c.b16 %v1756, %v1756
      %v1789 = vpack.c.b16 %v1757, %v1757
      %v1790 = vpack.c.b16 %v1758, %v1758
      %v1791 = vpack.c.b16 %v1759, %v1759
      %v1792 = vpack.c.b16 %v1760, %v1760
      %v1793 = vpack.c.b16 %v1761, %v1761
      %v1794 = vpack.c.b16 %v1762, %v1762
      %v1796 = vshrl.u32 %v1763, 16
      %v1798 = vrot.slane %v1796, 7
      %v1799 = vshll.u32 %v1763, 16
      %v1801 = vor.u32 %v1798, %v1799
      %v1802 = vrot.slane %v1798, 4
      %v1804 = vshrl.u32 %v1764, 16
      %v1806 = vrot.slane %v1804, 7
      %v1807 = vshll.u32 %v1764, 16
      %v1809 = vor.u32 %v1806, %v1807
      %v1810 = vrot.slane %v1806, 4
      %v1812 = vshrl.u32 %v1765, 16
      %v1814 = vrot.slane %v1812, 7
      %v1815 = vshll.u32 %v1765, 16
      %v1817 = vor.u32 %v1814, %v1815
      %v1818 = vrot.slane %v1814, 4
      %v1820 = vshrl.u32 %v1766, 16
      %v1822 = vrot.slane %v1820, 7
      %v1823 = vshll.u32 %v1766, 16
      %v1825 = vor.u32 %v1822, %v1823
      %v1826 = vrot.slane %v1822, 4
      %v1828 = vshrl.u32 %v1767, 16
      %v1830 = vrot.slane %v1828, 7
      %v1831 = vshll.u32 %v1767, 16
      %v1833 = vor.u32 %v1830, %v1831
      %v1834 = vrot.slane %v1830, 4
      %v1836 = vshrl.u32 %v1768, 16
      %v1838 = vrot.slane %v1836, 7
      %v1839 = vshll.u32 %v1768, 16
      %v1841 = vor.u32 %v1838, %v1839
      %v1842 = vrot.slane %v1838, 4
      %v1844 = vshrl.u32 %v1769, 16
      %v1846 = vrot.slane %v1844, 7
      %v1847 = vshll.u32 %v1769, 16
      %v1849 = vor.u32 %v1846, %v1847
      %v1850 = vrot.slane %v1846, 4
      %v1852 = vshrl.u32 %v1770, 16
      %v1854 = vrot.slane %v1852, 7
      %v1855 = vshll.u32 %v1770, 16
      %v1857 = vor.u32 %v1854, %v1855
      %v1858 = vrot.slane %v1854, 4
      %v1860 = vshrl.u32 %v1771, 16
      %v1862 = vrot.slane %v1860, 7
      %v1863 = vshll.u32 %v1771, 16
      %v1865 = vor.u32 %v1862, %v1863
      %v1866 = vrot.slane %v1862, 4
      %v1868 = vshrl.u32 %v1772, 16
      %v1870 = vrot.slane %v1868, 7
      %v1871 = vshll.u32 %v1772, 16
      %v1873 = vor.u32 %v1870, %v1871
      %v1874 = vrot.slane %v1870, 4
      %v1876 = vshrl.u32 %v1773, 16
      %v1878 = vrot.slane %v1876, 7
      %v1879 = vshll.u32 %v1773, 16
      %v1881 = vor.u32 %v1878, %v1879
      %v1882 = vrot.slane %v1878, 4
      %v1884 = vshrl.u32 %v1774, 16
      %v1886 = vrot.slane %v1884, 7
      %v1887 = vshll.u32 %v1774, 16
      %v1889 = vor.u32 %v1886, %v1887
      %v1890 = vrot.slane %v1886, 4
      %v1892 = vshrl.u32 %v1775, 16
      %v1894 = vrot.slane %v1892, 7
      %v1895 = vshll.u32 %v1775, 16
      %v1897 = vor.u32 %v1894, %v1895
      %v1898 = vrot.slane %v1894, 4
      %v1900 = vshrl.u32 %v1776, 16
      %v1902 = vrot.slane %v1900, 7
      %v1903 = vshll.u32 %v1776, 16
      %v1905 = vor.u32 %v1902, %v1903
      %v1906 = vrot.slane %v1902, 4
      %v1908 = vshrl.u32 %v1777, 16
      %v1910 = vrot.slane %v1908, 7
      %v1911 = vshll.u32 %v1777, 16
      %v1913 = vor.u32 %v1910, %v1911
      %v1914 = vrot.slane %v1910, 4
      %v1916 = vshrl.u32 %v1778, 16
      %v1918 = vrot.slane %v1916, 7
      %v1919 = vshll.u32 %v1778, 16
      %v1921 = vor.u32 %v1918, %v1919
      %v1922 = vrot.slane %v1918, 4
      %v1924 = vshrl.u32 %v1779, 16
      %v1926 = vrot.slane %v1924, 7
      %v1927 = vshll.u32 %v1779, 16
      %v1929 = vor.u32 %v1926, %v1927
      %v1930 = vrot.slane %v1926, 4
      %v1932 = vshrl.u32 %v1780, 16
      %v1934 = vrot.slane %v1932, 7
      %v1935 = vshll.u32 %v1780, 16
      %v1937 = vor.u32 %v1934, %v1935
      %v1938 = vrot.slane %v1934, 4
      %v1940 = vshrl.u32 %v1781, 16
      %v1942 = vrot.slane %v1940, 7
      %v1943 = vshll.u32 %v1781, 16
      %v1945 = vor.u32 %v1942, %v1943
      %v1946 = vrot.slane %v1942, 4
      %v1948 = vshrl.u32 %v1782, 16
      %v1950 = vrot.slane %v1948, 7
      %v1951 = vshll.u32 %v1782, 16
      %v1953 = vor.u32 %v1950, %v1951
      %v1954 = vrot.slane %v1950, 4
      %v1956 = vshrl.u32 %v1783, 16
      %v1958 = vrot.slane %v1956, 7
      %v1959 = vshll.u32 %v1783, 16
      %v1961 = vor.u32 %v1958, %v1959
      %v1962 = vrot.slane %v1958, 4
      %v1964 = vshrl.u32 %v1784, 16
      %v1966 = vrot.slane %v1964, 7
      %v1967 = vshll.u32 %v1784, 16
      %v1969 = vor.u32 %v1966, %v1967
      %v1970 = vrot.slane %v1966, 4
      %v1972 = vshrl.u32 %v1785, 16
      %v1974 = vrot.slane %v1972, 7
      %v1975 = vshll.u32 %v1785, 16
      %v1977 = vor.u32 %v1974, %v1975
      %v1978 = vrot.slane %v1974, 4
      %v1980 = vshrl.u32 %v1786, 16
      %v1982 = vrot.slane %v1980, 7
      %v1983 = vshll.u32 %v1786, 16
      %v1985 = vor.u32 %v1982, %v1983
      %v1986 = vrot.slane %v1982, 4
      %v1988 = vshrl.u32 %v1787, 16
      %v1990 = vrot.slane %v1988, 7
      %v1991 = vshll.u32 %v1787, 16
      %v1993 = vor.u32 %v1990, %v1991
      %v1994 = vrot.slane %v1990, 4
      %v1996 = vshrl.u32 %v1788, 16
      %v1998 = vrot.slane %v1996, 7
      %v1999 = vshll.u32 %v1788, 16
      %v2001 = vor.u32 %v1998, %v1999
      %v2002 = vrot.slane %v1998, 4
      %v2004 = vshrl.u32 %v1789, 16
      %v2006 = vrot.slane %v2004, 7
      %v2007 = vshll.u32 %v1789, 16
      %v2009 = vor.u32 %v2006, %v2007
      %v2010 = vrot.slane %v2006, 4
      %v2012 = vshrl.u32 %v1790, 16
      %v2014 = vrot.slane %v2012, 7
      %v2015 = vshll.u32 %v1790, 16
      %v2017 = vor.u32 %v2014, %v2015
      %v2018 = vrot.slane %v2014, 4
      %v2020 = vshrl.u32 %v1791, 16
      %v2022 = vrot.slane %v2020, 7
      %v2023 = vshll.u32 %v1791, 16
      %v2025 = vor.u32 %v2022, %v2023
      %v2026 = vrot.slane %v2022, 4
      %v2028 = vshrl.u32 %v1792, 16
      %v2030 = vrot.slane %v2028, 7
      %v2031 = vshll.u32 %v1792, 16
      %v2033 = vor.u32 %v2030, %v2031
      %v2034 = vrot.slane %v2030, 4
      %v2036 = vshrl.u32 %v1793, 16
      %v2038 = vrot.slane %v2036, 7
      %v2039 = vshll.u32 %v1793, 16
      %v2041 = vor.u32 %v2038, %v2039
      %v2042 = vrot.slane %v2038, 4
      %v2044 = vshrl.u32 %v1794, 16
      %v2046 = vrot.slane %v2044, 7
      %v2047 = vshll.u32 %v1794, 16
      %v2049 = vor.u32 %v2046, %v2047
      %v2050 = vrot.slane %v2046, 4
      %vm2115 = vcmask 27648
      %vm2116 = vmand %vm2115, %vm1569
      %v2117 = vld [vmem:[%s361] sm:$0xf]
      %v2118 = vsel %vm2116, %v1801, %v2117
      %2119 = vst [vmem:[%s361] sm:$0xf] %v2118
      %v2120 = vld [vmem:[%s361 + $0x4] sm:$0x1]
      %v2121 = vsel %vm1472, %v1802, %v2120
      %2122 = vst [vmem:[%s361 + $0x4] sm:$0x1] %v2121
      %v2123 = vld [vmem:[%s361 + $0x8] sm:$0xf]
      %v2124 = vsel %vm2116, %v1809, %v2123
      %2125 = vst [vmem:[%s361 + $0x8] sm:$0xf] %v2124
      %v2126 = vld [vmem:[%s361 + $0xc] sm:$0x1]
      %v2127 = vsel %vm1472, %v1810, %v2126
      %2128 = vst [vmem:[%s361 + $0xc] sm:$0x1] %v2127
      %v2129 = vld [vmem:[%s361 + $0x10] sm:$0xf]
      %v2130 = vsel %vm2116, %v1817, %v2129
      %2131 = vst [vmem:[%s361 + $0x10] sm:$0xf] %v2130
      %v2132 = vld [vmem:[%s361 + $0x14] sm:$0x1]
      %v2133 = vsel %vm1472, %v1818, %v2132
      %2134 = vst [vmem:[%s361 + $0x14] sm:$0x1] %v2133
      %v2135 = vld [vmem:[%s361 + $0x18] sm:$0xf]
      %v2136 = vsel %vm2116, %v1825, %v2135
      %2137 = vst [vmem:[%s361 + $0x18] sm:$0xf] %v2136
      %v2138 = vld [vmem:[%s361 + $0x1c] sm:$0x1]
      %v2139 = vsel %vm1472, %v1826, %v2138
      %2140 = vst [vmem:[%s361 + $0x1c] sm:$0x1] %v2139
      %v2141 = vld [vmem:[%s361 + $0x20] sm:$0xf]
      %v2142 = vsel %vm2116, %v1833, %v2141
      %2143 = vst [vmem:[%s361 + $0x20] sm:$0xf] %v2142
      %v2144 = vld [vmem:[%s361 + $0x24] sm:$0x1]
      %v2145 = vsel %vm1472, %v1834, %v2144
      %2146 = vst [vmem:[%s361 + $0x24] sm:$0x1] %v2145
      %v2147 = vld [vmem:[%s361 + $0x28] sm:$0xf]
      %v2148 = vsel %vm2116, %v1841, %v2147
      %2149 = vst [vmem:[%s361 + $0x28] sm:$0xf] %v2148
      %v2150 = vld [vmem:[%s361 + $0x2c] sm:$0x1]
      %v2151 = vsel %vm1472, %v1842, %v2150
      %2152 = vst [vmem:[%s361 + $0x2c] sm:$0x1] %v2151
      %v2153 = vld [vmem:[%s361 + $0x30] sm:$0xf]
      %v2154 = vsel %vm2116, %v1849, %v2153
      %2155 = vst [vmem:[%s361 + $0x30] sm:$0xf] %v2154
      %v2156 = vld [vmem:[%s361 + $0x34] sm:$0x1]
      %v2157 = vsel %vm1472, %v1850, %v2156
      %2158 = vst [vmem:[%s361 + $0x34] sm:$0x1] %v2157
      %v2159 = vld [vmem:[%s361 + $0x38] sm:$0xf]
      %v2160 = vsel %vm2116, %v1857, %v2159
      %2161 = vst [vmem:[%s361 + $0x38] sm:$0xf] %v2160
      %v2162 = vld [vmem:[%s361 + $0x3c] sm:$0x1]
      %v2163 = vsel %vm1472, %v1858, %v2162
      %2164 = vst [vmem:[%s361 + $0x3c] sm:$0x1] %v2163
      %v2165 = vld [vmem:[%s361 + $0x40] sm:$0xf]
      %v2166 = vsel %vm2116, %v1865, %v2165
      %2167 = vst [vmem:[%s361 + $0x40] sm:$0xf] %v2166
      %v2168 = vld [vmem:[%s361 + $0x44] sm:$0x1]
      %v2169 = vsel %vm1472, %v1866, %v2168
      %2170 = vst [vmem:[%s361 + $0x44] sm:$0x1] %v2169
      %v2171 = vld [vmem:[%s361 + $0x48] sm:$0xf]
      %v2172 = vsel %vm2116, %v1873, %v2171
      %2173 = vst [vmem:[%s361 + $0x48] sm:$0xf] %v2172
      %v2174 = vld [vmem:[%s361 + $0x4c] sm:$0x1]
      %v2175 = vsel %vm1472, %v1874, %v2174
      %2176 = vst [vmem:[%s361 + $0x4c] sm:$0x1] %v2175
      %v2177 = vld [vmem:[%s361 + $0x50] sm:$0xf]
      %v2178 = vsel %vm2116, %v1881, %v2177
      %2179 = vst [vmem:[%s361 + $0x50] sm:$0xf] %v2178
      %v2180 = vld [vmem:[%s361 + $0x54] sm:$0x1]
      %v2181 = vsel %vm1472, %v1882, %v2180
      %2182 = vst [vmem:[%s361 + $0x54] sm:$0x1] %v2181
      %v2183 = vld [vmem:[%s361 + $0x58] sm:$0xf]
      %v2184 = vsel %vm2116, %v1889, %v2183
      %2185 = vst [vmem:[%s361 + $0x58] sm:$0xf] %v2184
      %v2186 = vld [vmem:[%s361 + $0x5c] sm:$0x1]
      %v2187 = vsel %vm1472, %v1890, %v2186
      %2188 = vst [vmem:[%s361 + $0x5c] sm:$0x1] %v2187
      %v2189 = vld [vmem:[%s361 + $0x60] sm:$0xf]
      %v2190 = vsel %vm2116, %v1897, %v2189
      %2191 = vst [vmem:[%s361 + $0x60] sm:$0xf] %v2190
      %v2192 = vld [vmem:[%s361 + $0x64] sm:$0x1]
      %v2193 = vsel %vm1472, %v1898, %v2192
      %2194 = vst [vmem:[%s361 + $0x64] sm:$0x1] %v2193
      %v2195 = vld [vmem:[%s361 + $0x68] sm:$0xf]
      %v2196 = vsel %vm2116, %v1905, %v2195
      %2197 = vst [vmem:[%s361 + $0x68] sm:$0xf] %v2196
      %v2198 = vld [vmem:[%s361 + $0x6c] sm:$0x1]
      %v2199 = vsel %vm1472, %v1906, %v2198
      %2200 = vst [vmem:[%s361 + $0x6c] sm:$0x1] %v2199
      %v2201 = vld [vmem:[%s361 + $0x70] sm:$0xf]
      %v2202 = vsel %vm2116, %v1913, %v2201
      %2203 = vst [vmem:[%s361 + $0x70] sm:$0xf] %v2202
      %v2204 = vld [vmem:[%s361 + $0x74] sm:$0x1]
      %v2205 = vsel %vm1472, %v1914, %v2204
      %2206 = vst [vmem:[%s361 + $0x74] sm:$0x1] %v2205
      %v2207 = vld [vmem:[%s361 + $0x78] sm:$0xf]
      %v2208 = vsel %vm2116, %v1921, %v2207
      %2209 = vst [vmem:[%s361 + $0x78] sm:$0xf] %v2208
      %v2210 = vld [vmem:[%s361 + $0x7c] sm:$0x1]
      %v2211 = vsel %vm1472, %v1922, %v2210
      %2212 = vst [vmem:[%s361 + $0x7c] sm:$0x1] %v2211
      %v2213 = vld [vmem:[%s361 + $0x80] sm:$0xf]
      %v2214 = vsel %vm2116, %v1929, %v2213
      %2215 = vst [vmem:[%s361 + $0x80] sm:$0xf] %v2214
      %v2216 = vld [vmem:[%s361 + $0x84] sm:$0x1]
      %v2217 = vsel %vm1472, %v1930, %v2216
      %2218 = vst [vmem:[%s361 + $0x84] sm:$0x1] %v2217
      %v2219 = vld [vmem:[%s361 + $0x88] sm:$0xf]
      %v2220 = vsel %vm2116, %v1937, %v2219
      %2221 = vst [vmem:[%s361 + $0x88] sm:$0xf] %v2220
      %v2222 = vld [vmem:[%s361 + $0x8c] sm:$0x1]
      %v2223 = vsel %vm1472, %v1938, %v2222
      %2224 = vst [vmem:[%s361 + $0x8c] sm:$0x1] %v2223
      %v2225 = vld [vmem:[%s361 + $0x90] sm:$0xf]
      %v2226 = vsel %vm2116, %v1945, %v2225
      %2227 = vst [vmem:[%s361 + $0x90] sm:$0xf] %v2226
      %v2228 = vld [vmem:[%s361 + $0x94] sm:$0x1]
      %v2229 = vsel %vm1472, %v1946, %v2228
      %2230 = vst [vmem:[%s361 + $0x94] sm:$0x1] %v2229
      %v2231 = vld [vmem:[%s361 + $0x98] sm:$0xf]
      %v2232 = vsel %vm2116, %v1953, %v2231
      %2233 = vst [vmem:[%s361 + $0x98] sm:$0xf] %v2232
      %v2234 = vld [vmem:[%s361 + $0x9c] sm:$0x1]
      %v2235 = vsel %vm1472, %v1954, %v2234
      %2236 = vst [vmem:[%s361 + $0x9c] sm:$0x1] %v2235
      %v2237 = vld [vmem:[%s361 + $0xa0] sm:$0xf]
      %v2238 = vsel %vm2116, %v1961, %v2237
      %2239 = vst [vmem:[%s361 + $0xa0] sm:$0xf] %v2238
      %v2240 = vld [vmem:[%s361 + $0xa4] sm:$0x1]
      %v2241 = vsel %vm1472, %v1962, %v2240
      %2242 = vst [vmem:[%s361 + $0xa4] sm:$0x1] %v2241
      %v2243 = vld [vmem:[%s361 + $0xa8] sm:$0xf]
      %v2244 = vsel %vm2116, %v1969, %v2243
      %2245 = vst [vmem:[%s361 + $0xa8] sm:$0xf] %v2244
      %v2246 = vld [vmem:[%s361 + $0xac] sm:$0x1]
      %v2247 = vsel %vm1472, %v1970, %v2246
      %2248 = vst [vmem:[%s361 + $0xac] sm:$0x1] %v2247
      %v2249 = vld [vmem:[%s361 + $0xb0] sm:$0xf]
      %v2250 = vsel %vm2116, %v1977, %v2249
      %2251 = vst [vmem:[%s361 + $0xb0] sm:$0xf] %v2250
      %v2252 = vld [vmem:[%s361 + $0xb4] sm:$0x1]
      %v2253 = vsel %vm1472, %v1978, %v2252
      %2254 = vst [vmem:[%s361 + $0xb4] sm:$0x1] %v2253
      %v2255 = vld [vmem:[%s361 + $0xb8] sm:$0xf]
      %v2256 = vsel %vm2116, %v1985, %v2255
      %2257 = vst [vmem:[%s361 + $0xb8] sm:$0xf] %v2256
      %v2258 = vld [vmem:[%s361 + $0xbc] sm:$0x1]
      %v2259 = vsel %vm1472, %v1986, %v2258
      %2260 = vst [vmem:[%s361 + $0xbc] sm:$0x1] %v2259
      %v2261 = vld [vmem:[%s361 + $0xc0] sm:$0xf]
      %v2262 = vsel %vm2116, %v1993, %v2261
      %2263 = vst [vmem:[%s361 + $0xc0] sm:$0xf] %v2262
      %v2264 = vld [vmem:[%s361 + $0xc4] sm:$0x1]
      %v2265 = vsel %vm1472, %v1994, %v2264
      %2266 = vst [vmem:[%s361 + $0xc4] sm:$0x1] %v2265
      %v2267 = vld [vmem:[%s361 + $0xc8] sm:$0xf]
      %v2268 = vsel %vm2116, %v2001, %v2267
      %2269 = vst [vmem:[%s361 + $0xc8] sm:$0xf] %v2268
      %v2270 = vld [vmem:[%s361 + $0xcc] sm:$0x1]
      %v2271 = vsel %vm1472, %v2002, %v2270
      %2272 = vst [vmem:[%s361 + $0xcc] sm:$0x1] %v2271
      %v2273 = vld [vmem:[%s361 + $0xd0] sm:$0xf]
      %v2274 = vsel %vm2116, %v2009, %v2273
      %2275 = vst [vmem:[%s361 + $0xd0] sm:$0xf] %v2274
      %v2276 = vld [vmem:[%s361 + $0xd4] sm:$0x1]
      %v2277 = vsel %vm1472, %v2010, %v2276
      %2278 = vst [vmem:[%s361 + $0xd4] sm:$0x1] %v2277
      %v2279 = vld [vmem:[%s361 + $0xd8] sm:$0xf]
      %v2280 = vsel %vm2116, %v2017, %v2279
      %2281 = vst [vmem:[%s361 + $0xd8] sm:$0xf] %v2280
      %v2282 = vld [vmem:[%s361 + $0xdc] sm:$0x1]
      %v2283 = vsel %vm1472, %v2018, %v2282
      %2284 = vst [vmem:[%s361 + $0xdc] sm:$0x1] %v2283
      %v2285 = vld [vmem:[%s361 + $0xe0] sm:$0xf]
      %v2286 = vsel %vm2116, %v2025, %v2285
      %2287 = vst [vmem:[%s361 + $0xe0] sm:$0xf] %v2286
      %v2288 = vld [vmem:[%s361 + $0xe4] sm:$0x1]
      %v2289 = vsel %vm1472, %v2026, %v2288
      %2290 = vst [vmem:[%s361 + $0xe4] sm:$0x1] %v2289
      %v2291 = vld [vmem:[%s361 + $0xe8] sm:$0xf]
      %v2292 = vsel %vm2116, %v2033, %v2291
      %2293 = vst [vmem:[%s361 + $0xe8] sm:$0xf] %v2292
      %v2294 = vld [vmem:[%s361 + $0xec] sm:$0x1]
      %v2295 = vsel %vm1472, %v2034, %v2294
      %2296 = vst [vmem:[%s361 + $0xec] sm:$0x1] %v2295
      %v2297 = vld [vmem:[%s361 + $0xf0] sm:$0xf]
      %v2298 = vsel %vm2116, %v2041, %v2297
      %2299 = vst [vmem:[%s361 + $0xf0] sm:$0xf] %v2298
      %v2300 = vld [vmem:[%s361 + $0xf4] sm:$0x1]
      %v2301 = vsel %vm1472, %v2042, %v2300
      %2302 = vst [vmem:[%s361 + $0xf4] sm:$0x1] %v2301
      %v2303 = vld [vmem:[%s361 + $0xf8] sm:$0xf]
      %v2304 = vsel %vm2116, %v2049, %v2303
      %2305 = vst [vmem:[%s361 + $0xf8] sm:$0xf] %v2304
      %v2306 = vld [vmem:[%s361 + $0xfc] sm:$0x1]
      %v2307 = vsel %vm1472, %v2050, %v2306
      %2308 = vst [vmem:[%s361 + $0xfc] sm:$0x1] %v2307
      %s2309 = smul.u32 16, %s22
      %p2310 = scmp.lt.s32.totalorder %s21, 1
      %s2311 = scalar_select %p2310, %s21, 1
      %p2312 = scmp.lt.s32.totalorder %s2309, 15
      %s2313 = scalar_select %p2312, %s2309, 15
      %s2314 = smul.addr %s2313, 4
      %s2315 = smul.addr %s2311, 64
      %s2316 = sadd.s32 %s2314, %s2315
      %s2317 = smul.addr %s2316, 4
      %s2318 = scalar_lea.vmem %s3, %s2317
      %p2319 = scmp.lt.s32.totalorder %s21, 1
      %s2320 = scalar_select %p2319, %s21, 1
      %p2321 = scmp.lt.s32.totalorder %s22, 0
      %s2322 = scalar_select %p2321, %s22, 0
      %s2323 = sadd.s32 %s2322, %s2320
      %s2324 = scalar_lea.vmem %s4, %s2323
      %p2325 = scmp.lt.s32.totalorder %s21, 1
      %s2326 = scalar_select %p2325, %s21, 1
      %p2327 = scmp.lt.s32.totalorder %s22, 0
      %s2328 = scalar_select %p2327, %s22, 0
      %s2329 = sadd.s32 %s2328, %s2326
      %s2330 = scalar_lea.vmem %s5, %s2329
      // Predicated region
      $region33: #{deconv2d_block_forward.3} parent=31 // pred_check
        %p2331 = pneg %p130
      $region34: #{deconv2d_block_forward.3} parent=31 // pred_check_branch
        %2333 = sbr.rel (%p2331) target = $region36
      $region35: #{deconv2d_block_forward.3} parent=31 // pred_region
        %s2334 = smul.u32 16, %s22
      $region36: #{deconv2d_block_forward.3} parent=31 // pred_fallthru
        _
      // Predicated region
      $region37: #{deconv2d_block_forward.3} parent=31 // pred_check
        %p2335 = pneg %p158
      $region38: #{deconv2d_block_forward.3} parent=31 // pred_check_branch
        %2337 = sbr.rel (%p2335) target = $region40
      $region39: #{deconv2d_block_forward.3} parent=31 // pred_region
        _
      $region40: #{deconv2d_block_forward.3} parent=31 // pred_fallthru
        _
      // Predicated region
      $region41: #{deconv2d_block_forward.3} parent=31 // pred_check
        %p2338 = pneg %p186
      $region42: #{deconv2d_block_forward.3} parent=31 // pred_check_branch
        %2340 = sbr.rel (%p2338) target = $region44
      $region43: #{deconv2d_block_forward.3} parent=31 // pred_region
        _
      $region44: #{deconv2d_block_forward.3} parent=31 // pred_fallthru
        _
    $region32: #{deconv2d_block_forward.3} parent=5 // pred_fallthru
      _
    %p2341 = scmp.le.s32.totalorder 2, %s12
    // Predicated region
    $region45: #{deconv2d_block_forward.3} parent=5 // pred_check
      %p2342 = pneg %p2341
    $region46: #{deconv2d_block_forward.3} parent=5 // pred_check_branch
      %2344 = sbr.rel (%p2342) target = $region48
    $region47: #{deconv2d_block_forward.3} parent=5 // pred_region
      %s2345 = ssub.s32 %s12, 2
      // Predicated region
      $region49: #{deconv2d_block_forward.3} parent=47 // pred_check
        %p2346 = pneg %p136
      $region50: #{deconv2d_block_forward.3} parent=47 // pred_check_branch
        %2348 = sbr.rel (%p2346) target = $region52
      $region51: #{deconv2d_block_forward.3} parent=47 // pred_region
        %s2349 = smul.u32 16, %s24
        %p2350 = scmp.lt.s32.totalorder %s23, 1
        %s2351 = scalar_select %p2350, %s23, 1
        %p2352 = scmp.lt.s32.totalorder %s2349, 15
        %s2353 = scalar_select %p2352, %s2349, 15
        %s2354 = smul.addr %s2353, 4
        %s2355 = smul.addr %s2351, 64
        %s2356 = sadd.s32 %s2354, %s2355
        %s2357 = smul.addr %s2356, 4
        %s2358 = scalar_lea.vmem %s3, %s2357
      $region52: #{deconv2d_block_forward.3} parent=47 // pred_fallthru
        _
      // Predicated region
      $region53: #{deconv2d_block_forward.3} parent=47 // pred_check
        %p2359 = pneg %p164
      $region54: #{deconv2d_block_forward.3} parent=47 // pred_check_branch
        %2361 = sbr.rel (%p2359) target = $region56
      $region55: #{deconv2d_block_forward.3} parent=47 // pred_region
        %p2362 = scmp.lt.s32.totalorder %s23, 1
        %s2363 = scalar_select %p2362, %s23, 1
        %p2364 = scmp.lt.s32.totalorder %s24, 0
        %s2365 = scalar_select %p2364, %s24, 0
        %s2366 = sadd.s32 %s2365, %s2363
        %s2367 = scalar_lea.vmem %s4, %s2366
      $region56: #{deconv2d_block_forward.3} parent=47 // pred_fallthru
        _
      // Predicated region
      $region57: #{deconv2d_block_forward.3} parent=47 // pred_check
        %p2368 = pneg %p192
      $region58: #{deconv2d_block_forward.3} parent=47 // pred_check_branch
        %2370 = sbr.rel (%p2368) target = $region60
      $region59: #{deconv2d_block_forward.3} parent=47 // pred_region
        %p2371 = scmp.lt.s32.totalorder %s23, 1
        %s2372 = scalar_select %p2371, %s23, 1
        %p2373 = scmp.lt.s32.totalorder %s24, 0
        %s2374 = scalar_select %p2373, %s24, 0
        %s2375 = sadd.s32 %s2374, %s2372
        %s2376 = scalar_lea.vmem %s5, %s2375
      $region60: #{deconv2d_block_forward.3} parent=47 // pred_fallthru
        _
    $region48: #{deconv2d_block_forward.3} parent=5 // pred_fallthru
      _
  $region6: #{deconv2d_block_forward.3} parent=0 // loop_footer
    %s16 = sadd.s32 1, %s12
  $region7: #{deconv2d_block_forward.3} parent=0 // loop_footer_branch
    %11 = sbr.rel target = $region3
  $region8: #{deconv2d_block_forward.3} parent=0 // loop_exit
    _

// kernel: deconv2d_block_forward.4
$region0: #{deconv2d_block_forward.4}
  #allocation0 [shape = 'u32[]', space=smem, size = 0x4, offset = 0x4, fixed_abs, tag = 'smem constant byte address 0x4 - core index']
  #allocation1 [shape = 'u32[144,128]{1,0:T(1,128)}', space=vmem, size = 0x12000, scoped, tag = 'internal scratch']
  %s0 = inlined_call_operand.vmem [shape: f32[1,4], index: 0, kind: input, shape index: {}]
  %s1 = inlined_call_operand.vmem [shape: f32[1,4], index: 1, kind: input, shape index: {}]
  %s2 = inlined_call_operand.vmem [shape: bf16[2,16,2,10,4], index: 2, kind: input, shape index: {}, may-alias: {2,3,4}]
  %s3 = inlined_call_operand.vmem [shape: bf16[2,16,2,10,4], index: 3, kind: input, shape index: {}, may-alias: {2,3,4}]
  %s4 = inlined_call_operand.vmem [shape: bf16[2,16,2,10,4], index: 4, kind: input, shape index: {}, may-alias: {2,3,4}]
  %s5 = inlined_call_operand.vmem [shape: bf16[2,16,2,10,4], index: 5, kind: input, shape index: {}, may-alias: {5,6,7}]
  %s6 = inlined_call_operand.vmem [shape: bf16[2,16,2,10,4], index: 6, kind: input, shape index: {}, may-alias: {5,6,7}]
  %s7 = inlined_call_operand.vmem [shape: bf16[2,16,2,10,4], index: 7, kind: input, shape index: {}, may-alias: {5,6,7}]
  %s8 = inlined_call_operand.vmem [shape: bf16[3,3,4,4], index: 8, kind: input, shape index: {}]
  %s9 = inlined_call_operand.vmem [shape: bf16[3,3,4,4], index: 9, kind: input, shape index: {}]
  %s10 = inlined_call_operand.vmem [shape: bf16[2,16,2,8,4], index: 10, kind: output, shape index: {0}]
  %s11 = inlined_call_operand.vmem [shape: f32[2,1,1,4], index: 11, kind: output, shape index: {1}]
  %s12 = inlined_call_operand.vmem [shape: f32[2,1,1,4], index: 12, kind: output, shape index: {2}]
  %13 = xla_tuple %s10, %s11, %s12
  %s14 = sld [smem:[#allocation0]]
  $region89: #{deconv2d_block_forward.4} parent=0
    _
  %s16 = ssub.s32 1, %s14
  %s17 = scalar_select 0, %s16, %s14
  loop: start=0, step=1, limit=4
  $region2: #{deconv2d_block_forward.4} parent=0 // loop_pre_header
    _
  $region3: #{deconv2d_block_forward.4} parent=0 // loop_header
    %s19 = sphi 0, %s23
    %p20 = scmp.ge.s32.totalorder %s19, 4
    %s26 = sphi 0, %s38
    %s27 = sphi 0, %s34
    %s28 = sphi 0, %s26
    %s29 = sphi 0, %s27
    %s30 = sphi 0, %s28
    %s31 = sphi 0, %s29
    %s39 = sphi 0, %s39
    %s41 = sphi 0, %s39
    %s42 = sphi 0, %s41
    %s56 = sphi 0, %s42
    %s60 = sphi 0, %s60
    %s62 = sphi 0, %s60
    %s63 = sphi 0, %s62
    %s77 = sphi 0, %s63
    %s85 = sphi 0, %s87
    %s88 = sphi 0, %s85
    %s89 = sphi 0, %s88
    %s105 = sphi 0, %s89
    %s121 = sphi 0, %s123
    %s124 = sphi 0, %s121
    %s125 = sphi 0, %s124
    %s141 = sphi 0, %s125
    %s157 = sphi 0, %s159
    %s160 = sphi 0, %s157
    %s161 = sphi 0, %s160
    %s177 = sphi 0, %s161
    %s185 = sphi 0, %s187
    %s188 = sphi 0, %s185
    %s189 = sphi 0, %s188
    %s205 = sphi 0, %s189
    %s221 = sphi 0, %s223
    %s224 = sphi 0, %s221
    %s225 = sphi 0, %s224
    %s241 = sphi 0, %s225
    %s257 = sphi 0, %s259
    %s260 = sphi 0, %s257
    %s261 = sphi 0, %s260
    %s277 = sphi 0, %s261
    %s281 = sphi 0, %s281
    %s283 = sphi 0, %s281
    %s284 = sphi 0, %s283
    %s298 = sphi 0, %s284
    %s302 = sphi 0, %s302
    %s304 = sphi 0, %s302
    %s305 = sphi 0, %s304
    %s319 = sphi 0, %s305
    %s327 = sphi 0, %s329
    %s330 = sphi 0, %s327
    %s331 = sphi 0, %s330
    %s347 = sphi 0, %s331
    %s355 = sphi 0, %s357
    %s358 = sphi 0, %s355
    %s359 = sphi 0, %s358
    %s375 = sphi 0, %s359
    %s383 = sphi 0, %s385
    %s386 = sphi 0, %s383
    %s387 = sphi 0, %s386
    %s403 = sphi 0, %s387
  $region4: #{deconv2d_block_forward.4} parent=0 // loop_header_branch
    %22 = sbr.rel (%p20) target = $region8
  $region5: #{deconv2d_block_forward.4} parent=0 // loop_body
    %s24 = ssub.s32 %s19, 1
    %s25 = ssub.s32 %s19, 2
    %s32 = sadd.s32 1, %s27
    %p33 = scmp.ge.s32.totalorder %s32, 1
    %s34 = scalar_select %p33, 0, %s32
    %s35 = sadd.s32 1, %s26
    %s36 = scalar_select %p33, %s35, %s26
    %p37 = scmp.ge.s32.totalorder %s36, 2
    %s38 = scalar_select %p37, 0, %s36
    %s40 = sadd.s32 %s39, 1
    %p43 = scmp.eq.s32.totalorder %s19, 1
    %p44 = scmp.ne.s32.totalorder %s39, %s41
    %p45 = scmp.eq.s32.totalorder %s19, 0
    %p46 = por %p44, %p45
    %p47 = scmp.ne.s32.totalorder %s39, %s41
    %p48 = scmp.eq.s32.totalorder %s24, 1
    %p49 = por %p47, %p48
    %p50 = scmp.ne.s32.totalorder %s41, %s42
    %p51 = scmp.eq.s32.totalorder %s24, 0
    %p52 = por %p50, %p51
    %p53 = scmp.ne.s32.totalorder %s41, %s42
    %p54 = scmp.eq.s32.totalorder %s25, 1
    %p55 = por %p53, %p54
    %p57 = scmp.ne.s32.totalorder %s42, %s56
    %p58 = scmp.eq.s32.totalorder %s25, 0
    %p59 = por %p57, %p58
    %s61 = sadd.s32 %s60, 1
    %p64 = scmp.eq.s32.totalorder %s19, 1
    %p65 = scmp.ne.s32.totalorder %s60, %s62
    %p66 = scmp.eq.s32.totalorder %s19, 0
    %p67 = por %p65, %p66
    %p68 = scmp.ne.s32.totalorder %s60, %s62
    %p69 = scmp.eq.s32.totalorder %s24, 1
    %p70 = por %p68, %p69
    %p71 = scmp.ne.s32.totalorder %s62, %s63
    %p72 = scmp.eq.s32.totalorder %s24, 0
    %p73 = por %p71, %p72
    %p74 = scmp.ne.s32.totalorder %s62, %s63
    %p75 = scmp.eq.s32.totalorder %s25, 1
    %p76 = por %p74, %p75
    %p78 = scmp.ne.s32.totalorder %s63, %s77
    %p79 = scmp.eq.s32.totalorder %s25, 0
    %p80 = por %p78, %p79
    %s81 = ssub.s32 %s26, %s38
    %s82 = ssub.s32 %s27, %s34
    %s83 = sor.u32 %s81, %s82
    %p84 = scmp.eq.s32.totalorder %s83, 0
    %s86 = sadd.s32 %s85, 1
    %s87 = scalar_select %p84, %s85, %s86
    %p90 = pneg %p84
    %p91 = scmp.eq.s32.totalorder %s19, 1
    %p92 = por %p90, %p91
    %p93 = scmp.ne.s32.totalorder %s85, %s88
    %p94 = scmp.eq.s32.totalorder %s19, 0
    %p95 = por %p93, %p94
    %p96 = scmp.ne.s32.totalorder %s85, %s88
    %p97 = scmp.eq.s32.totalorder %s24, 1
    %p98 = por %p96, %p97
    %p99 = scmp.ne.s32.totalorder %s88, %s89
    %p100 = scmp.eq.s32.totalorder %s24, 0
    %p101 = por %p99, %p100
    %p102 = scmp.ne.s32.totalorder %s88, %s89
    %p103 = scmp.eq.s32.totalorder %s25, 1
    %p104 = por %p102, %p103
    %p106 = scmp.ne.s32.totalorder %s89, %s105
    %p107 = scmp.eq.s32.totalorder %s25, 0
    %p108 = por %p106, %p107
    %s109 = smul.u32 %s27, 16
    %s110 = ssub.s32 %s109, 1
    %p111 = scmp.gt.s32.totalorder %s110, 0
    %s112 = scalar_select %p111, %s110, 0
    %s113 = smul.u32 %s34, 16
    %s114 = ssub.s32 %s113, 1
    %p115 = scmp.gt.s32.totalorder %s114, 0
    %s116 = scalar_select %p115, %s114, 0
    %s117 = ssub.s32 %s26, %s38
    %s118 = ssub.s32 %s112, %s116
    %s119 = sor.u32 %s117, %s118
    %p120 = scmp.eq.s32.totalorder %s119, 0
    %s122 = sadd.s32 %s121, 1
    %s123 = scalar_select %p120, %s121, %s122
    %p126 = pneg %p120
    %p127 = scmp.eq.s32.totalorder %s19, 1
    %p128 = por %p126, %p127
    %p129 = scmp.ne.s32.totalorder %s121, %s124
    %p130 = scmp.eq.s32.totalorder %s19, 0
    %p131 = por %p129, %p130
    %p132 = scmp.ne.s32.totalorder %s121, %s124
    %p133 = scmp.eq.s32.totalorder %s24, 1
    %p134 = por %p132, %p133
    %p135 = scmp.ne.s32.totalorder %s124, %s125
    %p136 = scmp.eq.s32.totalorder %s24, 0
    %p137 = por %p135, %p136
    %p138 = scmp.ne.s32.totalorder %s124, %s125
    %p139 = scmp.eq.s32.totalorder %s25, 1
    %p140 = por %p138, %p139
    %p142 = scmp.ne.s32.totalorder %s125, %s141
    %p143 = scmp.eq.s32.totalorder %s25, 0
    %p144 = por %p142, %p143
    %s145 = smul.u32 %s27, 16
    %s146 = sadd.s32 %s145, 16
    %p147 = scmp.lt.s32.totalorder %s146, 15
    %s148 = scalar_select %p147, %s146, 15
    %s149 = smul.u32 %s34, 16
    %s150 = sadd.s32 %s149, 16
    %p151 = scmp.lt.s32.totalorder %s150, 15
    %s152 = scalar_select %p151, %s150, 15
    %s153 = ssub.s32 %s26, %s38
    %s154 = ssub.s32 %s148, %s152
    %s155 = sor.u32 %s153, %s154
    %p156 = scmp.eq.s32.totalorder %s155, 0
    %s158 = sadd.s32 %s157, 1
    %s159 = scalar_select %p156, %s157, %s158
    %p162 = pneg %p156
    %p163 = scmp.eq.s32.totalorder %s19, 1
    %p164 = por %p162, %p163
    %p165 = scmp.ne.s32.totalorder %s157, %s160
    %p166 = scmp.eq.s32.totalorder %s19, 0
    %p167 = por %p165, %p166
    %p168 = scmp.ne.s32.totalorder %s157, %s160
    %p169 = scmp.eq.s32.totalorder %s24, 1
    %p170 = por %p168, %p169
    %p171 = scmp.ne.s32.totalorder %s160, %s161
    %p172 = scmp.eq.s32.totalorder %s24, 0
    %p173 = por %p171, %p172
    %p174 = scmp.ne.s32.totalorder %s160, %s161
    %p175 = scmp.eq.s32.totalorder %s25, 1
    %p176 = por %p174, %p175
    %p178 = scmp.ne.s32.totalorder %s161, %s177
    %p179 = scmp.eq.s32.totalorder %s25, 0
    %p180 = por %p178, %p179
    %s181 = ssub.s32 %s26, %s38
    %s182 = ssub.s32 %s27, %s34
    %s183 = sor.u32 %s181, %s182
    %p184 = scmp.eq.s32.totalorder %s183, 0
    %s186 = sadd.s32 %s185, 1
    %s187 = scalar_select %p184, %s185, %s186
    %p190 = pneg %p184
    %p191 = scmp.eq.s32.totalorder %s19, 1
    %p192 = por %p190, %p191
    %p193 = scmp.ne.s32.totalorder %s185, %s188
    %p194 = scmp.eq.s32.totalorder %s19, 0
    %p195 = por %p193, %p194
    %p196 = scmp.ne.s32.totalorder %s185, %s188
    %p197 = scmp.eq.s32.totalorder %s24, 1
    %p198 = por %p196, %p197
    %p199 = scmp.ne.s32.totalorder %s188, %s189
    %p200 = scmp.eq.s32.totalorder %s24, 0
    %p201 = por %p199, %p200
    %p202 = scmp.ne.s32.totalorder %s188, %s189
    %p203 = scmp.eq.s32.totalorder %s25, 1
    %p204 = por %p202, %p203
    %p206 = scmp.ne.s32.totalorder %s189, %s205
    %p207 = scmp.eq.s32.totalorder %s25, 0
    %p208 = por %p206, %p207
    %s209 = smul.u32 %s27, 16
    %s210 = ssub.s32 %s209, 1
    %p211 = scmp.gt.s32.totalorder %s210, 0
    %s212 = scalar_select %p211, %s210, 0
    %s213 = smul.u32 %s34, 16
    %s214 = ssub.s32 %s213, 1
    %p215 = scmp.gt.s32.totalorder %s214, 0
    %s216 = scalar_select %p215, %s214, 0
    %s217 = ssub.s32 %s26, %s38
    %s218 = ssub.s32 %s212, %s216
    %s219 = sor.u32 %s217, %s218
    %p220 = scmp.eq.s32.totalorder %s219, 0
    %s222 = sadd.s32 %s221, 1
    %s223 = scalar_select %p220, %s221, %s222
    %p226 = pneg %p220
    %p227 = scmp.eq.s32.totalorder %s19, 1
    %p228 = por %p226, %p227
    %p229 = scmp.ne.s32.totalorder %s221, %s224
    %p230 = scmp.eq.s32.totalorder %s19, 0
    %p231 = por %p229, %p230
    %p232 = scmp.ne.s32.totalorder %s221, %s224
    %p233 = scmp.eq.s32.totalorder %s24, 1
    %p234 = por %p232, %p233
    %p235 = scmp.ne.s32.totalorder %s224, %s225
    %p236 = scmp.eq.s32.totalorder %s24, 0
    %p237 = por %p235, %p236
    %p238 = scmp.ne.s32.totalorder %s224, %s225
    %p239 = scmp.eq.s32.totalorder %s25, 1
    %p240 = por %p238, %p239
    %p242 = scmp.ne.s32.totalorder %s225, %s241
    %p243 = scmp.eq.s32.totalorder %s25, 0
    %p244 = por %p242, %p243
    %s245 = smul.u32 %s27, 16
    %s246 = sadd.s32 %s245, 16
    %p247 = scmp.lt.s32.totalorder %s246, 15
    %s248 = scalar_select %p247, %s246, 15
    %s249 = smul.u32 %s34, 16
    %s250 = sadd.s32 %s249, 16
    %p251 = scmp.lt.s32.totalorder %s250, 15
    %s252 = scalar_select %p251, %s250, 15
    %s253 = ssub.s32 %s26, %s38
    %s254 = ssub.s32 %s248, %s252
    %s255 = sor.u32 %s253, %s254
    %p256 = scmp.eq.s32.totalorder %s255, 0
    %s258 = sadd.s32 %s257, 1
    %s259 = scalar_select %p256, %s257, %s258
    %p262 = pneg %p256
    %p263 = scmp.eq.s32.totalorder %s19, 1
    %p264 = por %p262, %p263
    %p265 = scmp.ne.s32.totalorder %s257, %s260
    %p266 = scmp.eq.s32.totalorder %s19, 0
    %p267 = por %p265, %p266
    %p268 = scmp.ne.s32.totalorder %s257, %s260
    %p269 = scmp.eq.s32.totalorder %s24, 1
    %p270 = por %p268, %p269
    %p271 = scmp.ne.s32.totalorder %s260, %s261
    %p272 = scmp.eq.s32.totalorder %s24, 0
    %p273 = por %p271, %p272
    %p274 = scmp.ne.s32.totalorder %s260, %s261
    %p275 = scmp.eq.s32.totalorder %s25, 1
    %p276 = por %p274, %p275
    %p278 = scmp.ne.s32.totalorder %s261, %s277
    %p279 = scmp.eq.s32.totalorder %s25, 0
    %p280 = por %p278, %p279
    %s282 = sadd.s32 %s281, 1
    %p285 = scmp.eq.s32.totalorder %s19, 1
    %p286 = scmp.ne.s32.totalorder %s281, %s283
    %p287 = scmp.eq.s32.totalorder %s19, 0
    %p288 = por %p286, %p287
    %p289 = scmp.ne.s32.totalorder %s281, %s283
    %p290 = scmp.eq.s32.totalorder %s24, 1
    %p291 = por %p289, %p290
    %p292 = scmp.ne.s32.totalorder %s283, %s284
    %p293 = scmp.eq.s32.totalorder %s24, 0
    %p294 = por %p292, %p293
    %p295 = scmp.ne.s32.totalorder %s283, %s284
    %p296 = scmp.eq.s32.totalorder %s25, 1
    %p297 = por %p295, %p296
    %p299 = scmp.ne.s32.totalorder %s284, %s298
    %p300 = scmp.eq.s32.totalorder %s25, 0
    %p301 = por %p299, %p300
    %s303 = sadd.s32 %s302, 1
    %p306 = scmp.eq.s32.totalorder %s19, 1
    %p307 = scmp.ne.s32.totalorder %s302, %s304
    %p308 = scmp.eq.s32.totalorder %s19, 0
    %p309 = por %p307, %p308
    %p310 = scmp.ne.s32.totalorder %s302, %s304
    %p311 = scmp.eq.s32.totalorder %s24, 1
    %p312 = por %p310, %p311
    %p313 = scmp.ne.s32.totalorder %s304, %s305
    %p314 = scmp.eq.s32.totalorder %s24, 0
    %p315 = por %p313, %p314
    %p316 = scmp.ne.s32.totalorder %s304, %s305
    %p317 = scmp.eq.s32.totalorder %s25, 1
    %p318 = por %p316, %p317
    %p320 = scmp.ne.s32.totalorder %s305, %s319
    %p321 = scmp.eq.s32.totalorder %s25, 0
    %p322 = por %p320, %p321
    %s323 = ssub.s32 %s26, %s38
    %s324 = ssub.s32 %s27, %s34
    %s325 = sor.u32 %s323, %s324
    %p326 = scmp.eq.s32.totalorder %s325, 0
    %s328 = sadd.s32 %s327, 1
    %s329 = scalar_select %p326, %s327, %s328
    %p332 = pneg %p326
    %p333 = scmp.eq.s32.totalorder %s19, 1
    %p334 = por %p332, %p333
    %p335 = scmp.ne.s32.totalorder %s327, %s330
    %p336 = scmp.eq.s32.totalorder %s19, 0
    %p337 = por %p335, %p336
    %p338 = scmp.ne.s32.totalorder %s327, %s330
    %p339 = scmp.eq.s32.totalorder %s24, 1
    %p340 = por %p338, %p339
    %p341 = scmp.ne.s32.totalorder %s330, %s331
    %p342 = scmp.eq.s32.totalorder %s24, 0
    %p343 = por %p341, %p342
    %p344 = scmp.ne.s32.totalorder %s330, %s331
    %p345 = scmp.eq.s32.totalorder %s25, 1
    %p346 = por %p344, %p345
    %p348 = scmp.ne.s32.totalorder %s331, %s347
    %p349 = scmp.eq.s32.totalorder %s25, 0
    %p350 = por %p348, %p349
    %s351 = ssub.s32 %s26, %s38
    %s352 = ssub.s32 %s27, %s34
    %s353 = sor.u32 %s351, %s352
    %p354 = scmp.eq.s32.totalorder %s353, 0
    %s356 = sadd.s32 %s355, 1
    %s357 = scalar_select %p354, %s355, %s356
    %p360 = pneg %p354
    %p361 = scmp.eq.s32.totalorder %s19, 1
    %p362 = por %p360, %p361
    %p363 = scmp.ne.s32.totalorder %s355, %s358
    %p364 = scmp.eq.s32.totalorder %s19, 0
    %p365 = por %p363, %p364
    %p366 = scmp.ne.s32.totalorder %s355, %s358
    %p367 = scmp.eq.s32.totalorder %s24, 1
    %p368 = por %p366, %p367
    %p369 = scmp.ne.s32.totalorder %s358, %s359
    %p370 = scmp.eq.s32.totalorder %s24, 0
    %p371 = por %p369, %p370
    %p372 = scmp.ne.s32.totalorder %s358, %s359
    %p373 = scmp.eq.s32.totalorder %s25, 1
    %p374 = por %p372, %p373
    %p376 = scmp.ne.s32.totalorder %s359, %s375
    %p377 = scmp.eq.s32.totalorder %s25, 0
    %p378 = por %p376, %p377
    %s379 = ssub.s32 %s26, %s38
    %s380 = ssub.s32 %s27, %s34
    %s381 = sor.u32 %s379, %s380
    %p382 = scmp.eq.s32.totalorder %s381, 0
    %s384 = sadd.s32 %s383, 1
    %s385 = scalar_select %p382, %s383, %s384
    %p388 = pneg %p382
    %p389 = scmp.eq.s32.totalorder %s19, 1
    %p390 = por %p388, %p389
    %p391 = scmp.ne.s32.totalorder %s383, %s386
    %p392 = scmp.eq.s32.totalorder %s19, 0
    %p393 = por %p391, %p392
    %p394 = scmp.ne.s32.totalorder %s383, %s386
    %p395 = scmp.eq.s32.totalorder %s24, 1
    %p396 = por %p394, %p395
    %p397 = scmp.ne.s32.totalorder %s386, %s387
    %p398 = scmp.eq.s32.totalorder %s24, 0
    %p399 = por %p397, %p398
    %p400 = scmp.ne.s32.totalorder %s386, %s387
    %p401 = scmp.eq.s32.totalorder %s25, 1
    %p402 = por %p400, %p401
    %p404 = scmp.ne.s32.totalorder %s387, %s403
    %p405 = scmp.eq.s32.totalorder %s25, 0
    %p406 = por %p404, %p405
    %p407 = scmp.le.s32.totalorder 1, %s19
    %p408 = scmp.lt.s32.totalorder %s19, 3
    %p409 = pnand %p407, %p408
    %p410 = pneg %p409
    // Predicated region
    $region9: #{deconv2d_block_forward.4} parent=5 // pred_check
      _
    $region10: #{deconv2d_block_forward.4} parent=5 // pred_check_branch
      %412 = sbr.rel (%p409) target = $region12
    $region11: #{deconv2d_block_forward.4} parent=5 // pred_region
      %s413 = ssub.s32 %s19, 1
      // Predicated region
      $region13: #{deconv2d_block_forward.4} parent=11 // pred_check
        %p414 = pneg %p52
      $region14: #{deconv2d_block_forward.4} parent=11 // pred_check_branch
        %416 = sbr.rel (%p414) target = $region16
      $region15: #{deconv2d_block_forward.4} parent=11 // pred_region
        _
      $region16: #{deconv2d_block_forward.4} parent=11 // pred_fallthru
        _
      // Predicated region
      $region17: #{deconv2d_block_forward.4} parent=11 // pred_check
        %p417 = pneg %p73
      $region18: #{deconv2d_block_forward.4} parent=11 // pred_check_branch
        %419 = sbr.rel (%p417) target = $region20
      $region19: #{deconv2d_block_forward.4} parent=11 // pred_region
        _
      $region20: #{deconv2d_block_forward.4} parent=11 // pred_fallthru
        _
      // Predicated region
      $region21: #{deconv2d_block_forward.4} parent=11 // pred_check
        %p420 = pneg %p294
      $region22: #{deconv2d_block_forward.4} parent=11 // pred_check_branch
        %422 = sbr.rel (%p420) target = $region24
      $region23: #{deconv2d_block_forward.4} parent=11 // pred_region
        _
      $region24: #{deconv2d_block_forward.4} parent=11 // pred_fallthru
        _
      // Predicated region
      $region25: #{deconv2d_block_forward.4} parent=11 // pred_check
        %p423 = pneg %p315
      $region26: #{deconv2d_block_forward.4} parent=11 // pred_check_branch
        %425 = sbr.rel (%p423) target = $region28
      $region27: #{deconv2d_block_forward.4} parent=11 // pred_region
        _
      $region28: #{deconv2d_block_forward.4} parent=11 // pred_fallthru
        _
    $region12: #{deconv2d_block_forward.4} parent=5 // pred_fallthru
      _
    %p426 = scmp.lt.s32.totalorder %s19, 2
    // Predicated region
    $region29: #{deconv2d_block_forward.4} parent=5 // pred_check
      %p427 = pneg %p426
    $region30: #{deconv2d_block_forward.4} parent=5 // pred_check_branch
      %429 = sbr.rel (%p427) target = $region32
    $region31: #{deconv2d_block_forward.4} parent=5 // pred_region
      // Predicated region
      $region33: #{deconv2d_block_forward.4} parent=31 // pred_check
        %p430 = pneg %p95
      $region34: #{deconv2d_block_forward.4} parent=31 // pred_check_branch
        %432 = sbr.rel (%p430) target = $region36
      $region35: #{deconv2d_block_forward.4} parent=31 // pred_region
        %s433 = smul.u32 16, %s27
        %p434 = scmp.lt.s32.totalorder %s26, 1
        %s435 = scalar_select %p434, %s26, 1
        %p436 = scmp.lt.s32.totalorder %s433, 15
        %s437 = scalar_select %p436, %s433, 15
        %s438 = smul.addr %s437, 4
        %s439 = smul.addr %s435, 64
        %s440 = sadd.s32 %s438, %s439
        %s441 = smul.addr %s440, 4
        %s442 = scalar_lea.vmem %s2, %s441
        %s443 = smul.u32 16, %s27
      $region36: #{deconv2d_block_forward.4} parent=31 // pred_fallthru
        _
      // Predicated region
      $region37: #{deconv2d_block_forward.4} parent=31 // pred_check
        %p444 = pneg %p131
      $region38: #{deconv2d_block_forward.4} parent=31 // pred_check_branch
        %446 = sbr.rel (%p444) target = $region40
      $region39: #{deconv2d_block_forward.4} parent=31 // pred_region
        %s447 = smul.u32 %s27, 16
        %s448 = ssub.s32 %s447, 1
        %p449 = scmp.gt.s32.totalorder %s448, 0
        %s450 = scalar_select %p449, %s448, 0
        %p451 = scmp.lt.s32.totalorder %s26, 1
        %s452 = scalar_select %p451, %s26, 1
        %p453 = scmp.lt.s32.totalorder %s450, 15
        %s454 = scalar_select %p453, %s450, 15
        %s455 = smul.addr %s454, 4
        %s456 = smul.addr %s452, 64
        %s457 = sadd.s32 %s455, %s456
        %s458 = smul.addr %s457, 4
        %s459 = scalar_lea.vmem %s3, %s458
        %s460 = smul.u32 %s27, 16
        %s461 = ssub.s32 %s460, 1
        %p462 = scmp.gt.s32.totalorder %s461, 0
        %s463 = scalar_select %p462, %s461, 0
      $region40: #{deconv2d_block_forward.4} parent=31 // pred_fallthru
        _
      // Predicated region
      $region41: #{deconv2d_block_forward.4} parent=31 // pred_check
        %p464 = pneg %p167
      $region42: #{deconv2d_block_forward.4} parent=31 // pred_check_branch
        %466 = sbr.rel (%p464) target = $region44
      $region43: #{deconv2d_block_forward.4} parent=31 // pred_region
        %s467 = smul.u32 %s27, 16
        %s468 = sadd.s32 %s467, 16
        %p469 = scmp.lt.s32.totalorder %s468, 15
        %s470 = scalar_select %p469, %s468, 15
        %p471 = scmp.lt.s32.totalorder %s26, 1
        %s472 = scalar_select %p471, %s26, 1
        %p473 = scmp.lt.s32.totalorder %s470, 15
        %s474 = scalar_select %p473, %s470, 15
        %s475 = smul.addr %s474, 4
        %s476 = smul.addr %s472, 64
        %s477 = sadd.s32 %s475, %s476
        %s478 = smul.addr %s477, 4
        %s479 = scalar_lea.vmem %s4, %s478
        %s480 = smul.u32 %s27, 16
        %s481 = sadd.s32 %s480, 16
        %p482 = scmp.lt.s32.totalorder %s481, 15
        %s483 = scalar_select %p482, %s481, 15
      $region44: #{deconv2d_block_forward.4} parent=31 // pred_fallthru
        _
      // Predicated region
      $region45: #{deconv2d_block_forward.4} parent=31 // pred_check
        %p484 = pneg %p195
      $region46: #{deconv2d_block_forward.4} parent=31 // pred_check_branch
        %486 = sbr.rel (%p484) target = $region48
      $region47: #{deconv2d_block_forward.4} parent=31 // pred_region
        %s487 = smul.u32 16, %s27
        %p488 = scmp.lt.s32.totalorder %s26, 1
        %s489 = scalar_select %p488, %s26, 1
        %p490 = scmp.lt.s32.totalorder %s487, 15
        %s491 = scalar_select %p490, %s487, 15
        %s492 = smul.addr %s491, 4
        %s493 = smul.addr %s489, 64
        %s494 = sadd.s32 %s492, %s493
        %s495 = smul.addr %s494, 4
        %s496 = scalar_lea.vmem %s5, %s495
        %s497 = smul.u32 16, %s27
      $region48: #{deconv2d_block_forward.4} parent=31 // pred_fallthru
        _
      // Predicated region
      $region49: #{deconv2d_block_forward.4} parent=31 // pred_check
        %p498 = pneg %p231
      $region50: #{deconv2d_block_forward.4} parent=31 // pred_check_branch
        %500 = sbr.rel (%p498) target = $region52
      $region51: #{deconv2d_block_forward.4} parent=31 // pred_region
        %s501 = smul.u32 %s27, 16
        %s502 = ssub.s32 %s501, 1
        %p503 = scmp.gt.s32.totalorder %s502, 0
        %s504 = scalar_select %p503, %s502, 0
        %p505 = scmp.lt.s32.totalorder %s26, 1
        %s506 = scalar_select %p505, %s26, 1
        %p507 = scmp.lt.s32.totalorder %s504, 15
        %s508 = scalar_select %p507, %s504, 15
        %s509 = smul.addr %s508, 4
        %s510 = smul.addr %s506, 64
        %s511 = sadd.s32 %s509, %s510
        %s512 = smul.addr %s511, 4
        %s513 = scalar_lea.vmem %s6, %s512
        %s514 = smul.u32 %s27, 16
        %s515 = ssub.s32 %s514, 1
        %p516 = scmp.gt.s32.totalorder %s515, 0
        %s517 = scalar_select %p516, %s515, 0
      $region52: #{deconv2d_block_forward.4} parent=31 // pred_fallthru
        _
      // Predicated region
      $region53: #{deconv2d_block_forward.4} parent=31 // pred_check
        %p518 = pneg %p267
      $region54: #{deconv2d_block_forward.4} parent=31 // pred_check_branch
        %520 = sbr.rel (%p518) target = $region56
      $region55: #{deconv2d_block_forward.4} parent=31 // pred_region
        %s521 = smul.u32 %s27, 16
        %s522 = sadd.s32 %s521, 16
        %p523 = scmp.lt.s32.totalorder %s522, 15
        %s524 = scalar_select %p523, %s522, 15
        %p525 = scmp.lt.s32.totalorder %s26, 1
        %s526 = scalar_select %p525, %s26, 1
        %p527 = scmp.lt.s32.totalorder %s524, 15
        %s528 = scalar_select %p527, %s524, 15
        %s529 = smul.addr %s528, 4
        %s530 = smul.addr %s526, 64
        %s531 = sadd.s32 %s529, %s530
        %s532 = smul.addr %s531, 4
        %s533 = scalar_lea.vmem %s7, %s532
        %s534 = smul.u32 %s27, 16
        %s535 = sadd.s32 %s534, 16
        %p536 = scmp.lt.s32.totalorder %s535, 15
        %s537 = scalar_select %p536, %s535, 15
      $region56: #{deconv2d_block_forward.4} parent=31 // pred_fallthru
        _
    $region32: #{deconv2d_block_forward.4} parent=5 // pred_fallthru
      _
    %p538 = scmp.le.s32.totalorder 1, %s19
    %p539 = scmp.lt.s32.totalorder %s19, 3
    %p540 = pnand %p538, %p539
    %p541 = pneg %p540
    // Predicated region
    $region57: #{deconv2d_block_forward.4} parent=5 // pred_check
      _
    $region58: #{deconv2d_block_forward.4} parent=5 // pred_check_branch
      %543 = sbr.rel (%p540) target = $region60
    $region59: #{deconv2d_block_forward.4} parent=5 // pred_region
      %s544 = ssub.s32 %s19, 1
      %p545 = pneg %p52
      %p546 = pneg %p49
      %p547 = pneg %p73
      %p548 = pneg %p70
      %s549 = smul.u32 16, %s29
      %p550 = scmp.lt.s32.totalorder %s28, 1
      %s551 = scalar_select %p550, %s28, 1
      %p552 = scmp.lt.s32.totalorder %s549, 15
      %s553 = scalar_select %p552, %s549, 15
      %s554 = smul.addr %s553, 4
      %s555 = smul.addr %s551, 64
      %s556 = sadd.s32 %s554, %s555
      %s557 = smul.addr %s556, 4
      %s558 = scalar_lea.vmem %s2, %s557
      %p559 = pneg %p101
      %p560 = pneg %p98
      %s561 = smul.u32 %s29, 16
      %s562 = ssub.s32 %s561, 1
      %p563 = scmp.gt.s32.totalorder %s562, 0
      %s564 = scalar_select %p563, %s562, 0
      %p565 = scmp.lt.s32.totalorder %s28, 1
      %s566 = scalar_select %p565, %s28, 1
      %p567 = scmp.lt.s32.totalorder %s564, 15
      %s568 = scalar_select %p567, %s564, 15
      %s569 = smul.addr %s568, 4
      %s570 = smul.addr %s566, 64
      %s571 = sadd.s32 %s569, %s570
      %s572 = smul.addr %s571, 4
      %s573 = scalar_lea.vmem %s3, %s572
      %p574 = pneg %p137
      %p575 = pneg %p134
      %s576 = smul.u32 %s29, 16
      %s577 = sadd.s32 %s576, 16
      %p578 = scmp.lt.s32.totalorder %s577, 15
      %s579 = scalar_select %p578, %s577, 15
      %p580 = scmp.lt.s32.totalorder %s28, 1
      %s581 = scalar_select %p580, %s28, 1
      %p582 = scmp.lt.s32.totalorder %s579, 15
      %s583 = scalar_select %p582, %s579, 15
      %s584 = smul.addr %s583, 4
      %s585 = smul.addr %s581, 64
      %s586 = sadd.s32 %s584, %s585
      %s587 = smul.addr %s586, 4
      %s588 = scalar_lea.vmem %s4, %s587
      %p589 = pneg %p173
      %p590 = pneg %p170
      %s591 = smul.u32 16, %s29
      %p592 = scmp.lt.s32.totalorder %s28, 1
      %s593 = scalar_select %p592, %s28, 1
      %p594 = scmp.lt.s32.totalorder %s591, 15
      %s595 = scalar_select %p594, %s591, 15
      %s596 = smul.addr %s595, 4
      %s597 = smul.addr %s593, 64
      %s598 = sadd.s32 %s596, %s597
      %s599 = smul.addr %s598, 4
      %s600 = scalar_lea.vmem %s5, %s599
      %p601 = pneg %p201
      %p602 = pneg %p198
      %s603 = smul.u32 %s29, 16
      %s604 = ssub.s32 %s603, 1
      %p605 = scmp.gt.s32.totalorder %s604, 0
      %s606 = scalar_select %p605, %s604, 0
      %p607 = scmp.lt.s32.totalorder %s28, 1
      %s608 = scalar_select %p607, %s28, 1
      %p609 = scmp.lt.s32.totalorder %s606, 15
      %s610 = scalar_select %p609, %s606, 15
      %s611 = smul.addr %s610, 4
      %s612 = smul.addr %s608, 64
      %s613 = sadd.s32 %s611, %s612
      %s614 = smul.addr %s613, 4
      %s615 = scalar_lea.vmem %s6, %s614
      %p616 = pneg %p237
      %p617 = pneg %p234
      %s618 = smul.u32 %s29, 16
      %s619 = sadd.s32 %s618, 16
      %p620 = scmp.lt.s32.totalorder %s619, 15
      %s621 = scalar_select %p620, %s619, 15
      %p622 = scmp.lt.s32.totalorder %s28, 1
      %s623 = scalar_select %p622, %s28, 1
      %p624 = scmp.lt.s32.totalorder %s621, 15
      %s625 = scalar_select %p624, %s621, 15
      %s626 = smul.addr %s625, 4
      %s627 = smul.addr %s623, 64
      %s628 = sadd.s32 %s626, %s627
      %s629 = smul.addr %s628, 4
      %s630 = scalar_lea.vmem %s7, %s629
      %p631 = pneg %p273
      %p632 = pneg %p270
      %p633 = pneg %p294
      %p634 = pneg %p291
      %p635 = pneg %p315
      %p636 = pneg %p312
      %p637 = pneg %p343
      %p638 = pneg %p340
      %s639 = smul.u32 16, %s29
      %p640 = scmp.lt.s32.totalorder %s28, 1
      %s641 = scalar_select %p640, %s28, 1
      %p642 = scmp.lt.s32.totalorder %s639, 15
      %s643 = scalar_select %p642, %s639, 15
      %s644 = smul.addr %s643, 2
      %s645 = smul.addr %s641, 32
      %s646 = sadd.s32 %s644, %s645
      %s647 = smul.addr %s646, 4
      %s648 = scalar_lea.vmem %s10, %s647
      %p649 = pneg %p371
      %p650 = pneg %p368
      %p651 = scmp.lt.s32.totalorder %s28, 1
      %s652 = scalar_select %p651, %s28, 1
      %p653 = scmp.lt.s32.totalorder %s29, 0
      %s654 = scalar_select %p653, %s29, 0
      %s655 = sadd.s32 %s654, %s652
      %s656 = scalar_lea.vmem %s11, %s655
      %p657 = pneg %p399
      %p658 = pneg %p396
      %p659 = scmp.lt.s32.totalorder %s28, 1
      %s660 = scalar_select %p659, %s28, 1
      %p661 = scmp.lt.s32.totalorder %s29, 0
      %s662 = scalar_select %p661, %s29, 0
      %s663 = sadd.s32 %s662, %s660
      %s664 = scalar_lea.vmem %s12, %s663
      %s665 = smul.u32 16, %s29
      %p666 = scmp.lt.s32.totalorder %s28, 1
      %s667 = scalar_select %p666, %s28, 1
      %p668 = scmp.lt.s32.totalorder %s665, 15
      %s669 = scalar_select %p668, %s665, 15
      %s670 = smul.addr %s669, 4
      %s671 = smul.addr %s667, 64
      %s672 = sadd.s32 %s670, %s671
      %s673 = smul.addr %s672, 4
      %s674 = scalar_lea.vmem %s2, %s673
      %s675 = smul.u32 16, %s29
      %s676 = smul.u32 %s29, 16
      %s677 = ssub.s32 %s676, 1
      %p678 = scmp.gt.s32.totalorder %s677, 0
      %s679 = scalar_select %p678, %s677, 0
      %p680 = scmp.lt.s32.totalorder %s28, 1
      %s681 = scalar_select %p680, %s28, 1
      %p682 = scmp.lt.s32.totalorder %s679, 15
      %s683 = scalar_select %p682, %s679, 15
      %s684 = smul.addr %s683, 4
      %s685 = smul.addr %s681, 64
      %s686 = sadd.s32 %s684, %s685
      %s687 = smul.addr %s686, 4
      %s688 = scalar_lea.vmem %s3, %s687
      %s689 = smul.u32 %s29, 16
      %s690 = ssub.s32 %s689, 1
      %p691 = scmp.gt.s32.totalorder %s690, 0
      %s692 = scalar_select %p691, %s690, 0
      %s693 = smul.u32 %s29, 16
      %s694 = sadd.s32 %s693, 16
      %p695 = scmp.lt.s32.totalorder %s694, 15
      %s696 = scalar_select %p695, %s694, 15
      %p697 = scmp.lt.s32.totalorder %s28, 1
      %s698 = scalar_select %p697, %s28, 1
      %p699 = scmp.lt.s32.totalorder %s696, 15
      %s700 = scalar_select %p699, %s696, 15
      %s701 = smul.addr %s700, 4
      %s702 = smul.addr %s698, 64
      %s703 = sadd.s32 %s701, %s702
      %s704 = smul.addr %s703, 4
      %s705 = scalar_lea.vmem %s4, %s704
      %s706 = smul.u32 %s29, 16
      %s707 = sadd.s32 %s706, 16
      %p708 = scmp.lt.s32.totalorder %s707, 15
      %s709 = scalar_select %p708, %s707, 15
      %s710 = smul.u32 16, %s29
      %p711 = scmp.lt.s32.totalorder %s28, 1
      %s712 = scalar_select %p711, %s28, 1
      %p713 = scmp.lt.s32.totalorder %s710, 15
      %s714 = scalar_select %p713, %s710, 15
      %s715 = smul.addr %s714, 4
      %s716 = smul.addr %s712, 64
      %s717 = sadd.s32 %s715, %s716
      %s718 = smul.addr %s717, 4
      %s719 = scalar_lea.vmem %s5, %s718
      %s720 = smul.u32 16, %s29
      %s721 = smul.u32 %s29, 16
      %s722 = ssub.s32 %s721, 1
      %p723 = scmp.gt.s32.totalorder %s722, 0
      %s724 = scalar_select %p723, %s722, 0
      %p725 = scmp.lt.s32.totalorder %s28, 1
      %s726 = scalar_select %p725, %s28, 1
      %p727 = scmp.lt.s32.totalorder %s724, 15
      %s728 = scalar_select %p727, %s724, 15
      %s729 = smul.addr %s728, 4
      %s730 = smul.addr %s726, 64
      %s731 = sadd.s32 %s729, %s730
      %s732 = smul.addr %s731, 4
      %s733 = scalar_lea.vmem %s6, %s732
      %s734 = smul.u32 %s29, 16
      %s735 = ssub.s32 %s734, 1
      %p736 = scmp.gt.s32.totalorder %s735, 0
      %s737 = scalar_select %p736, %s735, 0
      %s738 = smul.u32 %s29, 16
      %s739 = sadd.s32 %s738, 16
      %p740 = scmp.lt.s32.totalorder %s739, 15
      %s741 = scalar_select %p740, %s739, 15
      %p742 = scmp.lt.s32.totalorder %s28, 1
      %s743 = scalar_select %p742, %s28, 1
      %p744 = scmp.lt.s32.totalorder %s741, 15
      %s745 = scalar_select %p744, %s741, 15
      %s746 = smul.addr %s745, 4
      %s747 = smul.addr %s743, 64
      %s748 = sadd.s32 %s746, %s747
      %s749 = smul.addr %s748, 4
      %s750 = scalar_lea.vmem %s7, %s749
      %s751 = smul.u32 %s29, 16
      %s752 = sadd.s32 %s751, 16
      %p753 = scmp.lt.s32.totalorder %s752, 15
      %s754 = scalar_select %p753, %s752, 15
      %s755 = smul.u32 16, %s29
      %p756 = scmp.lt.s32.totalorder %s28, 1
      %s757 = scalar_select %p756, %s28, 1
      %p758 = scmp.lt.s32.totalorder %s755, 15
      %s759 = scalar_select %p758, %s755, 15
      %s760 = smul.addr %s759, 2
      %s761 = smul.addr %s757, 32
      %s762 = sadd.s32 %s760, %s761
      %s763 = smul.addr %s762, 4
      %s764 = scalar_lea.vmem %s10, %s763
      %s765 = smul.u32 16, %s29
      %p766 = scmp.lt.s32.totalorder %s28, 1
      %s767 = scalar_select %p766, %s28, 1
      %p768 = scmp.lt.s32.totalorder %s29, 0
      %s769 = scalar_select %p768, %s29, 0
      %s770 = sadd.s32 %s769, %s767
      %s771 = scalar_lea.vmem %s11, %s770
      %p772 = scmp.lt.s32.totalorder %s28, 1
      %s773 = scalar_select %p772, %s28, 1
      %p774 = scmp.lt.s32.totalorder %s29, 0
      %s775 = scalar_select %p774, %s29, 0
      %s776 = sadd.s32 %s775, %s773
      %s777 = scalar_lea.vmem %s12, %s776
      %p781 = scmp.eq.s32.totalorder %s29, 0
      %s782 = scalar_select %p781, 0.0, 1.0
      %v783 = vld [vmem:[%s0] sm:$0x1]
      %v784 = vld [vmem:[%s1] sm:$0x1]
      %v785 = vld [vmem:[%s688] sm:$0xf]
      %v786 = vld [vmem:[%s688 + $0x4] sm:$0x1]
      %v787 = vld [vmem:[%s688 + $0x8] sm:$0xf]
      %v788 = vld [vmem:[%s688 + $0xc] sm:$0x1]
      %v789 = vunpack.c.l.bf16 %v785
      %v790 = vunpack.c.l.bf16 %v786
      %v791 = vunpack.c.l.bf16 %v787
      %v792 = vunpack.c.l.bf16 %v788
      %v794 = vlaneseq
      %v795 = vshrl.u32 %v794, 7
      %v796 = vsub.s32 0, %v795
      %v797 = vrot.slane %v783, %v796
      %v799 = vmul.f32 %v789, %v797
      %v800 = vmul.f32 %v790, %v797
      %v801 = vmul.f32 %v791, %v797
      %v802 = vmul.f32 %v792, %v797
      %v804 = vlaneseq
      %v805 = vshrl.u32 %v804, 7
      %v806 = vsub.s32 0, %v805
      %v807 = vrot.slane %v784, %v806
      %v809 = vadd.f32 %v799, %v807
      %v810 = vadd.f32 %v800, %v807
      %v811 = vadd.f32 %v801, %v807
      %v812 = vadd.f32 %v802, %v807
      %v813 = vmax.f32 %v809, 0.0
      %v814 = vmax.f32 %v810, 0.0
      %v815 = vmax.f32 %v811, 0.0
      %v816 = vmax.f32 %v812, 0.0
      %v817 = vstv %s782
      %v818 = vmul.f32 %v813, %v817
      %v819 = vmul.f32 %v814, %v817
      %v820 = vmul.f32 %v815, %v817
      %v821 = vmul.f32 %v816, %v817
      %v822 = vpack.c.bf16 %v819, %v818
      %v823 = vpack.c.bf16 %v821, %v820
      %v824 = vld [vmem:[%s674] sm:$0xf]
      %v825 = vld [vmem:[%s674 + $0x4] sm:$0x1]
      %v826 = vld [vmem:[%s674 + $0x8] sm:$0xf]
      %v827 = vld [vmem:[%s674 + $0xc] sm:$0x1]
      %v828 = vld [vmem:[%s674 + $0x10] sm:$0xf]
      %v829 = vld [vmem:[%s674 + $0x14] sm:$0x1]
      %v830 = vld [vmem:[%s674 + $0x18] sm:$0xf]
      %v831 = vld [vmem:[%s674 + $0x1c] sm:$0x1]
      %v832 = vld [vmem:[%s674 + $0x20] sm:$0xf]
      %v833 = vld [vmem:[%s674 + $0x24] sm:$0x1]
      %v834 = vld [vmem:[%s674 + $0x28] sm:$0xf]
      %v835 = vld [vmem:[%s674 + $0x2c] sm:$0x1]
      %v836 = vld [vmem:[%s674 + $0x30] sm:$0xf]
      %v837 = vld [vmem:[%s674 + $0x34] sm:$0x1]
      %v838 = vld [vmem:[%s674 + $0x38] sm:$0xf]
      %v839 = vld [vmem:[%s674 + $0x3c] sm:$0x1]
      %v840 = vld [vmem:[%s674 + $0x40] sm:$0xf]
      %v841 = vld [vmem:[%s674 + $0x44] sm:$0x1]
      %v842 = vld [vmem:[%s674 + $0x48] sm:$0xf]
      %v843 = vld [vmem:[%s674 + $0x4c] sm:$0x1]
      %v844 = vld [vmem:[%s674 + $0x50] sm:$0xf]
      %v845 = vld [vmem:[%s674 + $0x54] sm:$0x1]
      %v846 = vld [vmem:[%s674 + $0x58] sm:$0xf]
      %v847 = vld [vmem:[%s674 + $0x5c] sm:$0x1]
      %v848 = vld [vmem:[%s674 + $0x60] sm:$0xf]
      %v849 = vld [vmem:[%s674 + $0x64] sm:$0x1]
      %v850 = vld [vmem:[%s674 + $0x68] sm:$0xf]
      %v851 = vld [vmem:[%s674 + $0x6c] sm:$0x1]
      %v852 = vld [vmem:[%s674 + $0x70] sm:$0xf]
      %v853 = vld [vmem:[%s674 + $0x74] sm:$0x1]
      %v854 = vld [vmem:[%s674 + $0x78] sm:$0xf]
      %v855 = vld [vmem:[%s674 + $0x7c] sm:$0x1]
      %v856 = vld [vmem:[%s674 + $0x80] sm:$0xf]
      %v857 = vld [vmem:[%s674 + $0x84] sm:$0x1]
      %v858 = vld [vmem:[%s674 + $0x88] sm:$0xf]
      %v859 = vld [vmem:[%s674 + $0x8c] sm:$0x1]
      %v860 = vld [vmem:[%s674 + $0x90] sm:$0xf]
      %v861 = vld [vmem:[%s674 + $0x94] sm:$0x1]
      %v862 = vld [vmem:[%s674 + $0x98] sm:$0xf]
      %v863 = vld [vmem:[%s674 + $0x9c] sm:$0x1]
      %v864 = vld [vmem:[%s674 + $0xa0] sm:$0xf]
      %v865 = vld [vmem:[%s674 + $0xa4] sm:$0x1]
      %v866 = vld [vmem:[%s674 + $0xa8] sm:$0xf]
      %v867 = vld [vmem:[%s674 + $0xac] sm:$0x1]
      %v868 = vld [vmem:[%s674 + $0xb0] sm:$0xf]
      %v869 = vld [vmem:[%s674 + $0xb4] sm:$0x1]
      %v870 = vld [vmem:[%s674 + $0xb8] sm:$0xf]
      %v871 = vld [vmem:[%s674 + $0xbc] sm:$0x1]
      %v872 = vld [vmem:[%s674 + $0xc0] sm:$0xf]
      %v873 = vld [vmem:[%s674 + $0xc4] sm:$0x1]
      %v874 = vld [vmem:[%s674 + $0xc8] sm:$0xf]
      %v875 = vld [vmem:[%s674 + $0xcc] sm:$0x1]
      %v876 = vld [vmem:[%s674 + $0xd0] sm:$0xf]
      %v877 = vld [vmem:[%s674 + $0xd4] sm:$0x1]
      %v878 = vld [vmem:[%s674 + $0xd8] sm:$0xf]
      %v879 = vld [vmem:[%s674 + $0xdc] sm:$0x1]
      %v880 = vld [vmem:[%s674 + $0xe0] sm:$0xf]
      %v881 = vld [vmem:[%s674 + $0xe4] sm:$0x1]
      %v882 = vld [vmem:[%s674 + $0xe8] sm:$0xf]
      %v883 = vld [vmem:[%s674 + $0xec] sm:$0x1]
      %v884 = vld [vmem:[%s674 + $0xf0] sm:$0xf]
      %v885 = vld [vmem:[%s674 + $0xf4] sm:$0x1]
      %v886 = vld [vmem:[%s674 + $0xf8] sm:$0xf]
      %v887 = vld [vmem:[%s674 + $0xfc] sm:$0x1]
      %v888 = vunpack.c.l.bf16 %v824
      %v889 = vunpack.c.l.bf16 %v825
      %v890 = vunpack.c.l.bf16 %v826
      %v891 = vunpack.c.l.bf16 %v827
      %v892 = vunpack.c.l.bf16 %v828
      %v893 = vunpack.c.l.bf16 %v829
      %v894 = vunpack.c.l.bf16 %v830
      %v895 = vunpack.c.l.bf16 %v831
      %v896 = vunpack.c.l.bf16 %v832
      %v897 = vunpack.c.l.bf16 %v833
      %v898 = vunpack.c.l.bf16 %v834
      %v899 = vunpack.c.l.bf16 %v835
      %v900 = vunpack.c.l.bf16 %v836
      %v901 = vunpack.c.l.bf16 %v837
      %v902 = vunpack.c.l.bf16 %v838
      %v903 = vunpack.c.l.bf16 %v839
      %v904 = vunpack.c.l.bf16 %v840
      %v905 = vunpack.c.l.bf16 %v841
      %v906 = vunpack.c.l.bf16 %v842
      %v907 = vunpack.c.l.bf16 %v843
      %v908 = vunpack.c.l.bf16 %v844
      %v909 = vunpack.c.l.bf16 %v845
      %v910 = vunpack.c.l.bf16 %v846
      %v911 = vunpack.c.l.bf16 %v847
      %v912 = vunpack.c.l.bf16 %v848
      %v913 = vunpack.c.l.bf16 %v849
      %v914 = vunpack.c.l.bf16 %v850
      %v915 = vunpack.c.l.bf16 %v851
      %v916 = vunpack.c.l.bf16 %v852
      %v917 = vunpack.c.l.bf16 %v853
      %v918 = vunpack.c.l.bf16 %v854
      %v919 = vunpack.c.l.bf16 %v855
      %v920 = vunpack.c.l.bf16 %v856
      %v921 = vunpack.c.l.bf16 %v857
      %v922 = vunpack.c.l.bf16 %v858
      %v923 = vunpack.c.l.bf16 %v859
      %v924 = vunpack.c.l.bf16 %v860
      %v925 = vunpack.c.l.bf16 %v861
      %v926 = vunpack.c.l.bf16 %v862
      %v927 = vunpack.c.l.bf16 %v863
      %v928 = vunpack.c.l.bf16 %v864
      %v929 = vunpack.c.l.bf16 %v865
      %v930 = vunpack.c.l.bf16 %v866
      %v931 = vunpack.c.l.bf16 %v867
      %v932 = vunpack.c.l.bf16 %v868
      %v933 = vunpack.c.l.bf16 %v869
      %v934 = vunpack.c.l.bf16 %v870
      %v935 = vunpack.c.l.bf16 %v871
      %v936 = vunpack.c.l.bf16 %v872
      %v937 = vunpack.c.l.bf16 %v873
      %v938 = vunpack.c.l.bf16 %v874
      %v939 = vunpack.c.l.bf16 %v875
      %v940 = vunpack.c.l.bf16 %v876
      %v941 = vunpack.c.l.bf16 %v877
      %v942 = vunpack.c.l.bf16 %v878
      %v943 = vunpack.c.l.bf16 %v879
      %v944 = vunpack.c.l.bf16 %v880
      %v945 = vunpack.c.l.bf16 %v881
      %v946 = vunpack.c.l.bf16 %v882
      %v947 = vunpack.c.l.bf16 %v883
      %v948 = vunpack.c.l.bf16 %v884
      %v949 = vunpack.c.l.bf16 %v885
      %v950 = vunpack.c.l.bf16 %v886
      %v951 = vunpack.c.l.bf16 %v887
      %v952 = vmul.f32 %v888, %v797
      %v953 = vmul.f32 %v889, %v797
      %v954 = vmul.f32 %v890, %v797
      %v955 = vmul.f32 %v891, %v797
      %v956 = vmul.f32 %v892, %v797
      %v957 = vmul.f32 %v893, %v797
      %v958 = vmul.f32 %v894, %v797
      %v959 = vmul.f32 %v895, %v797
      %v960 = vmul.f32 %v896, %v797
      %v961 = vmul.f32 %v897, %v797
      %v962 = vmul.f32 %v898, %v797
      %v963 = vmul.f32 %v899, %v797
      %v964 = vmul.f32 %v900, %v797
      %v965 = vmul.f32 %v901, %v797
      %v966 = vmul.f32 %v902, %v797
      %v967 = vmul.f32 %v903, %v797
      %v968 = vmul.f32 %v904, %v797
      %v969 = vmul.f32 %v905, %v797
      %v970 = vmul.f32 %v906, %v797
      %v971 = vmul.f32 %v907, %v797
      %v972 = vmul.f32 %v908, %v797
      %v973 = vmul.f32 %v909, %v797
      %v974 = vmul.f32 %v910, %v797
      %v975 = vmul.f32 %v911, %v797
      %v976 = vmul.f32 %v912, %v797
      %v977 = vmul.f32 %v913, %v797
      %v978 = vmul.f32 %v914, %v797
      %v979 = vmul.f32 %v915, %v797
      %v980 = vmul.f32 %v916, %v797
      %v981 = vmul.f32 %v917, %v797
      %v982 = vmul.f32 %v918, %v797
      %v983 = vmul.f32 %v919, %v797
      %v984 = vmul.f32 %v920, %v797
      %v985 = vmul.f32 %v921, %v797
      %v986 = vmul.f32 %v922, %v797
      %v987 = vmul.f32 %v923, %v797
      %v988 = vmul.f32 %v924, %v797
      %v989 = vmul.f32 %v925, %v797
      %v990 = vmul.f32 %v926, %v797
      %v991 = vmul.f32 %v927, %v797
      %v992 = vmul.f32 %v928, %v797
      %v993 = vmul.f32 %v929, %v797
      %v994 = vmul.f32 %v930, %v797
      %v995 = vmul.f32 %v931, %v797
      %v996 = vmul.f32 %v932, %v797
      %v997 = vmul.f32 %v933, %v797
      %v998 = vmul.f32 %v934, %v797
      %v999 = vmul.f32 %v935, %v797
      %v1000 = vmul.f32 %v936, %v797
      %v1001 = vmul.f32 %v937, %v797
      %v1002 = vmul.f32 %v938, %v797
      %v1003 = vmul.f32 %v939, %v797
      %v1004 = vmul.f32 %v940, %v797
      %v1005 = vmul.f32 %v941, %v797
      %v1006 = vmul.f32 %v942, %v797
      %v1007 = vmul.f32 %v943, %v797
      %v1008 = vmul.f32 %v944, %v797
      %v1009 = vmul.f32 %v945, %v797
      %v1010 = vmul.f32 %v946, %v797
      %v1011 = vmul.f32 %v947, %v797
      %v1012 = vmul.f32 %v948, %v797
      %v1013 = vmul.f32 %v949, %v797
      %v1014 = vmul.f32 %v950, %v797
      %v1015 = vmul.f32 %v951, %v797
      %v1016 = vadd.f32 %v952, %v807
      %v1017 = vadd.f32 %v953, %v807
      %v1018 = vadd.f32 %v954, %v807
      %v1019 = vadd.f32 %v955, %v807
      %v1020 = vadd.f32 %v956, %v807
      %v1021 = vadd.f32 %v957, %v807
      %v1022 = vadd.f32 %v958, %v807
      %v1023 = vadd.f32 %v959, %v807
      %v1024 = vadd.f32 %v960, %v807
      %v1025 = vadd.f32 %v961, %v807
      %v1026 = vadd.f32 %v962, %v807
      %v1027 = vadd.f32 %v963, %v807
      %v1028 = vadd.f32 %v964, %v807
      %v1029 = vadd.f32 %v965, %v807
      %v1030 = vadd.f32 %v966, %v807
      %v1031 = vadd.f32 %v967, %v807
      %v1032 = vadd.f32 %v968, %v807
      %v1033 = vadd.f32 %v969, %v807
      %v1034 = vadd.f32 %v970, %v807
      %v1035 = vadd.f32 %v971, %v807
      %v1036 = vadd.f32 %v972, %v807
      %v1037 = vadd.f32 %v973, %v807
      %v1038 = vadd.f32 %v974, %v807
      %v1039 = vadd.f32 %v975, %v807
      %v1040 = vadd.f32 %v976, %v807
      %v1041 = vadd.f32 %v977, %v807
      %v1042 = vadd.f32 %v978, %v807
      %v1043 = vadd.f32 %v979, %v807
      %v1044 = vadd.f32 %v980, %v807
      %v1045 = vadd.f32 %v981, %v807
      %v1046 = vadd.f32 %v982, %v807
      %v1047 = vadd.f32 %v983, %v807
      %v1048 = vadd.f32 %v984, %v807
      %v1049 = vadd.f32 %v985, %v807
      %v1050 = vadd.f32 %v986, %v807
      %v1051 = vadd.f32 %v987, %v807
      %v1052 = vadd.f32 %v988, %v807
      %v1053 = vadd.f32 %v989, %v807
      %v1054 = vadd.f32 %v990, %v807
      %v1055 = vadd.f32 %v991, %v807
      %v1056 = vadd.f32 %v992, %v807
      %v1057 = vadd.f32 %v993, %v807
      %v1058 = vadd.f32 %v994, %v807
      %v1059 = vadd.f32 %v995, %v807
      %v1060 = vadd.f32 %v996, %v807
      %v1061 = vadd.f32 %v997, %v807
      %v1062 = vadd.f32 %v998, %v807
      %v1063 = vadd.f32 %v999, %v807
      %v1064 = vadd.f32 %v1000, %v807
      %v1065 = vadd.f32 %v1001, %v807
      %v1066 = vadd.f32 %v1002, %v807
      %v1067 = vadd.f32 %v1003, %v807
      %v1068 = vadd.f32 %v1004, %v807
      %v1069 = vadd.f32 %v1005, %v807
      %v1070 = vadd.f32 %v1006, %v807
      %v1071 = vadd.f32 %v1007, %v807
      %v1072 = vadd.f32 %v1008, %v807
      %v1073 = vadd.f32 %v1009, %v807
      %v1074 = vadd.f32 %v1010, %v807
      %v1075 = vadd.f32 %v1011, %v807
      %v1076 = vadd.f32 %v1012, %v807
      %v1077 = vadd.f32 %v1013, %v807
      %v1078 = vadd.f32 %v1014, %v807
      %v1079 = vadd.f32 %v1015, %v807
      %v1080 = vmax.f32 %v1016, 0.0
      %v1081 = vmax.f32 %v1017, 0.0
      %v1082 = vmax.f32 %v1018, 0.0
      %v1083 = vmax.f32 %v1019, 0.0
      %v1084 = vmax.f32 %v1020, 0.0
      %v1085 = vmax.f32 %v1021, 0.0
      %v1086 = vmax.f32 %v1022, 0.0
      %v1087 = vmax.f32 %v1023, 0.0
      %v1088 = vmax.f32 %v1024, 0.0
      %v1089 = vmax.f32 %v1025, 0.0
      %v1090 = vmax.f32 %v1026, 0.0
      %v1091 = vmax.f32 %v1027, 0.0
      %v1092 = vmax.f32 %v1028, 0.0
      %v1093 = vmax.f32 %v1029, 0.0
      %v1094 = vmax.f32 %v1030, 0.0
      %v1095 = vmax.f32 %v1031, 0.0
      %v1096 = vmax.f32 %v1032, 0.0
      %v1097 = vmax.f32 %v1033, 0.0
      %v1098 = vmax.f32 %v1034, 0.0
      %v1099 = vmax.f32 %v1035, 0.0
      %v1100 = vmax.f32 %v1036, 0.0
      %v1101 = vmax.f32 %v1037, 0.0
      %v1102 = vmax.f32 %v1038, 0.0
      %v1103 = vmax.f32 %v1039, 0.0
      %v1104 = vmax.f32 %v1040, 0.0
      %v1105 = vmax.f32 %v1041, 0.0
      %v1106 = vmax.f32 %v1042, 0.0
      %v1107 = vmax.f32 %v1043, 0.0
      %v1108 = vmax.f32 %v1044, 0.0
      %v1109 = vmax.f32 %v1045, 0.0
      %v1110 = vmax.f32 %v1046, 0.0
      %v1111 = vmax.f32 %v1047, 0.0
      %v1112 = vmax.f32 %v1048, 0.0
      %v1113 = vmax.f32 %v1049, 0.0
      %v1114 = vmax.f32 %v1050, 0.0
      %v1115 = vmax.f32 %v1051, 0.0
      %v1116 = vmax.f32 %v1052, 0.0
      %v1117 = vmax.f32 %v1053, 0.0
      %v1118 = vmax.f32 %v1054, 0.0
      %v1119 = vmax.f32 %v1055, 0.0
      %v1120 = vmax.f32 %v1056, 0.0
      %v1121 = vmax.f32 %v1057, 0.0
      %v1122 = vmax.f32 %v1058, 0.0
      %v1123 = vmax.f32 %v1059, 0.0
      %v1124 = vmax.f32 %v1060, 0.0
      %v1125 = vmax.f32 %v1061, 0.0
      %v1126 = vmax.f32 %v1062, 0.0
      %v1127 = vmax.f32 %v1063, 0.0
      %v1128 = vmax.f32 %v1064, 0.0
      %v1129 = vmax.f32 %v1065, 0.0
      %v1130 = vmax.f32 %v1066, 0.0
      %v1131 = vmax.f32 %v1067, 0.0
      %v1132 = vmax.f32 %v1068, 0.0
      %v1133 = vmax.f32 %v1069, 0.0
      %v1134 = vmax.f32 %v1070, 0.0
      %v1135 = vmax.f32 %v1071, 0.0
      %v1136 = vmax.f32 %v1072, 0.0
      %v1137 = vmax.f32 %v1073, 0.0
      %v1138 = vmax.f32 %v1074, 0.0
      %v1139 = vmax.f32 %v1075, 0.0
      %v1140 = vmax.f32 %v1076, 0.0
      %v1141 = vmax.f32 %v1077, 0.0
      %v1142 = vmax.f32 %v1078, 0.0
      %v1143 = vmax.f32 %v1079, 0.0
      %v1144 = vpack.c.bf16 %v1081, %v1080
      %v1145 = vpack.c.bf16 %v1083, %v1082
      %v1146 = vpack.c.bf16 %v1085, %v1084
      %v1147 = vpack.c.bf16 %v1087, %v1086
      %v1148 = vpack.c.bf16 %v1089, %v1088
      %v1149 = vpack.c.bf16 %v1091, %v1090
      %v1150 = vpack.c.bf16 %v1093, %v1092
      %v1151 = vpack.c.bf16 %v1095, %v1094
      %v1152 = vpack.c.bf16 %v1097, %v1096
      %v1153 = vpack.c.bf16 %v1099, %v1098
      %v1154 = vpack.c.bf16 %v1101, %v1100
      %v1155 = vpack.c.bf16 %v1103, %v1102
      %v1156 = vpack.c.bf16 %v1105, %v1104
      %v1157 = vpack.c.bf16 %v1107, %v1106
      %v1158 = vpack.c.bf16 %v1109, %v1108
      %v1159 = vpack.c.bf16 %v1111, %v1110
      %v1160 = vpack.c.bf16 %v1113, %v1112
      %v1161 = vpack.c.bf16 %v1115, %v1114
      %v1162 = vpack.c.bf16 %v1117, %v1116
      %v1163 = vpack.c.bf16 %v1119, %v1118
      %v1164 = vpack.c.bf16 %v1121, %v1120
      %v1165 = vpack.c.bf16 %v1123, %v1122
      %v1166 = vpack.c.bf16 %v1125, %v1124
      %v1167 = vpack.c.bf16 %v1127, %v1126
      %v1168 = vpack.c.bf16 %v1129, %v1128
      %v1169 = vpack.c.bf16 %v1131, %v1130
      %v1170 = vpack.c.bf16 %v1133, %v1132
      %v1171 = vpack.c.bf16 %v1135, %v1134
      %v1172 = vpack.c.bf16 %v1137, %v1136
      %v1173 = vpack.c.bf16 %v1139, %v1138
      %v1174 = vpack.c.bf16 %v1141, %v1140
      %v1175 = vpack.c.bf16 %v1143, %v1142
      %v1176 = vld [vmem:[%s705] sm:$0xf]
      %v1177 = vld [vmem:[%s705 + $0x4] sm:$0x1]
      %v1178 = vld [vmem:[%s705 + $0x8] sm:$0xf]
      %v1179 = vld [vmem:[%s705 + $0xc] sm:$0x1]
      %v1180 = vunpack.c.l.bf16 %v1176
      %v1181 = vunpack.c.l.bf16 %v1177
      %v1182 = vunpack.c.l.bf16 %v1178
      %v1183 = vunpack.c.l.bf16 %v1179
      %v1184 = vmul.f32 %v1180, %v797
      %v1185 = vmul.f32 %v1181, %v797
      %v1186 = vmul.f32 %v1182, %v797
      %v1187 = vmul.f32 %v1183, %v797
      %v1188 = vadd.f32 %v1184, %v807
      %v1189 = vadd.f32 %v1185, %v807
      %v1190 = vadd.f32 %v1186, %v807
      %v1191 = vadd.f32 %v1187, %v807
      %v1192 = vmax.f32 %v1188, 0.0
      %v1193 = vmax.f32 %v1189, 0.0
      %v1194 = vmax.f32 %v1190, 0.0
      %v1195 = vmax.f32 %v1191, 0.0
      %v1196 = vmul.f32 %v1192, %v817
      %v1197 = vmul.f32 %v1193, %v817
      %v1198 = vmul.f32 %v1194, %v817
      %v1199 = vmul.f32 %v1195, %v817
      %v1200 = vpack.c.bf16 %v1197, %v1196
      %v1201 = vpack.c.bf16 %v1199, %v1198
      %v1202 = vlaneseq
      %v1203 = vshrl.u32 %v1202, 7
      %v1204 = vadd.s32 %v1203, 8
      %vm1205 = vcmp.ge.s32.totalorder %v1203, 1
      %vm1206 = vcmp.ge.s32.totalorder %v1204, 1
      %vm1207 = vcmp.le.s32.totalorder %v1203, 8
      %vm1208 = vcmp.le.s32.totalorder %v1204, 8
      %vm1209 = vmand %vm1205, %vm1207
      %vm1210 = vmand %vm1206, %vm1208
      %vm1211 = vmpackc.low %vm1209, %vm1209
      %vm1212 = vmpackc.low %vm1210, %vm1210
      %v1213 = vsel %vm1211, 65537, 0
      %v1214 = vsel %vm1212, 65537, 0
      %v1215 = vunpack.c.l.b16 %v1213
      %v1216 = vunpack.c.l.b16 %v1214
      %v1217 = vpack.c.b16 %v1216, %v1215
      %vm1218 = vcmp.ne.s16.totalorder %v1217, 0
      %v1219 = vsel %vm1218, %v822, 0
      %v1220 = vsel %vm1218, %v823, 0
      %v1221 = vsel %vm1218, %v1144, 0
      %v1222 = vsel %vm1218, %v1145, 0
      %v1223 = vsel %vm1218, %v1146, 0
      %v1224 = vsel %vm1218, %v1147, 0
      %v1225 = vsel %vm1218, %v1148, 0
      %v1226 = vsel %vm1218, %v1149, 0
      %v1227 = vsel %vm1218, %v1150, 0
      %v1228 = vsel %vm1218, %v1151, 0
      %v1229 = vsel %vm1218, %v1152, 0
      %v1230 = vsel %vm1218, %v1153, 0
      %v1231 = vsel %vm1218, %v1154, 0
      %v1232 = vsel %vm1218, %v1155, 0
      %v1233 = vsel %vm1218, %v1156, 0
      %v1234 = vsel %vm1218, %v1157, 0
      %v1235 = vsel %vm1218, %v1158, 0
      %v1236 = vsel %vm1218, %v1159, 0
      %v1237 = vsel %vm1218, %v1160, 0
      %v1238 = vsel %vm1218, %v1161, 0
      %v1239 = vsel %vm1218, %v1162, 0
      %v1240 = vsel %vm1218, %v1163, 0
      %v1241 = vsel %vm1218, %v1164, 0
      %v1242 = vsel %vm1218, %v1165, 0
      %v1243 = vsel %vm1218, %v1166, 0
      %v1244 = vsel %vm1218, %v1167, 0
      %v1245 = vsel %vm1218, %v1168, 0
      %v1246 = vsel %vm1218, %v1169, 0
      %v1247 = vsel %vm1218, %v1170, 0
      %v1248 = vsel %vm1218, %v1171, 0
      %v1249 = vsel %vm1218, %v1172, 0
      %v1250 = vsel %vm1218, %v1173, 0
      %v1251 = vsel %vm1218, %v1174, 0
      %v1252 = vsel %vm1218, %v1175, 0
      %v1253 = vsel %vm1218, %v1200, 0
      %v1254 = vsel %vm1218, %v1201, 0
      %v1255 = vld [vmem:[%s733] sm:$0xf]
      %v1256 = vld [vmem:[%s733 + $0x4] sm:$0x1]
      %v1257 = vld [vmem:[%s733 + $0x8] sm:$0xf]
      %v1258 = vld [vmem:[%s733 + $0xc] sm:$0x1]
      %p1260 = scmp.ne.f32.partialorder %s782, %s782
      %s1261 = sshrl.u32 %s782, 16
      %s1262 = sand.u32 %s1261, 1
      %s1263 = sadd.s32 32767, %s1262
      %s1264 = sadd.s32 %s782, %s1263
      %s1265 = sand.u32 %s1264, 4294901760
      %s1266 = scalar_select %p1260, 2143289344, %s1265
      %s1268 = sshrl.u32 %s1266, 16
      %s1269 = sshll.u32 %s1268, 16
      %s1270 = sor.u32 %s1268, %s1269
      %v1271 = vstv %s1270
      %v1273 = vmul.bf16 %v1255, %v1271
      %v1274 = vmul.bf16 %v1256, %v1271
      %v1275 = vmul.bf16 %v1257, %v1271
      %v1276 = vmul.bf16 %v1258, %v1271
      %v1277 = vld [vmem:[%s719] sm:$0xf]
      %v1278 = vld [vmem:[%s719 + $0x4] sm:$0x1]
      %v1279 = vld [vmem:[%s719 + $0x8] sm:$0xf]
      %v1280 = vld [vmem:[%s719 + $0xc] sm:$0x1]
      %v1281 = vld [vmem:[%s719 + $0x10] sm:$0xf]
      %v1282 = vld [vmem:[%s719 + $0x14] sm:$0x1]
      %v1283 = vld [vmem:[%s719 + $0x18] sm:$0xf]
      %v1284 = vld [vmem:[%s719 + $0x1c] sm:$0x1]
      %v1285 = vld [vmem:[%s719 + $0x20] sm:$0xf]
      %v1286 = vld [vmem:[%s719 + $0x24] sm:$0x1]
      %v1287 = vld [vmem:[%s719 + $0x28] sm:$0xf]
      %v1288 = vld [vmem:[%s719 + $0x2c] sm:$0x1]
      %v1289 = vld [vmem:[%s719 + $0x30] sm:$0xf]
      %v1290 = vld [vmem:[%s719 + $0x34] sm:$0x1]
      %v1291 = vld [vmem:[%s719 + $0x38] sm:$0xf]
      %v1292 = vld [vmem:[%s719 + $0x3c] sm:$0x1]
      %v1293 = vld [vmem:[%s719 + $0x40] sm:$0xf]
      %v1294 = vld [vmem:[%s719 + $0x44] sm:$0x1]
      %v1295 = vld [vmem:[%s719 + $0x48] sm:$0xf]
      %v1296 = vld [vmem:[%s719 + $0x4c] sm:$0x1]
      %v1297 = vld [vmem:[%s719 + $0x50] sm:$0xf]
      %v1298 = vld [vmem:[%s719 + $0x54] sm:$0x1]
      %v1299 = vld [vmem:[%s719 + $0x58] sm:$0xf]
      %v1300 = vld [vmem:[%s719 + $0x5c] sm:$0x1]
      %v1301 = vld [vmem:[%s719 + $0x60] sm:$0xf]
      %v1302 = vld [vmem:[%s719 + $0x64] sm:$0x1]
      %v1303 = vld [vmem:[%s719 + $0x68] sm:$0xf]
      %v1304 = vld [vmem:[%s719 + $0x6c] sm:$0x1]
      %v1305 = vld [vmem:[%s719 + $0x70] sm:$0xf]
      %v1306 = vld [vmem:[%s719 + $0x74] sm:$0x1]
      %v1307 = vld [vmem:[%s719 + $0x78] sm:$0xf]
      %v1308 = vld [vmem:[%s719 + $0x7c] sm:$0x1]
      %v1309 = vld [vmem:[%s719 + $0x80] sm:$0xf]
      %v1310 = vld [vmem:[%s719 + $0x84] sm:$0x1]
      %v1311 = vld [vmem:[%s719 + $0x88] sm:$0xf]
      %v1312 = vld [vmem:[%s719 + $0x8c] sm:$0x1]
      %v1313 = vld [vmem:[%s719 + $0x90] sm:$0xf]
      %v1314 = vld [vmem:[%s719 + $0x94] sm:$0x1]
      %v1315 = vld [vmem:[%s719 + $0x98] sm:$0xf]
      %v1316 = vld [vmem:[%s719 + $0x9c] sm:$0x1]
      %v1317 = vld [vmem:[%s719 + $0xa0] sm:$0xf]
      %v1318 = vld [vmem:[%s719 + $0xa4] sm:$0x1]
      %v1319 = vld [vmem:[%s719 + $0xa8] sm:$0xf]
      %v1320 = vld [vmem:[%s719 + $0xac] sm:$0x1]
      %v1321 = vld [vmem:[%s719 + $0xb0] sm:$0xf]
      %v1322 = vld [vmem:[%s719 + $0xb4] sm:$0x1]
      %v1323 = vld [vmem:[%s719 + $0xb8] sm:$0xf]
      %v1324 = vld [vmem:[%s719 + $0xbc] sm:$0x1]
      %v1325 = vld [vmem:[%s719 + $0xc0] sm:$0xf]
      %v1326 = vld [vmem:[%s719 + $0xc4] sm:$0x1]
      %v1327 = vld [vmem:[%s719 + $0xc8] sm:$0xf]
      %v1328 = vld [vmem:[%s719 + $0xcc] sm:$0x1]
      %v1329 = vld [vmem:[%s719 + $0xd0] sm:$0xf]
      %v1330 = vld [vmem:[%s719 + $0xd4] sm:$0x1]
      %v1331 = vld [vmem:[%s719 + $0xd8] sm:$0xf]
      %v1332 = vld [vmem:[%s719 + $0xdc] sm:$0x1]
      %v1333 = vld [vmem:[%s719 + $0xe0] sm:$0xf]
      %v1334 = vld [vmem:[%s719 + $0xe4] sm:$0x1]
      %v1335 = vld [vmem:[%s719 + $0xe8] sm:$0xf]
      %v1336 = vld [vmem:[%s719 + $0xec] sm:$0x1]
      %v1337 = vld [vmem:[%s719 + $0xf0] sm:$0xf]
      %v1338 = vld [vmem:[%s719 + $0xf4] sm:$0x1]
      %v1339 = vld [vmem:[%s719 + $0xf8] sm:$0xf]
      %v1340 = vld [vmem:[%s719 + $0xfc] sm:$0x1]
      %v1341 = vld [vmem:[%s750] sm:$0xf]
      %v1342 = vld [vmem:[%s750 + $0x4] sm:$0x1]
      %v1343 = vld [vmem:[%s750 + $0x8] sm:$0xf]
      %v1344 = vld [vmem:[%s750 + $0xc] sm:$0x1]
      %v1345 = vmul.bf16 %v1341, %v1271
      %v1346 = vmul.bf16 %v1342, %v1271
      %v1347 = vmul.bf16 %v1343, %v1271
      %v1348 = vmul.bf16 %v1344, %v1271
      %v1350 = vshrl.u32 %v1219, 16
      %v1352 = vshll.u32 %v1219, 16
      %v1354 = vrot.slane %v1352, 1
      %v1355 = vor.u32 %v1350, %v1354
      %v1357 = vshrl.u32 %v1221, 16
      %v1359 = vshll.u32 %v1221, 16
      %v1361 = vrot.slane %v1359, 1
      %v1362 = vor.u32 %v1357, %v1361
      %v1364 = vshrl.u32 %v1223, 16
      %v1366 = vshll.u32 %v1223, 16
      %v1368 = vrot.slane %v1366, 1
      %v1369 = vor.u32 %v1364, %v1368
      %v1371 = vshrl.u32 %v1225, 16
      %v1373 = vshll.u32 %v1225, 16
      %v1375 = vrot.slane %v1373, 1
      %v1376 = vor.u32 %v1371, %v1375
      %v1378 = vshrl.u32 %v1227, 16
      %v1380 = vshll.u32 %v1227, 16
      %v1382 = vrot.slane %v1380, 1
      %v1383 = vor.u32 %v1378, %v1382
      %v1385 = vshrl.u32 %v1229, 16
      %v1387 = vshll.u32 %v1229, 16
      %v1389 = vrot.slane %v1387, 1
      %v1390 = vor.u32 %v1385, %v1389
      %v1392 = vshrl.u32 %v1231, 16
      %v1394 = vshll.u32 %v1231, 16
      %v1396 = vrot.slane %v1394, 1
      %v1397 = vor.u32 %v1392, %v1396
      %v1399 = vshrl.u32 %v1233, 16
      %v1401 = vshll.u32 %v1233, 16
      %v1403 = vrot.slane %v1401, 1
      %v1404 = vor.u32 %v1399, %v1403
      %v1406 = vshrl.u32 %v1235, 16
      %v1408 = vshll.u32 %v1235, 16
      %v1410 = vrot.slane %v1408, 1
      %v1411 = vor.u32 %v1406, %v1410
      %v1413 = vshrl.u32 %v1237, 16
      %v1415 = vshll.u32 %v1237, 16
      %v1417 = vrot.slane %v1415, 1
      %v1418 = vor.u32 %v1413, %v1417
      %v1420 = vshrl.u32 %v1239, 16
      %v1422 = vshll.u32 %v1239, 16
      %v1424 = vrot.slane %v1422, 1
      %v1425 = vor.u32 %v1420, %v1424
      %v1427 = vshrl.u32 %v1241, 16
      %v1429 = vshll.u32 %v1241, 16
      %v1431 = vrot.slane %v1429, 1
      %v1432 = vor.u32 %v1427, %v1431
      %v1434 = vshrl.u32 %v1243, 16
      %v1436 = vshll.u32 %v1243, 16
      %v1438 = vrot.slane %v1436, 1
      %v1439 = vor.u32 %v1434, %v1438
      %v1441 = vshrl.u32 %v1245, 16
      %v1443 = vshll.u32 %v1245, 16
      %v1445 = vrot.slane %v1443, 1
      %v1446 = vor.u32 %v1441, %v1445
      %v1448 = vshrl.u32 %v1247, 16
      %v1450 = vshll.u32 %v1247, 16
      %v1452 = vrot.slane %v1450, 1
      %v1453 = vor.u32 %v1448, %v1452
      %v1455 = vshrl.u32 %v1249, 16
      %v1457 = vshll.u32 %v1249, 16
      %v1459 = vrot.slane %v1457, 1
      %v1460 = vor.u32 %v1455, %v1459
      %v1462 = vshrl.u32 %v1251, 16
      %v1464 = vshll.u32 %v1251, 16
      %v1466 = vrot.slane %v1464, 1
      %v1467 = vor.u32 %v1462, %v1466
      %v1469 = vshrl.u32 %v1253, 16
      %v1471 = vshll.u32 %v1253, 16
      %v1473 = vrot.slane %v1471, 1
      %v1474 = vor.u32 %v1469, %v1473
      %vm1475 = vsmask.f32 3328
      %vm1476 = vsmask.f32 7440
      %vm1477 = vmor %vm1475, %vm1476
      %v1479 = vshrl.u32 %v1273, 16
      %v1481 = vrot.slane %v1479, 4
      %v1482 = vshll.u32 %v1273, 16
      %v1484 = vrot.slane %v1482, 5
      %v1485 = vor.u32 %v1481, %v1484
      %v1486 = vrot.slane %v1485, 4
      %v1488 = vshll.u32 %v1274, 16
      %v1490 = vrot.slane %v1488, 5
      %v1491 = vsel %vm1477, %v1486, %v1490
      %v1493 = vshrl.u32 %v1277, 16
      %v1495 = vrot.slane %v1493, 4
      %v1496 = vshll.u32 %v1277, 16
      %v1498 = vrot.slane %v1496, 5
      %v1499 = vor.u32 %v1495, %v1498
      %v1500 = vrot.slane %v1499, 4
      %v1502 = vshll.u32 %v1278, 16
      %v1504 = vrot.slane %v1502, 5
      %v1505 = vsel %vm1477, %v1500, %v1504
      %v1507 = vshrl.u32 %v1281, 16
      %v1509 = vrot.slane %v1507, 4
      %v1510 = vshll.u32 %v1281, 16
      %v1512 = vrot.slane %v1510, 5
      %v1513 = vor.u32 %v1509, %v1512
      %v1514 = vrot.slane %v1513, 4
      %v1516 = vshll.u32 %v1282, 16
      %v1518 = vrot.slane %v1516, 5
      %v1519 = vsel %vm1477, %v1514, %v1518
      %v1521 = vshrl.u32 %v1285, 16
      %v1523 = vrot.slane %v1521, 4
      %v1524 = vshll.u32 %v1285, 16
      %v1526 = vrot.slane %v1524, 5
      %v1527 = vor.u32 %v1523, %v1526
      %v1528 = vrot.slane %v1527, 4
      %v1530 = vshll.u32 %v1286, 16
      %v1532 = vrot.slane %v1530, 5
      %v1533 = vsel %vm1477, %v1528, %v1532
      %v1535 = vshrl.u32 %v1289, 16
      %v1537 = vrot.slane %v1535, 4
      %v1538 = vshll.u32 %v1289, 16
      %v1540 = vrot.slane %v1538, 5
      %v1541 = vor.u32 %v1537, %v1540
      %v1542 = vrot.slane %v1541, 4
      %v1544 = vshll.u32 %v1290, 16
      %v1546 = vrot.slane %v1544, 5
      %v1547 = vsel %vm1477, %v1542, %v1546
      %v1549 = vshrl.u32 %v1293, 16
      %v1551 = vrot.slane %v1549, 4
      %v1552 = vshll.u32 %v1293, 16
      %v1554 = vrot.slane %v1552, 5
      %v1555 = vor.u32 %v1551, %v1554
      %v1556 = vrot.slane %v1555, 4
      %v1558 = vshll.u32 %v1294, 16
      %v1560 = vrot.slane %v1558, 5
      %v1561 = vsel %vm1477, %v1556, %v1560
      %v1563 = vshrl.u32 %v1297, 16
      %v1565 = vrot.slane %v1563, 4
      %v1566 = vshll.u32 %v1297, 16
      %v1568 = vrot.slane %v1566, 5
      %v1569 = vor.u32 %v1565, %v1568
      %v1570 = vrot.slane %v1569, 4
      %v1572 = vshll.u32 %v1298, 16
      %v1574 = vrot.slane %v1572, 5
      %v1575 = vsel %vm1477, %v1570, %v1574
      %v1577 = vshrl.u32 %v1301, 16
      %v1579 = vrot.slane %v1577, 4
      %v1580 = vshll.u32 %v1301, 16
      %v1582 = vrot.slane %v1580, 5
      %v1583 = vor.u32 %v1579, %v1582
      %v1584 = vrot.slane %v1583, 4
      %v1586 = vshll.u32 %v1302, 16
      %v1588 = vrot.slane %v1586, 5
      %v1589 = vsel %vm1477, %v1584, %v1588
      %v1591 = vshrl.u32 %v1305, 16
      %v1593 = vrot.slane %v1591, 4
      %v1594 = vshll.u32 %v1305, 16
      %v1596 = vrot.slane %v1594, 5
      %v1597 = vor.u32 %v1593, %v1596
      %v1598 = vrot.slane %v1597, 4
      %v1600 = vshll.u32 %v1306, 16
      %v1602 = vrot.slane %v1600, 5
      %v1603 = vsel %vm1477, %v1598, %v1602
      %v1605 = vshrl.u32 %v1309, 16
      %v1607 = vrot.slane %v1605, 4
      %v1608 = vshll.u32 %v1309, 16
      %v1610 = vrot.slane %v1608, 5
      %v1611 = vor.u32 %v1607, %v1610
      %v1612 = vrot.slane %v1611, 4
      %v1614 = vshll.u32 %v1310, 16
      %v1616 = vrot.slane %v1614, 5
      %v1617 = vsel %vm1477, %v1612, %v1616
      %v1619 = vshrl.u32 %v1313, 16
      %v1621 = vrot.slane %v1619, 4
      %v1622 = vshll.u32 %v1313, 16
      %v1624 = vrot.slane %v1622, 5
      %v1625 = vor.u32 %v1621, %v1624
      %v1626 = vrot.slane %v1625, 4
      %v1628 = vshll.u32 %v1314, 16
      %v1630 = vrot.slane %v1628, 5
      %v1631 = vsel %vm1477, %v1626, %v1630
      %v1633 = vshrl.u32 %v1317, 16
      %v1635 = vrot.slane %v1633, 4
      %v1636 = vshll.u32 %v1317, 16
      %v1638 = vrot.slane %v1636, 5
      %v1639 = vor.u32 %v1635, %v1638
      %v1640 = vrot.slane %v1639, 4
      %v1642 = vshll.u32 %v1318, 16
      %v1644 = vrot.slane %v1642, 5
      %v1645 = vsel %vm1477, %v1640, %v1644
      %v1647 = vshrl.u32 %v1321, 16
      %v1649 = vrot.slane %v1647, 4
      %v1650 = vshll.u32 %v1321, 16
      %v1652 = vrot.slane %v1650, 5
      %v1653 = vor.u32 %v1649, %v1652
      %v1654 = vrot.slane %v1653, 4
      %v1656 = vshll.u32 %v1322, 16
      %v1658 = vrot.slane %v1656, 5
      %v1659 = vsel %vm1477, %v1654, %v1658
      %v1661 = vshrl.u32 %v1325, 16
      %v1663 = vrot.slane %v1661, 4
      %v1664 = vshll.u32 %v1325, 16
      %v1666 = vrot.slane %v1664, 5
      %v1667 = vor.u32 %v1663, %v1666
      %v1668 = vrot.slane %v1667, 4
      %v1670 = vshll.u32 %v1326, 16
      %v1672 = vrot.slane %v1670, 5
      %v1673 = vsel %vm1477, %v1668, %v1672
      %v1675 = vshrl.u32 %v1329, 16
      %v1677 = vrot.slane %v1675, 4
      %v1678 = vshll.u32 %v1329, 16
      %v1680 = vrot.slane %v1678, 5
      %v1681 = vor.u32 %v1677, %v1680
      %v1682 = vrot.slane %v1681, 4
      %v1684 = vshll.u32 %v1330, 16
      %v1686 = vrot.slane %v1684, 5
      %v1687 = vsel %vm1477, %v1682, %v1686
      %v1689 = vshrl.u32 %v1333, 16
      %v1691 = vrot.slane %v1689, 4
      %v1692 = vshll.u32 %v1333, 16
      %v1694 = vrot.slane %v1692, 5
      %v1695 = vor.u32 %v1691, %v1694
      %v1696 = vrot.slane %v1695, 4
      %v1698 = vshll.u32 %v1334, 16
      %v1700 = vrot.slane %v1698, 5
      %v1701 = vsel %vm1477, %v1696, %v1700
      %v1703 = vshrl.u32 %v1337, 16
      %v1705 = vrot.slane %v1703, 4
      %v1706 = vshll.u32 %v1337, 16
      %v1708 = vrot.slane %v1706, 5
      %v1709 = vor.u32 %v1705, %v1708
      %v1710 = vrot.slane %v1709, 4
      %v1712 = vshll.u32 %v1338, 16
      %v1714 = vrot.slane %v1712, 5
      %v1715 = vsel %vm1477, %v1710, %v1714
      %v1717 = vshrl.u32 %v1345, 16
      %v1719 = vrot.slane %v1717, 4
      %v1720 = vshll.u32 %v1345, 16
      %v1722 = vrot.slane %v1720, 5
      %v1723 = vor.u32 %v1719, %v1722
      %v1724 = vrot.slane %v1723, 4
      %v1726 = vshll.u32 %v1346, 16
      %v1728 = vrot.slane %v1726, 5
      %v1729 = vsel %vm1477, %v1724, %v1728
      %v1730 = vshrl.u32 %v1274, 16
      %v1732 = vrot.slane %v1730, 4
      %v1733 = vrot.slane %v1732, 4
      %v1734 = vshrl.u32 %v1278, 16
      %v1736 = vrot.slane %v1734, 4
      %v1737 = vrot.slane %v1736, 4
      %v1738 = vshrl.u32 %v1282, 16
      %v1740 = vrot.slane %v1738, 4
      %v1741 = vrot.slane %v1740, 4
      %v1742 = vshrl.u32 %v1286, 16
      %v1744 = vrot.slane %v1742, 4
      %v1745 = vrot.slane %v1744, 4
      %v1746 = vshrl.u32 %v1290, 16
      %v1748 = vrot.slane %v1746, 4
      %v1749 = vrot.slane %v1748, 4
      %v1750 = vshrl.u32 %v1294, 16
      %v1752 = vrot.slane %v1750, 4
      %v1753 = vrot.slane %v1752, 4
      %v1754 = vshrl.u32 %v1298, 16
      %v1756 = vrot.slane %v1754, 4
      %v1757 = vrot.slane %v1756, 4
      %v1758 = vshrl.u32 %v1302, 16
      %v1760 = vrot.slane %v1758, 4
      %v1761 = vrot.slane %v1760, 4
      %v1762 = vshrl.u32 %v1306, 16
      %v1764 = vrot.slane %v1762, 4
      %v1765 = vrot.slane %v1764, 4
      %v1766 = vshrl.u32 %v1310, 16
      %v1768 = vrot.slane %v1766, 4
      %v1769 = vrot.slane %v1768, 4
      %v1770 = vshrl.u32 %v1314, 16
      %v1772 = vrot.slane %v1770, 4
      %v1773 = vrot.slane %v1772, 4
      %v1774 = vshrl.u32 %v1318, 16
      %v1776 = vrot.slane %v1774, 4
      %v1777 = vrot.slane %v1776, 4
      %v1778 = vshrl.u32 %v1322, 16
      %v1780 = vrot.slane %v1778, 4
      %v1781 = vrot.slane %v1780, 4
      %v1782 = vshrl.u32 %v1326, 16
      %v1784 = vrot.slane %v1782, 4
      %v1785 = vrot.slane %v1784, 4
      %v1786 = vshrl.u32 %v1330, 16
      %v1788 = vrot.slane %v1786, 4
      %v1789 = vrot.slane %v1788, 4
      %v1790 = vshrl.u32 %v1334, 16
      %v1792 = vrot.slane %v1790, 4
      %v1793 = vrot.slane %v1792, 4
      %v1794 = vshrl.u32 %v1338, 16
      %v1796 = vrot.slane %v1794, 4
      %v1797 = vrot.slane %v1796, 4
      %v1798 = vshrl.u32 %v1346, 16
      %v1800 = vrot.slane %v1798, 4
      %v1801 = vrot.slane %v1800, 4
      %v1802 = vld [vmem:[%s8] sm:$0x3]
      %v1803 = vld [vmem:[%s9] sm:$0x3]
      %v1820 = vunpack.c.l.b16 %v1275
      %v1821 = vunpack.c.l.b16 %v1491
      %v1822 = vunpack.c.l.b16 %v1279
      %v1823 = vunpack.c.l.b16 %v1505
      %v1824 = vunpack.c.l.b16 %v1283
      %v1825 = vunpack.c.l.b16 %v1519
      %v1826 = vunpack.c.l.b16 %v1287
      %v1827 = vunpack.c.l.b16 %v1533
      %v1828 = vunpack.c.l.b16 %v1291
      %v1829 = vunpack.c.l.b16 %v1547
      %v1830 = vunpack.c.l.b16 %v1295
      %v1831 = vunpack.c.l.b16 %v1561
      %v1832 = vunpack.c.l.b16 %v1299
      %v1833 = vunpack.c.l.b16 %v1575
      %v1834 = vunpack.c.l.b16 %v1303
      %v1835 = vunpack.c.l.b16 %v1589
      %v1836 = vunpack.c.l.b16 %v1307
      %v1837 = vunpack.c.l.b16 %v1603
      %v1838 = vunpack.c.l.b16 %v1311
      %v1839 = vunpack.c.l.b16 %v1617
      %v1840 = vunpack.c.l.b16 %v1315
      %v1841 = vunpack.c.l.b16 %v1631
      %v1842 = vunpack.c.l.b16 %v1319
      %v1843 = vunpack.c.l.b16 %v1645
      %v1844 = vunpack.c.l.b16 %v1323
      %v1845 = vunpack.c.l.b16 %v1659
      %v1846 = vunpack.c.l.b16 %v1327
      %v1847 = vunpack.c.l.b16 %v1673
      %v1848 = vunpack.c.l.b16 %v1331
      %v1849 = vunpack.c.l.b16 %v1687
      %v1850 = vunpack.c.l.b16 %v1335
      %v1851 = vunpack.c.l.b16 %v1701
      %v1852 = vpack.c.b16 %v1821, %v1820
      %v1853 = vpack.c.b16 %v1823, %v1822
      %v1854 = vpack.c.b16 %v1825, %v1824
      %v1855 = vpack.c.b16 %v1827, %v1826
      %v1856 = vpack.c.b16 %v1829, %v1828
      %v1857 = vpack.c.b16 %v1831, %v1830
      %v1858 = vpack.c.b16 %v1833, %v1832
      %v1859 = vpack.c.b16 %v1835, %v1834
      %v1860 = vpack.c.b16 %v1837, %v1836
      %v1861 = vpack.c.b16 %v1839, %v1838
      %v1862 = vpack.c.b16 %v1841, %v1840
      %v1863 = vpack.c.b16 %v1843, %v1842
      %v1864 = vpack.c.b16 %v1845, %v1844
      %v1865 = vpack.c.b16 %v1847, %v1846
      %v1866 = vpack.c.b16 %v1849, %v1848
      %v1867 = vpack.c.b16 %v1851, %v1850
      %vm1868 = vcmask 31744
      %v1870 = vsel %vm1868, %v1852, 0
      %v1873 = vsel %vm1868, %v1853, 0
      %v1876 = vsel %vm1868, %v1854, 0
      %v1879 = vsel %vm1868, %v1855, 0
      %v1882 = vsel %vm1868, %v1856, 0
      %v1885 = vsel %vm1868, %v1857, 0
      %v1888 = vsel %vm1868, %v1858, 0
      %v1891 = vsel %vm1868, %v1859, 0
      %v1894 = vsel %vm1868, %v1860, 0
      %v1897 = vsel %vm1868, %v1861, 0
      %v1900 = vsel %vm1868, %v1862, 0
      %v1903 = vsel %vm1868, %v1863, 0
      %v1906 = vsel %vm1868, %v1864, 0
      %v1909 = vsel %vm1868, %v1865, 0
      %v1912 = vsel %vm1868, %v1866, 0
      %v1915 = vsel %vm1868, %v1867, 0
      %vm1917 = vcmask 1041408
      %v1919 = vsel %vm1917, %v1803, 0
      %1921 = vmatprep.subr.bf16.mxu0 0
      %1922 = vmatpush1.bf16.msra.mxu0 %v1919
      %1923 = vmatprep.subr.bf16.mxu0 0
      %1924 = vmatpush1.bf16.msra.mxu0 0
      %1925 = vmatprep.subr.bf16.mxu0 0
      %1926 = vmatpush1.bf16.msra.mxu0 0
      %1927 = vmatprep.subr.bf16.mxu0 0
      %1928 = vmatpush1.bf16.msra.mxu0 0
      %1929 = vmatprep.subr.bf16.mxu0 0
      %1930 = vmatpush1.bf16.msra.mxu0 0
      %1931 = vmatprep.subr.bf16.mxu0 0
      %1932 = vmatpush1.bf16.msra.mxu0 0
      %1933 = vmatprep.subr.bf16.mxu0 0
      %1934 = vmatpush1.bf16.msra.mxu0 0
      %1935 = vmatprep.subr.bf16.mxu0 0
      %1936 = vmatpush1.bf16.msra.mxu0 0
      %1937 = vmatprep.subr.bf16.mxu0 0
      %1938 = vmatpush1.bf16.msra.mxu0 0
      %1939 = vmatprep.subr.bf16.mxu0 0
      %1940 = vmatpush1.bf16.msra.mxu0 0
      %1941 = vmatprep.subr.bf16.mxu0 0
      %1942 = vmatpush1.bf16.msra.mxu0 0
      %1943 = vmatprep.subr.bf16.mxu0 0
      %1944 = vmatpush1.bf16.msra.mxu0 0
      %1945 = vmatprep.subr.bf16.mxu0 0
      %1946 = vmatpush1.bf16.msra.mxu0 0
      %1947 = vmatprep.subr.bf16.mxu0 0
      %1948 = vmatpush1.bf16.msra.mxu0 0
      %1949 = vmatprep.subr.bf16.mxu0 0
      %1950 = vmatpush1.bf16.msra.mxu0 0
      %1951 = vmatprep.subr.bf16.mxu0 0
      %1952 = vmatpush1.bf16.msra.mxu0 0
      %1953 = vmatprep.mubr.bf16.mxu0 0
      %1954 = vmatmul.mubr.bf16.gmra.mrb[0].mxu0 %v1870
      %v1955 = vpop.f32.mrb[0].mxu0
      %v1956 = vadd.f32 0.0, %v1955
      %v1957 = vpop.f32.mrb[0].mxu0
      %v1958 = vpop.f32.mrb[0].mxu0
      %v1959 = vadd.f32 0.0, %v1958
      %v1960 = vpop.f32.mrb[0].mxu0
      %1961 = vmatprep.mubr.bf16.mxu0 0
      %1962 = vmatmul.mubr.bf16.gmra.mrb[0].mxu0 %v1873
      %v1963 = vpop.f32.mrb[0].mxu0
      %v1964 = vadd.f32 0.0, %v1963
      %v1965 = vpop.f32.mrb[0].mxu0
      %v1966 = vpop.f32.mrb[0].mxu0
      %v1967 = vadd.f32 0.0, %v1966
      %v1968 = vpop.f32.mrb[0].mxu0
      %1969 = vmatprep.mubr.bf16.mxu0 0
      %1970 = vmatmul.mubr.bf16.gmra.mrb[0].mxu0 %v1876
      %v1971 = vpop.f32.mrb[0].mxu0
      %v1972 = vadd.f32 0.0, %v1971
      %v1973 = vpop.f32.mrb[0].mxu0
      %v1974 = vpop.f32.mrb[0].mxu0
      %v1975 = vadd.f32 0.0, %v1974
      %v1976 = vpop.f32.mrb[0].mxu0
      %1977 = vmatprep.mubr.bf16.mxu0 0
      %1978 = vmatmul.mubr.bf16.gmra.mrb[0].mxu0 %v1879
      %v1979 = vpop.f32.mrb[0].mxu0
      %v1980 = vadd.f32 0.0, %v1979
      %v1981 = vpop.f32.mrb[0].mxu0
      %v1982 = vpop.f32.mrb[0].mxu0
      %v1983 = vadd.f32 0.0, %v1982
      %v1984 = vpop.f32.mrb[0].mxu0
      %1985 = vmatprep.mubr.bf16.mxu0 0
      %1986 = vmatmul.mubr.bf16.gmra.mrb[0].mxu0 %v1882
      %v1987 = vpop.f32.mrb[0].mxu0
      %v1988 = vadd.f32 0.0, %v1987
      %v1989 = vpop.f32.mrb[0].mxu0
      %v1990 = vpop.f32.mrb[0].mxu0
      %v1991 = vadd.f32 0.0, %v1990
      %v1992 = vpop.f32.mrb[0].mxu0
      %1993 = vmatprep.mubr.bf16.mxu0 0
      %1994 = vmatmul.mubr.bf16.gmra.mrb[0].mxu0 %v1885
      %v1995 = vpop.f32.mrb[0].mxu0
      %v1996 = vadd.f32 0.0, %v1995
      %v1997 = vpop.f32.mrb[0].mxu0
      %v1998 = vpop.f32.mrb[0].mxu0
      %v1999 = vadd.f32 0.0, %v1998
      %v2000 = vpop.f32.mrb[0].mxu0
      %2001 = vmatprep.mubr.bf16.mxu0 0
      %2002 = vmatmul.mubr.bf16.gmra.mrb[0].mxu0 %v1888
      %v2003 = vpop.f32.mrb[0].mxu0
      %v2004 = vadd.f32 0.0, %v2003
      %v2005 = vpop.f32.mrb[0].mxu0
      %v2006 = vpop.f32.mrb[0].mxu0
      %v2007 = vadd.f32 0.0, %v2006
      %v2008 = vpop.f32.mrb[0].mxu0
      %2009 = vmatprep.mubr.bf16.mxu0 0
      %2010 = vmatmul.mubr.bf16.gmra.mrb[0].mxu0 %v1891
      %v2011 = vpop.f32.mrb[0].mxu0
      %v2012 = vadd.f32 0.0, %v2011
      %v2013 = vpop.f32.mrb[0].mxu0
      %v2014 = vpop.f32.mrb[0].mxu0
      %v2015 = vadd.f32 0.0, %v2014
      %v2016 = vpop.f32.mrb[0].mxu0
      %2017 = vmatprep.mubr.bf16.mxu0 0
      %2018 = vmatmul.mubr.bf16.gmra.mrb[0].mxu0 %v1894
      %v2019 = vpop.f32.mrb[0].mxu0
      %v2020 = vadd.f32 0.0, %v2019
      %v2021 = vpop.f32.mrb[0].mxu0
      %v2022 = vpop.f32.mrb[0].mxu0
      %v2023 = vadd.f32 0.0, %v2022
      %v2024 = vpop.f32.mrb[0].mxu0
      %2025 = vmatprep.mubr.bf16.mxu0 0
      %2026 = vmatmul.mubr.bf16.gmra.mrb[0].mxu0 %v1897
      %v2027 = vpop.f32.mrb[0].mxu0
      %v2028 = vadd.f32 0.0, %v2027
      %v2029 = vpop.f32.mrb[0].mxu0
      %v2030 = vpop.f32.mrb[0].mxu0
      %v2031 = vadd.f32 0.0, %v2030
      %v2032 = vpop.f32.mrb[0].mxu0
      %2033 = vmatprep.mubr.bf16.mxu0 0
      %2034 = vmatmul.mubr.bf16.gmra.mrb[0].mxu0 %v1900
      %v2035 = vpop.f32.mrb[0].mxu0
      %v2036 = vadd.f32 0.0, %v2035
      %v2037 = vpop.f32.mrb[0].mxu0
      %v2038 = vpop.f32.mrb[0].mxu0
      %v2039 = vadd.f32 0.0, %v2038
      %v2040 = vpop.f32.mrb[0].mxu0
      %2041 = vmatprep.mubr.bf16.mxu0 0
      %2042 = vmatmul.mubr.bf16.gmra.mrb[0].mxu0 %v1903
      %v2043 = vpop.f32.mrb[0].mxu0
      %v2044 = vadd.f32 0.0, %v2043
      %v2045 = vpop.f32.mrb[0].mxu0
      %v2046 = vpop.f32.mrb[0].mxu0
      %v2047 = vadd.f32 0.0, %v2046
      %v2048 = vpop.f32.mrb[0].mxu0
      %2049 = vmatprep.mubr.bf16.mxu0 0
      %2050 = vmatmul.mubr.bf16.gmra.mrb[0].mxu0 %v1906
      %v2051 = vpop.f32.mrb[0].mxu0
      %v2052 = vadd.f32 0.0, %v2051
      %v2053 = vpop.f32.mrb[0].mxu0
      %v2054 = vpop.f32.mrb[0].mxu0
      %v2055 = vadd.f32 0.0, %v2054
      %v2056 = vpop.f32.mrb[0].mxu0
      %2057 = vmatprep.mubr.bf16.mxu0 0
      %2058 = vmatmul.mubr.bf16.gmra.mrb[0].mxu0 %v1909
      %v2059 = vpop.f32.mrb[0].mxu0
      %v2060 = vadd.f32 0.0, %v2059
      %v2061 = vpop.f32.mrb[0].mxu0
      %v2062 = vpop.f32.mrb[0].mxu0
      %v2063 = vadd.f32 0.0, %v2062
      %v2064 = vpop.f32.mrb[0].mxu0
      %2065 = vmatprep.mubr.bf16.mxu0 0
      %2066 = vmatmul.mubr.bf16.gmra.mrb[0].mxu0 %v1912
      %v2067 = vpop.f32.mrb[0].mxu0
      %v2068 = vadd.f32 0.0, %v2067
      %v2069 = vpop.f32.mrb[0].mxu0
      %v2070 = vpop.f32.mrb[0].mxu0
      %v2071 = vadd.f32 0.0, %v2070
      %v2072 = vpop.f32.mrb[0].mxu0
      %2073 = vmatprep.mubr.bf16.mxu0 0
      %2074 = vmatmul.mubr.bf16.gmra.mrb[0].mxu0 %v1915
      %v2075 = vpop.f32.mrb[0].mxu0
      %v2076 = vadd.f32 0.0, %v2075
      %v2077 = vpop.f32.mrb[0].mxu0
      %v2078 = vpop.f32.mrb[0].mxu0
      %v2079 = vadd.f32 0.0, %v2078
      %v2080 = vpop.f32.mrb[0].mxu0
      %2081 = vdwg.mxu0
      %v2098 = vunpack.c.l.b16 %v1220
      %v2099 = vunpack.c.l.b16 %v1355
      %v2100 = vunpack.c.l.b16 %v1222
      %v2101 = vunpack.c.l.b16 %v1362
      %v2102 = vunpack.c.l.b16 %v1224
      %v2103 = vunpack.c.l.b16 %v1369
      %v2104 = vunpack.c.l.b16 %v1226
      %v2105 = vunpack.c.l.b16 %v1376
      %v2106 = vunpack.c.l.b16 %v1228
      %v2107 = vunpack.c.l.b16 %v1383
      %v2108 = vunpack.c.l.b16 %v1230
      %v2109 = vunpack.c.l.b16 %v1390
      %v2110 = vunpack.c.l.b16 %v1232
      %v2111 = vunpack.c.l.b16 %v1397
      %v2112 = vunpack.c.l.b16 %v1234
      %v2113 = vunpack.c.l.b16 %v1404
      %v2114 = vunpack.c.l.b16 %v1236
      %v2115 = vunpack.c.l.b16 %v1411
      %v2116 = vunpack.c.l.b16 %v1238
      %v2117 = vunpack.c.l.b16 %v1418
      %v2118 = vunpack.c.l.b16 %v1240
      %v2119 = vunpack.c.l.b16 %v1425
      %v2120 = vunpack.c.l.b16 %v1242
      %v2121 = vunpack.c.l.b16 %v1432
      %v2122 = vunpack.c.l.b16 %v1244
      %v2123 = vunpack.c.l.b16 %v1439
      %v2124 = vunpack.c.l.b16 %v1246
      %v2125 = vunpack.c.l.b16 %v1446
      %v2126 = vunpack.c.l.b16 %v1248
      %v2127 = vunpack.c.l.b16 %v1453
      %v2128 = vunpack.c.l.b16 %v1250
      %v2129 = vunpack.c.l.b16 %v1460
      %v2130 = vpack.c.b16 %v2099, %v2098
      %v2131 = vpack.c.b16 %v2101, %v2100
      %v2132 = vpack.c.b16 %v2103, %v2102
      %v2133 = vpack.c.b16 %v2105, %v2104
      %v2134 = vpack.c.b16 %v2107, %v2106
      %v2135 = vpack.c.b16 %v2109, %v2108
      %v2136 = vpack.c.b16 %v2111, %v2110
      %v2137 = vpack.c.b16 %v2113, %v2112
      %v2138 = vpack.c.b16 %v2115, %v2114
      %v2139 = vpack.c.b16 %v2117, %v2116
      %v2140 = vpack.c.b16 %v2119, %v2118
      %v2141 = vpack.c.b16 %v2121, %v2120
      %v2142 = vpack.c.b16 %v2123, %v2122
      %v2143 = vpack.c.b16 %v2125, %v2124
      %v2144 = vpack.c.b16 %v2127, %v2126
      %v2145 = vpack.c.b16 %v2129, %v2128
      %v2147 = vsel %vm1868, %v2130, 0
      %v2150 = vsel %vm1868, %v2131, 0
      %v2153 = vsel %vm1868, %v2132, 0
      %v2156 = vsel %vm1868, %v2133, 0
      %v2159 = vsel %vm1868, %v2134, 0
      %v2162 = vsel %vm1868, %v2135, 0
      %v2165 = vsel %vm1868, %v2136, 0
      %v2168 = vsel %vm1868, %v2137, 0
      %v2171 = vsel %vm1868, %v2138, 0
      %v2174 = vsel %vm1868, %v2139, 0
      %v2177 = vsel %vm1868, %v2140, 0
      %v2180 = vsel %vm1868, %v2141, 0
      %v2183 = vsel %vm1868, %v2142, 0
      %v2186 = vsel %vm1868, %v2143, 0
      %v2189 = vsel %vm1868, %v2144, 0
      %v2192 = vsel %vm1868, %v2145, 0
      %v2195 = vsel %vm1917, %v1802, 0
      %2197 = vmatprep.subr.bf16.mxu0 0
      %2198 = vmatpush1.bf16.msra.mxu0 %v2195
      %2199 = vmatprep.subr.bf16.mxu0 0
      %2200 = vmatpush1.bf16.msra.mxu0 0
      %2201 = vmatprep.subr.bf16.mxu0 0
      %2202 = vmatpush1.bf16.msra.mxu0 0
      %2203 = vmatprep.subr.bf16.mxu0 0
      %2204 = vmatpush1.bf16.msra.mxu0 0
      %2205 = vmatprep.subr.bf16.mxu0 0
      %2206 = vmatpush1.bf16.msra.mxu0 0
      %2207 = vmatprep.subr.bf16.mxu0 0
      %2208 = vmatpush1.bf16.msra.mxu0 0
      %2209 = vmatprep.subr.bf16.mxu0 0
      %2210 = vmatpush1.bf16.msra.mxu0 0
      %2211 = vmatprep.subr.bf16.mxu0 0
      %2212 = vmatpush1.bf16.msra.mxu0 0
      %2213 = vmatprep.subr.bf16.mxu0 0
      %2214 = vmatpush1.bf16.msra.mxu0 0
      %2215 = vmatprep.subr.bf16.mxu0 0
      %2216 = vmatpush1.bf16.msra.mxu0 0
      %2217 = vmatprep.subr.bf16.mxu0 0
      %2218 = vmatpush1.bf16.msra.mxu0 0
      %2219 = vmatprep.subr.bf16.mxu0 0
      %2220 = vmatpush1.bf16.msra.mxu0 0
      %2221 = vmatprep.subr.bf16.mxu0 0
      %2222 = vmatpush1.bf16.msra.mxu0 0
      %2223 = vmatprep.subr.bf16.mxu0 0
      %2224 = vmatpush1.bf16.msra.mxu0 0
      %2225 = vmatprep.subr.bf16.mxu0 0
      %2226 = vmatpush1.bf16.msra.mxu0 0
      %2227 = vmatprep.subr.bf16.mxu0 0
      %2228 = vmatpush1.bf16.msra.mxu0 0
      %2229 = vmatprep.mubr.bf16.mxu0 0
      %2230 = vmatmul.mubr.bf16.gmra.mrb[0].mxu0 %v2147
      %v2231 = vpop.f32.mrb[0].mxu0
      %v2232 = vadd.f32 %v1956, %v2231
      %v2233 = vpop.f32.mrb[0].mxu0
      %v2234 = vpop.f32.mrb[0].mxu0
      %v2235 = vadd.f32 %v1959, %v2234
      %v2236 = vpop.f32.mrb[0].mxu0
      %2237 = vmatprep.mubr.bf16.mxu0 0
      %2238 = vmatmul.mubr.bf16.gmra.mrb[0].mxu0 %v2150
      %v2239 = vpop.f32.mrb[0].mxu0
      %v2240 = vadd.f32 %v1964, %v2239
      %v2241 = vpop.f32.mrb[0].mxu0
      %v2242 = vpop.f32.mrb[0].mxu0
      %v2243 = vadd.f32 %v1967, %v2242
      %v2244 = vpop.f32.mrb[0].mxu0
      %2245 = vmatprep.mubr.bf16.mxu0 0
      %2246 = vmatmul.mubr.bf16.gmra.mrb[0].mxu0 %v2153
      %v2247 = vpop.f32.mrb[0].mxu0
      %v2248 = vadd.f32 %v1972, %v2247
      %v2249 = vpop.f32.mrb[0].mxu0
      %v2250 = vpop.f32.mrb[0].mxu0
      %v2251 = vadd.f32 %v1975, %v2250
      %v2252 = vpop.f32.mrb[0].mxu0
      %2253 = vmatprep.mubr.bf16.mxu0 0
      %2254 = vmatmul.mubr.bf16.gmra.mrb[0].mxu0 %v2156
      %v2255 = vpop.f32.mrb[0].mxu0
      %v2256 = vadd.f32 %v1980, %v2255
      %v2257 = vpop.f32.mrb[0].mxu0
      %v2258 = vpop.f32.mrb[0].mxu0
      %v2259 = vadd.f32 %v1983, %v2258
      %v2260 = vpop.f32.mrb[0].mxu0
      %2261 = vmatprep.mubr.bf16.mxu0 0
      %2262 = vmatmul.mubr.bf16.gmra.mrb[0].mxu0 %v2159
      %v2263 = vpop.f32.mrb[0].mxu0
      %v2264 = vadd.f32 %v1988, %v2263
      %v2265 = vpop.f32.mrb[0].mxu0
      %v2266 = vpop.f32.mrb[0].mxu0
      %v2267 = vadd.f32 %v1991, %v2266
      %v2268 = vpop.f32.mrb[0].mxu0
      %2269 = vmatprep.mubr.bf16.mxu0 0
      %2270 = vmatmul.mubr.bf16.gmra.mrb[0].mxu0 %v2162
      %v2271 = vpop.f32.mrb[0].mxu0
      %v2272 = vadd.f32 %v1996, %v2271
      %v2273 = vpop.f32.mrb[0].mxu0
      %v2274 = vpop.f32.mrb[0].mxu0
      %v2275 = vadd.f32 %v1999, %v2274
      %v2276 = vpop.f32.mrb[0].mxu0
      %2277 = vmatprep.mubr.bf16.mxu0 0
      %2278 = vmatmul.mubr.bf16.gmra.mrb[0].mxu0 %v2165
      %v2279 = vpop.f32.mrb[0].mxu0
      %v2280 = vadd.f32 %v2004, %v2279
      %v2281 = vpop.f32.mrb[0].mxu0
      %v2282 = vpop.f32.mrb[0].mxu0
      %v2283 = vadd.f32 %v2007, %v2282
      %v2284 = vpop.f32.mrb[0].mxu0
      %2285 = vmatprep.mubr.bf16.mxu0 0
      %2286 = vmatmul.mubr.bf16.gmra.mrb[0].mxu0 %v2168
      %v2287 = vpop.f32.mrb[0].mxu0
      %v2288 = vadd.f32 %v2012, %v2287
      %v2289 = vpop.f32.mrb[0].mxu0
      %v2290 = vpop.f32.mrb[0].mxu0
      %v2291 = vadd.f32 %v2015, %v2290
      %v2292 = vpop.f32.mrb[0].mxu0
      %2293 = vmatprep.mubr.bf16.mxu0 0
      %2294 = vmatmul.mubr.bf16.gmra.mrb[0].mxu0 %v2171
      %v2295 = vpop.f32.mrb[0].mxu0
      %v2296 = vadd.f32 %v2020, %v2295
      %v2297 = vpop.f32.mrb[0].mxu0
      %v2298 = vpop.f32.mrb[0].mxu0
      %v2299 = vadd.f32 %v2023, %v2298
      %v2300 = vpop.f32.mrb[0].mxu0
      %2301 = vmatprep.mubr.bf16.mxu0 0
      %2302 = vmatmul.mubr.bf16.gmra.mrb[0].mxu0 %v2174
      %v2303 = vpop.f32.mrb[0].mxu0
      %v2304 = vadd.f32 %v2028, %v2303
      %v2305 = vpop.f32.mrb[0].mxu0
      %v2306 = vpop.f32.mrb[0].mxu0
      %v2307 = vadd.f32 %v2031, %v2306
      %v2308 = vpop.f32.mrb[0].mxu0
      %2309 = vmatprep.mubr.bf16.mxu0 0
      %2310 = vmatmul.mubr.bf16.gmra.mrb[0].mxu0 %v2177
      %v2311 = vpop.f32.mrb[0].mxu0
      %v2312 = vadd.f32 %v2036, %v2311
      %v2313 = vpop.f32.mrb[0].mxu0
      %v2314 = vpop.f32.mrb[0].mxu0
      %v2315 = vadd.f32 %v2039, %v2314
      %v2316 = vpop.f32.mrb[0].mxu0
      %2317 = vmatprep.mubr.bf16.mxu0 0
      %2318 = vmatmul.mubr.bf16.gmra.mrb[0].mxu0 %v2180
      %v2319 = vpop.f32.mrb[0].mxu0
      %v2320 = vadd.f32 %v2044, %v2319
      %v2321 = vpop.f32.mrb[0].mxu0
      %v2322 = vpop.f32.mrb[0].mxu0
      %v2323 = vadd.f32 %v2047, %v2322
      %v2324 = vpop.f32.mrb[0].mxu0
      %2325 = vmatprep.mubr.bf16.mxu0 0
      %2326 = vmatmul.mubr.bf16.gmra.mrb[0].mxu0 %v2183
      %v2327 = vpop.f32.mrb[0].mxu0
      %v2328 = vadd.f32 %v2052, %v2327
      %v2329 = vpop.f32.mrb[0].mxu0
      %v2330 = vpop.f32.mrb[0].mxu0
      %v2331 = vadd.f32 %v2055, %v2330
      %v2332 = vpop.f32.mrb[0].mxu0
      %2333 = vmatprep.mubr.bf16.mxu0 0
      %2334 = vmatmul.mubr.bf16.gmra.mrb[0].mxu0 %v2186
      %v2335 = vpop.f32.mrb[0].mxu0
      %v2336 = vadd.f32 %v2060, %v2335
      %v2337 = vpop.f32.mrb[0].mxu0
      %v2338 = vpop.f32.mrb[0].mxu0
      %v2339 = vadd.f32 %v2063, %v2338
      %v2340 = vpop.f32.mrb[0].mxu0
      %2341 = vmatprep.mubr.bf16.mxu0 0
      %2342 = vmatmul.mubr.bf16.gmra.mrb[0].mxu0 %v2189
      %v2343 = vpop.f32.mrb[0].mxu0
      %v2344 = vadd.f32 %v2068, %v2343
      %v2345 = vpop.f32.mrb[0].mxu0
      %v2346 = vpop.f32.mrb[0].mxu0
      %v2347 = vadd.f32 %v2071, %v2346
      %v2348 = vpop.f32.mrb[0].mxu0
      %2349 = vmatprep.mubr.bf16.mxu0 0
      %2350 = vmatmul.mubr.bf16.gmra.mrb[0].mxu0 %v2192
      %v2351 = vpop.f32.mrb[0].mxu0
      %v2352 = vadd.f32 %v2076, %v2351
      %v2353 = vpop.f32.mrb[0].mxu0
      %v2354 = vpop.f32.mrb[0].mxu0
      %v2355 = vadd.f32 %v2079, %v2354
      %v2356 = vpop.f32.mrb[0].mxu0
      %2357 = vdwg.mxu0
      %v2374 = vunpack.c.l.b16 %v1219
      %v2375 = vunpack.c.h.b16 %v1219
      %v2376 = vunpack.c.h.b16 %v1220
      %v2377 = vunpack.c.l.b16 %v1221
      %v2378 = vunpack.c.h.b16 %v1221
      %v2379 = vunpack.c.h.b16 %v1222
      %v2380 = vunpack.c.l.b16 %v1223
      %v2381 = vunpack.c.h.b16 %v1223
      %v2382 = vunpack.c.h.b16 %v1224
      %v2383 = vunpack.c.l.b16 %v1225
      %v2384 = vunpack.c.h.b16 %v1225
      %v2385 = vunpack.c.h.b16 %v1226
      %v2386 = vunpack.c.l.b16 %v1227
      %v2387 = vunpack.c.h.b16 %v1227
      %v2388 = vunpack.c.h.b16 %v1228
      %v2389 = vunpack.c.l.b16 %v1229
      %v2390 = vunpack.c.h.b16 %v1229
      %v2391 = vunpack.c.h.b16 %v1230
      %v2392 = vunpack.c.l.b16 %v1231
      %v2393 = vunpack.c.h.b16 %v1231
      %v2394 = vunpack.c.h.b16 %v1232
      %v2395 = vunpack.c.l.b16 %v1233
      %v2396 = vunpack.c.h.b16 %v1233
      %v2397 = vunpack.c.h.b16 %v1234
      %v2398 = vunpack.c.l.b16 %v1235
      %v2399 = vunpack.c.h.b16 %v1235
      %v2400 = vunpack.c.h.b16 %v1236
      %v2401 = vunpack.c.l.b16 %v1237
      %v2402 = vunpack.c.h.b16 %v1237
      %v2403 = vunpack.c.h.b16 %v1238
      %v2404 = vunpack.c.l.b16 %v1239
      %v2405 = vunpack.c.h.b16 %v1239
      %v2406 = vunpack.c.h.b16 %v1240
      %v2407 = vunpack.c.l.b16 %v1241
      %v2408 = vunpack.c.h.b16 %v1241
      %v2409 = vunpack.c.h.b16 %v1242
      %v2410 = vunpack.c.l.b16 %v1243
      %v2411 = vunpack.c.h.b16 %v1243
      %v2412 = vunpack.c.h.b16 %v1244
      %v2413 = vunpack.c.l.b16 %v1245
      %v2414 = vunpack.c.h.b16 %v1245
      %v2415 = vunpack.c.h.b16 %v1246
      %v2416 = vunpack.c.l.b16 %v1247
      %v2417 = vunpack.c.h.b16 %v1247
      %v2418 = vunpack.c.h.b16 %v1248
      %v2419 = vunpack.c.l.b16 %v1249
      %v2420 = vunpack.c.h.b16 %v1249
      %v2421 = vunpack.c.h.b16 %v1250
      %v2422 = vpack.c.b16 %v2374, %v2374
      %v2423 = vpack.c.b16 %v2375, %v2375
      %v2424 = vpack.c.b16 %v2098, %v2098
      %v2425 = vpack.c.b16 %v2376, %v2376
      %v2426 = vpack.c.b16 %v2377, %v2377
      %v2427 = vpack.c.b16 %v2378, %v2378
      %v2428 = vpack.c.b16 %v2100, %v2100
      %v2429 = vpack.c.b16 %v2379, %v2379
      %v2430 = vpack.c.b16 %v2380, %v2380
      %v2431 = vpack.c.b16 %v2381, %v2381
      %v2432 = vpack.c.b16 %v2102, %v2102
      %v2433 = vpack.c.b16 %v2382, %v2382
      %v2434 = vpack.c.b16 %v2383, %v2383
      %v2435 = vpack.c.b16 %v2384, %v2384
      %v2436 = vpack.c.b16 %v2104, %v2104
      %v2437 = vpack.c.b16 %v2385, %v2385
      %v2438 = vpack.c.b16 %v2386, %v2386
      %v2439 = vpack.c.b16 %v2387, %v2387
      %v2440 = vpack.c.b16 %v2106, %v2106
      %v2441 = vpack.c.b16 %v2388, %v2388
      %v2442 = vpack.c.b16 %v2389, %v2389
      %v2443 = vpack.c.b16 %v2390, %v2390
      %v2444 = vpack.c.b16 %v2108, %v2108
      %v2445 = vpack.c.b16 %v2391, %v2391
      %v2446 = vpack.c.b16 %v2392, %v2392
      %v2447 = vpack.c.b16 %v2393, %v2393
      %v2448 = vpack.c.b16 %v2110, %v2110
      %v2449 = vpack.c.b16 %v2394, %v2394
      %v2450 = vpack.c.b16 %v2395, %v2395
      %v2451 = vpack.c.b16 %v2396, %v2396
      %v2452 = vpack.c.b16 %v2112, %v2112
      %v2453 = vpack.c.b16 %v2397, %v2397
      %v2454 = vpack.c.b16 %v2398, %v2398
      %v2455 = vpack.c.b16 %v2399, %v2399
      %v2456 = vpack.c.b16 %v2114, %v2114
      %v2457 = vpack.c.b16 %v2400, %v2400
      %v2458 = vpack.c.b16 %v2401, %v2401
      %v2459 = vpack.c.b16 %v2402, %v2402
      %v2460 = vpack.c.b16 %v2116, %v2116
      %v2461 = vpack.c.b16 %v2403, %v2403
      %v2462 = vpack.c.b16 %v2404, %v2404
      %v2463 = vpack.c.b16 %v2405, %v2405
      %v2464 = vpack.c.b16 %v2118, %v2118
      %v2465 = vpack.c.b16 %v2406, %v2406
      %v2466 = vpack.c.b16 %v2407, %v2407
      %v2467 = vpack.c.b16 %v2408, %v2408
      %v2468 = vpack.c.b16 %v2120, %v2120
      %v2469 = vpack.c.b16 %v2409, %v2409
      %v2470 = vpack.c.b16 %v2410, %v2410
      %v2471 = vpack.c.b16 %v2411, %v2411
      %v2472 = vpack.c.b16 %v2122, %v2122
      %v2473 = vpack.c.b16 %v2412, %v2412
      %v2474 = vpack.c.b16 %v2413, %v2413
      %v2475 = vpack.c.b16 %v2414, %v2414
      %v2476 = vpack.c.b16 %v2124, %v2124
      %v2477 = vpack.c.b16 %v2415, %v2415
      %v2478 = vpack.c.b16 %v2416, %v2416
      %v2479 = vpack.c.b16 %v2417, %v2417
      %v2480 = vpack.c.b16 %v2126, %v2126
      %v2481 = vpack.c.b16 %v2418, %v2418
      %v2482 = vpack.c.b16 %v2419, %v2419
      %v2483 = vpack.c.b16 %v2420, %v2420
      %v2484 = vpack.c.b16 %v2128, %v2128
      %v2485 = vpack.c.b16 %v2421, %v2421
      %v2487 = vshrl.u32 %v2422, 16
      %v2489 = vrot.slane %v2487, 4
      %v2490 = vshll.u32 %v2422, 16
      %v2492 = vrot.slane %v2490, 5
      %v2493 = vor.u32 %v2489, %v2492
      %v2494 = vrot.slane %v2493, 4
      %v2496 = vshll.u32 %v2423, 16
      %v2498 = vrot.slane %v2496, 5
      %v2499 = vsel %vm1477, %v2494, %v2498
      %v2501 = vshrl.u32 %v2424, 16
      %v2503 = vrot.slane %v2501, 4
      %v2504 = vshll.u32 %v2424, 16
      %v2506 = vrot.slane %v2504, 5
      %v2507 = vor.u32 %v2503, %v2506
      %v2508 = vrot.slane %v2507, 4
      %v2510 = vshll.u32 %v2425, 16
      %v2512 = vrot.slane %v2510, 5
      %v2513 = vsel %vm1477, %v2508, %v2512
      %v2515 = vshrl.u32 %v2426, 16
      %v2517 = vrot.slane %v2515, 4
      %v2518 = vshll.u32 %v2426, 16
      %v2520 = vrot.slane %v2518, 5
      %v2521 = vor.u32 %v2517, %v2520
      %v2522 = vrot.slane %v2521, 4
      %v2524 = vshll.u32 %v2427, 16
      %v2526 = vrot.slane %v2524, 5
      %v2527 = vsel %vm1477, %v2522, %v2526
      %v2529 = vshrl.u32 %v2428, 16
      %v2531 = vrot.slane %v2529, 4
      %v2532 = vshll.u32 %v2428, 16
      %v2534 = vrot.slane %v2532, 5
      %v2535 = vor.u32 %v2531, %v2534
      %v2536 = vrot.slane %v2535, 4
      %v2538 = vshll.u32 %v2429, 16
      %v2540 = vrot.slane %v2538, 5
      %v2541 = vsel %vm1477, %v2536, %v2540
      %v2543 = vshrl.u32 %v2430, 16
      %v2545 = vrot.slane %v2543, 4
      %v2546 = vshll.u32 %v2430, 16
      %v2548 = vrot.slane %v2546, 5
      %v2549 = vor.u32 %v2545, %v2548
      %v2550 = vrot.slane %v2549, 4
      %v2552 = vshll.u32 %v2431, 16
      %v2554 = vrot.slane %v2552, 5
      %v2555 = vsel %vm1477, %v2550, %v2554
      %v2557 = vshrl.u32 %v2432, 16
      %v2559 = vrot.slane %v2557, 4
      %v2560 = vshll.u32 %v2432, 16
      %v2562 = vrot.slane %v2560, 5
      %v2563 = vor.u32 %v2559, %v2562
      %v2564 = vrot.slane %v2563, 4
      %v2566 = vshll.u32 %v2433, 16
      %v2568 = vrot.slane %v2566, 5
      %v2569 = vsel %vm1477, %v2564, %v2568
      %v2571 = vshrl.u32 %v2434, 16
      %v2573 = vrot.slane %v2571, 4
      %v2574 = vshll.u32 %v2434, 16
      %v2576 = vrot.slane %v2574, 5
      %v2577 = vor.u32 %v2573, %v2576
      %v2578 = vrot.slane %v2577, 4
      %v2580 = vshll.u32 %v2435, 16
      %v2582 = vrot.slane %v2580, 5
      %v2583 = vsel %vm1477, %v2578, %v2582
      %v2585 = vshrl.u32 %v2436, 16
      %v2587 = vrot.slane %v2585, 4
      %v2588 = vshll.u32 %v2436, 16
      %v2590 = vrot.slane %v2588, 5
      %v2591 = vor.u32 %v2587, %v2590
      %v2592 = vrot.slane %v2591, 4
      %v2594 = vshll.u32 %v2437, 16
      %v2596 = vrot.slane %v2594, 5
      %v2597 = vsel %vm1477, %v2592, %v2596
      %v2599 = vshrl.u32 %v2438, 16
      %v2601 = vrot.slane %v2599, 4
      %v2602 = vshll.u32 %v2438, 16
      %v2604 = vrot.slane %v2602, 5
      %v2605 = vor.u32 %v2601, %v2604
      %v2606 = vrot.slane %v2605, 4
      %v2608 = vshll.u32 %v2439, 16
      %v2610 = vrot.slane %v2608, 5
      %v2611 = vsel %vm1477, %v2606, %v2610
      %v2613 = vshrl.u32 %v2440, 16
      %v2615 = vrot.slane %v2613, 4
      %v2616 = vshll.u32 %v2440, 16
      %v2618 = vrot.slane %v2616, 5
      %v2619 = vor.u32 %v2615, %v2618
      %v2620 = vrot.slane %v2619, 4
      %v2622 = vshll.u32 %v2441, 16
      %v2624 = vrot.slane %v2622, 5
      %v2625 = vsel %vm1477, %v2620, %v2624
      %v2627 = vshrl.u32 %v2442, 16
      %v2629 = vrot.slane %v2627, 4
      %v2630 = vshll.u32 %v2442, 16
      %v2632 = vrot.slane %v2630, 5
      %v2633 = vor.u32 %v2629, %v2632
      %v2634 = vrot.slane %v2633, 4
      %v2636 = vshll.u32 %v2443, 16
      %v2638 = vrot.slane %v2636, 5
      %v2639 = vsel %vm1477, %v2634, %v2638
      %v2641 = vshrl.u32 %v2444, 16
      %v2643 = vrot.slane %v2641, 4
      %v2644 = vshll.u32 %v2444, 16
      %v2646 = vrot.slane %v2644, 5
      %v2647 = vor.u32 %v2643, %v2646
      %v2648 = vrot.slane %v2647, 4
      %v2650 = vshll.u32 %v2445, 16
      %v2652 = vrot.slane %v2650, 5
      %v2653 = vsel %vm1477, %v2648, %v2652
      %v2655 = vshrl.u32 %v2446, 16
      %v2657 = vrot.slane %v2655, 4
      %v2658 = vshll.u32 %v2446, 16
      %v2660 = vrot.slane %v2658, 5
      %v2661 = vor.u32 %v2657, %v2660
      %v2662 = vrot.slane %v2661, 4
      %v2664 = vshll.u32 %v2447, 16
      %v2666 = vrot.slane %v2664, 5
      %v2667 = vsel %vm1477, %v2662, %v2666
      %v2669 = vshrl.u32 %v2448, 16
      %v2671 = vrot.slane %v2669, 4
      %v2672 = vshll.u32 %v2448, 16
      %v2674 = vrot.slane %v2672, 5
      %v2675 = vor.u32 %v2671, %v2674
      %v2676 = vrot.slane %v2675, 4
      %v2678 = vshll.u32 %v2449, 16
      %v2680 = vrot.slane %v2678, 5
      %v2681 = vsel %vm1477, %v2676, %v2680
      %v2683 = vshrl.u32 %v2450, 16
      %v2685 = vrot.slane %v2683, 4
      %v2686 = vshll.u32 %v2450, 16
      %v2688 = vrot.slane %v2686, 5
      %v2689 = vor.u32 %v2685, %v2688
      %v2690 = vrot.slane %v2689, 4
      %v2692 = vshll.u32 %v2451, 16
      %v2694 = vrot.slane %v2692, 5
      %v2695 = vsel %vm1477, %v2690, %v2694
      %v2697 = vshrl.u32 %v2452, 16
      %v2699 = vrot.slane %v2697, 4
      %v2700 = vshll.u32 %v2452, 16
      %v2702 = vrot.slane %v2700, 5
      %v2703 = vor.u32 %v2699, %v2702
      %v2704 = vrot.slane %v2703, 4
      %v2706 = vshll.u32 %v2453, 16
      %v2708 = vrot.slane %v2706, 5
      %v2709 = vsel %vm1477, %v2704, %v2708
      %v2711 = vshrl.u32 %v2454, 16
      %v2713 = vrot.slane %v2711, 4
      %v2714 = vshll.u32 %v2454, 16
      %v2716 = vrot.slane %v2714, 5
      %v2717 = vor.u32 %v2713, %v2716
      %v2718 = vrot.slane %v2717, 4
      %v2720 = vshll.u32 %v2455, 16
      %v2722 = vrot.slane %v2720, 5
      %v2723 = vsel %vm1477, %v2718, %v2722
      %v2725 = vshrl.u32 %v2456, 16
      %v2727 = vrot.slane %v2725, 4
      %v2728 = vshll.u32 %v2456, 16
      %v2730 = vrot.slane %v2728, 5
      %v2731 = vor.u32 %v2727, %v2730
      %v2732 = vrot.slane %v2731, 4
      %v2734 = vshll.u32 %v2457, 16
      %v2736 = vrot.slane %v2734, 5
      %v2737 = vsel %vm1477, %v2732, %v2736
      %v2739 = vshrl.u32 %v2458, 16
      %v2741 = vrot.slane %v2739, 4
      %v2742 = vshll.u32 %v2458, 16
      %v2744 = vrot.slane %v2742, 5
      %v2745 = vor.u32 %v2741, %v2744
      %v2746 = vrot.slane %v2745, 4
      %v2748 = vshll.u32 %v2459, 16
      %v2750 = vrot.slane %v2748, 5
      %v2751 = vsel %vm1477, %v2746, %v2750
      %v2753 = vshrl.u32 %v2460, 16
      %v2755 = vrot.slane %v2753, 4
      %v2756 = vshll.u32 %v2460, 16
      %v2758 = vrot.slane %v2756, 5
      %v2759 = vor.u32 %v2755, %v2758
      %v2760 = vrot.slane %v2759, 4
      %v2762 = vshll.u32 %v2461, 16
      %v2764 = vrot.slane %v2762, 5
      %v2765 = vsel %vm1477, %v2760, %v2764
      %v2767 = vshrl.u32 %v2462, 16
      %v2769 = vrot.slane %v2767, 4
      %v2770 = vshll.u32 %v2462, 16
      %v2772 = vrot.slane %v2770, 5
      %v2773 = vor.u32 %v2769, %v2772
      %v2774 = vrot.slane %v2773, 4
      %v2776 = vshll.u32 %v2463, 16
      %v2778 = vrot.slane %v2776, 5
      %v2779 = vsel %vm1477, %v2774, %v2778
      %v2781 = vshrl.u32 %v2464, 16
      %v2783 = vrot.slane %v2781, 4
      %v2784 = vshll.u32 %v2464, 16
      %v2786 = vrot.slane %v2784, 5
      %v2787 = vor.u32 %v2783, %v2786
      %v2788 = vrot.slane %v2787, 4
      %v2790 = vshll.u32 %v2465, 16
      %v2792 = vrot.slane %v2790, 5
      %v2793 = vsel %vm1477, %v2788, %v2792
      %v2795 = vshrl.u32 %v2466, 16
      %v2797 = vrot.slane %v2795, 4
      %v2798 = vshll.u32 %v2466, 16
      %v2800 = vrot.slane %v2798, 5
      %v2801 = vor.u32 %v2797, %v2800
      %v2802 = vrot.slane %v2801, 4
      %v2804 = vshll.u32 %v2467, 16
      %v2806 = vrot.slane %v2804, 5
      %v2807 = vsel %vm1477, %v2802, %v2806
      %v2809 = vshrl.u32 %v2468, 16
      %v2811 = vrot.slane %v2809, 4
      %v2812 = vshll.u32 %v2468, 16
      %v2814 = vrot.slane %v2812, 5
      %v2815 = vor.u32 %v2811, %v2814
      %v2816 = vrot.slane %v2815, 4
      %v2818 = vshll.u32 %v2469, 16
      %v2820 = vrot.slane %v2818, 5
      %v2821 = vsel %vm1477, %v2816, %v2820
      %v2823 = vshrl.u32 %v2470, 16
      %v2825 = vrot.slane %v2823, 4
      %v2826 = vshll.u32 %v2470, 16
      %v2828 = vrot.slane %v2826, 5
      %v2829 = vor.u32 %v2825, %v2828
      %v2830 = vrot.slane %v2829, 4
      %v2832 = vshll.u32 %v2471, 16
      %v2834 = vrot.slane %v2832, 5
      %v2835 = vsel %vm1477, %v2830, %v2834
      %v2837 = vshrl.u32 %v2472, 16
      %v2839 = vrot.slane %v2837, 4
      %v2840 = vshll.u32 %v2472, 16
      %v2842 = vrot.slane %v2840, 5
      %v2843 = vor.u32 %v2839, %v2842
      %v2844 = vrot.slane %v2843, 4
      %v2846 = vshll.u32 %v2473, 16
      %v2848 = vrot.slane %v2846, 5
      %v2849 = vsel %vm1477, %v2844, %v2848
      %v2851 = vshrl.u32 %v2474, 16
      %v2853 = vrot.slane %v2851, 4
      %v2854 = vshll.u32 %v2474, 16
      %v2856 = vrot.slane %v2854, 5
      %v2857 = vor.u32 %v2853, %v2856
      %v2858 = vrot.slane %v2857, 4
      %v2860 = vshll.u32 %v2475, 16
      %v2862 = vrot.slane %v2860, 5
      %v2863 = vsel %vm1477, %v2858, %v2862
      %v2865 = vshrl.u32 %v2476, 16
      %v2867 = vrot.slane %v2865, 4
      %v2868 = vshll.u32 %v2476, 16
      %v2870 = vrot.slane %v2868, 5
      %v2871 = vor.u32 %v2867, %v2870
      %v2872 = vrot.slane %v2871, 4
      %v2874 = vshll.u32 %v2477, 16
      %v2876 = vrot.slane %v2874, 5
      %v2877 = vsel %vm1477, %v2872, %v2876
      %v2879 = vshrl.u32 %v2478, 16
      %v2881 = vrot.slane %v2879, 4
      %v2882 = vshll.u32 %v2478, 16
      %v2884 = vrot.slane %v2882, 5
      %v2885 = vor.u32 %v2881, %v2884
      %v2886 = vrot.slane %v2885, 4
      %v2888 = vshll.u32 %v2479, 16
      %v2890 = vrot.slane %v2888, 5
      %v2891 = vsel %vm1477, %v2886, %v2890
      %v2893 = vshrl.u32 %v2480, 16
      %v2895 = vrot.slane %v2893, 4
      %v2896 = vshll.u32 %v2480, 16
      %v2898 = vrot.slane %v2896, 5
      %v2899 = vor.u32 %v2895, %v2898
      %v2900 = vrot.slane %v2899, 4
      %v2902 = vshll.u32 %v2481, 16
      %v2904 = vrot.slane %v2902, 5
      %v2905 = vsel %vm1477, %v2900, %v2904
      %v2907 = vshrl.u32 %v2482, 16
      %v2909 = vrot.slane %v2907, 4
      %v2910 = vshll.u32 %v2482, 16
      %v2912 = vrot.slane %v2910, 5
      %v2913 = vor.u32 %v2909, %v2912
      %v2914 = vrot.slane %v2913, 4
      %v2916 = vshll.u32 %v2483, 16
      %v2918 = vrot.slane %v2916, 5
      %v2919 = vsel %vm1477, %v2914, %v2918
      %v2921 = vshrl.u32 %v2484, 16
      %v2923 = vrot.slane %v2921, 4
      %v2924 = vshll.u32 %v2484, 16
      %v2926 = vrot.slane %v2924, 5
      %v2927 = vor.u32 %v2923, %v2926
      %v2928 = vrot.slane %v2927, 4
      %v2930 = vshll.u32 %v2485, 16
      %v2932 = vrot.slane %v2930, 5
      %v2933 = vsel %vm1477, %v2928, %v2932
      %v2935 = vshrl.u32 %v1275, 16
      %v2937 = vrot.slane %v2935, 4
      %v2938 = vshll.u32 %v1275, 16
      %v2940 = vrot.slane %v2938, 5
      %v2941 = vor.u32 %v2937, %v2940
      %v2942 = vrot.slane %v2941, 4
      %v2944 = vshll.u32 %v1276, 16
      %v2946 = vrot.slane %v2944, 5
      %v2947 = vsel %vm1477, %v2942, %v2946
      %v2949 = vshrl.u32 %v1279, 16
      %v2951 = vrot.slane %v2949, 4
      %v2952 = vshll.u32 %v1279, 16
      %v2954 = vrot.slane %v2952, 5
      %v2955 = vor.u32 %v2951, %v2954
      %v2956 = vrot.slane %v2955, 4
      %v2958 = vshll.u32 %v1280, 16
      %v2960 = vrot.slane %v2958, 5
      %v2961 = vsel %vm1477, %v2956, %v2960
      %v2963 = vshrl.u32 %v1283, 16
      %v2965 = vrot.slane %v2963, 4
      %v2966 = vshll.u32 %v1283, 16
      %v2968 = vrot.slane %v2966, 5
      %v2969 = vor.u32 %v2965, %v2968
      %v2970 = vrot.slane %v2969, 4
      %v2972 = vshll.u32 %v1284, 16
      %v2974 = vrot.slane %v2972, 5
      %v2975 = vsel %vm1477, %v2970, %v2974
      %v2977 = vshrl.u32 %v1287, 16
      %v2979 = vrot.slane %v2977, 4
      %v2980 = vshll.u32 %v1287, 16
      %v2982 = vrot.slane %v2980, 5
      %v2983 = vor.u32 %v2979, %v2982
      %v2984 = vrot.slane %v2983, 4
      %v2986 = vshll.u32 %v1288, 16
      %v2988 = vrot.slane %v2986, 5
      %v2989 = vsel %vm1477, %v2984, %v2988
      %v2991 = vshrl.u32 %v1291, 16
      %v2993 = vrot.slane %v2991, 4
      %v2994 = vshll.u32 %v1291, 16
      %v2996 = vrot.slane %v2994, 5
      %v2997 = vor.u32 %v2993, %v2996
      %v2998 = vrot.slane %v2997, 4
      %v3000 = vshll.u32 %v1292, 16
      %v3002 = vrot.slane %v3000, 5
      %v3003 = vsel %vm1477, %v2998, %v3002
      %v3005 = vshrl.u32 %v1295, 16
      %v3007 = vrot.slane %v3005, 4
      %v3008 = vshll.u32 %v1295, 16
      %v3010 = vrot.slane %v3008, 5
      %v3011 = vor.u32 %v3007, %v3010
      %v3012 = vrot.slane %v3011, 4
      %v3014 = vshll.u32 %v1296, 16
      %v3016 = vrot.slane %v3014, 5
      %v3017 = vsel %vm1477, %v3012, %v3016
      %v3019 = vshrl.u32 %v1299, 16
      %v3021 = vrot.slane %v3019, 4
      %v3022 = vshll.u32 %v1299, 16
      %v3024 = vrot.slane %v3022, 5
      %v3025 = vor.u32 %v3021, %v3024
      %v3026 = vrot.slane %v3025, 4
      %v3028 = vshll.u32 %v1300, 16
      %v3030 = vrot.slane %v3028, 5
      %v3031 = vsel %vm1477, %v3026, %v3030
      %v3033 = vshrl.u32 %v1303, 16
      %v3035 = vrot.slane %v3033, 4
      %v3036 = vshll.u32 %v1303, 16
      %v3038 = vrot.slane %v3036, 5
      %v3039 = vor.u32 %v3035, %v3038
      %v3040 = vrot.slane %v3039, 4
      %v3042 = vshll.u32 %v1304, 16
      %v3044 = vrot.slane %v3042, 5
      %v3045 = vsel %vm1477, %v3040, %v3044
      %v3047 = vshrl.u32 %v1307, 16
      %v3049 = vrot.slane %v3047, 4
      %v3050 = vshll.u32 %v1307, 16
      %v3052 = vrot.slane %v3050, 5
      %v3053 = vor.u32 %v3049, %v3052
      %v3054 = vrot.slane %v3053, 4
      %v3056 = vshll.u32 %v1308, 16
      %v3058 = vrot.slane %v3056, 5
      %v3059 = vsel %vm1477, %v3054, %v3058
      %v3061 = vshrl.u32 %v1311, 16
      %v3063 = vrot.slane %v3061, 4
      %v3064 = vshll.u32 %v1311, 16
      %v3066 = vrot.slane %v3064, 5
      %v3067 = vor.u32 %v3063, %v3066
      %v3068 = vrot.slane %v3067, 4
      %v3070 = vshll.u32 %v1312, 16
      %v3072 = vrot.slane %v3070, 5
      %v3073 = vsel %vm1477, %v3068, %v3072
      %v3075 = vshrl.u32 %v1315, 16
      %v3077 = vrot.slane %v3075, 4
      %v3078 = vshll.u32 %v1315, 16
      %v3080 = vrot.slane %v3078, 5
      %v3081 = vor.u32 %v3077, %v3080
      %v3082 = vrot.slane %v3081, 4
      %v3084 = vshll.u32 %v1316, 16
      %v3086 = vrot.slane %v3084, 5
      %v3087 = vsel %vm1477, %v3082, %v3086
      %v3089 = vshrl.u32 %v1319, 16
      %v3091 = vrot.slane %v3089, 4
      %v3092 = vshll.u32 %v1319, 16
      %v3094 = vrot.slane %v3092, 5
      %v3095 = vor.u32 %v3091, %v3094
      %v3096 = vrot.slane %v3095, 4
      %v3098 = vshll.u32 %v1320, 16
      %v3100 = vrot.slane %v3098, 5
      %v3101 = vsel %vm1477, %v3096, %v3100
      %v3103 = vshrl.u32 %v1323, 16
      %v3105 = vrot.slane %v3103, 4
      %v3106 = vshll.u32 %v1323, 16
      %v3108 = vrot.slane %v3106, 5
      %v3109 = vor.u32 %v3105, %v3108
      %v3110 = vrot.slane %v3109, 4
      %v3112 = vshll.u32 %v1324, 16
      %v3114 = vrot.slane %v3112, 5
      %v3115 = vsel %vm1477, %v3110, %v3114
      %v3117 = vshrl.u32 %v1327, 16
      %v3119 = vrot.slane %v3117, 4
      %v3120 = vshll.u32 %v1327, 16
      %v3122 = vrot.slane %v3120, 5
      %v3123 = vor.u32 %v3119, %v3122
      %v3124 = vrot.slane %v3123, 4
      %v3126 = vshll.u32 %v1328, 16
      %v3128 = vrot.slane %v3126, 5
      %v3129 = vsel %vm1477, %v3124, %v3128
      %v3131 = vshrl.u32 %v1331, 16
      %v3133 = vrot.slane %v3131, 4
      %v3134 = vshll.u32 %v1331, 16
      %v3136 = vrot.slane %v3134, 5
      %v3137 = vor.u32 %v3133, %v3136
      %v3138 = vrot.slane %v3137, 4
      %v3140 = vshll.u32 %v1332, 16
      %v3142 = vrot.slane %v3140, 5
      %v3143 = vsel %vm1477, %v3138, %v3142
      %v3145 = vshrl.u32 %v1335, 16
      %v3147 = vrot.slane %v3145, 4
      %v3148 = vshll.u32 %v1335, 16
      %v3150 = vrot.slane %v3148, 5
      %v3151 = vor.u32 %v3147, %v3150
      %v3152 = vrot.slane %v3151, 4
      %v3154 = vshll.u32 %v1336, 16
      %v3156 = vrot.slane %v3154, 5
      %v3157 = vsel %vm1477, %v3152, %v3156
      %s3158 = scalar_lea.vmem %s8, 2
      %v3159 = vld [vmem:[%s3158] sm:$0x3]
      %v3160 = vunpack.c.l.b16 %v2499
      %v3161 = vunpack.c.l.b16 %v2513
      %v3162 = vunpack.c.l.b16 %v2527
      %v3163 = vunpack.c.l.b16 %v2541
      %v3164 = vunpack.c.l.b16 %v2555
      %v3165 = vunpack.c.l.b16 %v2569
      %v3166 = vunpack.c.l.b16 %v2583
      %v3167 = vunpack.c.l.b16 %v2597
      %v3168 = vunpack.c.l.b16 %v2611
      %v3169 = vunpack.c.l.b16 %v2625
      %v3170 = vunpack.c.l.b16 %v2639
      %v3171 = vunpack.c.l.b16 %v2653
      %v3172 = vunpack.c.l.b16 %v2667
      %v3173 = vunpack.c.l.b16 %v2681
      %v3174 = vunpack.c.l.b16 %v2695
      %v3175 = vunpack.c.l.b16 %v2709
      %v3176 = vunpack.c.l.b16 %v2723
      %v3177 = vunpack.c.l.b16 %v2737
      %v3178 = vunpack.c.l.b16 %v2751
      %v3179 = vunpack.c.l.b16 %v2765
      %v3180 = vunpack.c.l.b16 %v2779
      %v3181 = vunpack.c.l.b16 %v2793
      %v3182 = vunpack.c.l.b16 %v2807
      %v3183 = vunpack.c.l.b16 %v2821
      %v3184 = vunpack.c.l.b16 %v2835
      %v3185 = vunpack.c.l.b16 %v2849
      %v3186 = vunpack.c.l.b16 %v2863
      %v3187 = vunpack.c.l.b16 %v2877
      %v3188 = vunpack.c.l.b16 %v2891
      %v3189 = vunpack.c.l.b16 %v2905
      %v3190 = vunpack.c.l.b16 %v2919
      %v3191 = vunpack.c.l.b16 %v2933
      %v3192 = vpack.c.b16 %v3161, %v3160
      %v3193 = vpack.c.b16 %v3163, %v3162
      %v3194 = vpack.c.b16 %v3165, %v3164
      %v3195 = vpack.c.b16 %v3167, %v3166
      %v3196 = vpack.c.b16 %v3169, %v3168
      %v3197 = vpack.c.b16 %v3171, %v3170
      %v3198 = vpack.c.b16 %v3173, %v3172
      %v3199 = vpack.c.b16 %v3175, %v3174
      %v3200 = vpack.c.b16 %v3177, %v3176
      %v3201 = vpack.c.b16 %v3179, %v3178
      %v3202 = vpack.c.b16 %v3181, %v3180
      %v3203 = vpack.c.b16 %v3183, %v3182
      %v3204 = vpack.c.b16 %v3185, %v3184
      %v3205 = vpack.c.b16 %v3187, %v3186
      %v3206 = vpack.c.b16 %v3189, %v3188
      %v3207 = vpack.c.b16 %v3191, %v3190
      %v3209 = vsel %vm1868, %v3192, 0
      %v3212 = vsel %vm1868, %v3193, 0
      %v3215 = vsel %vm1868, %v3194, 0
      %v3218 = vsel %vm1868, %v3195, 0
      %v3221 = vsel %vm1868, %v3196, 0
      %v3224 = vsel %vm1868, %v3197, 0
      %v3227 = vsel %vm1868, %v3198, 0
      %v3230 = vsel %vm1868, %v3199, 0
      %v3233 = vsel %vm1868, %v3200, 0
      %v3236 = vsel %vm1868, %v3201, 0
      %v3239 = vsel %vm1868, %v3202, 0
      %v3242 = vsel %vm1868, %v3203, 0
      %v3245 = vsel %vm1868, %v3204, 0
      %v3248 = vsel %vm1868, %v3205, 0
      %v3251 = vsel %vm1868, %v3206, 0
      %v3254 = vsel %vm1868, %v3207, 0
      %v3257 = vsel %vm1917, %v3159, 0
      %3259 = vmatprep.subr.bf16.mxu0 0
      %3260 = vmatpush1.bf16.msra.mxu0 %v3257
      %3261 = vmatprep.subr.bf16.mxu0 0
      %3262 = vmatpush1.bf16.msra.mxu0 0
      %3263 = vmatprep.subr.bf16.mxu0 0
      %3264 = vmatpush1.bf16.msra.mxu0 0
      %3265 = vmatprep.subr.bf16.mxu0 0
      %3266 = vmatpush1.bf16.msra.mxu0 0
      %3267 = vmatprep.subr.bf16.mxu0 0
      %3268 = vmatpush1.bf16.msra.mxu0 0
      %3269 = vmatprep.subr.bf16.mxu0 0
      %3270 = vmatpush1.bf16.msra.mxu0 0
      %3271 = vmatprep.subr.bf16.mxu0 0
      %3272 = vmatpush1.bf16.msra.mxu0 0
      %3273 = vmatprep.subr.bf16.mxu0 0
      %3274 = vmatpush1.bf16.msra.mxu0 0
      %3275 = vmatprep.subr.bf16.mxu0 0
      %3276 = vmatpush1.bf16.msra.mxu0 0
      %3277 = vmatprep.subr.bf16.mxu0 0
      %3278 = vmatpush1.bf16.msra.mxu0 0
      %3279 = vmatprep.subr.bf16.mxu0 0
      %3280 = vmatpush1.bf16.msra.mxu0 0
      %3281 = vmatprep.subr.bf16.mxu0 0
      %3282 = vmatpush1.bf16.msra.mxu0 0
      %3283 = vmatprep.subr.bf16.mxu0 0
      %3284 = vmatpush1.bf16.msra.mxu0 0
      %3285 = vmatprep.subr.bf16.mxu0 0
      %3286 = vmatpush1.bf16.msra.mxu0 0
      %3287 = vmatprep.subr.bf16.mxu0 0
      %3288 = vmatpush1.bf16.msra.mxu0 0
      %3289 = vmatprep.subr.bf16.mxu0 0
      %3290 = vmatpush1.bf16.msra.mxu0 0
      %3291 = vmatprep.mubr.bf16.mxu0 0
      %3292 = vmatmul.mubr.bf16.gmra.mrb[0].mxu0 %v3209
      %v3293 = vpop.f32.mrb[0].mxu0
      %v3294 = vadd.f32 0.0, %v3293
      %v3295 = vpop.f32.mrb[0].mxu0
      %v3296 = vpop.f32.mrb[0].mxu0
      %v3297 = vadd.f32 0.0, %v3296
      %v3298 = vpop.f32.mrb[0].mxu0
      %3299 = vmatprep.mubr.bf16.mxu0 0
      %3300 = vmatmul.mubr.bf16.gmra.mrb[0].mxu0 %v3212
      %v3301 = vpop.f32.mrb[0].mxu0
      %v3302 = vadd.f32 0.0, %v3301
      %v3303 = vpop.f32.mrb[0].mxu0
      %v3304 = vpop.f32.mrb[0].mxu0
      %v3305 = vadd.f32 0.0, %v3304
      %v3306 = vpop.f32.mrb[0].mxu0
      %3307 = vmatprep.mubr.bf16.mxu0 0
      %3308 = vmatmul.mubr.bf16.gmra.mrb[0].mxu0 %v3215
      %v3309 = vpop.f32.mrb[0].mxu0
      %v3310 = vadd.f32 0.0, %v3309
      %v3311 = vpop.f32.mrb[0].mxu0
      %v3312 = vpop.f32.mrb[0].mxu0
      %v3313 = vadd.f32 0.0, %v3312
      %v3314 = vpop.f32.mrb[0].mxu0
      %3315 = vmatprep.mubr.bf16.mxu0 0
      %3316 = vmatmul.mubr.bf16.gmra.mrb[0].mxu0 %v3218
      %v3317 = vpop.f32.mrb[0].mxu0
      %v3318 = vadd.f32 0.0, %v3317
      %v3319 = vpop.f32.mrb[0].mxu0
      %v3320 = vpop.f32.mrb[0].mxu0
      %v3321 = vadd.f32 0.0, %v3320
      %v3322 = vpop.f32.mrb[0].mxu0
      %3323 = vmatprep.mubr.bf16.mxu0 0
      %3324 = vmatmul.mubr.bf16.gmra.mrb[0].mxu0 %v3221
      %v3325 = vpop.f32.mrb[0].mxu0
      %v3326 = vadd.f32 0.0, %v3325
      %v3327 = vpop.f32.mrb[0].mxu0
      %v3328 = vpop.f32.mrb[0].mxu0
      %v3329 = vadd.f32 0.0, %v3328
      %v3330 = vpop.f32.mrb[0].mxu0
      %3331 = vmatprep.mubr.bf16.mxu0 0
      %3332 = vmatmul.mubr.bf16.gmra.mrb[0].mxu0 %v3224
      %v3333 = vpop.f32.mrb[0].mxu0
      %v3334 = vadd.f32 0.0, %v3333
      %v3335 = vpop.f32.mrb[0].mxu0
      %v3336 = vpop.f32.mrb[0].mxu0
      %v3337 = vadd.f32 0.0, %v3336
      %v3338 = vpop.f32.mrb[0].mxu0
      %3339 = vmatprep.mubr.bf16.mxu0 0
      %3340 = vmatmul.mubr.bf16.gmra.mrb[0].mxu0 %v3227
      %v3341 = vpop.f32.mrb[0].mxu0
      %v3342 = vadd.f32 0.0, %v3341
      %v3343 = vpop.f32.mrb[0].mxu0
      %v3344 = vpop.f32.mrb[0].mxu0
      %v3345 = vadd.f32 0.0, %v3344
      %v3346 = vpop.f32.mrb[0].mxu0
      %3347 = vmatprep.mubr.bf16.mxu0 0
      %3348 = vmatmul.mubr.bf16.gmra.mrb[0].mxu0 %v3230
      %v3349 = vpop.f32.mrb[0].mxu0
      %v3350 = vadd.f32 0.0, %v3349
      %v3351 = vpop.f32.mrb[0].mxu0
      %v3352 = vpop.f32.mrb[0].mxu0
      %v3353 = vadd.f32 0.0, %v3352
      %v3354 = vpop.f32.mrb[0].mxu0
      %3355 = vmatprep.mubr.bf16.mxu0 0
      %3356 = vmatmul.mubr.bf16.gmra.mrb[0].mxu0 %v3233
      %v3357 = vpop.f32.mrb[0].mxu0
      %v3358 = vadd.f32 0.0, %v3357
      %v3359 = vpop.f32.mrb[0].mxu0
      %v3360 = vpop.f32.mrb[0].mxu0
      %v3361 = vadd.f32 0.0, %v3360
      %v3362 = vpop.f32.mrb[0].mxu0
      %3363 = vmatprep.mubr.bf16.mxu0 0
      %3364 = vmatmul.mubr.bf16.gmra.mrb[0].mxu0 %v3236
      %v3365 = vpop.f32.mrb[0].mxu0
      %v3366 = vadd.f32 0.0, %v3365
      %v3367 = vpop.f32.mrb[0].mxu0
      %v3368 = vpop.f32.mrb[0].mxu0
      %v3369 = vadd.f32 0.0, %v3368
      %v3370 = vpop.f32.mrb[0].mxu0
      %3371 = vmatprep.mubr.bf16.mxu0 0
      %3372 = vmatmul.mubr.bf16.gmra.mrb[0].mxu0 %v3239
      %v3373 = vpop.f32.mrb[0].mxu0
      %v3374 = vadd.f32 0.0, %v3373
      %v3375 = vpop.f32.mrb[0].mxu0
      %v3376 = vpop.f32.mrb[0].mxu0
      %v3377 = vadd.f32 0.0, %v3376
      %v3378 = vpop.f32.mrb[0].mxu0
      %3379 = vmatprep.mubr.bf16.mxu0 0
      %3380 = vmatmul.mubr.bf16.gmra.mrb[0].mxu0 %v3242
      %v3381 = vpop.f32.mrb[0].mxu0
      %v3382 = vadd.f32 0.0, %v3381
      %v3383 = vpop.f32.mrb[0].mxu0
      %v3384 = vpop.f32.mrb[0].mxu0
      %v3385 = vadd.f32 0.0, %v3384
      %v3386 = vpop.f32.mrb[0].mxu0
      %3387 = vmatprep.mubr.bf16.mxu0 0
      %3388 = vmatmul.mubr.bf16.gmra.mrb[0].mxu0 %v3245
      %v3389 = vpop.f32.mrb[0].mxu0
      %v3390 = vadd.f32 0.0, %v3389
      %v3391 = vpop.f32.mrb[0].mxu0
      %v3392 = vpop.f32.mrb[0].mxu0
      %v3393 = vadd.f32 0.0, %v3392
      %v3394 = vpop.f32.mrb[0].mxu0
      %3395 = vmatprep.mubr.bf16.mxu0 0
      %3396 = vmatmul.mubr.bf16.gmra.mrb[0].mxu0 %v3248
      %v3397 = vpop.f32.mrb[0].mxu0
      %v3398 = vadd.f32 0.0, %v3397
      %v3399 = vpop.f32.mrb[0].mxu0
      %v3400 = vpop.f32.mrb[0].mxu0
      %v3401 = vadd.f32 0.0, %v3400
      %v3402 = vpop.f32.mrb[0].mxu0
      %3403 = vmatprep.mubr.bf16.mxu0 0
      %3404 = vmatmul.mubr.bf16.gmra.mrb[0].mxu0 %v3251
      %v3405 = vpop.f32.mrb[0].mxu0
      %v3406 = vadd.f32 0.0, %v3405
      %v3407 = vpop.f32.mrb[0].mxu0
      %v3408 = vpop.f32.mrb[0].mxu0
      %v3409 = vadd.f32 0.0, %v3408
      %v3410 = vpop.f32.mrb[0].mxu0
      %3411 = vmatprep.mubr.bf16.mxu0 0
      %3412 = vmatmul.mubr.bf16.gmra.mrb[0].mxu0 %v3254
      %v3413 = vpop.f32.mrb[0].mxu0
      %v3414 = vadd.f32 0.0, %v3413
      %v3415 = vpop.f32.mrb[0].mxu0
      %v3416 = vpop.f32.mrb[0].mxu0
      %v3417 = vadd.f32 0.0, %v3416
      %v3418 = vpop.f32.mrb[0].mxu0
      %3419 = vdwg.mxu0
      %v3420 = vadd.f32 %v2232, %v3294
      %v3421 = vadd.f32 %v2235, %v3297
      %v3422 = vadd.f32 %v2240, %v3302
      %v3423 = vadd.f32 %v2243, %v3305
      %v3424 = vadd.f32 %v2248, %v3310
      %v3425 = vadd.f32 %v2251, %v3313
      %v3426 = vadd.f32 %v2256, %v3318
      %v3427 = vadd.f32 %v2259, %v3321
      %v3428 = vadd.f32 %v2264, %v3326
      %v3429 = vadd.f32 %v2267, %v3329
      %v3430 = vadd.f32 %v2272, %v3334
      %v3431 = vadd.f32 %v2275, %v3337
      %v3432 = vadd.f32 %v2280, %v3342
      %v3433 = vadd.f32 %v2283, %v3345
      %v3434 = vadd.f32 %v2288, %v3350
      %v3435 = vadd.f32 %v2291, %v3353
      %v3436 = vadd.f32 %v2296, %v3358
      %v3437 = vadd.f32 %v2299, %v3361
      %v3438 = vadd.f32 %v2304, %v3366
      %v3439 = vadd.f32 %v2307, %v3369
      %v3440 = vadd.f32 %v2312, %v3374
      %v3441 = vadd.f32 %v2315, %v3377
      %v3442 = vadd.f32 %v2320, %v3382
      %v3443 = vadd.f32 %v2323, %v3385
      %v3444 = vadd.f32 %v2328, %v3390
      %v3445 = vadd.f32 %v2331, %v3393
      %v3446 = vadd.f32 %v2336, %v3398
      %v3447 = vadd.f32 %v2339, %v3401
      %v3448 = vadd.f32 %v2344, %v3406
      %v3449 = vadd.f32 %v2347, %v3409
      %v3450 = vadd.f32 %v2352, %v3414
      %v3451 = vadd.f32 %v2355, %v3417
      %s3452 = scalar_lea.vmem %s9, 2
      %v3453 = vld [vmem:[%s3452] sm:$0x3]
      %v3454 = vunpack.c.l.b16 %v2947
      %v3455 = vunpack.c.l.b16 %v2961
      %v3456 = vunpack.c.l.b16 %v2975
      %v3457 = vunpack.c.l.b16 %v2989
      %v3458 = vunpack.c.l.b16 %v3003
      %v3459 = vunpack.c.l.b16 %v3017
      %v3460 = vunpack.c.l.b16 %v3031
      %v3461 = vunpack.c.l.b16 %v3045
      %v3462 = vunpack.c.l.b16 %v3059
      %v3463 = vunpack.c.l.b16 %v3073
      %v3464 = vunpack.c.l.b16 %v3087
      %v3465 = vunpack.c.l.b16 %v3101
      %v3466 = vunpack.c.l.b16 %v3115
      %v3467 = vunpack.c.l.b16 %v3129
      %v3468 = vunpack.c.l.b16 %v3143
      %v3469 = vunpack.c.l.b16 %v3157
      %v3470 = vpack.c.b16 %v3454, %v1821
      %v3471 = vpack.c.b16 %v3455, %v1823
      %v3472 = vpack.c.b16 %v3456, %v1825
      %v3473 = vpack.c.b16 %v3457, %v1827
      %v3474 = vpack.c.b16 %v3458, %v1829
      %v3475 = vpack.c.b16 %v3459, %v1831
      %v3476 = vpack.c.b16 %v3460, %v1833
      %v3477 = vpack.c.b16 %v3461, %v1835
      %v3478 = vpack.c.b16 %v3462, %v1837
      %v3479 = vpack.c.b16 %v3463, %v1839
      %v3480 = vpack.c.b16 %v3464, %v1841
      %v3481 = vpack.c.b16 %v3465, %v1843
      %v3482 = vpack.c.b16 %v3466, %v1845
      %v3483 = vpack.c.b16 %v3467, %v1847
      %v3484 = vpack.c.b16 %v3468, %v1849
      %v3485 = vpack.c.b16 %v3469, %v1851
      %v3487 = vsel %vm1868, %v3470, 0
      %v3490 = vsel %vm1868, %v3471, 0
      %v3493 = vsel %vm1868, %v3472, 0
      %v3496 = vsel %vm1868, %v3473, 0
      %v3499 = vsel %vm1868, %v3474, 0
      %v3502 = vsel %vm1868, %v3475, 0
      %v3505 = vsel %vm1868, %v3476, 0
      %v3508 = vsel %vm1868, %v3477, 0
      %v3511 = vsel %vm1868, %v3478, 0
      %v3514 = vsel %vm1868, %v3479, 0
      %v3517 = vsel %vm1868, %v3480, 0
      %v3520 = vsel %vm1868, %v3481, 0
      %v3523 = vsel %vm1868, %v3482, 0
      %v3526 = vsel %vm1868, %v3483, 0
      %v3529 = vsel %vm1868, %v3484, 0
      %v3532 = vsel %vm1868, %v3485, 0
      %v3535 = vsel %vm1917, %v3453, 0
      %3537 = vmatprep.subr.bf16.mxu0 0
      %3538 = vmatpush1.bf16.msra.mxu0 %v3535
      %3539 = vmatprep.subr.bf16.mxu0 0
      %3540 = vmatpush1.bf16.msra.mxu0 0
      %3541 = vmatprep.subr.bf16.mxu0 0
      %3542 = vmatpush1.bf16.msra.mxu0 0
      %3543 = vmatprep.subr.bf16.mxu0 0
      %3544 = vmatpush1.bf16.msra.mxu0 0
      %3545 = vmatprep.subr.bf16.mxu0 0
      %3546 = vmatpush1.bf16.msra.mxu0 0
      %3547 = vmatprep.subr.bf16.mxu0 0
      %3548 = vmatpush1.bf16.msra.mxu0 0
      %3549 = vmatprep.subr.bf16.mxu0 0
      %3550 = vmatpush1.bf16.msra.mxu0 0
      %3551 = vmatprep.subr.bf16.mxu0 0
      %3552 = vmatpush1.bf16.msra.mxu0 0
      %3553 = vmatprep.subr.bf16.mxu0 0
      %3554 = vmatpush1.bf16.msra.mxu0 0
      %3555 = vmatprep.subr.bf16.mxu0 0
      %3556 = vmatpush1.bf16.msra.mxu0 0
      %3557 = vmatprep.subr.bf16.mxu0 0
      %3558 = vmatpush1.bf16.msra.mxu0 0
      %3559 = vmatprep.subr.bf16.mxu0 0
      %3560 = vmatpush1.bf16.msra.mxu0 0
      %3561 = vmatprep.subr.bf16.mxu0 0
      %3562 = vmatpush1.bf16.msra.mxu0 0
      %3563 = vmatprep.subr.bf16.mxu0 0
      %3564 = vmatpush1.bf16.msra.mxu0 0
      %3565 = vmatprep.subr.bf16.mxu0 0
      %3566 = vmatpush1.bf16.msra.mxu0 0
      %3567 = vmatprep.subr.bf16.mxu0 0
      %3568 = vmatpush1.bf16.msra.mxu0 0
      %3569 = vmatprep.mubr.bf16.mxu0 0
      %3570 = vmatmul.mubr.bf16.gmra.mrb[0].mxu0 %v3487
      %v3571 = vpop.f32.mrb[0].mxu0
      %v3572 = vadd.f32 0.0, %v3571
      %v3573 = vpop.f32.mrb[0].mxu0
      %v3574 = vpop.f32.mrb[0].mxu0
      %v3575 = vadd.f32 0.0, %v3574
      %v3576 = vpop.f32.mrb[0].mxu0
      %3577 = vmatprep.mubr.bf16.mxu0 0
      %3578 = vmatmul.mubr.bf16.gmra.mrb[0].mxu0 %v3490
      %v3579 = vpop.f32.mrb[0].mxu0
      %v3580 = vadd.f32 0.0, %v3579
      %v3581 = vpop.f32.mrb[0].mxu0
      %v3582 = vpop.f32.mrb[0].mxu0
      %v3583 = vadd.f32 0.0, %v3582
      %v3584 = vpop.f32.mrb[0].mxu0
      %3585 = vmatprep.mubr.bf16.mxu0 0
      %3586 = vmatmul.mubr.bf16.gmra.mrb[0].mxu0 %v3493
      %v3587 = vpop.f32.mrb[0].mxu0
      %v3588 = vadd.f32 0.0, %v3587
      %v3589 = vpop.f32.mrb[0].mxu0
      %v3590 = vpop.f32.mrb[0].mxu0
      %v3591 = vadd.f32 0.0, %v3590
      %v3592 = vpop.f32.mrb[0].mxu0
      %3593 = vmatprep.mubr.bf16.mxu0 0
      %3594 = vmatmul.mubr.bf16.gmra.mrb[0].mxu0 %v3496
      %v3595 = vpop.f32.mrb[0].mxu0
      %v3596 = vadd.f32 0.0, %v3595
      %v3597 = vpop.f32.mrb[0].mxu0
      %v3598 = vpop.f32.mrb[0].mxu0
      %v3599 = vadd.f32 0.0, %v3598
      %v3600 = vpop.f32.mrb[0].mxu0
      %3601 = vmatprep.mubr.bf16.mxu0 0
      %3602 = vmatmul.mubr.bf16.gmra.mrb[0].mxu0 %v3499
      %v3603 = vpop.f32.mrb[0].mxu0
      %v3604 = vadd.f32 0.0, %v3603
      %v3605 = vpop.f32.mrb[0].mxu0
      %v3606 = vpop.f32.mrb[0].mxu0
      %v3607 = vadd.f32 0.0, %v3606
      %v3608 = vpop.f32.mrb[0].mxu0
      %3609 = vmatprep.mubr.bf16.mxu0 0
      %3610 = vmatmul.mubr.bf16.gmra.mrb[0].mxu0 %v3502
      %v3611 = vpop.f32.mrb[0].mxu0
      %v3612 = vadd.f32 0.0, %v3611
      %v3613 = vpop.f32.mrb[0].mxu0
      %v3614 = vpop.f32.mrb[0].mxu0
      %v3615 = vadd.f32 0.0, %v3614
      %v3616 = vpop.f32.mrb[0].mxu0
      %3617 = vmatprep.mubr.bf16.mxu0 0
      %3618 = vmatmul.mubr.bf16.gmra.mrb[0].mxu0 %v3505
      %v3619 = vpop.f32.mrb[0].mxu0
      %v3620 = vadd.f32 0.0, %v3619
      %v3621 = vpop.f32.mrb[0].mxu0
      %v3622 = vpop.f32.mrb[0].mxu0
      %v3623 = vadd.f32 0.0, %v3622
      %v3624 = vpop.f32.mrb[0].mxu0
      %3625 = vmatprep.mubr.bf16.mxu0 0
      %3626 = vmatmul.mubr.bf16.gmra.mrb[0].mxu0 %v3508
      %v3627 = vpop.f32.mrb[0].mxu0
      %v3628 = vadd.f32 0.0, %v3627
      %v3629 = vpop.f32.mrb[0].mxu0
      %v3630 = vpop.f32.mrb[0].mxu0
      %v3631 = vadd.f32 0.0, %v3630
      %v3632 = vpop.f32.mrb[0].mxu0
      %3633 = vmatprep.mubr.bf16.mxu0 0
      %3634 = vmatmul.mubr.bf16.gmra.mrb[0].mxu0 %v3511
      %v3635 = vpop.f32.mrb[0].mxu0
      %v3636 = vadd.f32 0.0, %v3635
      %v3637 = vpop.f32.mrb[0].mxu0
      %v3638 = vpop.f32.mrb[0].mxu0
      %v3639 = vadd.f32 0.0, %v3638
      %v3640 = vpop.f32.mrb[0].mxu0
      %3641 = vmatprep.mubr.bf16.mxu0 0
      %3642 = vmatmul.mubr.bf16.gmra.mrb[0].mxu0 %v3514
      %v3643 = vpop.f32.mrb[0].mxu0
      %v3644 = vadd.f32 0.0, %v3643
      %v3645 = vpop.f32.mrb[0].mxu0
      %v3646 = vpop.f32.mrb[0].mxu0
      %v3647 = vadd.f32 0.0, %v3646
      %v3648 = vpop.f32.mrb[0].mxu0
      %3649 = vmatprep.mubr.bf16.mxu0 0
      %3650 = vmatmul.mubr.bf16.gmra.mrb[0].mxu0 %v3517
      %v3651 = vpop.f32.mrb[0].mxu0
      %v3652 = vadd.f32 0.0, %v3651
      %v3653 = vpop.f32.mrb[0].mxu0
      %v3654 = vpop.f32.mrb[0].mxu0
      %v3655 = vadd.f32 0.0, %v3654
      %v3656 = vpop.f32.mrb[0].mxu0
      %3657 = vmatprep.mubr.bf16.mxu0 0
      %3658 = vmatmul.mubr.bf16.gmra.mrb[0].mxu0 %v3520
      %v3659 = vpop.f32.mrb[0].mxu0
      %v3660 = vadd.f32 0.0, %v3659
      %v3661 = vpop.f32.mrb[0].mxu0
      %v3662 = vpop.f32.mrb[0].mxu0
      %v3663 = vadd.f32 0.0, %v3662
      %v3664 = vpop.f32.mrb[0].mxu0
      %3665 = vmatprep.mubr.bf16.mxu0 0
      %3666 = vmatmul.mubr.bf16.gmra.mrb[0].mxu0 %v3523
      %v3667 = vpop.f32.mrb[0].mxu0
      %v3668 = vadd.f32 0.0, %v3667
      %v3669 = vpop.f32.mrb[0].mxu0
      %v3670 = vpop.f32.mrb[0].mxu0
      %v3671 = vadd.f32 0.0, %v3670
      %v3672 = vpop.f32.mrb[0].mxu0
      %3673 = vmatprep.mubr.bf16.mxu0 0
      %3674 = vmatmul.mubr.bf16.gmra.mrb[0].mxu0 %v3526
      %v3675 = vpop.f32.mrb[0].mxu0
      %v3676 = vadd.f32 0.0, %v3675
      %v3677 = vpop.f32.mrb[0].mxu0
      %v3678 = vpop.f32.mrb[0].mxu0
      %v3679 = vadd.f32 0.0, %v3678
      %v3680 = vpop.f32.mrb[0].mxu0
      %3681 = vmatprep.mubr.bf16.mxu0 0
      %3682 = vmatmul.mubr.bf16.gmra.mrb[0].mxu0 %v3529
      %v3683 = vpop.f32.mrb[0].mxu0
      %v3684 = vadd.f32 0.0, %v3683
      %v3685 = vpop.f32.mrb[0].mxu0
      %v3686 = vpop.f32.mrb[0].mxu0
      %v3687 = vadd.f32 0.0, %v3686
      %v3688 = vpop.f32.mrb[0].mxu0
      %3689 = vmatprep.mubr.bf16.mxu0 0
      %3690 = vmatmul.mubr.bf16.gmra.mrb[0].mxu0 %v3532
      %v3691 = vpop.f32.mrb[0].mxu0
      %v3692 = vadd.f32 0.0, %v3691
      %v3693 = vpop.f32.mrb[0].mxu0
      %v3694 = vpop.f32.mrb[0].mxu0
      %v3695 = vadd.f32 0.0, %v3694
      %v3696 = vpop.f32.mrb[0].mxu0
      %3697 = vdwg.mxu0
      %v3698 = vadd.f32 %v3420, %v3572
      %v3699 = vadd.f32 %v3421, %v3575
      %v3700 = vadd.f32 %v3422, %v3580
      %v3701 = vadd.f32 %v3423, %v3583
      %v3702 = vadd.f32 %v3424, %v3588
      %v3703 = vadd.f32 %v3425, %v3591
      %v3704 = vadd.f32 %v3426, %v3596
      %v3705 = vadd.f32 %v3427, %v3599
      %v3706 = vadd.f32 %v3428, %v3604
      %v3707 = vadd.f32 %v3429, %v3607
      %v3708 = vadd.f32 %v3430, %v3612
      %v3709 = vadd.f32 %v3431, %v3615
      %v3710 = vadd.f32 %v3432, %v3620
      %v3711 = vadd.f32 %v3433, %v3623
      %v3712 = vadd.f32 %v3434, %v3628
      %v3713 = vadd.f32 %v3435, %v3631
      %v3714 = vadd.f32 %v3436, %v3636
      %v3715 = vadd.f32 %v3437, %v3639
      %v3716 = vadd.f32 %v3438, %v3644
      %v3717 = vadd.f32 %v3439, %v3647
      %v3718 = vadd.f32 %v3440, %v3652
      %v3719 = vadd.f32 %v3441, %v3655
      %v3720 = vadd.f32 %v3442, %v3660
      %v3721 = vadd.f32 %v3443, %v3663
      %v3722 = vadd.f32 %v3444, %v3668
      %v3723 = vadd.f32 %v3445, %v3671
      %v3724 = vadd.f32 %v3446, %v3676
      %v3725 = vadd.f32 %v3447, %v3679
      %v3726 = vadd.f32 %v3448, %v3684
      %v3727 = vadd.f32 %v3449, %v3687
      %v3728 = vadd.f32 %v3450, %v3692
      %v3729 = vadd.f32 %v3451, %v3695
      %v3730 = vunpack.c.h.b16 %v1355
      %v3731 = vunpack.c.h.b16 %v1362
      %v3732 = vunpack.c.h.b16 %v1369
      %v3733 = vunpack.c.h.b16 %v1376
      %v3734 = vunpack.c.h.b16 %v1383
      %v3735 = vunpack.c.h.b16 %v1390
      %v3736 = vunpack.c.h.b16 %v1397
      %v3737 = vunpack.c.h.b16 %v1404
      %v3738 = vunpack.c.h.b16 %v1411
      %v3739 = vunpack.c.h.b16 %v1418
      %v3740 = vunpack.c.h.b16 %v1425
      %v3741 = vunpack.c.h.b16 %v1432
      %v3742 = vunpack.c.h.b16 %v1439
      %v3743 = vunpack.c.h.b16 %v1446
      %v3744 = vunpack.c.h.b16 %v1453
      %v3745 = vunpack.c.h.b16 %v1460
      %v3746 = vpack.c.b16 %v2099, %v2099
      %v3747 = vpack.c.b16 %v3730, %v3730
      %v3748 = vpack.c.b16 %v2101, %v2101
      %v3749 = vpack.c.b16 %v3731, %v3731
      %v3750 = vpack.c.b16 %v2103, %v2103
      %v3751 = vpack.c.b16 %v3732, %v3732
      %v3752 = vpack.c.b16 %v2105, %v2105
      %v3753 = vpack.c.b16 %v3733, %v3733
      %v3754 = vpack.c.b16 %v2107, %v2107
      %v3755 = vpack.c.b16 %v3734, %v3734
      %v3756 = vpack.c.b16 %v2109, %v2109
      %v3757 = vpack.c.b16 %v3735, %v3735
      %v3758 = vpack.c.b16 %v2111, %v2111
      %v3759 = vpack.c.b16 %v3736, %v3736
      %v3760 = vpack.c.b16 %v2113, %v2113
      %v3761 = vpack.c.b16 %v3737, %v3737
      %v3762 = vpack.c.b16 %v2115, %v2115
      %v3763 = vpack.c.b16 %v3738, %v3738
      %v3764 = vpack.c.b16 %v2117, %v2117
      %v3765 = vpack.c.b16 %v3739, %v3739
      %v3766 = vpack.c.b16 %v2119, %v2119
      %v3767 = vpack.c.b16 %v3740, %v3740
      %v3768 = vpack.c.b16 %v2121, %v2121
      %v3769 = vpack.c.b16 %v3741, %v3741
      %v3770 = vpack.c.b16 %v2123, %v2123
      %v3771 = vpack.c.b16 %v3742, %v3742
      %v3772 = vpack.c.b16 %v2125, %v2125
      %v3773 = vpack.c.b16 %v3743, %v3743
      %v3774 = vpack.c.b16 %v2127, %v2127
      %v3775 = vpack.c.b16 %v3744, %v3744
      %v3776 = vpack.c.b16 %v2129, %v2129
      %v3777 = vpack.c.b16 %v3745, %v3745
      %v3779 = vshrl.u32 %v3746, 16
      %v3781 = vrot.slane %v3779, 4
      %v3782 = vshll.u32 %v3746, 16
      %v3784 = vrot.slane %v3782, 5
      %v3785 = vor.u32 %v3781, %v3784
      %v3786 = vrot.slane %v3785, 4
      %v3788 = vshll.u32 %v3747, 16
      %v3790 = vrot.slane %v3788, 5
      %v3791 = vsel %vm1477, %v3786, %v3790
      %v3793 = vshrl.u32 %v3748, 16
      %v3795 = vrot.slane %v3793, 4
      %v3796 = vshll.u32 %v3748, 16
      %v3798 = vrot.slane %v3796, 5
      %v3799 = vor.u32 %v3795, %v3798
      %v3800 = vrot.slane %v3799, 4
      %v3802 = vshll.u32 %v3749, 16
      %v3804 = vrot.slane %v3802, 5
      %v3805 = vsel %vm1477, %v3800, %v3804
      %v3807 = vshrl.u32 %v3750, 16
      %v3809 = vrot.slane %v3807, 4
      %v3810 = vshll.u32 %v3750, 16
      %v3812 = vrot.slane %v3810, 5
      %v3813 = vor.u32 %v3809, %v3812
      %v3814 = vrot.slane %v3813, 4
      %v3816 = vshll.u32 %v3751, 16
      %v3818 = vrot.slane %v3816, 5
      %v3819 = vsel %vm1477, %v3814, %v3818
      %v3821 = vshrl.u32 %v3752, 16
      %v3823 = vrot.slane %v3821, 4
      %v3824 = vshll.u32 %v3752, 16
      %v3826 = vrot.slane %v3824, 5
      %v3827 = vor.u32 %v3823, %v3826
      %v3828 = vrot.slane %v3827, 4
      %v3830 = vshll.u32 %v3753, 16
      %v3832 = vrot.slane %v3830, 5
      %v3833 = vsel %vm1477, %v3828, %v3832
      %v3835 = vshrl.u32 %v3754, 16
      %v3837 = vrot.slane %v3835, 4
      %v3838 = vshll.u32 %v3754, 16
      %v3840 = vrot.slane %v3838, 5
      %v3841 = vor.u32 %v3837, %v3840
      %v3842 = vrot.slane %v3841, 4
      %v3844 = vshll.u32 %v3755, 16
      %v3846 = vrot.slane %v3844, 5
      %v3847 = vsel %vm1477, %v3842, %v3846
      %v3849 = vshrl.u32 %v3756, 16
      %v3851 = vrot.slane %v3849, 4
      %v3852 = vshll.u32 %v3756, 16
      %v3854 = vrot.slane %v3852, 5
      %v3855 = vor.u32 %v3851, %v3854
      %v3856 = vrot.slane %v3855, 4
      %v3858 = vshll.u32 %v3757, 16
      %v3860 = vrot.slane %v3858, 5
      %v3861 = vsel %vm1477, %v3856, %v3860
      %v3863 = vshrl.u32 %v3758, 16
      %v3865 = vrot.slane %v3863, 4
      %v3866 = vshll.u32 %v3758, 16
      %v3868 = vrot.slane %v3866, 5
      %v3869 = vor.u32 %v3865, %v3868
      %v3870 = vrot.slane %v3869, 4
      %v3872 = vshll.u32 %v3759, 16
      %v3874 = vrot.slane %v3872, 5
      %v3875 = vsel %vm1477, %v3870, %v3874
      %v3877 = vshrl.u32 %v3760, 16
      %v3879 = vrot.slane %v3877, 4
      %v3880 = vshll.u32 %v3760, 16
      %v3882 = vrot.slane %v3880, 5
      %v3883 = vor.u32 %v3879, %v3882
      %v3884 = vrot.slane %v3883, 4
      %v3886 = vshll.u32 %v3761, 16
      %v3888 = vrot.slane %v3886, 5
      %v3889 = vsel %vm1477, %v3884, %v3888
      %v3891 = vshrl.u32 %v3762, 16
      %v3893 = vrot.slane %v3891, 4
      %v3894 = vshll.u32 %v3762, 16
      %v3896 = vrot.slane %v3894, 5
      %v3897 = vor.u32 %v3893, %v3896
      %v3898 = vrot.slane %v3897, 4
      %v3900 = vshll.u32 %v3763, 16
      %v3902 = vrot.slane %v3900, 5
      %v3903 = vsel %vm1477, %v3898, %v3902
      %v3905 = vshrl.u32 %v3764, 16
      %v3907 = vrot.slane %v3905, 4
      %v3908 = vshll.u32 %v3764, 16
      %v3910 = vrot.slane %v3908, 5
      %v3911 = vor.u32 %v3907, %v3910
      %v3912 = vrot.slane %v3911, 4
      %v3914 = vshll.u32 %v3765, 16
      %v3916 = vrot.slane %v3914, 5
      %v3917 = vsel %vm1477, %v3912, %v3916
      %v3919 = vshrl.u32 %v3766, 16
      %v3921 = vrot.slane %v3919, 4
      %v3922 = vshll.u32 %v3766, 16
      %v3924 = vrot.slane %v3922, 5
      %v3925 = vor.u32 %v3921, %v3924
      %v3926 = vrot.slane %v3925, 4
      %v3928 = vshll.u32 %v3767, 16
      %v3930 = vrot.slane %v3928, 5
      %v3931 = vsel %vm1477, %v3926, %v3930
      %v3933 = vshrl.u32 %v3768, 16
      %v3935 = vrot.slane %v3933, 4
      %v3936 = vshll.u32 %v3768, 16
      %v3938 = vrot.slane %v3936, 5
      %v3939 = vor.u32 %v3935, %v3938
      %v3940 = vrot.slane %v3939, 4
      %v3942 = vshll.u32 %v3769, 16
      %v3944 = vrot.slane %v3942, 5
      %v3945 = vsel %vm1477, %v3940, %v3944
      %v3947 = vshrl.u32 %v3770, 16
      %v3949 = vrot.slane %v3947, 4
      %v3950 = vshll.u32 %v3770, 16
      %v3952 = vrot.slane %v3950, 5
      %v3953 = vor.u32 %v3949, %v3952
      %v3954 = vrot.slane %v3953, 4
      %v3956 = vshll.u32 %v3771, 16
      %v3958 = vrot.slane %v3956, 5
      %v3959 = vsel %vm1477, %v3954, %v3958
      %v3961 = vshrl.u32 %v3772, 16
      %v3963 = vrot.slane %v3961, 4
      %v3964 = vshll.u32 %v3772, 16
      %v3966 = vrot.slane %v3964, 5
      %v3967 = vor.u32 %v3963, %v3966
      %v3968 = vrot.slane %v3967, 4
      %v3970 = vshll.u32 %v3773, 16
      %v3972 = vrot.slane %v3970, 5
      %v3973 = vsel %vm1477, %v3968, %v3972
      %v3975 = vshrl.u32 %v3774, 16
      %v3977 = vrot.slane %v3975, 4
      %v3978 = vshll.u32 %v3774, 16
      %v3980 = vrot.slane %v3978, 5
      %v3981 = vor.u32 %v3977, %v3980
      %v3982 = vrot.slane %v3981, 4
      %v3984 = vshll.u32 %v3775, 16
      %v3986 = vrot.slane %v3984, 5
      %v3987 = vsel %vm1477, %v3982, %v3986
      %v3989 = vshrl.u32 %v3776, 16
      %v3991 = vrot.slane %v3989, 4
      %v3992 = vshll.u32 %v3776, 16
      %v3994 = vrot.slane %v3992, 5
      %v3995 = vor.u32 %v3991, %v3994
      %v3996 = vrot.slane %v3995, 4
      %v3998 = vshll.u32 %v3777, 16
      %v4000 = vrot.slane %v3998, 5
      %v4001 = vsel %vm1477, %v3996, %v4000
      %v4003 = vshrl.u32 %v1491, 16
      %v4005 = vrot.slane %v4003, 4
      %v4006 = vshll.u32 %v1491, 16
      %v4008 = vrot.slane %v4006, 5
      %v4009 = vor.u32 %v4005, %v4008
      %v4010 = vrot.slane %v4009, 4
      %v4012 = vshll.u32 %v1733, 16
      %v4014 = vrot.slane %v4012, 5
      %v4015 = vsel %vm1477, %v4010, %v4014
      %v4017 = vshrl.u32 %v1505, 16
      %v4019 = vrot.slane %v4017, 4
      %v4020 = vshll.u32 %v1505, 16
      %v4022 = vrot.slane %v4020, 5
      %v4023 = vor.u32 %v4019, %v4022
      %v4024 = vrot.slane %v4023, 4
      %v4026 = vshll.u32 %v1737, 16
      %v4028 = vrot.slane %v4026, 5
      %v4029 = vsel %vm1477, %v4024, %v4028
      %v4031 = vshrl.u32 %v1519, 16
      %v4033 = vrot.slane %v4031, 4
      %v4034 = vshll.u32 %v1519, 16
      %v4036 = vrot.slane %v4034, 5
      %v4037 = vor.u32 %v4033, %v4036
      %v4038 = vrot.slane %v4037, 4
      %v4040 = vshll.u32 %v1741, 16
      %v4042 = vrot.slane %v4040, 5
      %v4043 = vsel %vm1477, %v4038, %v4042
      %v4045 = vshrl.u32 %v1533, 16
      %v4047 = vrot.slane %v4045, 4
      %v4048 = vshll.u32 %v1533, 16
      %v4050 = vrot.slane %v4048, 5
      %v4051 = vor.u32 %v4047, %v4050
      %v4052 = vrot.slane %v4051, 4
      %v4054 = vshll.u32 %v1745, 16
      %v4056 = vrot.slane %v4054, 5
      %v4057 = vsel %vm1477, %v4052, %v4056
      %v4059 = vshrl.u32 %v1547, 16
      %v4061 = vrot.slane %v4059, 4
      %v4062 = vshll.u32 %v1547, 16
      %v4064 = vrot.slane %v4062, 5
      %v4065 = vor.u32 %v4061, %v4064
      %v4066 = vrot.slane %v4065, 4
      %v4068 = vshll.u32 %v1749, 16
      %v4070 = vrot.slane %v4068, 5
      %v4071 = vsel %vm1477, %v4066, %v4070
      %v4073 = vshrl.u32 %v1561, 16
      %v4075 = vrot.slane %v4073, 4
      %v4076 = vshll.u32 %v1561, 16
      %v4078 = vrot.slane %v4076, 5
      %v4079 = vor.u32 %v4075, %v4078
      %v4080 = vrot.slane %v4079, 4
      %v4082 = vshll.u32 %v1753, 16
      %v4084 = vrot.slane %v4082, 5
      %v4085 = vsel %vm1477, %v4080, %v4084
      %v4087 = vshrl.u32 %v1575, 16
      %v4089 = vrot.slane %v4087, 4
      %v4090 = vshll.u32 %v1575, 16
      %v4092 = vrot.slane %v4090, 5
      %v4093 = vor.u32 %v4089, %v4092
      %v4094 = vrot.slane %v4093, 4
      %v4096 = vshll.u32 %v1757, 16
      %v4098 = vrot.slane %v4096, 5
      %v4099 = vsel %vm1477, %v4094, %v4098
      %v4101 = vshrl.u32 %v1589, 16
      %v4103 = vrot.slane %v4101, 4
      %v4104 = vshll.u32 %v1589, 16
      %v4106 = vrot.slane %v4104, 5
      %v4107 = vor.u32 %v4103, %v4106
      %v4108 = vrot.slane %v4107, 4
      %v4110 = vshll.u32 %v1761, 16
      %v4112 = vrot.slane %v4110, 5
      %v4113 = vsel %vm1477, %v4108, %v4112
      %v4115 = vshrl.u32 %v1603, 16
      %v4117 = vrot.slane %v4115, 4
      %v4118 = vshll.u32 %v1603, 16
      %v4120 = vrot.slane %v4118, 5
      %v4121 = vor.u32 %v4117, %v4120
      %v4122 = vrot.slane %v4121, 4
      %v4124 = vshll.u32 %v1765, 16
      %v4126 = vrot.slane %v4124, 5
      %v4127 = vsel %vm1477, %v4122, %v4126
      %v4129 = vshrl.u32 %v1617, 16
      %v4131 = vrot.slane %v4129, 4
      %v4132 = vshll.u32 %v1617, 16
      %v4134 = vrot.slane %v4132, 5
      %v4135 = vor.u32 %v4131, %v4134
      %v4136 = vrot.slane %v4135, 4
      %v4138 = vshll.u32 %v1769, 16
      %v4140 = vrot.slane %v4138, 5
      %v4141 = vsel %vm1477, %v4136, %v4140
      %v4143 = vshrl.u32 %v1631, 16
      %v4145 = vrot.slane %v4143, 4
      %v4146 = vshll.u32 %v1631, 16
      %v4148 = vrot.slane %v4146, 5
      %v4149 = vor.u32 %v4145, %v4148
      %v4150 = vrot.slane %v4149, 4
      %v4152 = vshll.u32 %v1773, 16
      %v4154 = vrot.slane %v4152, 5
      %v4155 = vsel %vm1477, %v4150, %v4154
      %v4157 = vshrl.u32 %v1645, 16
      %v4159 = vrot.slane %v4157, 4
      %v4160 = vshll.u32 %v1645, 16
      %v4162 = vrot.slane %v4160, 5
      %v4163 = vor.u32 %v4159, %v4162
      %v4164 = vrot.slane %v4163, 4
      %v4166 = vshll.u32 %v1777, 16
      %v4168 = vrot.slane %v4166, 5
      %v4169 = vsel %vm1477, %v4164, %v4168
      %v4171 = vshrl.u32 %v1659, 16
      %v4173 = vrot.slane %v4171, 4
      %v4174 = vshll.u32 %v1659, 16
      %v4176 = vrot.slane %v4174, 5
      %v4177 = vor.u32 %v4173, %v4176
      %v4178 = vrot.slane %v4177, 4
      %v4180 = vshll.u32 %v1781, 16
      %v4182 = vrot.slane %v4180, 5
      %v4183 = vsel %vm1477, %v4178, %v4182
      %v4185 = vshrl.u32 %v1673, 16
      %v4187 = vrot.slane %v4185, 4
      %v4188 = vshll.u32 %v1673, 16
      %v4190 = vrot.slane %v4188, 5
      %v4191 = vor.u32 %v4187, %v4190
      %v4192 = vrot.slane %v4191, 4
      %v4194 = vshll.u32 %v1785, 16
      %v4196 = vrot.slane %v4194, 5
      %v4197 = vsel %vm1477, %v4192, %v4196
      %v4199 = vshrl.u32 %v1687, 16
      %v4201 = vrot.slane %v4199, 4
      %v4202 = vshll.u32 %v1687, 16
      %v4204 = vrot.slane %v4202, 5
      %v4205 = vor.u32 %v4201, %v4204
      %v4206 = vrot.slane %v4205, 4
      %v4208 = vshll.u32 %v1789, 16
      %v4210 = vrot.slane %v4208, 5
      %v4211 = vsel %vm1477, %v4206, %v4210
      %v4213 = vshrl.u32 %v1701, 16
      %v4215 = vrot.slane %v4213, 4
      %v4216 = vshll.u32 %v1701, 16
      %v4218 = vrot.slane %v4216, 5
      %v4219 = vor.u32 %v4215, %v4218
      %v4220 = vrot.slane %v4219, 4
      %v4222 = vshll.u32 %v1793, 16
      %v4224 = vrot.slane %v4222, 5
      %v4225 = vsel %vm1477, %v4220, %v4224
      %s4226 = scalar_lea.vmem %s8, 4
      %v4227 = vld [vmem:[%s4226] sm:$0x3]
      %v4228 = vunpack.c.l.b16 %v3791
      %v4229 = vunpack.c.l.b16 %v3805
      %v4230 = vunpack.c.l.b16 %v3819
      %v4231 = vunpack.c.l.b16 %v3833
      %v4232 = vunpack.c.l.b16 %v3847
      %v4233 = vunpack.c.l.b16 %v3861
      %v4234 = vunpack.c.l.b16 %v3875
      %v4235 = vunpack.c.l.b16 %v3889
      %v4236 = vunpack.c.l.b16 %v3903
      %v4237 = vunpack.c.l.b16 %v3917
      %v4238 = vunpack.c.l.b16 %v3931
      %v4239 = vunpack.c.l.b16 %v3945
      %v4240 = vunpack.c.l.b16 %v3959
      %v4241 = vunpack.c.l.b16 %v3973
      %v4242 = vunpack.c.l.b16 %v3987
      %v4243 = vunpack.c.l.b16 %v4001
      %v4244 = vpack.c.b16 %v4228, %v3161
      %v4245 = vpack.c.b16 %v4229, %v3163
      %v4246 = vpack.c.b16 %v4230, %v3165
      %v4247 = vpack.c.b16 %v4231, %v3167
      %v4248 = vpack.c.b16 %v4232, %v3169
      %v4249 = vpack.c.b16 %v4233, %v3171
      %v4250 = vpack.c.b16 %v4234, %v3173
      %v4251 = vpack.c.b16 %v4235, %v3175
      %v4252 = vpack.c.b16 %v4236, %v3177
      %v4253 = vpack.c.b16 %v4237, %v3179
      %v4254 = vpack.c.b16 %v4238, %v3181
      %v4255 = vpack.c.b16 %v4239, %v3183
      %v4256 = vpack.c.b16 %v4240, %v3185
      %v4257 = vpack.c.b16 %v4241, %v3187
      %v4258 = vpack.c.b16 %v4242, %v3189
      %v4259 = vpack.c.b16 %v4243, %v3191
      %v4261 = vsel %vm1868, %v4244, 0
      %v4264 = vsel %vm1868, %v4245, 0
      %v4267 = vsel %vm1868, %v4246, 0
      %v4270 = vsel %vm1868, %v4247, 0
      %v4273 = vsel %vm1868, %v4248, 0
      %v4276 = vsel %vm1868, %v4249, 0
      %v4279 = vsel %vm1868, %v4250, 0
      %v4282 = vsel %vm1868, %v4251, 0
      %v4285 = vsel %vm1868, %v4252, 0
      %v4288 = vsel %vm1868, %v4253, 0
      %v4291 = vsel %vm1868, %v4254, 0
      %v4294 = vsel %vm1868, %v4255, 0
      %v4297 = vsel %vm1868, %v4256, 0
      %v4300 = vsel %vm1868, %v4257, 0
      %v4303 = vsel %vm1868, %v4258, 0
      %v4306 = vsel %vm1868, %v4259, 0
      %v4309 = vsel %vm1917, %v4227, 0
      %4311 = vmatprep.subr.bf16.mxu0 0
      %4312 = vmatpush1.bf16.msra.mxu0 %v4309
      %4313 = vmatprep.subr.bf16.mxu0 0
      %4314 = vmatpush1.bf16.msra.mxu0 0
      %4315 = vmatprep.subr.bf16.mxu0 0
      %4316 = vmatpush1.bf16.msra.mxu0 0
      %4317 = vmatprep.subr.bf16.mxu0 0
      %4318 = vmatpush1.bf16.msra.mxu0 0
      %4319 = vmatprep.subr.bf16.mxu0 0
      %4320 = vmatpush1.bf16.msra.mxu0 0
      %4321 = vmatprep.subr.bf16.mxu0 0
      %4322 = vmatpush1.bf16.msra.mxu0 0
      %4323 = vmatprep.subr.bf16.mxu0 0
      %4324 = vmatpush1.bf16.msra.mxu0 0
      %4325 = vmatprep.subr.bf16.mxu0 0
      %4326 = vmatpush1.bf16.msra.mxu0 0
      %4327 = vmatprep.subr.bf16.mxu0 0
      %4328 = vmatpush1.bf16.msra.mxu0 0
      %4329 = vmatprep.subr.bf16.mxu0 0
      %4330 = vmatpush1.bf16.msra.mxu0 0
      %4331 = vmatprep.subr.bf16.mxu0 0
      %4332 = vmatpush1.bf16.msra.mxu0 0
      %4333 = vmatprep.subr.bf16.mxu0 0
      %4334 = vmatpush1.bf16.msra.mxu0 0
      %4335 = vmatprep.subr.bf16.mxu0 0
      %4336 = vmatpush1.bf16.msra.mxu0 0
      %4337 = vmatprep.subr.bf16.mxu0 0
      %4338 = vmatpush1.bf16.msra.mxu0 0
      %4339 = vmatprep.subr.bf16.mxu0 0
      %4340 = vmatpush1.bf16.msra.mxu0 0
      %4341 = vmatprep.subr.bf16.mxu0 0
      %4342 = vmatpush1.bf16.msra.mxu0 0
      %4343 = vmatprep.mubr.bf16.mxu0 0
      %4344 = vmatmul.mubr.bf16.gmra.mrb[0].mxu0 %v4261
      %v4345 = vpop.f32.mrb[0].mxu0
      %v4346 = vadd.f32 0.0, %v4345
      %v4347 = vpop.f32.mrb[0].mxu0
      %v4348 = vpop.f32.mrb[0].mxu0
      %v4349 = vadd.f32 0.0, %v4348
      %v4350 = vpop.f32.mrb[0].mxu0
      %4351 = vmatprep.mubr.bf16.mxu0 0
      %4352 = vmatmul.mubr.bf16.gmra.mrb[0].mxu0 %v4264
      %v4353 = vpop.f32.mrb[0].mxu0
      %v4354 = vadd.f32 0.0, %v4353
      %v4355 = vpop.f32.mrb[0].mxu0
      %v4356 = vpop.f32.mrb[0].mxu0
      %v4357 = vadd.f32 0.0, %v4356
      %v4358 = vpop.f32.mrb[0].mxu0
      %4359 = vmatprep.mubr.bf16.mxu0 0
      %4360 = vmatmul.mubr.bf16.gmra.mrb[0].mxu0 %v4267
      %v4361 = vpop.f32.mrb[0].mxu0
      %v4362 = vadd.f32 0.0, %v4361
      %v4363 = vpop.f32.mrb[0].mxu0
      %v4364 = vpop.f32.mrb[0].mxu0
      %v4365 = vadd.f32 0.0, %v4364
      %v4366 = vpop.f32.mrb[0].mxu0
      %4367 = vmatprep.mubr.bf16.mxu0 0
      %4368 = vmatmul.mubr.bf16.gmra.mrb[0].mxu0 %v4270
      %v4369 = vpop.f32.mrb[0].mxu0
      %v4370 = vadd.f32 0.0, %v4369
      %v4371 = vpop.f32.mrb[0].mxu0
      %v4372 = vpop.f32.mrb[0].mxu0
      %v4373 = vadd.f32 0.0, %v4372
      %v4374 = vpop.f32.mrb[0].mxu0
      %4375 = vmatprep.mubr.bf16.mxu0 0
      %4376 = vmatmul.mubr.bf16.gmra.mrb[0].mxu0 %v4273
      %v4377 = vpop.f32.mrb[0].mxu0
      %v4378 = vadd.f32 0.0, %v4377
      %v4379 = vpop.f32.mrb[0].mxu0
      %v4380 = vpop.f32.mrb[0].mxu0
      %v4381 = vadd.f32 0.0, %v4380
      %v4382 = vpop.f32.mrb[0].mxu0
      %4383 = vmatprep.mubr.bf16.mxu0 0
      %4384 = vmatmul.mubr.bf16.gmra.mrb[0].mxu0 %v4276
      %v4385 = vpop.f32.mrb[0].mxu0
      %v4386 = vadd.f32 0.0, %v4385
      %v4387 = vpop.f32.mrb[0].mxu0
      %v4388 = vpop.f32.mrb[0].mxu0
      %v4389 = vadd.f32 0.0, %v4388
      %v4390 = vpop.f32.mrb[0].mxu0
      %4391 = vmatprep.mubr.bf16.mxu0 0
      %4392 = vmatmul.mubr.bf16.gmra.mrb[0].mxu0 %v4279
      %v4393 = vpop.f32.mrb[0].mxu0
      %v4394 = vadd.f32 0.0, %v4393
      %v4395 = vpop.f32.mrb[0].mxu0
      %v4396 = vpop.f32.mrb[0].mxu0
      %v4397 = vadd.f32 0.0, %v4396
      %v4398 = vpop.f32.mrb[0].mxu0
      %4399 = vmatprep.mubr.bf16.mxu0 0
      %4400 = vmatmul.mubr.bf16.gmra.mrb[0].mxu0 %v4282
      %v4401 = vpop.f32.mrb[0].mxu0
      %v4402 = vadd.f32 0.0, %v4401
      %v4403 = vpop.f32.mrb[0].mxu0
      %v4404 = vpop.f32.mrb[0].mxu0
      %v4405 = vadd.f32 0.0, %v4404
      %v4406 = vpop.f32.mrb[0].mxu0
      %4407 = vmatprep.mubr.bf16.mxu0 0
      %4408 = vmatmul.mubr.bf16.gmra.mrb[0].mxu0 %v4285
      %v4409 = vpop.f32.mrb[0].mxu0
      %v4410 = vadd.f32 0.0, %v4409
      %v4411 = vpop.f32.mrb[0].mxu0
      %v4412 = vpop.f32.mrb[0].mxu0
      %v4413 = vadd.f32 0.0, %v4412
      %v4414 = vpop.f32.mrb[0].mxu0
      %4415 = vmatprep.mubr.bf16.mxu0 0
      %4416 = vmatmul.mubr.bf16.gmra.mrb[0].mxu0 %v4288
      %v4417 = vpop.f32.mrb[0].mxu0
      %v4418 = vadd.f32 0.0, %v4417
      %v4419 = vpop.f32.mrb[0].mxu0
      %v4420 = vpop.f32.mrb[0].mxu0
      %v4421 = vadd.f32 0.0, %v4420
      %v4422 = vpop.f32.mrb[0].mxu0
      %4423 = vmatprep.mubr.bf16.mxu0 0
      %4424 = vmatmul.mubr.bf16.gmra.mrb[0].mxu0 %v4291
      %v4425 = vpop.f32.mrb[0].mxu0
      %v4426 = vadd.f32 0.0, %v4425
      %v4427 = vpop.f32.mrb[0].mxu0
      %v4428 = vpop.f32.mrb[0].mxu0
      %v4429 = vadd.f32 0.0, %v4428
      %v4430 = vpop.f32.mrb[0].mxu0
      %4431 = vmatprep.mubr.bf16.mxu0 0
      %4432 = vmatmul.mubr.bf16.gmra.mrb[0].mxu0 %v4294
      %v4433 = vpop.f32.mrb[0].mxu0
      %v4434 = vadd.f32 0.0, %v4433
      %v4435 = vpop.f32.mrb[0].mxu0
      %v4436 = vpop.f32.mrb[0].mxu0
      %v4437 = vadd.f32 0.0, %v4436
      %v4438 = vpop.f32.mrb[0].mxu0
      %4439 = vmatprep.mubr.bf16.mxu0 0
      %4440 = vmatmul.mubr.bf16.gmra.mrb[0].mxu0 %v4297
      %v4441 = vpop.f32.mrb[0].mxu0
      %v4442 = vadd.f32 0.0, %v4441
      %v4443 = vpop.f32.mrb[0].mxu0
      %v4444 = vpop.f32.mrb[0].mxu0
      %v4445 = vadd.f32 0.0, %v4444
      %v4446 = vpop.f32.mrb[0].mxu0
      %4447 = vmatprep.mubr.bf16.mxu0 0
      %4448 = vmatmul.mubr.bf16.gmra.mrb[0].mxu0 %v4300
      %v4449 = vpop.f32.mrb[0].mxu0
      %v4450 = vadd.f32 0.0, %v4449
      %v4451 = vpop.f32.mrb[0].mxu0
      %v4452 = vpop.f32.mrb[0].mxu0
      %v4453 = vadd.f32 0.0, %v4452
      %v4454 = vpop.f32.mrb[0].mxu0
      %4455 = vmatprep.mubr.bf16.mxu0 0
      %4456 = vmatmul.mubr.bf16.gmra.mrb[0].mxu0 %v4303
      %v4457 = vpop.f32.mrb[0].mxu0
      %v4458 = vadd.f32 0.0, %v4457
      %v4459 = vpop.f32.mrb[0].mxu0
      %v4460 = vpop.f32.mrb[0].mxu0
      %v4461 = vadd.f32 0.0, %v4460
      %v4462 = vpop.f32.mrb[0].mxu0
      %4463 = vmatprep.mubr.bf16.mxu0 0
      %4464 = vmatmul.mubr.bf16.gmra.mrb[0].mxu0 %v4306
      %v4465 = vpop.f32.mrb[0].mxu0
      %v4466 = vadd.f32 0.0, %v4465
      %v4467 = vpop.f32.mrb[0].mxu0
      %v4468 = vpop.f32.mrb[0].mxu0
      %v4469 = vadd.f32 0.0, %v4468
      %v4470 = vpop.f32.mrb[0].mxu0
      %4471 = vdwg.mxu0
      %v4472 = vadd.f32 %v3698, %v4346
      %v4473 = vadd.f32 %v3699, %v4349
      %v4474 = vadd.f32 %v3700, %v4354
      %v4475 = vadd.f32 %v3701, %v4357
      %v4476 = vadd.f32 %v3702, %v4362
      %v4477 = vadd.f32 %v3703, %v4365
      %v4478 = vadd.f32 %v3704, %v4370
      %v4479 = vadd.f32 %v3705, %v4373
      %v4480 = vadd.f32 %v3706, %v4378
      %v4481 = vadd.f32 %v3707, %v4381
      %v4482 = vadd.f32 %v3708, %v4386
      %v4483 = vadd.f32 %v3709, %v4389
      %v4484 = vadd.f32 %v3710, %v4394
      %v4485 = vadd.f32 %v3711, %v4397
      %v4486 = vadd.f32 %v3712, %v4402
      %v4487 = vadd.f32 %v3713, %v4405
      %v4488 = vadd.f32 %v3714, %v4410
      %v4489 = vadd.f32 %v3715, %v4413
      %v4490 = vadd.f32 %v3716, %v4418
      %v4491 = vadd.f32 %v3717, %v4421
      %v4492 = vadd.f32 %v3718, %v4426
      %v4493 = vadd.f32 %v3719, %v4429
      %v4494 = vadd.f32 %v3720, %v4434
      %v4495 = vadd.f32 %v3721, %v4437
      %v4496 = vadd.f32 %v3722, %v4442
      %v4497 = vadd.f32 %v3723, %v4445
      %v4498 = vadd.f32 %v3724, %v4450
      %v4499 = vadd.f32 %v3725, %v4453
      %v4500 = vadd.f32 %v3726, %v4458
      %v4501 = vadd.f32 %v3727, %v4461
      %v4502 = vadd.f32 %v3728, %v4466
      %v4503 = vadd.f32 %v3729, %v4469
      %s4504 = scalar_lea.vmem %s9, 4
      %v4505 = vld [vmem:[%s4504] sm:$0x3]
      %v4506 = vunpack.c.l.b16 %v4015
      %v4507 = vunpack.c.l.b16 %v4029
      %v4508 = vunpack.c.l.b16 %v4043
      %v4509 = vunpack.c.l.b16 %v4057
      %v4510 = vunpack.c.l.b16 %v4071
      %v4511 = vunpack.c.l.b16 %v4085
      %v4512 = vunpack.c.l.b16 %v4099
      %v4513 = vunpack.c.l.b16 %v4113
      %v4514 = vunpack.c.l.b16 %v4127
      %v4515 = vunpack.c.l.b16 %v4141
      %v4516 = vunpack.c.l.b16 %v4155
      %v4517 = vunpack.c.l.b16 %v4169
      %v4518 = vunpack.c.l.b16 %v4183
      %v4519 = vunpack.c.l.b16 %v4197
      %v4520 = vunpack.c.l.b16 %v4211
      %v4521 = vunpack.c.l.b16 %v4225
      %v4522 = vpack.c.b16 %v4506, %v3454
      %v4523 = vpack.c.b16 %v4507, %v3455
      %v4524 = vpack.c.b16 %v4508, %v3456
      %v4525 = vpack.c.b16 %v4509, %v3457
      %v4526 = vpack.c.b16 %v4510, %v3458
      %v4527 = vpack.c.b16 %v4511, %v3459
      %v4528 = vpack.c.b16 %v4512, %v3460
      %v4529 = vpack.c.b16 %v4513, %v3461
      %v4530 = vpack.c.b16 %v4514, %v3462
      %v4531 = vpack.c.b16 %v4515, %v3463
      %v4532 = vpack.c.b16 %v4516, %v3464
      %v4533 = vpack.c.b16 %v4517, %v3465
      %v4534 = vpack.c.b16 %v4518, %v3466
      %v4535 = vpack.c.b16 %v4519, %v3467
      %v4536 = vpack.c.b16 %v4520, %v3468
      %v4537 = vpack.c.b16 %v4521, %v3469
      %v4539 = vsel %vm1868, %v4522, 0
      %v4542 = vsel %vm1868, %v4523, 0
      %v4545 = vsel %vm1868, %v4524, 0
      %v4548 = vsel %vm1868, %v4525, 0
      %v4551 = vsel %vm1868, %v4526, 0
      %v4554 = vsel %vm1868, %v4527, 0
      %v4557 = vsel %vm1868, %v4528, 0
      %v4560 = vsel %vm1868, %v4529, 0
      %v4563 = vsel %vm1868, %v4530, 0
      %v4566 = vsel %vm1868, %v4531, 0
      %v4569 = vsel %vm1868, %v4532, 0
      %v4572 = vsel %vm1868, %v4533, 0
      %v4575 = vsel %vm1868, %v4534, 0
      %v4578 = vsel %vm1868, %v4535, 0
      %v4581 = vsel %vm1868, %v4536, 0
      %v4584 = vsel %vm1868, %v4537, 0
      %v4587 = vsel %vm1917, %v4505, 0
      %4589 = vmatprep.subr.bf16.mxu0 0
      %4590 = vmatpush1.bf16.msra.mxu0 %v4587
      %4591 = vmatprep.subr.bf16.mxu0 0
      %4592 = vmatpush1.bf16.msra.mxu0 0
      %4593 = vmatprep.subr.bf16.mxu0 0
      %4594 = vmatpush1.bf16.msra.mxu0 0
      %4595 = vmatprep.subr.bf16.mxu0 0
      %4596 = vmatpush1.bf16.msra.mxu0 0
      %4597 = vmatprep.subr.bf16.mxu0 0
      %4598 = vmatpush1.bf16.msra.mxu0 0
      %4599 = vmatprep.subr.bf16.mxu0 0
      %4600 = vmatpush1.bf16.msra.mxu0 0
      %4601 = vmatprep.subr.bf16.mxu0 0
      %4602 = vmatpush1.bf16.msra.mxu0 0
      %4603 = vmatprep.subr.bf16.mxu0 0
      %4604 = vmatpush1.bf16.msra.mxu0 0
      %4605 = vmatprep.subr.bf16.mxu0 0
      %4606 = vmatpush1.bf16.msra.mxu0 0
      %4607 = vmatprep.subr.bf16.mxu0 0
      %4608 = vmatpush1.bf16.msra.mxu0 0
      %4609 = vmatprep.subr.bf16.mxu0 0
      %4610 = vmatpush1.bf16.msra.mxu0 0
      %4611 = vmatprep.subr.bf16.mxu0 0
      %4612 = vmatpush1.bf16.msra.mxu0 0
      %4613 = vmatprep.subr.bf16.mxu0 0
      %4614 = vmatpush1.bf16.msra.mxu0 0
      %4615 = vmatprep.subr.bf16.mxu0 0
      %4616 = vmatpush1.bf16.msra.mxu0 0
      %4617 = vmatprep.subr.bf16.mxu0 0
      %4618 = vmatpush1.bf16.msra.mxu0 0
      %4619 = vmatprep.subr.bf16.mxu0 0
      %4620 = vmatpush1.bf16.msra.mxu0 0
      %4621 = vmatprep.mubr.bf16.mxu0 0
      %4622 = vmatmul.mubr.bf16.gmra.mrb[0].mxu0 %v4539
      %v4623 = vpop.f32.mrb[0].mxu0
      %v4624 = vadd.f32 0.0, %v4623
      %v4625 = vpop.f32.mrb[0].mxu0
      %v4626 = vpop.f32.mrb[0].mxu0
      %v4627 = vadd.f32 0.0, %v4626
      %v4628 = vpop.f32.mrb[0].mxu0
      %4629 = vmatprep.mubr.bf16.mxu0 0
      %4630 = vmatmul.mubr.bf16.gmra.mrb[0].mxu0 %v4542
      %v4631 = vpop.f32.mrb[0].mxu0
      %v4632 = vadd.f32 0.0, %v4631
      %v4633 = vpop.f32.mrb[0].mxu0
      %v4634 = vpop.f32.mrb[0].mxu0
      %v4635 = vadd.f32 0.0, %v4634
      %v4636 = vpop.f32.mrb[0].mxu0
      %4637 = vmatprep.mubr.bf16.mxu0 0
      %4638 = vmatmul.mubr.bf16.gmra.mrb[0].mxu0 %v4545
      %v4639 = vpop.f32.mrb[0].mxu0
      %v4640 = vadd.f32 0.0, %v4639
      %v4641 = vpop.f32.mrb[0].mxu0
      %v4642 = vpop.f32.mrb[0].mxu0
      %v4643 = vadd.f32 0.0, %v4642
      %v4644 = vpop.f32.mrb[0].mxu0
      %4645 = vmatprep.mubr.bf16.mxu0 0
      %4646 = vmatmul.mubr.bf16.gmra.mrb[0].mxu0 %v4548
      %v4647 = vpop.f32.mrb[0].mxu0
      %v4648 = vadd.f32 0.0, %v4647
      %v4649 = vpop.f32.mrb[0].mxu0
      %v4650 = vpop.f32.mrb[0].mxu0
      %v4651 = vadd.f32 0.0, %v4650
      %v4652 = vpop.f32.mrb[0].mxu0
      %4653 = vmatprep.mubr.bf16.mxu0 0
      %4654 = vmatmul.mubr.bf16.gmra.mrb[0].mxu0 %v4551
      %v4655 = vpop.f32.mrb[0].mxu0
      %v4656 = vadd.f32 0.0, %v4655
      %v4657 = vpop.f32.mrb[0].mxu0
      %v4658 = vpop.f32.mrb[0].mxu0
      %v4659 = vadd.f32 0.0, %v4658
      %v4660 = vpop.f32.mrb[0].mxu0
      %4661 = vmatprep.mubr.bf16.mxu0 0
      %4662 = vmatmul.mubr.bf16.gmra.mrb[0].mxu0 %v4554
      %v4663 = vpop.f32.mrb[0].mxu0
      %v4664 = vadd.f32 0.0, %v4663
      %v4665 = vpop.f32.mrb[0].mxu0
      %v4666 = vpop.f32.mrb[0].mxu0
      %v4667 = vadd.f32 0.0, %v4666
      %v4668 = vpop.f32.mrb[0].mxu0
      %4669 = vmatprep.mubr.bf16.mxu0 0
      %4670 = vmatmul.mubr.bf16.gmra.mrb[0].mxu0 %v4557
      %v4671 = vpop.f32.mrb[0].mxu0
      %v4672 = vadd.f32 0.0, %v4671
      %v4673 = vpop.f32.mrb[0].mxu0
      %v4674 = vpop.f32.mrb[0].mxu0
      %v4675 = vadd.f32 0.0, %v4674
      %v4676 = vpop.f32.mrb[0].mxu0
      %4677 = vmatprep.mubr.bf16.mxu0 0
      %4678 = vmatmul.mubr.bf16.gmra.mrb[0].mxu0 %v4560
      %v4679 = vpop.f32.mrb[0].mxu0
      %v4680 = vadd.f32 0.0, %v4679
      %v4681 = vpop.f32.mrb[0].mxu0
      %v4682 = vpop.f32.mrb[0].mxu0
      %v4683 = vadd.f32 0.0, %v4682
      %v4684 = vpop.f32.mrb[0].mxu0
      %4685 = vmatprep.mubr.bf16.mxu0 0
      %4686 = vmatmul.mubr.bf16.gmra.mrb[0].mxu0 %v4563
      %v4687 = vpop.f32.mrb[0].mxu0
      %v4688 = vadd.f32 0.0, %v4687
      %v4689 = vpop.f32.mrb[0].mxu0
      %v4690 = vpop.f32.mrb[0].mxu0
      %v4691 = vadd.f32 0.0, %v4690
      %v4692 = vpop.f32.mrb[0].mxu0
      %4693 = vmatprep.mubr.bf16.mxu0 0
      %4694 = vmatmul.mubr.bf16.gmra.mrb[0].mxu0 %v4566
      %v4695 = vpop.f32.mrb[0].mxu0
      %v4696 = vadd.f32 0.0, %v4695
      %v4697 = vpop.f32.mrb[0].mxu0
      %v4698 = vpop.f32.mrb[0].mxu0
      %v4699 = vadd.f32 0.0, %v4698
      %v4700 = vpop.f32.mrb[0].mxu0
      %4701 = vmatprep.mubr.bf16.mxu0 0
      %4702 = vmatmul.mubr.bf16.gmra.mrb[0].mxu0 %v4569
      %v4703 = vpop.f32.mrb[0].mxu0
      %v4704 = vadd.f32 0.0, %v4703
      %v4705 = vpop.f32.mrb[0].mxu0
      %v4706 = vpop.f32.mrb[0].mxu0
      %v4707 = vadd.f32 0.0, %v4706
      %v4708 = vpop.f32.mrb[0].mxu0
      %4709 = vmatprep.mubr.bf16.mxu0 0
      %4710 = vmatmul.mubr.bf16.gmra.mrb[0].mxu0 %v4572
      %v4711 = vpop.f32.mrb[0].mxu0
      %v4712 = vadd.f32 0.0, %v4711
      %v4713 = vpop.f32.mrb[0].mxu0
      %v4714 = vpop.f32.mrb[0].mxu0
      %v4715 = vadd.f32 0.0, %v4714
      %v4716 = vpop.f32.mrb[0].mxu0
      %4717 = vmatprep.mubr.bf16.mxu0 0
      %4718 = vmatmul.mubr.bf16.gmra.mrb[0].mxu0 %v4575
      %v4719 = vpop.f32.mrb[0].mxu0
      %v4720 = vadd.f32 0.0, %v4719
      %v4721 = vpop.f32.mrb[0].mxu0
      %v4722 = vpop.f32.mrb[0].mxu0
      %v4723 = vadd.f32 0.0, %v4722
      %v4724 = vpop.f32.mrb[0].mxu0
      %4725 = vmatprep.mubr.bf16.mxu0 0
      %4726 = vmatmul.mubr.bf16.gmra.mrb[0].mxu0 %v4578
      %v4727 = vpop.f32.mrb[0].mxu0
      %v4728 = vadd.f32 0.0, %v4727
      %v4729 = vpop.f32.mrb[0].mxu0
      %v4730 = vpop.f32.mrb[0].mxu0
      %v4731 = vadd.f32 0.0, %v4730
      %v4732 = vpop.f32.mrb[0].mxu0
      %4733 = vmatprep.mubr.bf16.mxu0 0
      %4734 = vmatmul.mubr.bf16.gmra.mrb[0].mxu0 %v4581
      %v4735 = vpop.f32.mrb[0].mxu0
      %v4736 = vadd.f32 0.0, %v4735
      %v4737 = vpop.f32.mrb[0].mxu0
      %v4738 = vpop.f32.mrb[0].mxu0
      %v4739 = vadd.f32 0.0, %v4738
      %v4740 = vpop.f32.mrb[0].mxu0
      %4741 = vmatprep.mubr.bf16.mxu0 0
      %4742 = vmatmul.mubr.bf16.gmra.mrb[0].mxu0 %v4584
      %v4743 = vpop.f32.mrb[0].mxu0
      %v4744 = vadd.f32 0.0, %v4743
      %v4745 = vpop.f32.mrb[0].mxu0
      %v4746 = vpop.f32.mrb[0].mxu0
      %v4747 = vadd.f32 0.0, %v4746
      %v4748 = vpop.f32.mrb[0].mxu0
      %4749 = vdwg.mxu0
      %v4750 = vadd.f32 %v4472, %v4624
      %v4751 = vadd.f32 %v4473, %v4627
      %v4752 = vadd.f32 %v4474, %v4632
      %v4753 = vadd.f32 %v4475, %v4635
      %v4754 = vadd.f32 %v4476, %v4640
      %v4755 = vadd.f32 %v4477, %v4643
      %v4756 = vadd.f32 %v4478, %v4648
      %v4757 = vadd.f32 %v4479, %v4651
      %v4758 = vadd.f32 %v4480, %v4656
      %v4759 = vadd.f32 %v4481, %v4659
      %v4760 = vadd.f32 %v4482, %v4664
      %v4761 = vadd.f32 %v4483, %v4667
      %v4762 = vadd.f32 %v4484, %v4672
      %v4763 = vadd.f32 %v4485, %v4675
      %v4764 = vadd.f32 %v4486, %v4680
      %v4765 = vadd.f32 %v4487, %v4683
      %v4766 = vadd.f32 %v4488, %v4688
      %v4767 = vadd.f32 %v4489, %v4691
      %v4768 = vadd.f32 %v4490, %v4696
      %v4769 = vadd.f32 %v4491, %v4699
      %v4770 = vadd.f32 %v4492, %v4704
      %v4771 = vadd.f32 %v4493, %v4707
      %v4772 = vadd.f32 %v4494, %v4712
      %v4773 = vadd.f32 %v4495, %v4715
      %v4774 = vadd.f32 %v4496, %v4720
      %v4775 = vadd.f32 %v4497, %v4723
      %v4776 = vadd.f32 %v4498, %v4728
      %v4777 = vadd.f32 %v4499, %v4731
      %v4778 = vadd.f32 %v4500, %v4736
      %v4779 = vadd.f32 %v4501, %v4739
      %v4780 = vadd.f32 %v4502, %v4744
      %v4781 = vadd.f32 %v4503, %v4747
      %s4782 = scalar_lea.vmem %s8, 6
      %v4783 = vld [vmem:[%s4782] sm:$0x3]
      %v4785 = vunpack.c.l.b16 %v1252
      %v4786 = vunpack.c.l.b16 %v1467
      %v4787 = vpack.c.b16 %v4786, %v4785
      %v4789 = vsel %vm1868, %v4787, 0
      %v4792 = vsel %vm1917, %v4783, 0
      %4794 = vmatprep.subr.bf16.mxu0 0
      %4795 = vmatpush1.bf16.msra.mxu0 %v4792
      %4796 = vmatprep.subr.bf16.mxu0 0
      %4797 = vmatpush1.bf16.msra.mxu0 0
      %4798 = vmatprep.subr.bf16.mxu0 0
      %4799 = vmatpush1.bf16.msra.mxu0 0
      %4800 = vmatprep.subr.bf16.mxu0 0
      %4801 = vmatpush1.bf16.msra.mxu0 0
      %4802 = vmatprep.subr.bf16.mxu0 0
      %4803 = vmatpush1.bf16.msra.mxu0 0
      %4804 = vmatprep.subr.bf16.mxu0 0
      %4805 = vmatpush1.bf16.msra.mxu0 0
      %4806 = vmatprep.subr.bf16.mxu0 0
      %4807 = vmatpush1.bf16.msra.mxu0 0
      %4808 = vmatprep.subr.bf16.mxu0 0
      %4809 = vmatpush1.bf16.msra.mxu0 0
      %4810 = vmatprep.subr.bf16.mxu0 0
      %4811 = vmatpush1.bf16.msra.mxu0 0
      %4812 = vmatprep.subr.bf16.mxu0 0
      %4813 = vmatpush1.bf16.msra.mxu0 0
      %4814 = vmatprep.subr.bf16.mxu0 0
      %4815 = vmatpush1.bf16.msra.mxu0 0
      %4816 = vmatprep.subr.bf16.mxu0 0
      %4817 = vmatpush1.bf16.msra.mxu0 0
      %4818 = vmatprep.subr.bf16.mxu0 0
      %4819 = vmatpush1.bf16.msra.mxu0 0
      %4820 = vmatprep.subr.bf16.mxu0 0
      %4821 = vmatpush1.bf16.msra.mxu0 0
      %4822 = vmatprep.subr.bf16.mxu0 0
      %4823 = vmatpush1.bf16.msra.mxu0 0
      %4824 = vmatprep.subr.bf16.mxu0 0
      %4825 = vmatpush1.bf16.msra.mxu0 0
      %4826 = vmatprep.mubr.bf16.mxu0 0
      %4827 = vmatmul.mubr.bf16.gmra.mrb[0].mxu0 %v2150
      %v4828 = vpop.f32.mrb[0].mxu0
      %v4829 = vadd.f32 0.0, %v4828
      %v4830 = vpop.f32.mrb[0].mxu0
      %v4831 = vpop.f32.mrb[0].mxu0
      %v4832 = vadd.f32 0.0, %v4831
      %v4833 = vpop.f32.mrb[0].mxu0
      %4834 = vmatprep.mubr.bf16.mxu0 0
      %4835 = vmatmul.mubr.bf16.gmra.mrb[0].mxu0 %v2153
      %v4836 = vpop.f32.mrb[0].mxu0
      %v4837 = vadd.f32 0.0, %v4836
      %v4838 = vpop.f32.mrb[0].mxu0
      %v4839 = vpop.f32.mrb[0].mxu0
      %v4840 = vadd.f32 0.0, %v4839
      %v4841 = vpop.f32.mrb[0].mxu0
      %4842 = vmatprep.mubr.bf16.mxu0 0
      %4843 = vmatmul.mubr.bf16.gmra.mrb[0].mxu0 %v2156
      %v4844 = vpop.f32.mrb[0].mxu0
      %v4845 = vadd.f32 0.0, %v4844
      %v4846 = vpop.f32.mrb[0].mxu0
      %v4847 = vpop.f32.mrb[0].mxu0
      %v4848 = vadd.f32 0.0, %v4847
      %v4849 = vpop.f32.mrb[0].mxu0
      %4850 = vmatprep.mubr.bf16.mxu0 0
      %4851 = vmatmul.mubr.bf16.gmra.mrb[0].mxu0 %v2159
      %v4852 = vpop.f32.mrb[0].mxu0
      %v4853 = vadd.f32 0.0, %v4852
      %v4854 = vpop.f32.mrb[0].mxu0
      %v4855 = vpop.f32.mrb[0].mxu0
      %v4856 = vadd.f32 0.0, %v4855
      %v4857 = vpop.f32.mrb[0].mxu0
      %4858 = vmatprep.mubr.bf16.mxu0 0
      %4859 = vmatmul.mubr.bf16.gmra.mrb[0].mxu0 %v2162
      %v4860 = vpop.f32.mrb[0].mxu0
      %v4861 = vadd.f32 0.0, %v4860
      %v4862 = vpop.f32.mrb[0].mxu0
      %v4863 = vpop.f32.mrb[0].mxu0
      %v4864 = vadd.f32 0.0, %v4863
      %v4865 = vpop.f32.mrb[0].mxu0
      %4866 = vmatprep.mubr.bf16.mxu0 0
      %4867 = vmatmul.mubr.bf16.gmra.mrb[0].mxu0 %v2165
      %v4868 = vpop.f32.mrb[0].mxu0
      %v4869 = vadd.f32 0.0, %v4868
      %v4870 = vpop.f32.mrb[0].mxu0
      %v4871 = vpop.f32.mrb[0].mxu0
      %v4872 = vadd.f32 0.0, %v4871
      %v4873 = vpop.f32.mrb[0].mxu0
      %4874 = vmatprep.mubr.bf16.mxu0 0
      %4875 = vmatmul.mubr.bf16.gmra.mrb[0].mxu0 %v2168
      %v4876 = vpop.f32.mrb[0].mxu0
      %v4877 = vadd.f32 0.0, %v4876
      %v4878 = vpop.f32.mrb[0].mxu0
      %v4879 = vpop.f32.mrb[0].mxu0
      %v4880 = vadd.f32 0.0, %v4879
      %v4881 = vpop.f32.mrb[0].mxu0
      %4882 = vmatprep.mubr.bf16.mxu0 0
      %4883 = vmatmul.mubr.bf16.gmra.mrb[0].mxu0 %v2171
      %v4884 = vpop.f32.mrb[0].mxu0
      %v4885 = vadd.f32 0.0, %v4884
      %v4886 = vpop.f32.mrb[0].mxu0
      %v4887 = vpop.f32.mrb[0].mxu0
      %v4888 = vadd.f32 0.0, %v4887
      %v4889 = vpop.f32.mrb[0].mxu0
      %4890 = vmatprep.mubr.bf16.mxu0 0
      %4891 = vmatmul.mubr.bf16.gmra.mrb[0].mxu0 %v2174
      %v4892 = vpop.f32.mrb[0].mxu0
      %v4893 = vadd.f32 0.0, %v4892
      %v4894 = vpop.f32.mrb[0].mxu0
      %v4895 = vpop.f32.mrb[0].mxu0
      %v4896 = vadd.f32 0.0, %v4895
      %v4897 = vpop.f32.mrb[0].mxu0
      %4898 = vmatprep.mubr.bf16.mxu0 0
      %4899 = vmatmul.mubr.bf16.gmra.mrb[0].mxu0 %v2177
      %v4900 = vpop.f32.mrb[0].mxu0
      %v4901 = vadd.f32 0.0, %v4900
      %v4902 = vpop.f32.mrb[0].mxu0
      %v4903 = vpop.f32.mrb[0].mxu0
      %v4904 = vadd.f32 0.0, %v4903
      %v4905 = vpop.f32.mrb[0].mxu0
      %4906 = vmatprep.mubr.bf16.mxu0 0
      %4907 = vmatmul.mubr.bf16.gmra.mrb[0].mxu0 %v2180
      %v4908 = vpop.f32.mrb[0].mxu0
      %v4909 = vadd.f32 0.0, %v4908
      %v4910 = vpop.f32.mrb[0].mxu0
      %v4911 = vpop.f32.mrb[0].mxu0
      %v4912 = vadd.f32 0.0, %v4911
      %v4913 = vpop.f32.mrb[0].mxu0
      %4914 = vmatprep.mubr.bf16.mxu0 0
      %4915 = vmatmul.mubr.bf16.gmra.mrb[0].mxu0 %v2183
      %v4916 = vpop.f32.mrb[0].mxu0
      %v4917 = vadd.f32 0.0, %v4916
      %v4918 = vpop.f32.mrb[0].mxu0
      %v4919 = vpop.f32.mrb[0].mxu0
      %v4920 = vadd.f32 0.0, %v4919
      %v4921 = vpop.f32.mrb[0].mxu0
      %4922 = vmatprep.mubr.bf16.mxu0 0
      %4923 = vmatmul.mubr.bf16.gmra.mrb[0].mxu0 %v2186
      %v4924 = vpop.f32.mrb[0].mxu0
      %v4925 = vadd.f32 0.0, %v4924
      %v4926 = vpop.f32.mrb[0].mxu0
      %v4927 = vpop.f32.mrb[0].mxu0
      %v4928 = vadd.f32 0.0, %v4927
      %v4929 = vpop.f32.mrb[0].mxu0
      %4930 = vmatprep.mubr.bf16.mxu0 0
      %4931 = vmatmul.mubr.bf16.gmra.mrb[0].mxu0 %v2189
      %v4932 = vpop.f32.mrb[0].mxu0
      %v4933 = vadd.f32 0.0, %v4932
      %v4934 = vpop.f32.mrb[0].mxu0
      %v4935 = vpop.f32.mrb[0].mxu0
      %v4936 = vadd.f32 0.0, %v4935
      %v4937 = vpop.f32.mrb[0].mxu0
      %4938 = vmatprep.mubr.bf16.mxu0 0
      %4939 = vmatmul.mubr.bf16.gmra.mrb[0].mxu0 %v2192
      %v4940 = vpop.f32.mrb[0].mxu0
      %v4941 = vadd.f32 0.0, %v4940
      %v4942 = vpop.f32.mrb[0].mxu0
      %v4943 = vpop.f32.mrb[0].mxu0
      %v4944 = vadd.f32 0.0, %v4943
      %v4945 = vpop.f32.mrb[0].mxu0
      %4946 = vmatprep.mubr.bf16.mxu0 0
      %4947 = vmatmul.mubr.bf16.gmra.mrb[0].mxu0 %v4789
      %v4948 = vpop.f32.mrb[0].mxu0
      %v4949 = vadd.f32 0.0, %v4948
      %v4950 = vpop.f32.mrb[0].mxu0
      %v4951 = vpop.f32.mrb[0].mxu0
      %v4952 = vadd.f32 0.0, %v4951
      %v4953 = vpop.f32.mrb[0].mxu0
      %4954 = vdwg.mxu0
      %v4955 = vadd.f32 %v4750, %v4829
      %v4956 = vadd.f32 %v4751, %v4832
      %v4957 = vadd.f32 %v4752, %v4837
      %v4958 = vadd.f32 %v4753, %v4840
      %v4959 = vadd.f32 %v4754, %v4845
      %v4960 = vadd.f32 %v4755, %v4848
      %v4961 = vadd.f32 %v4756, %v4853
      %v4962 = vadd.f32 %v4757, %v4856
      %v4963 = vadd.f32 %v4758, %v4861
      %v4964 = vadd.f32 %v4759, %v4864
      %v4965 = vadd.f32 %v4760, %v4869
      %v4966 = vadd.f32 %v4761, %v4872
      %v4967 = vadd.f32 %v4762, %v4877
      %v4968 = vadd.f32 %v4763, %v4880
      %v4969 = vadd.f32 %v4764, %v4885
      %v4970 = vadd.f32 %v4765, %v4888
      %v4971 = vadd.f32 %v4766, %v4893
      %v4972 = vadd.f32 %v4767, %v4896
      %v4973 = vadd.f32 %v4768, %v4901
      %v4974 = vadd.f32 %v4769, %v4904
      %v4975 = vadd.f32 %v4770, %v4909
      %v4976 = vadd.f32 %v4771, %v4912
      %v4977 = vadd.f32 %v4772, %v4917
      %v4978 = vadd.f32 %v4773, %v4920
      %v4979 = vadd.f32 %v4774, %v4925
      %v4980 = vadd.f32 %v4775, %v4928
      %v4981 = vadd.f32 %v4776, %v4933
      %v4982 = vadd.f32 %v4777, %v4936
      %v4983 = vadd.f32 %v4778, %v4941
      %v4984 = vadd.f32 %v4779, %v4944
      %v4985 = vadd.f32 %v4780, %v4949
      %v4986 = vadd.f32 %v4781, %v4952
      %s4987 = scalar_lea.vmem %s9, 6
      %v4988 = vld [vmem:[%s4987] sm:$0x3]
      %v4990 = vunpack.c.l.b16 %v1339
      %v4991 = vunpack.c.l.b16 %v1715
      %v4992 = vpack.c.b16 %v4991, %v4990
      %v4994 = vsel %vm1868, %v4992, 0
      %v4997 = vsel %vm1917, %v4988, 0
      %4999 = vmatprep.subr.bf16.mxu0 0
      %5000 = vmatpush1.bf16.msra.mxu0 %v4997
      %5001 = vmatprep.subr.bf16.mxu0 0
      %5002 = vmatpush1.bf16.msra.mxu0 0
      %5003 = vmatprep.subr.bf16.mxu0 0
      %5004 = vmatpush1.bf16.msra.mxu0 0
      %5005 = vmatprep.subr.bf16.mxu0 0
      %5006 = vmatpush1.bf16.msra.mxu0 0
      %5007 = vmatprep.subr.bf16.mxu0 0
      %5008 = vmatpush1.bf16.msra.mxu0 0
      %5009 = vmatprep.subr.bf16.mxu0 0
      %5010 = vmatpush1.bf16.msra.mxu0 0
      %5011 = vmatprep.subr.bf16.mxu0 0
      %5012 = vmatpush1.bf16.msra.mxu0 0
      %5013 = vmatprep.subr.bf16.mxu0 0
      %5014 = vmatpush1.bf16.msra.mxu0 0
      %5015 = vmatprep.subr.bf16.mxu0 0
      %5016 = vmatpush1.bf16.msra.mxu0 0
      %5017 = vmatprep.subr.bf16.mxu0 0
      %5018 = vmatpush1.bf16.msra.mxu0 0
      %5019 = vmatprep.subr.bf16.mxu0 0
      %5020 = vmatpush1.bf16.msra.mxu0 0
      %5021 = vmatprep.subr.bf16.mxu0 0
      %5022 = vmatpush1.bf16.msra.mxu0 0
      %5023 = vmatprep.subr.bf16.mxu0 0
      %5024 = vmatpush1.bf16.msra.mxu0 0
      %5025 = vmatprep.subr.bf16.mxu0 0
      %5026 = vmatpush1.bf16.msra.mxu0 0
      %5027 = vmatprep.subr.bf16.mxu0 0
      %5028 = vmatpush1.bf16.msra.mxu0 0
      %5029 = vmatprep.subr.bf16.mxu0 0
      %5030 = vmatpush1.bf16.msra.mxu0 0
      %5031 = vmatprep.mubr.bf16.mxu0 0
      %5032 = vmatmul.mubr.bf16.gmra.mrb[0].mxu0 %v1873
      %v5033 = vpop.f32.mrb[0].mxu0
      %v5034 = vadd.f32 0.0, %v5033
      %v5035 = vpop.f32.mrb[0].mxu0
      %v5036 = vpop.f32.mrb[0].mxu0
      %v5037 = vadd.f32 0.0, %v5036
      %v5038 = vpop.f32.mrb[0].mxu0
      %5039 = vmatprep.mubr.bf16.mxu0 0
      %5040 = vmatmul.mubr.bf16.gmra.mrb[0].mxu0 %v1876
      %v5041 = vpop.f32.mrb[0].mxu0
      %v5042 = vadd.f32 0.0, %v5041
      %v5043 = vpop.f32.mrb[0].mxu0
      %v5044 = vpop.f32.mrb[0].mxu0
      %v5045 = vadd.f32 0.0, %v5044
      %v5046 = vpop.f32.mrb[0].mxu0
      %5047 = vmatprep.mubr.bf16.mxu0 0
      %5048 = vmatmul.mubr.bf16.gmra.mrb[0].mxu0 %v1879
      %v5049 = vpop.f32.mrb[0].mxu0
      %v5050 = vadd.f32 0.0, %v5049
      %v5051 = vpop.f32.mrb[0].mxu0
      %v5052 = vpop.f32.mrb[0].mxu0
      %v5053 = vadd.f32 0.0, %v5052
      %v5054 = vpop.f32.mrb[0].mxu0
      %5055 = vmatprep.mubr.bf16.mxu0 0
      %5056 = vmatmul.mubr.bf16.gmra.mrb[0].mxu0 %v1882
      %v5057 = vpop.f32.mrb[0].mxu0
      %v5058 = vadd.f32 0.0, %v5057
      %v5059 = vpop.f32.mrb[0].mxu0
      %v5060 = vpop.f32.mrb[0].mxu0
      %v5061 = vadd.f32 0.0, %v5060
      %v5062 = vpop.f32.mrb[0].mxu0
      %5063 = vmatprep.mubr.bf16.mxu0 0
      %5064 = vmatmul.mubr.bf16.gmra.mrb[0].mxu0 %v1885
      %v5065 = vpop.f32.mrb[0].mxu0
      %v5066 = vadd.f32 0.0, %v5065
      %v5067 = vpop.f32.mrb[0].mxu0
      %v5068 = vpop.f32.mrb[0].mxu0
      %v5069 = vadd.f32 0.0, %v5068
      %v5070 = vpop.f32.mrb[0].mxu0
      %5071 = vmatprep.mubr.bf16.mxu0 0
      %5072 = vmatmul.mubr.bf16.gmra.mrb[0].mxu0 %v1888
      %v5073 = vpop.f32.mrb[0].mxu0
      %v5074 = vadd.f32 0.0, %v5073
      %v5075 = vpop.f32.mrb[0].mxu0
      %v5076 = vpop.f32.mrb[0].mxu0
      %v5077 = vadd.f32 0.0, %v5076
      %v5078 = vpop.f32.mrb[0].mxu0
      %5079 = vmatprep.mubr.bf16.mxu0 0
      %5080 = vmatmul.mubr.bf16.gmra.mrb[0].mxu0 %v1891
      %v5081 = vpop.f32.mrb[0].mxu0
      %v5082 = vadd.f32 0.0, %v5081
      %v5083 = vpop.f32.mrb[0].mxu0
      %v5084 = vpop.f32.mrb[0].mxu0
      %v5085 = vadd.f32 0.0, %v5084
      %v5086 = vpop.f32.mrb[0].mxu0
      %5087 = vmatprep.mubr.bf16.mxu0 0
      %5088 = vmatmul.mubr.bf16.gmra.mrb[0].mxu0 %v1894
      %v5089 = vpop.f32.mrb[0].mxu0
      %v5090 = vadd.f32 0.0, %v5089
      %v5091 = vpop.f32.mrb[0].mxu0
      %v5092 = vpop.f32.mrb[0].mxu0
      %v5093 = vadd.f32 0.0, %v5092
      %v5094 = vpop.f32.mrb[0].mxu0
      %5095 = vmatprep.mubr.bf16.mxu0 0
      %5096 = vmatmul.mubr.bf16.gmra.mrb[0].mxu0 %v1897
      %v5097 = vpop.f32.mrb[0].mxu0
      %v5098 = vadd.f32 0.0, %v5097
      %v5099 = vpop.f32.mrb[0].mxu0
      %v5100 = vpop.f32.mrb[0].mxu0
      %v5101 = vadd.f32 0.0, %v5100
      %v5102 = vpop.f32.mrb[0].mxu0
      %5103 = vmatprep.mubr.bf16.mxu0 0
      %5104 = vmatmul.mubr.bf16.gmra.mrb[0].mxu0 %v1900
      %v5105 = vpop.f32.mrb[0].mxu0
      %v5106 = vadd.f32 0.0, %v5105
      %v5107 = vpop.f32.mrb[0].mxu0
      %v5108 = vpop.f32.mrb[0].mxu0
      %v5109 = vadd.f32 0.0, %v5108
      %v5110 = vpop.f32.mrb[0].mxu0
      %5111 = vmatprep.mubr.bf16.mxu0 0
      %5112 = vmatmul.mubr.bf16.gmra.mrb[0].mxu0 %v1903
      %v5113 = vpop.f32.mrb[0].mxu0
      %v5114 = vadd.f32 0.0, %v5113
      %v5115 = vpop.f32.mrb[0].mxu0
      %v5116 = vpop.f32.mrb[0].mxu0
      %v5117 = vadd.f32 0.0, %v5116
      %v5118 = vpop.f32.mrb[0].mxu0
      %5119 = vmatprep.mubr.bf16.mxu0 0
      %5120 = vmatmul.mubr.bf16.gmra.mrb[0].mxu0 %v1906
      %v5121 = vpop.f32.mrb[0].mxu0
      %v5122 = vadd.f32 0.0, %v5121
      %v5123 = vpop.f32.mrb[0].mxu0
      %v5124 = vpop.f32.mrb[0].mxu0
      %v5125 = vadd.f32 0.0, %v5124
      %v5126 = vpop.f32.mrb[0].mxu0
      %5127 = vmatprep.mubr.bf16.mxu0 0
      %5128 = vmatmul.mubr.bf16.gmra.mrb[0].mxu0 %v1909
      %v5129 = vpop.f32.mrb[0].mxu0
      %v5130 = vadd.f32 0.0, %v5129
      %v5131 = vpop.f32.mrb[0].mxu0
      %v5132 = vpop.f32.mrb[0].mxu0
      %v5133 = vadd.f32 0.0, %v5132
      %v5134 = vpop.f32.mrb[0].mxu0
      %5135 = vmatprep.mubr.bf16.mxu0 0
      %5136 = vmatmul.mubr.bf16.gmra.mrb[0].mxu0 %v1912
      %v5137 = vpop.f32.mrb[0].mxu0
      %v5138 = vadd.f32 0.0, %v5137
      %v5139 = vpop.f32.mrb[0].mxu0
      %v5140 = vpop.f32.mrb[0].mxu0
      %v5141 = vadd.f32 0.0, %v5140
      %v5142 = vpop.f32.mrb[0].mxu0
      %5143 = vmatprep.mubr.bf16.mxu0 0
      %5144 = vmatmul.mubr.bf16.gmra.mrb[0].mxu0 %v1915
      %v5145 = vpop.f32.mrb[0].mxu0
      %v5146 = vadd.f32 0.0, %v5145
      %v5147 = vpop.f32.mrb[0].mxu0
      %v5148 = vpop.f32.mrb[0].mxu0
      %v5149 = vadd.f32 0.0, %v5148
      %v5150 = vpop.f32.mrb[0].mxu0
      %5151 = vmatprep.mubr.bf16.mxu0 0
      %5152 = vmatmul.mubr.bf16.gmra.mrb[0].mxu0 %v4994
      %v5153 = vpop.f32.mrb[0].mxu0
      %v5154 = vadd.f32 0.0, %v5153
      %v5155 = vpop.f32.mrb[0].mxu0
      %v5156 = vpop.f32.mrb[0].mxu0
      %v5157 = vadd.f32 0.0, %v5156
      %v5158 = vpop.f32.mrb[0].mxu0
      %5159 = vdwg.mxu0
      %v5160 = vadd.f32 %v4955, %v5034
      %v5161 = vadd.f32 %v4956, %v5037
      %v5162 = vadd.f32 %v4957, %v5042
      %v5163 = vadd.f32 %v4958, %v5045
      %v5164 = vadd.f32 %v4959, %v5050
      %v5165 = vadd.f32 %v4960, %v5053
      %v5166 = vadd.f32 %v4961, %v5058
      %v5167 = vadd.f32 %v4962, %v5061
      %v5168 = vadd.f32 %v4963, %v5066
      %v5169 = vadd.f32 %v4964, %v5069
      %v5170 = vadd.f32 %v4965, %v5074
      %v5171 = vadd.f32 %v4966, %v5077
      %v5172 = vadd.f32 %v4967, %v5082
      %v5173 = vadd.f32 %v4968, %v5085
      %v5174 = vadd.f32 %v4969, %v5090
      %v5175 = vadd.f32 %v4970, %v5093
      %v5176 = vadd.f32 %v4971, %v5098
      %v5177 = vadd.f32 %v4972, %v5101
      %v5178 = vadd.f32 %v4973, %v5106
      %v5179 = vadd.f32 %v4974, %v5109
      %v5180 = vadd.f32 %v4975, %v5114
      %v5181 = vadd.f32 %v4976, %v5117
      %v5182 = vadd.f32 %v4977, %v5122
      %v5183 = vadd.f32 %v4978, %v5125
      %v5184 = vadd.f32 %v4979, %v5130
      %v5185 = vadd.f32 %v4980, %v5133
      %v5186 = vadd.f32 %v4981, %v5138
      %v5187 = vadd.f32 %v4982, %v5141
      %v5188 = vadd.f32 %v4983, %v5146
      %v5189 = vadd.f32 %v4984, %v5149
      %v5190 = vadd.f32 %v4985, %v5154
      %v5191 = vadd.f32 %v4986, %v5157
      %v5193 = vunpack.c.l.b16 %v1251
      %v5194 = vunpack.c.h.b16 %v1251
      %v5195 = vunpack.c.h.b16 %v1252
      %v5196 = vpack.c.b16 %v5193, %v5193
      %v5197 = vpack.c.b16 %v5194, %v5194
      %v5198 = vpack.c.b16 %v4785, %v4785
      %v5199 = vpack.c.b16 %v5195, %v5195
      %v5201 = vshrl.u32 %v5196, 16
      %v5203 = vrot.slane %v5201, 4
      %v5204 = vshll.u32 %v5196, 16
      %v5206 = vrot.slane %v5204, 5
      %v5207 = vor.u32 %v5203, %v5206
      %v5208 = vrot.slane %v5207, 4
      %v5210 = vshll.u32 %v5197, 16
      %v5212 = vrot.slane %v5210, 5
      %v5213 = vsel %vm1477, %v5208, %v5212
      %v5215 = vshrl.u32 %v5198, 16
      %v5217 = vrot.slane %v5215, 4
      %v5218 = vshll.u32 %v5198, 16
      %v5220 = vrot.slane %v5218, 5
      %v5221 = vor.u32 %v5217, %v5220
      %v5222 = vrot.slane %v5221, 4
      %v5224 = vshll.u32 %v5199, 16
      %v5226 = vrot.slane %v5224, 5
      %v5227 = vsel %vm1477, %v5222, %v5226
      %v5229 = vshrl.u32 %v1339, 16
      %v5231 = vrot.slane %v5229, 4
      %v5232 = vshll.u32 %v1339, 16
      %v5234 = vrot.slane %v5232, 5
      %v5235 = vor.u32 %v5231, %v5234
      %v5236 = vrot.slane %v5235, 4
      %v5238 = vshll.u32 %v1340, 16
      %v5240 = vrot.slane %v5238, 5
      %v5241 = vsel %vm1477, %v5236, %v5240
      %s5242 = scalar_lea.vmem %s8, 8
      %v5243 = vld [vmem:[%s5242] sm:$0x3]
      %v5244 = vunpack.c.l.b16 %v5213
      %v5245 = vunpack.c.l.b16 %v5227
      %v5246 = vpack.c.b16 %v5245, %v5244
      %v5248 = vsel %vm1868, %v5246, 0
      %v5251 = vsel %vm1917, %v5243, 0
      %5253 = vmatprep.subr.bf16.mxu0 0
      %5254 = vmatpush1.bf16.msra.mxu0 %v5251
      %5255 = vmatprep.subr.bf16.mxu0 0
      %5256 = vmatpush1.bf16.msra.mxu0 0
      %5257 = vmatprep.subr.bf16.mxu0 0
      %5258 = vmatpush1.bf16.msra.mxu0 0
      %5259 = vmatprep.subr.bf16.mxu0 0
      %5260 = vmatpush1.bf16.msra.mxu0 0
      %5261 = vmatprep.subr.bf16.mxu0 0
      %5262 = vmatpush1.bf16.msra.mxu0 0
      %5263 = vmatprep.subr.bf16.mxu0 0
      %5264 = vmatpush1.bf16.msra.mxu0 0
      %5265 = vmatprep.subr.bf16.mxu0 0
      %5266 = vmatpush1.bf16.msra.mxu0 0
      %5267 = vmatprep.subr.bf16.mxu0 0
      %5268 = vmatpush1.bf16.msra.mxu0 0
      %5269 = vmatprep.subr.bf16.mxu0 0
      %5270 = vmatpush1.bf16.msra.mxu0 0
      %5271 = vmatprep.subr.bf16.mxu0 0
      %5272 = vmatpush1.bf16.msra.mxu0 0
      %5273 = vmatprep.subr.bf16.mxu0 0
      %5274 = vmatpush1.bf16.msra.mxu0 0
      %5275 = vmatprep.subr.bf16.mxu0 0
      %5276 = vmatpush1.bf16.msra.mxu0 0
      %5277 = vmatprep.subr.bf16.mxu0 0
      %5278 = vmatpush1.bf16.msra.mxu0 0
      %5279 = vmatprep.subr.bf16.mxu0 0
      %5280 = vmatpush1.bf16.msra.mxu0 0
      %5281 = vmatprep.subr.bf16.mxu0 0
      %5282 = vmatpush1.bf16.msra.mxu0 0
      %5283 = vmatprep.subr.bf16.mxu0 0
      %5284 = vmatpush1.bf16.msra.mxu0 0
      %5285 = vmatprep.mubr.bf16.mxu0 0
      %5286 = vmatmul.mubr.bf16.gmra.mrb[0].mxu0 %v3212
      %v5287 = vpop.f32.mrb[0].mxu0
      %v5288 = vadd.f32 0.0, %v5287
      %v5289 = vpop.f32.mrb[0].mxu0
      %v5290 = vpop.f32.mrb[0].mxu0
      %v5291 = vadd.f32 0.0, %v5290
      %v5292 = vpop.f32.mrb[0].mxu0
      %5293 = vmatprep.mubr.bf16.mxu0 0
      %5294 = vmatmul.mubr.bf16.gmra.mrb[0].mxu0 %v3215
      %v5295 = vpop.f32.mrb[0].mxu0
      %v5296 = vadd.f32 0.0, %v5295
      %v5297 = vpop.f32.mrb[0].mxu0
      %v5298 = vpop.f32.mrb[0].mxu0
      %v5299 = vadd.f32 0.0, %v5298
      %v5300 = vpop.f32.mrb[0].mxu0
      %5301 = vmatprep.mubr.bf16.mxu0 0
      %5302 = vmatmul.mubr.bf16.gmra.mrb[0].mxu0 %v3218
      %v5303 = vpop.f32.mrb[0].mxu0
      %v5304 = vadd.f32 0.0, %v5303
      %v5305 = vpop.f32.mrb[0].mxu0
      %v5306 = vpop.f32.mrb[0].mxu0
      %v5307 = vadd.f32 0.0, %v5306
      %v5308 = vpop.f32.mrb[0].mxu0
      %5309 = vmatprep.mubr.bf16.mxu0 0
      %5310 = vmatmul.mubr.bf16.gmra.mrb[0].mxu0 %v3221
      %v5311 = vpop.f32.mrb[0].mxu0
      %v5312 = vadd.f32 0.0, %v5311
      %v5313 = vpop.f32.mrb[0].mxu0
      %v5314 = vpop.f32.mrb[0].mxu0
      %v5315 = vadd.f32 0.0, %v5314
      %v5316 = vpop.f32.mrb[0].mxu0
      %5317 = vmatprep.mubr.bf16.mxu0 0
      %5318 = vmatmul.mubr.bf16.gmra.mrb[0].mxu0 %v3224
      %v5319 = vpop.f32.mrb[0].mxu0
      %v5320 = vadd.f32 0.0, %v5319
      %v5321 = vpop.f32.mrb[0].mxu0
      %v5322 = vpop.f32.mrb[0].mxu0
      %v5323 = vadd.f32 0.0, %v5322
      %v5324 = vpop.f32.mrb[0].mxu0
      %5325 = vmatprep.mubr.bf16.mxu0 0
      %5326 = vmatmul.mubr.bf16.gmra.mrb[0].mxu0 %v3227
      %v5327 = vpop.f32.mrb[0].mxu0
      %v5328 = vadd.f32 0.0, %v5327
      %v5329 = vpop.f32.mrb[0].mxu0
      %v5330 = vpop.f32.mrb[0].mxu0
      %v5331 = vadd.f32 0.0, %v5330
      %v5332 = vpop.f32.mrb[0].mxu0
      %5333 = vmatprep.mubr.bf16.mxu0 0
      %5334 = vmatmul.mubr.bf16.gmra.mrb[0].mxu0 %v3230
      %v5335 = vpop.f32.mrb[0].mxu0
      %v5336 = vadd.f32 0.0, %v5335
      %v5337 = vpop.f32.mrb[0].mxu0
      %v5338 = vpop.f32.mrb[0].mxu0
      %v5339 = vadd.f32 0.0, %v5338
      %v5340 = vpop.f32.mrb[0].mxu0
      %5341 = vmatprep.mubr.bf16.mxu0 0
      %5342 = vmatmul.mubr.bf16.gmra.mrb[0].mxu0 %v3233
      %v5343 = vpop.f32.mrb[0].mxu0
      %v5344 = vadd.f32 0.0, %v5343
      %v5345 = vpop.f32.mrb[0].mxu0
      %v5346 = vpop.f32.mrb[0].mxu0
      %v5347 = vadd.f32 0.0, %v5346
      %v5348 = vpop.f32.mrb[0].mxu0
      %5349 = vmatprep.mubr.bf16.mxu0 0
      %5350 = vmatmul.mubr.bf16.gmra.mrb[0].mxu0 %v3236
      %v5351 = vpop.f32.mrb[0].mxu0
      %v5352 = vadd.f32 0.0, %v5351
      %v5353 = vpop.f32.mrb[0].mxu0
      %v5354 = vpop.f32.mrb[0].mxu0
      %v5355 = vadd.f32 0.0, %v5354
      %v5356 = vpop.f32.mrb[0].mxu0
      %5357 = vmatprep.mubr.bf16.mxu0 0
      %5358 = vmatmul.mubr.bf16.gmra.mrb[0].mxu0 %v3239
      %v5359 = vpop.f32.mrb[0].mxu0
      %v5360 = vadd.f32 0.0, %v5359
      %v5361 = vpop.f32.mrb[0].mxu0
      %v5362 = vpop.f32.mrb[0].mxu0
      %v5363 = vadd.f32 0.0, %v5362
      %v5364 = vpop.f32.mrb[0].mxu0
      %5365 = vmatprep.mubr.bf16.mxu0 0
      %5366 = vmatmul.mubr.bf16.gmra.mrb[0].mxu0 %v3242
      %v5367 = vpop.f32.mrb[0].mxu0
      %v5368 = vadd.f32 0.0, %v5367
      %v5369 = vpop.f32.mrb[0].mxu0
      %v5370 = vpop.f32.mrb[0].mxu0
      %v5371 = vadd.f32 0.0, %v5370
      %v5372 = vpop.f32.mrb[0].mxu0
      %5373 = vmatprep.mubr.bf16.mxu0 0
      %5374 = vmatmul.mubr.bf16.gmra.mrb[0].mxu0 %v3245
      %v5375 = vpop.f32.mrb[0].mxu0
      %v5376 = vadd.f32 0.0, %v5375
      %v5377 = vpop.f32.mrb[0].mxu0
      %v5378 = vpop.f32.mrb[0].mxu0
      %v5379 = vadd.f32 0.0, %v5378
      %v5380 = vpop.f32.mrb[0].mxu0
      %5381 = vmatprep.mubr.bf16.mxu0 0
      %5382 = vmatmul.mubr.bf16.gmra.mrb[0].mxu0 %v3248
      %v5383 = vpop.f32.mrb[0].mxu0
      %v5384 = vadd.f32 0.0, %v5383
      %v5385 = vpop.f32.mrb[0].mxu0
      %v5386 = vpop.f32.mrb[0].mxu0
      %v5387 = vadd.f32 0.0, %v5386
      %v5388 = vpop.f32.mrb[0].mxu0
      %5389 = vmatprep.mubr.bf16.mxu0 0
      %5390 = vmatmul.mubr.bf16.gmra.mrb[0].mxu0 %v3251
      %v5391 = vpop.f32.mrb[0].mxu0
      %v5392 = vadd.f32 0.0, %v5391
      %v5393 = vpop.f32.mrb[0].mxu0
      %v5394 = vpop.f32.mrb[0].mxu0
      %v5395 = vadd.f32 0.0, %v5394
      %v5396 = vpop.f32.mrb[0].mxu0
      %5397 = vmatprep.mubr.bf16.mxu0 0
      %5398 = vmatmul.mubr.bf16.gmra.mrb[0].mxu0 %v3254
      %v5399 = vpop.f32.mrb[0].mxu0
      %v5400 = vadd.f32 0.0, %v5399
      %v5401 = vpop.f32.mrb[0].mxu0
      %v5402 = vpop.f32.mrb[0].mxu0
      %v5403 = vadd.f32 0.0, %v5402
      %v5404 = vpop.f32.mrb[0].mxu0
      %5405 = vmatprep.mubr.bf16.mxu0 0
      %5406 = vmatmul.mubr.bf16.gmra.mrb[0].mxu0 %v5248
      %v5407 = vpop.f32.mrb[0].mxu0
      %v5408 = vadd.f32 0.0, %v5407
      %v5409 = vpop.f32.mrb[0].mxu0
      %v5410 = vpop.f32.mrb[0].mxu0
      %v5411 = vadd.f32 0.0, %v5410
      %v5412 = vpop.f32.mrb[0].mxu0
      %5413 = vdwg.mxu0
      %v5414 = vadd.f32 %v5160, %v5288
      %v5415 = vadd.f32 %v5161, %v5291
      %v5416 = vadd.f32 %v5162, %v5296
      %v5417 = vadd.f32 %v5163, %v5299
      %v5418 = vadd.f32 %v5164, %v5304
      %v5419 = vadd.f32 %v5165, %v5307
      %v5420 = vadd.f32 %v5166, %v5312
      %v5421 = vadd.f32 %v5167, %v5315
      %v5422 = vadd.f32 %v5168, %v5320
      %v5423 = vadd.f32 %v5169, %v5323
      %v5424 = vadd.f32 %v5170, %v5328
      %v5425 = vadd.f32 %v5171, %v5331
      %v5426 = vadd.f32 %v5172, %v5336
      %v5427 = vadd.f32 %v5173, %v5339
      %v5428 = vadd.f32 %v5174, %v5344
      %v5429 = vadd.f32 %v5175, %v5347
      %v5430 = vadd.f32 %v5176, %v5352
      %v5431 = vadd.f32 %v5177, %v5355
      %v5432 = vadd.f32 %v5178, %v5360
      %v5433 = vadd.f32 %v5179, %v5363
      %v5434 = vadd.f32 %v5180, %v5368
      %v5435 = vadd.f32 %v5181, %v5371
      %v5436 = vadd.f32 %v5182, %v5376
      %v5437 = vadd.f32 %v5183, %v5379
      %v5438 = vadd.f32 %v5184, %v5384
      %v5439 = vadd.f32 %v5185, %v5387
      %v5440 = vadd.f32 %v5186, %v5392
      %v5441 = vadd.f32 %v5187, %v5395
      %v5442 = vadd.f32 %v5188, %v5400
      %v5443 = vadd.f32 %v5189, %v5403
      %v5444 = vadd.f32 %v5190, %v5408
      %v5445 = vadd.f32 %v5191, %v5411
      %s5446 = scalar_lea.vmem %s9, 8
      %v5447 = vld [vmem:[%s5446] sm:$0x3]
      %v5448 = vunpack.c.l.b16 %v5241
      %v5449 = vpack.c.b16 %v5448, %v4991
      %v5451 = vsel %vm1868, %v5449, 0
      %v5454 = vsel %vm1917, %v5447, 0
      %5456 = vmatprep.subr.bf16.mxu0 0
      %5457 = vmatpush1.bf16.msra.mxu0 %v5454
      %5458 = vmatprep.subr.bf16.mxu0 0
      %5459 = vmatpush1.bf16.msra.mxu0 0
      %5460 = vmatprep.subr.bf16.mxu0 0
      %5461 = vmatpush1.bf16.msra.mxu0 0
      %5462 = vmatprep.subr.bf16.mxu0 0
      %5463 = vmatpush1.bf16.msra.mxu0 0
      %5464 = vmatprep.subr.bf16.mxu0 0
      %5465 = vmatpush1.bf16.msra.mxu0 0
      %5466 = vmatprep.subr.bf16.mxu0 0
      %5467 = vmatpush1.bf16.msra.mxu0 0
      %5468 = vmatprep.subr.bf16.mxu0 0
      %5469 = vmatpush1.bf16.msra.mxu0 0
      %5470 = vmatprep.subr.bf16.mxu0 0
      %5471 = vmatpush1.bf16.msra.mxu0 0
      %5472 = vmatprep.subr.bf16.mxu0 0
      %5473 = vmatpush1.bf16.msra.mxu0 0
      %5474 = vmatprep.subr.bf16.mxu0 0
      %5475 = vmatpush1.bf16.msra.mxu0 0
      %5476 = vmatprep.subr.bf16.mxu0 0
      %5477 = vmatpush1.bf16.msra.mxu0 0
      %5478 = vmatprep.subr.bf16.mxu0 0
      %5479 = vmatpush1.bf16.msra.mxu0 0
      %5480 = vmatprep.subr.bf16.mxu0 0
      %5481 = vmatpush1.bf16.msra.mxu0 0
      %5482 = vmatprep.subr.bf16.mxu0 0
      %5483 = vmatpush1.bf16.msra.mxu0 0
      %5484 = vmatprep.subr.bf16.mxu0 0
      %5485 = vmatpush1.bf16.msra.mxu0 0
      %5486 = vmatprep.subr.bf16.mxu0 0
      %5487 = vmatpush1.bf16.msra.mxu0 0
      %5488 = vmatprep.mubr.bf16.mxu0 0
      %5489 = vmatmul.mubr.bf16.gmra.mrb[0].mxu0 %v3490
      %v5490 = vpop.f32.mrb[0].mxu0
      %v5491 = vadd.f32 0.0, %v5490
      %v5492 = vpop.f32.mrb[0].mxu0
      %v5493 = vpop.f32.mrb[0].mxu0
      %v5494 = vadd.f32 0.0, %v5493
      %v5495 = vpop.f32.mrb[0].mxu0
      %5496 = vmatprep.mubr.bf16.mxu0 0
      %5497 = vmatmul.mubr.bf16.gmra.mrb[0].mxu0 %v3493
      %v5498 = vpop.f32.mrb[0].mxu0
      %v5499 = vadd.f32 0.0, %v5498
      %v5500 = vpop.f32.mrb[0].mxu0
      %v5501 = vpop.f32.mrb[0].mxu0
      %v5502 = vadd.f32 0.0, %v5501
      %v5503 = vpop.f32.mrb[0].mxu0
      %5504 = vmatprep.mubr.bf16.mxu0 0
      %5505 = vmatmul.mubr.bf16.gmra.mrb[0].mxu0 %v3496
      %v5506 = vpop.f32.mrb[0].mxu0
      %v5507 = vadd.f32 0.0, %v5506
      %v5508 = vpop.f32.mrb[0].mxu0
      %v5509 = vpop.f32.mrb[0].mxu0
      %v5510 = vadd.f32 0.0, %v5509
      %v5511 = vpop.f32.mrb[0].mxu0
      %5512 = vmatprep.mubr.bf16.mxu0 0
      %5513 = vmatmul.mubr.bf16.gmra.mrb[0].mxu0 %v3499
      %v5514 = vpop.f32.mrb[0].mxu0
      %v5515 = vadd.f32 0.0, %v5514
      %v5516 = vpop.f32.mrb[0].mxu0
      %v5517 = vpop.f32.mrb[0].mxu0
      %v5518 = vadd.f32 0.0, %v5517
      %v5519 = vpop.f32.mrb[0].mxu0
      %5520 = vmatprep.mubr.bf16.mxu0 0
      %5521 = vmatmul.mubr.bf16.gmra.mrb[0].mxu0 %v3502
      %v5522 = vpop.f32.mrb[0].mxu0
      %v5523 = vadd.f32 0.0, %v5522
      %v5524 = vpop.f32.mrb[0].mxu0
      %v5525 = vpop.f32.mrb[0].mxu0
      %v5526 = vadd.f32 0.0, %v5525
      %v5527 = vpop.f32.mrb[0].mxu0
      %5528 = vmatprep.mubr.bf16.mxu0 0
      %5529 = vmatmul.mubr.bf16.gmra.mrb[0].mxu0 %v3505
      %v5530 = vpop.f32.mrb[0].mxu0
      %v5531 = vadd.f32 0.0, %v5530
      %v5532 = vpop.f32.mrb[0].mxu0
      %v5533 = vpop.f32.mrb[0].mxu0
      %v5534 = vadd.f32 0.0, %v5533
      %v5535 = vpop.f32.mrb[0].mxu0
      %5536 = vmatprep.mubr.bf16.mxu0 0
      %5537 = vmatmul.mubr.bf16.gmra.mrb[0].mxu0 %v3508
      %v5538 = vpop.f32.mrb[0].mxu0
      %v5539 = vadd.f32 0.0, %v5538
      %v5540 = vpop.f32.mrb[0].mxu0
      %v5541 = vpop.f32.mrb[0].mxu0
      %v5542 = vadd.f32 0.0, %v5541
      %v5543 = vpop.f32.mrb[0].mxu0
      %5544 = vmatprep.mubr.bf16.mxu0 0
      %5545 = vmatmul.mubr.bf16.gmra.mrb[0].mxu0 %v3511
      %v5546 = vpop.f32.mrb[0].mxu0
      %v5547 = vadd.f32 0.0, %v5546
      %v5548 = vpop.f32.mrb[0].mxu0
      %v5549 = vpop.f32.mrb[0].mxu0
      %v5550 = vadd.f32 0.0, %v5549
      %v5551 = vpop.f32.mrb[0].mxu0
      %5552 = vmatprep.mubr.bf16.mxu0 0
      %5553 = vmatmul.mubr.bf16.gmra.mrb[0].mxu0 %v3514
      %v5554 = vpop.f32.mrb[0].mxu0
      %v5555 = vadd.f32 0.0, %v5554
      %v5556 = vpop.f32.mrb[0].mxu0
      %v5557 = vpop.f32.mrb[0].mxu0
      %v5558 = vadd.f32 0.0, %v5557
      %v5559 = vpop.f32.mrb[0].mxu0
      %5560 = vmatprep.mubr.bf16.mxu0 0
      %5561 = vmatmul.mubr.bf16.gmra.mrb[0].mxu0 %v3517
      %v5562 = vpop.f32.mrb[0].mxu0
      %v5563 = vadd.f32 0.0, %v5562
      %v5564 = vpop.f32.mrb[0].mxu0
      %v5565 = vpop.f32.mrb[0].mxu0
      %v5566 = vadd.f32 0.0, %v5565
      %v5567 = vpop.f32.mrb[0].mxu0
      %5568 = vmatprep.mubr.bf16.mxu0 0
      %5569 = vmatmul.mubr.bf16.gmra.mrb[0].mxu0 %v3520
      %v5570 = vpop.f32.mrb[0].mxu0
      %v5571 = vadd.f32 0.0, %v5570
      %v5572 = vpop.f32.mrb[0].mxu0
      %v5573 = vpop.f32.mrb[0].mxu0
      %v5574 = vadd.f32 0.0, %v5573
      %v5575 = vpop.f32.mrb[0].mxu0
      %5576 = vmatprep.mubr.bf16.mxu0 0
      %5577 = vmatmul.mubr.bf16.gmra.mrb[0].mxu0 %v3523
      %v5578 = vpop.f32.mrb[0].mxu0
      %v5579 = vadd.f32 0.0, %v5578
      %v5580 = vpop.f32.mrb[0].mxu0
      %v5581 = vpop.f32.mrb[0].mxu0
      %v5582 = vadd.f32 0.0, %v5581
      %v5583 = vpop.f32.mrb[0].mxu0
      %5584 = vmatprep.mubr.bf16.mxu0 0
      %5585 = vmatmul.mubr.bf16.gmra.mrb[0].mxu0 %v3526
      %v5586 = vpop.f32.mrb[0].mxu0
      %v5587 = vadd.f32 0.0, %v5586
      %v5588 = vpop.f32.mrb[0].mxu0
      %v5589 = vpop.f32.mrb[0].mxu0
      %v5590 = vadd.f32 0.0, %v5589
      %v5591 = vpop.f32.mrb[0].mxu0
      %5592 = vmatprep.mubr.bf16.mxu0 0
      %5593 = vmatmul.mubr.bf16.gmra.mrb[0].mxu0 %v3529
      %v5594 = vpop.f32.mrb[0].mxu0
      %v5595 = vadd.f32 0.0, %v5594
      %v5596 = vpop.f32.mrb[0].mxu0
      %v5597 = vpop.f32.mrb[0].mxu0
      %v5598 = vadd.f32 0.0, %v5597
      %v5599 = vpop.f32.mrb[0].mxu0
      %5600 = vmatprep.mubr.bf16.mxu0 0
      %5601 = vmatmul.mubr.bf16.gmra.mrb[0].mxu0 %v3532
      %v5602 = vpop.f32.mrb[0].mxu0
      %v5603 = vadd.f32 0.0, %v5602
      %v5604 = vpop.f32.mrb[0].mxu0
      %v5605 = vpop.f32.mrb[0].mxu0
      %v5606 = vadd.f32 0.0, %v5605
      %v5607 = vpop.f32.mrb[0].mxu0
      %5608 = vmatprep.mubr.bf16.mxu0 0
      %5609 = vmatmul.mubr.bf16.gmra.mrb[0].mxu0 %v5451
      %v5610 = vpop.f32.mrb[0].mxu0
      %v5611 = vadd.f32 0.0, %v5610
      %v5612 = vpop.f32.mrb[0].mxu0
      %v5613 = vpop.f32.mrb[0].mxu0
      %v5614 = vadd.f32 0.0, %v5613
      %v5615 = vpop.f32.mrb[0].mxu0
      %5616 = vdwg.mxu0
      %v5617 = vadd.f32 %v5414, %v5491
      %v5618 = vadd.f32 %v5415, %v5494
      %v5619 = vadd.f32 %v5416, %v5499
      %v5620 = vadd.f32 %v5417, %v5502
      %v5621 = vadd.f32 %v5418, %v5507
      %v5622 = vadd.f32 %v5419, %v5510
      %v5623 = vadd.f32 %v5420, %v5515
      %v5624 = vadd.f32 %v5421, %v5518
      %v5625 = vadd.f32 %v5422, %v5523
      %v5626 = vadd.f32 %v5423, %v5526
      %v5627 = vadd.f32 %v5424, %v5531
      %v5628 = vadd.f32 %v5425, %v5534
      %v5629 = vadd.f32 %v5426, %v5539
      %v5630 = vadd.f32 %v5427, %v5542
      %v5631 = vadd.f32 %v5428, %v5547
      %v5632 = vadd.f32 %v5429, %v5550
      %v5633 = vadd.f32 %v5430, %v5555
      %v5634 = vadd.f32 %v5431, %v5558
      %v5635 = vadd.f32 %v5432, %v5563
      %v5636 = vadd.f32 %v5433, %v5566
      %v5637 = vadd.f32 %v5434, %v5571
      %v5638 = vadd.f32 %v5435, %v5574
      %v5639 = vadd.f32 %v5436, %v5579
      %v5640 = vadd.f32 %v5437, %v5582
      %v5641 = vadd.f32 %v5438, %v5587
      %v5642 = vadd.f32 %v5439, %v5590
      %v5643 = vadd.f32 %v5440, %v5595
      %v5644 = vadd.f32 %v5441, %v5598
      %v5645 = vadd.f32 %v5442, %v5603
      %v5646 = vadd.f32 %v5443, %v5606
      %v5647 = vadd.f32 %v5444, %v5611
      %v5648 = vadd.f32 %v5445, %v5614
      %v5649 = vunpack.c.h.b16 %v1467
      %v5650 = vpack.c.b16 %v4786, %v4786
      %v5651 = vpack.c.b16 %v5649, %v5649
      %v5653 = vshrl.u32 %v5650, 16
      %v5655 = vrot.slane %v5653, 4
      %v5656 = vshll.u32 %v5650, 16
      %v5658 = vrot.slane %v5656, 5
      %v5659 = vor.u32 %v5655, %v5658
      %v5660 = vrot.slane %v5659, 4
      %v5662 = vshll.u32 %v5651, 16
      %v5664 = vrot.slane %v5662, 5
      %v5665 = vsel %vm1477, %v5660, %v5664
      %v5667 = vshrl.u32 %v1715, 16
      %v5669 = vrot.slane %v5667, 4
      %v5670 = vshll.u32 %v1715, 16
      %v5672 = vrot.slane %v5670, 5
      %v5673 = vor.u32 %v5669, %v5672
      %v5674 = vrot.slane %v5673, 4
      %v5676 = vshll.u32 %v1797, 16
      %v5678 = vrot.slane %v5676, 5
      %v5679 = vsel %vm1477, %v5674, %v5678
      %s5680 = scalar_lea.vmem %s8, 10
      %v5681 = vld [vmem:[%s5680] sm:$0x3]
      %v5682 = vunpack.c.l.b16 %v5665
      %v5683 = vpack.c.b16 %v5682, %v5245
      %v5685 = vsel %vm1868, %v5683, 0
      %v5688 = vsel %vm1917, %v5681, 0
      %5690 = vmatprep.subr.bf16.mxu0 0
      %5691 = vmatpush1.bf16.msra.mxu0 %v5688
      %5692 = vmatprep.subr.bf16.mxu0 0
      %5693 = vmatpush1.bf16.msra.mxu0 0
      %5694 = vmatprep.subr.bf16.mxu0 0
      %5695 = vmatpush1.bf16.msra.mxu0 0
      %5696 = vmatprep.subr.bf16.mxu0 0
      %5697 = vmatpush1.bf16.msra.mxu0 0
      %5698 = vmatprep.subr.bf16.mxu0 0
      %5699 = vmatpush1.bf16.msra.mxu0 0
      %5700 = vmatprep.subr.bf16.mxu0 0
      %5701 = vmatpush1.bf16.msra.mxu0 0
      %5702 = vmatprep.subr.bf16.mxu0 0
      %5703 = vmatpush1.bf16.msra.mxu0 0
      %5704 = vmatprep.subr.bf16.mxu0 0
      %5705 = vmatpush1.bf16.msra.mxu0 0
      %5706 = vmatprep.subr.bf16.mxu0 0
      %5707 = vmatpush1.bf16.msra.mxu0 0
      %5708 = vmatprep.subr.bf16.mxu0 0
      %5709 = vmatpush1.bf16.msra.mxu0 0
      %5710 = vmatprep.subr.bf16.mxu0 0
      %5711 = vmatpush1.bf16.msra.mxu0 0
      %5712 = vmatprep.subr.bf16.mxu0 0
      %5713 = vmatpush1.bf16.msra.mxu0 0
      %5714 = vmatprep.subr.bf16.mxu0 0
      %5715 = vmatpush1.bf16.msra.mxu0 0
      %5716 = vmatprep.subr.bf16.mxu0 0
      %5717 = vmatpush1.bf16.msra.mxu0 0
      %5718 = vmatprep.subr.bf16.mxu0 0
      %5719 = vmatpush1.bf16.msra.mxu0 0
      %5720 = vmatprep.subr.bf16.mxu0 0
      %5721 = vmatpush1.bf16.msra.mxu0 0
      %5722 = vmatprep.mubr.bf16.mxu0 0
      %5723 = vmatmul.mubr.bf16.gmra.mrb[0].mxu0 %v4264
      %v5724 = vpop.f32.mrb[0].mxu0
      %v5725 = vadd.f32 0.0, %v5724
      %v5726 = vpop.f32.mrb[0].mxu0
      %v5727 = vpop.f32.mrb[0].mxu0
      %v5728 = vadd.f32 0.0, %v5727
      %v5729 = vpop.f32.mrb[0].mxu0
      %5730 = vmatprep.mubr.bf16.mxu0 0
      %5731 = vmatmul.mubr.bf16.gmra.mrb[0].mxu0 %v4267
      %v5732 = vpop.f32.mrb[0].mxu0
      %v5733 = vadd.f32 0.0, %v5732
      %v5734 = vpop.f32.mrb[0].mxu0
      %v5735 = vpop.f32.mrb[0].mxu0
      %v5736 = vadd.f32 0.0, %v5735
      %v5737 = vpop.f32.mrb[0].mxu0
      %5738 = vmatprep.mubr.bf16.mxu0 0
      %5739 = vmatmul.mubr.bf16.gmra.mrb[0].mxu0 %v4270
      %v5740 = vpop.f32.mrb[0].mxu0
      %v5741 = vadd.f32 0.0, %v5740
      %v5742 = vpop.f32.mrb[0].mxu0
      %v5743 = vpop.f32.mrb[0].mxu0
      %v5744 = vadd.f32 0.0, %v5743
      %v5745 = vpop.f32.mrb[0].mxu0
      %5746 = vmatprep.mubr.bf16.mxu0 0
      %5747 = vmatmul.mubr.bf16.gmra.mrb[0].mxu0 %v4273
      %v5748 = vpop.f32.mrb[0].mxu0
      %v5749 = vadd.f32 0.0, %v5748
      %v5750 = vpop.f32.mrb[0].mxu0
      %v5751 = vpop.f32.mrb[0].mxu0
      %v5752 = vadd.f32 0.0, %v5751
      %v5753 = vpop.f32.mrb[0].mxu0
      %5754 = vmatprep.mubr.bf16.mxu0 0
      %5755 = vmatmul.mubr.bf16.gmra.mrb[0].mxu0 %v4276
      %v5756 = vpop.f32.mrb[0].mxu0
      %v5757 = vadd.f32 0.0, %v5756
      %v5758 = vpop.f32.mrb[0].mxu0
      %v5759 = vpop.f32.mrb[0].mxu0
      %v5760 = vadd.f32 0.0, %v5759
      %v5761 = vpop.f32.mrb[0].mxu0
      %5762 = vmatprep.mubr.bf16.mxu0 0
      %5763 = vmatmul.mubr.bf16.gmra.mrb[0].mxu0 %v4279
      %v5764 = vpop.f32.mrb[0].mxu0
      %v5765 = vadd.f32 0.0, %v5764
      %v5766 = vpop.f32.mrb[0].mxu0
      %v5767 = vpop.f32.mrb[0].mxu0
      %v5768 = vadd.f32 0.0, %v5767
      %v5769 = vpop.f32.mrb[0].mxu0
      %5770 = vmatprep.mubr.bf16.mxu0 0
      %5771 = vmatmul.mubr.bf16.gmra.mrb[0].mxu0 %v4282
      %v5772 = vpop.f32.mrb[0].mxu0
      %v5773 = vadd.f32 0.0, %v5772
      %v5774 = vpop.f32.mrb[0].mxu0
      %v5775 = vpop.f32.mrb[0].mxu0
      %v5776 = vadd.f32 0.0, %v5775
      %v5777 = vpop.f32.mrb[0].mxu0
      %5778 = vmatprep.mubr.bf16.mxu0 0
      %5779 = vmatmul.mubr.bf16.gmra.mrb[0].mxu0 %v4285
      %v5780 = vpop.f32.mrb[0].mxu0
      %v5781 = vadd.f32 0.0, %v5780
      %v5782 = vpop.f32.mrb[0].mxu0
      %v5783 = vpop.f32.mrb[0].mxu0
      %v5784 = vadd.f32 0.0, %v5783
      %v5785 = vpop.f32.mrb[0].mxu0
      %5786 = vmatprep.mubr.bf16.mxu0 0
      %5787 = vmatmul.mubr.bf16.gmra.mrb[0].mxu0 %v4288
      %v5788 = vpop.f32.mrb[0].mxu0
      %v5789 = vadd.f32 0.0, %v5788
      %v5790 = vpop.f32.mrb[0].mxu0
      %v5791 = vpop.f32.mrb[0].mxu0
      %v5792 = vadd.f32 0.0, %v5791
      %v5793 = vpop.f32.mrb[0].mxu0
      %5794 = vmatprep.mubr.bf16.mxu0 0
      %5795 = vmatmul.mubr.bf16.gmra.mrb[0].mxu0 %v4291
      %v5796 = vpop.f32.mrb[0].mxu0
      %v5797 = vadd.f32 0.0, %v5796
      %v5798 = vpop.f32.mrb[0].mxu0
      %v5799 = vpop.f32.mrb[0].mxu0
      %v5800 = vadd.f32 0.0, %v5799
      %v5801 = vpop.f32.mrb[0].mxu0
      %5802 = vmatprep.mubr.bf16.mxu0 0
      %5803 = vmatmul.mubr.bf16.gmra.mrb[0].mxu0 %v4294
      %v5804 = vpop.f32.mrb[0].mxu0
      %v5805 = vadd.f32 0.0, %v5804
      %v5806 = vpop.f32.mrb[0].mxu0
      %v5807 = vpop.f32.mrb[0].mxu0
      %v5808 = vadd.f32 0.0, %v5807
      %v5809 = vpop.f32.mrb[0].mxu0
      %5810 = vmatprep.mubr.bf16.mxu0 0
      %5811 = vmatmul.mubr.bf16.gmra.mrb[0].mxu0 %v4297
      %v5812 = vpop.f32.mrb[0].mxu0
      %v5813 = vadd.f32 0.0, %v5812
      %v5814 = vpop.f32.mrb[0].mxu0
      %v5815 = vpop.f32.mrb[0].mxu0
      %v5816 = vadd.f32 0.0, %v5815
      %v5817 = vpop.f32.mrb[0].mxu0
      %5818 = vmatprep.mubr.bf16.mxu0 0
      %5819 = vmatmul.mubr.bf16.gmra.mrb[0].mxu0 %v4300
      %v5820 = vpop.f32.mrb[0].mxu0
      %v5821 = vadd.f32 0.0, %v5820
      %v5822 = vpop.f32.mrb[0].mxu0
      %v5823 = vpop.f32.mrb[0].mxu0
      %v5824 = vadd.f32 0.0, %v5823
      %v5825 = vpop.f32.mrb[0].mxu0
      %5826 = vmatprep.mubr.bf16.mxu0 0
      %5827 = vmatmul.mubr.bf16.gmra.mrb[0].mxu0 %v4303
      %v5828 = vpop.f32.mrb[0].mxu0
      %v5829 = vadd.f32 0.0, %v5828
      %v5830 = vpop.f32.mrb[0].mxu0
      %v5831 = vpop.f32.mrb[0].mxu0
      %v5832 = vadd.f32 0.0, %v5831
      %v5833 = vpop.f32.mrb[0].mxu0
      %5834 = vmatprep.mubr.bf16.mxu0 0
      %5835 = vmatmul.mubr.bf16.gmra.mrb[0].mxu0 %v4306
      %v5836 = vpop.f32.mrb[0].mxu0
      %v5837 = vadd.f32 0.0, %v5836
      %v5838 = vpop.f32.mrb[0].mxu0
      %v5839 = vpop.f32.mrb[0].mxu0
      %v5840 = vadd.f32 0.0, %v5839
      %v5841 = vpop.f32.mrb[0].mxu0
      %5842 = vmatprep.mubr.bf16.mxu0 0
      %5843 = vmatmul.mubr.bf16.gmra.mrb[0].mxu0 %v5685
      %v5844 = vpop.f32.mrb[0].mxu0
      %v5845 = vadd.f32 0.0, %v5844
      %v5846 = vpop.f32.mrb[0].mxu0
      %v5847 = vpop.f32.mrb[0].mxu0
      %v5848 = vadd.f32 0.0, %v5847
      %v5849 = vpop.f32.mrb[0].mxu0
      %5850 = vdwg.mxu0
      %v5851 = vadd.f32 %v5617, %v5725
      %v5852 = vadd.f32 %v5618, %v5728
      %v5853 = vadd.f32 %v5619, %v5733
      %v5854 = vadd.f32 %v5620, %v5736
      %v5855 = vadd.f32 %v5621, %v5741
      %v5856 = vadd.f32 %v5622, %v5744
      %v5857 = vadd.f32 %v5623, %v5749
      %v5858 = vadd.f32 %v5624, %v5752
      %v5859 = vadd.f32 %v5625, %v5757
      %v5860 = vadd.f32 %v5626, %v5760
      %v5861 = vadd.f32 %v5627, %v5765
      %v5862 = vadd.f32 %v5628, %v5768
      %v5863 = vadd.f32 %v5629, %v5773
      %v5864 = vadd.f32 %v5630, %v5776
      %v5865 = vadd.f32 %v5631, %v5781
      %v5866 = vadd.f32 %v5632, %v5784
      %v5867 = vadd.f32 %v5633, %v5789
      %v5868 = vadd.f32 %v5634, %v5792
      %v5869 = vadd.f32 %v5635, %v5797
      %v5870 = vadd.f32 %v5636, %v5800
      %v5871 = vadd.f32 %v5637, %v5805
      %v5872 = vadd.f32 %v5638, %v5808
      %v5873 = vadd.f32 %v5639, %v5813
      %v5874 = vadd.f32 %v5640, %v5816
      %v5875 = vadd.f32 %v5641, %v5821
      %v5876 = vadd.f32 %v5642, %v5824
      %v5877 = vadd.f32 %v5643, %v5829
      %v5878 = vadd.f32 %v5644, %v5832
      %v5879 = vadd.f32 %v5645, %v5837
      %v5880 = vadd.f32 %v5646, %v5840
      %v5881 = vadd.f32 %v5647, %v5845
      %v5882 = vadd.f32 %v5648, %v5848
      %s5883 = scalar_lea.vmem %s9, 10
      %v5884 = vld [vmem:[%s5883] sm:$0x3]
      %v5885 = vunpack.c.l.b16 %v5679
      %v5886 = vpack.c.b16 %v5885, %v5448
      %v5888 = vsel %vm1868, %v5886, 0
      %v5891 = vsel %vm1917, %v5884, 0
      %5893 = vmatprep.subr.bf16.mxu0 0
      %5894 = vmatpush1.bf16.msra.mxu0 %v5891
      %5895 = vmatprep.subr.bf16.mxu0 0
      %5896 = vmatpush1.bf16.msra.mxu0 0
      %5897 = vmatprep.subr.bf16.mxu0 0
      %5898 = vmatpush1.bf16.msra.mxu0 0
      %5899 = vmatprep.subr.bf16.mxu0 0
      %5900 = vmatpush1.bf16.msra.mxu0 0
      %5901 = vmatprep.subr.bf16.mxu0 0
      %5902 = vmatpush1.bf16.msra.mxu0 0
      %5903 = vmatprep.subr.bf16.mxu0 0
      %5904 = vmatpush1.bf16.msra.mxu0 0
      %5905 = vmatprep.subr.bf16.mxu0 0
      %5906 = vmatpush1.bf16.msra.mxu0 0
      %5907 = vmatprep.subr.bf16.mxu0 0
      %5908 = vmatpush1.bf16.msra.mxu0 0
      %5909 = vmatprep.subr.bf16.mxu0 0
      %5910 = vmatpush1.bf16.msra.mxu0 0
      %5911 = vmatprep.subr.bf16.mxu0 0
      %5912 = vmatpush1.bf16.msra.mxu0 0
      %5913 = vmatprep.subr.bf16.mxu0 0
      %5914 = vmatpush1.bf16.msra.mxu0 0
      %5915 = vmatprep.subr.bf16.mxu0 0
      %5916 = vmatpush1.bf16.msra.mxu0 0
      %5917 = vmatprep.subr.bf16.mxu0 0
      %5918 = vmatpush1.bf16.msra.mxu0 0
      %5919 = vmatprep.subr.bf16.mxu0 0
      %5920 = vmatpush1.bf16.msra.mxu0 0
      %5921 = vmatprep.subr.bf16.mxu0 0
      %5922 = vmatpush1.bf16.msra.mxu0 0
      %5923 = vmatprep.subr.bf16.mxu0 0
      %5924 = vmatpush1.bf16.msra.mxu0 0
      %5925 = vmatprep.mubr.bf16.mxu0 0
      %5926 = vmatmul.mubr.bf16.gmra.mrb[0].mxu0 %v4542
      %v5927 = vpop.f32.mrb[0].mxu0
      %v5928 = vadd.f32 0.0, %v5927
      %v5929 = vpop.f32.mrb[0].mxu0
      %v5930 = vpop.f32.mrb[0].mxu0
      %v5931 = vadd.f32 0.0, %v5930
      %v5932 = vpop.f32.mrb[0].mxu0
      %5933 = vmatprep.mubr.bf16.mxu0 0
      %5934 = vmatmul.mubr.bf16.gmra.mrb[0].mxu0 %v4545
      %v5935 = vpop.f32.mrb[0].mxu0
      %v5936 = vadd.f32 0.0, %v5935
      %v5937 = vpop.f32.mrb[0].mxu0
      %v5938 = vpop.f32.mrb[0].mxu0
      %v5939 = vadd.f32 0.0, %v5938
      %v5940 = vpop.f32.mrb[0].mxu0
      %5941 = vmatprep.mubr.bf16.mxu0 0
      %5942 = vmatmul.mubr.bf16.gmra.mrb[0].mxu0 %v4548
      %v5943 = vpop.f32.mrb[0].mxu0
      %v5944 = vadd.f32 0.0, %v5943
      %v5945 = vpop.f32.mrb[0].mxu0
      %v5946 = vpop.f32.mrb[0].mxu0
      %v5947 = vadd.f32 0.0, %v5946
      %v5948 = vpop.f32.mrb[0].mxu0
      %5949 = vmatprep.mubr.bf16.mxu0 0
      %5950 = vmatmul.mubr.bf16.gmra.mrb[0].mxu0 %v4551
      %v5951 = vpop.f32.mrb[0].mxu0
      %v5952 = vadd.f32 0.0, %v5951
      %v5953 = vpop.f32.mrb[0].mxu0
      %v5954 = vpop.f32.mrb[0].mxu0
      %v5955 = vadd.f32 0.0, %v5954
      %v5956 = vpop.f32.mrb[0].mxu0
      %5957 = vmatprep.mubr.bf16.mxu0 0
      %5958 = vmatmul.mubr.bf16.gmra.mrb[0].mxu0 %v4554
      %v5959 = vpop.f32.mrb[0].mxu0
      %v5960 = vadd.f32 0.0, %v5959
      %v5961 = vpop.f32.mrb[0].mxu0
      %v5962 = vpop.f32.mrb[0].mxu0
      %v5963 = vadd.f32 0.0, %v5962
      %v5964 = vpop.f32.mrb[0].mxu0
      %5965 = vmatprep.mubr.bf16.mxu0 0
      %5966 = vmatmul.mubr.bf16.gmra.mrb[0].mxu0 %v4557
      %v5967 = vpop.f32.mrb[0].mxu0
      %v5968 = vadd.f32 0.0, %v5967
      %v5969 = vpop.f32.mrb[0].mxu0
      %v5970 = vpop.f32.mrb[0].mxu0
      %v5971 = vadd.f32 0.0, %v5970
      %v5972 = vpop.f32.mrb[0].mxu0
      %5973 = vmatprep.mubr.bf16.mxu0 0
      %5974 = vmatmul.mubr.bf16.gmra.mrb[0].mxu0 %v4560
      %v5975 = vpop.f32.mrb[0].mxu0
      %v5976 = vadd.f32 0.0, %v5975
      %v5977 = vpop.f32.mrb[0].mxu0
      %v5978 = vpop.f32.mrb[0].mxu0
      %v5979 = vadd.f32 0.0, %v5978
      %v5980 = vpop.f32.mrb[0].mxu0
      %5981 = vmatprep.mubr.bf16.mxu0 0
      %5982 = vmatmul.mubr.bf16.gmra.mrb[0].mxu0 %v4563
      %v5983 = vpop.f32.mrb[0].mxu0
      %v5984 = vadd.f32 0.0, %v5983
      %v5985 = vpop.f32.mrb[0].mxu0
      %v5986 = vpop.f32.mrb[0].mxu0
      %v5987 = vadd.f32 0.0, %v5986
      %v5988 = vpop.f32.mrb[0].mxu0
      %5989 = vmatprep.mubr.bf16.mxu0 0
      %5990 = vmatmul.mubr.bf16.gmra.mrb[0].mxu0 %v4566
      %v5991 = vpop.f32.mrb[0].mxu0
      %v5992 = vadd.f32 0.0, %v5991
      %v5993 = vpop.f32.mrb[0].mxu0
      %v5994 = vpop.f32.mrb[0].mxu0
      %v5995 = vadd.f32 0.0, %v5994
      %v5996 = vpop.f32.mrb[0].mxu0
      %5997 = vmatprep.mubr.bf16.mxu0 0
      %5998 = vmatmul.mubr.bf16.gmra.mrb[0].mxu0 %v4569
      %v5999 = vpop.f32.mrb[0].mxu0
      %v6000 = vadd.f32 0.0, %v5999
      %v6001 = vpop.f32.mrb[0].mxu0
      %v6002 = vpop.f32.mrb[0].mxu0
      %v6003 = vadd.f32 0.0, %v6002
      %v6004 = vpop.f32.mrb[0].mxu0
      %6005 = vmatprep.mubr.bf16.mxu0 0
      %6006 = vmatmul.mubr.bf16.gmra.mrb[0].mxu0 %v4572
      %v6007 = vpop.f32.mrb[0].mxu0
      %v6008 = vadd.f32 0.0, %v6007
      %v6009 = vpop.f32.mrb[0].mxu0
      %v6010 = vpop.f32.mrb[0].mxu0
      %v6011 = vadd.f32 0.0, %v6010
      %v6012 = vpop.f32.mrb[0].mxu0
      %6013 = vmatprep.mubr.bf16.mxu0 0
      %6014 = vmatmul.mubr.bf16.gmra.mrb[0].mxu0 %v4575
      %v6015 = vpop.f32.mrb[0].mxu0
      %v6016 = vadd.f32 0.0, %v6015
      %v6017 = vpop.f32.mrb[0].mxu0
      %v6018 = vpop.f32.mrb[0].mxu0
      %v6019 = vadd.f32 0.0, %v6018
      %v6020 = vpop.f32.mrb[0].mxu0
      %6021 = vmatprep.mubr.bf16.mxu0 0
      %6022 = vmatmul.mubr.bf16.gmra.mrb[0].mxu0 %v4578
      %v6023 = vpop.f32.mrb[0].mxu0
      %v6024 = vadd.f32 0.0, %v6023
      %v6025 = vpop.f32.mrb[0].mxu0
      %v6026 = vpop.f32.mrb[0].mxu0
      %v6027 = vadd.f32 0.0, %v6026
      %v6028 = vpop.f32.mrb[0].mxu0
      %6029 = vmatprep.mubr.bf16.mxu0 0
      %6030 = vmatmul.mubr.bf16.gmra.mrb[0].mxu0 %v4581
      %v6031 = vpop.f32.mrb[0].mxu0
      %v6032 = vadd.f32 0.0, %v6031
      %v6033 = vpop.f32.mrb[0].mxu0
      %v6034 = vpop.f32.mrb[0].mxu0
      %v6035 = vadd.f32 0.0, %v6034
      %v6036 = vpop.f32.mrb[0].mxu0
      %6037 = vmatprep.mubr.bf16.mxu0 0
      %6038 = vmatmul.mubr.bf16.gmra.mrb[0].mxu0 %v4584
      %v6039 = vpop.f32.mrb[0].mxu0
      %v6040 = vadd.f32 0.0, %v6039
      %v6041 = vpop.f32.mrb[0].mxu0
      %v6042 = vpop.f32.mrb[0].mxu0
      %v6043 = vadd.f32 0.0, %v6042
      %v6044 = vpop.f32.mrb[0].mxu0
      %6045 = vmatprep.mubr.bf16.mxu0 0
      %6046 = vmatmul.mubr.bf16.gmra.mrb[0].mxu0 %v5888
      %v6047 = vpop.f32.mrb[0].mxu0
      %v6048 = vadd.f32 0.0, %v6047
      %v6049 = vpop.f32.mrb[0].mxu0
      %v6050 = vpop.f32.mrb[0].mxu0
      %v6051 = vadd.f32 0.0, %v6050
      %v6052 = vpop.f32.mrb[0].mxu0
      %6053 = vdwg.mxu0
      %v6054 = vadd.f32 %v5851, %v5928
      %v6055 = vadd.f32 %v5852, %v5931
      %v6056 = vadd.f32 %v5853, %v5936
      %v6057 = vadd.f32 %v5854, %v5939
      %v6058 = vadd.f32 %v5855, %v5944
      %v6059 = vadd.f32 %v5856, %v5947
      %v6060 = vadd.f32 %v5857, %v5952
      %v6061 = vadd.f32 %v5858, %v5955
      %v6062 = vadd.f32 %v5859, %v5960
      %v6063 = vadd.f32 %v5860, %v5963
      %v6064 = vadd.f32 %v5861, %v5968
      %v6065 = vadd.f32 %v5862, %v5971
      %v6066 = vadd.f32 %v5863, %v5976
      %v6067 = vadd.f32 %v5864, %v5979
      %v6068 = vadd.f32 %v5865, %v5984
      %v6069 = vadd.f32 %v5866, %v5987
      %v6070 = vadd.f32 %v5867, %v5992
      %v6071 = vadd.f32 %v5868, %v5995
      %v6072 = vadd.f32 %v5869, %v6000
      %v6073 = vadd.f32 %v5870, %v6003
      %v6074 = vadd.f32 %v5871, %v6008
      %v6075 = vadd.f32 %v5872, %v6011
      %v6076 = vadd.f32 %v5873, %v6016
      %v6077 = vadd.f32 %v5874, %v6019
      %v6078 = vadd.f32 %v5875, %v6024
      %v6079 = vadd.f32 %v5876, %v6027
      %v6080 = vadd.f32 %v5877, %v6032
      %v6081 = vadd.f32 %v5878, %v6035
      %v6082 = vadd.f32 %v5879, %v6040
      %v6083 = vadd.f32 %v5880, %v6043
      %v6084 = vadd.f32 %v5881, %v6048
      %v6085 = vadd.f32 %v5882, %v6051
      %s6086 = scalar_lea.vmem %s8, 12
      %v6087 = vld [vmem:[%s6086] sm:$0x3]
      %v6089 = vunpack.c.l.b16 %v1254
      %v6090 = vunpack.c.l.b16 %v1474
      %v6091 = vpack.c.b16 %v6090, %v6089
      %v6093 = vsel %vm1868, %v6091, 0
      %v6096 = vsel %vm1917, %v6087, 0
      %6098 = vmatprep.subr.bf16.mxu0 0
      %6099 = vmatpush1.bf16.msra.mxu0 %v6096
      %6100 = vmatprep.subr.bf16.mxu0 0
      %6101 = vmatpush1.bf16.msra.mxu0 0
      %6102 = vmatprep.subr.bf16.mxu0 0
      %6103 = vmatpush1.bf16.msra.mxu0 0
      %6104 = vmatprep.subr.bf16.mxu0 0
      %6105 = vmatpush1.bf16.msra.mxu0 0
      %6106 = vmatprep.subr.bf16.mxu0 0
      %6107 = vmatpush1.bf16.msra.mxu0 0
      %6108 = vmatprep.subr.bf16.mxu0 0
      %6109 = vmatpush1.bf16.msra.mxu0 0
      %6110 = vmatprep.subr.bf16.mxu0 0
      %6111 = vmatpush1.bf16.msra.mxu0 0
      %6112 = vmatprep.subr.bf16.mxu0 0
      %6113 = vmatpush1.bf16.msra.mxu0 0
      %6114 = vmatprep.subr.bf16.mxu0 0
      %6115 = vmatpush1.bf16.msra.mxu0 0
      %6116 = vmatprep.subr.bf16.mxu0 0
      %6117 = vmatpush1.bf16.msra.mxu0 0
      %6118 = vmatprep.subr.bf16.mxu0 0
      %6119 = vmatpush1.bf16.msra.mxu0 0
      %6120 = vmatprep.subr.bf16.mxu0 0
      %6121 = vmatpush1.bf16.msra.mxu0 0
      %6122 = vmatprep.subr.bf16.mxu0 0
      %6123 = vmatpush1.bf16.msra.mxu0 0
      %6124 = vmatprep.subr.bf16.mxu0 0
      %6125 = vmatpush1.bf16.msra.mxu0 0
      %6126 = vmatprep.subr.bf16.mxu0 0
      %6127 = vmatpush1.bf16.msra.mxu0 0
      %6128 = vmatprep.subr.bf16.mxu0 0
      %6129 = vmatpush1.bf16.msra.mxu0 0
      %6130 = vmatprep.mubr.bf16.mxu0 0
      %6131 = vmatmul.mubr.bf16.gmra.mrb[0].mxu0 %v2153
      %v6132 = vpop.f32.mrb[0].mxu0
      %v6133 = vadd.f32 0.0, %v6132
      %v6134 = vpop.f32.mrb[0].mxu0
      %v6135 = vpop.f32.mrb[0].mxu0
      %v6136 = vadd.f32 0.0, %v6135
      %v6137 = vpop.f32.mrb[0].mxu0
      %6138 = vmatprep.mubr.bf16.mxu0 0
      %6139 = vmatmul.mubr.bf16.gmra.mrb[0].mxu0 %v2156
      %v6140 = vpop.f32.mrb[0].mxu0
      %v6141 = vadd.f32 0.0, %v6140
      %v6142 = vpop.f32.mrb[0].mxu0
      %v6143 = vpop.f32.mrb[0].mxu0
      %v6144 = vadd.f32 0.0, %v6143
      %v6145 = vpop.f32.mrb[0].mxu0
      %6146 = vmatprep.mubr.bf16.mxu0 0
      %6147 = vmatmul.mubr.bf16.gmra.mrb[0].mxu0 %v2159
      %v6148 = vpop.f32.mrb[0].mxu0
      %v6149 = vadd.f32 0.0, %v6148
      %v6150 = vpop.f32.mrb[0].mxu0
      %v6151 = vpop.f32.mrb[0].mxu0
      %v6152 = vadd.f32 0.0, %v6151
      %v6153 = vpop.f32.mrb[0].mxu0
      %6154 = vmatprep.mubr.bf16.mxu0 0
      %6155 = vmatmul.mubr.bf16.gmra.mrb[0].mxu0 %v2162
      %v6156 = vpop.f32.mrb[0].mxu0
      %v6157 = vadd.f32 0.0, %v6156
      %v6158 = vpop.f32.mrb[0].mxu0
      %v6159 = vpop.f32.mrb[0].mxu0
      %v6160 = vadd.f32 0.0, %v6159
      %v6161 = vpop.f32.mrb[0].mxu0
      %6162 = vmatprep.mubr.bf16.mxu0 0
      %6163 = vmatmul.mubr.bf16.gmra.mrb[0].mxu0 %v2165
      %v6164 = vpop.f32.mrb[0].mxu0
      %v6165 = vadd.f32 0.0, %v6164
      %v6166 = vpop.f32.mrb[0].mxu0
      %v6167 = vpop.f32.mrb[0].mxu0
      %v6168 = vadd.f32 0.0, %v6167
      %v6169 = vpop.f32.mrb[0].mxu0
      %6170 = vmatprep.mubr.bf16.mxu0 0
      %6171 = vmatmul.mubr.bf16.gmra.mrb[0].mxu0 %v2168
      %v6172 = vpop.f32.mrb[0].mxu0
      %v6173 = vadd.f32 0.0, %v6172
      %v6174 = vpop.f32.mrb[0].mxu0
      %v6175 = vpop.f32.mrb[0].mxu0
      %v6176 = vadd.f32 0.0, %v6175
      %v6177 = vpop.f32.mrb[0].mxu0
      %6178 = vmatprep.mubr.bf16.mxu0 0
      %6179 = vmatmul.mubr.bf16.gmra.mrb[0].mxu0 %v2171
      %v6180 = vpop.f32.mrb[0].mxu0
      %v6181 = vadd.f32 0.0, %v6180
      %v6182 = vpop.f32.mrb[0].mxu0
      %v6183 = vpop.f32.mrb[0].mxu0
      %v6184 = vadd.f32 0.0, %v6183
      %v6185 = vpop.f32.mrb[0].mxu0
      %6186 = vmatprep.mubr.bf16.mxu0 0
      %6187 = vmatmul.mubr.bf16.gmra.mrb[0].mxu0 %v2174
      %v6188 = vpop.f32.mrb[0].mxu0
      %v6189 = vadd.f32 0.0, %v6188
      %v6190 = vpop.f32.mrb[0].mxu0
      %v6191 = vpop.f32.mrb[0].mxu0
      %v6192 = vadd.f32 0.0, %v6191
      %v6193 = vpop.f32.mrb[0].mxu0
      %6194 = vmatprep.mubr.bf16.mxu0 0
      %6195 = vmatmul.mubr.bf16.gmra.mrb[0].mxu0 %v2177
      %v6196 = vpop.f32.mrb[0].mxu0
      %v6197 = vadd.f32 0.0, %v6196
      %v6198 = vpop.f32.mrb[0].mxu0
      %v6199 = vpop.f32.mrb[0].mxu0
      %v6200 = vadd.f32 0.0, %v6199
      %v6201 = vpop.f32.mrb[0].mxu0
      %6202 = vmatprep.mubr.bf16.mxu0 0
      %6203 = vmatmul.mubr.bf16.gmra.mrb[0].mxu0 %v2180
      %v6204 = vpop.f32.mrb[0].mxu0
      %v6205 = vadd.f32 0.0, %v6204
      %v6206 = vpop.f32.mrb[0].mxu0
      %v6207 = vpop.f32.mrb[0].mxu0
      %v6208 = vadd.f32 0.0, %v6207
      %v6209 = vpop.f32.mrb[0].mxu0
      %6210 = vmatprep.mubr.bf16.mxu0 0
      %6211 = vmatmul.mubr.bf16.gmra.mrb[0].mxu0 %v2183
      %v6212 = vpop.f32.mrb[0].mxu0
      %v6213 = vadd.f32 0.0, %v6212
      %v6214 = vpop.f32.mrb[0].mxu0
      %v6215 = vpop.f32.mrb[0].mxu0
      %v6216 = vadd.f32 0.0, %v6215
      %v6217 = vpop.f32.mrb[0].mxu0
      %6218 = vmatprep.mubr.bf16.mxu0 0
      %6219 = vmatmul.mubr.bf16.gmra.mrb[0].mxu0 %v2186
      %v6220 = vpop.f32.mrb[0].mxu0
      %v6221 = vadd.f32 0.0, %v6220
      %v6222 = vpop.f32.mrb[0].mxu0
      %v6223 = vpop.f32.mrb[0].mxu0
      %v6224 = vadd.f32 0.0, %v6223
      %v6225 = vpop.f32.mrb[0].mxu0
      %6226 = vmatprep.mubr.bf16.mxu0 0
      %6227 = vmatmul.mubr.bf16.gmra.mrb[0].mxu0 %v2189
      %v6228 = vpop.f32.mrb[0].mxu0
      %v6229 = vadd.f32 0.0, %v6228
      %v6230 = vpop.f32.mrb[0].mxu0
      %v6231 = vpop.f32.mrb[0].mxu0
      %v6232 = vadd.f32 0.0, %v6231
      %v6233 = vpop.f32.mrb[0].mxu0
      %6234 = vmatprep.mubr.bf16.mxu0 0
      %6235 = vmatmul.mubr.bf16.gmra.mrb[0].mxu0 %v2192
      %v6236 = vpop.f32.mrb[0].mxu0
      %v6237 = vadd.f32 0.0, %v6236
      %v6238 = vpop.f32.mrb[0].mxu0
      %v6239 = vpop.f32.mrb[0].mxu0
      %v6240 = vadd.f32 0.0, %v6239
      %v6241 = vpop.f32.mrb[0].mxu0
      %6242 = vmatprep.mubr.bf16.mxu0 0
      %6243 = vmatmul.mubr.bf16.gmra.mrb[0].mxu0 %v4789
      %v6244 = vpop.f32.mrb[0].mxu0
      %v6245 = vadd.f32 0.0, %v6244
      %v6246 = vpop.f32.mrb[0].mxu0
      %v6247 = vpop.f32.mrb[0].mxu0
      %v6248 = vadd.f32 0.0, %v6247
      %v6249 = vpop.f32.mrb[0].mxu0
      %6250 = vmatprep.mubr.bf16.mxu0 0
      %6251 = vmatmul.mubr.bf16.gmra.mrb[0].mxu0 %v6093
      %v6252 = vpop.f32.mrb[0].mxu0
      %v6253 = vadd.f32 0.0, %v6252
      %v6254 = vpop.f32.mrb[0].mxu0
      %v6255 = vpop.f32.mrb[0].mxu0
      %v6256 = vadd.f32 0.0, %v6255
      %v6257 = vpop.f32.mrb[0].mxu0
      %6258 = vdwg.mxu0
      %v6259 = vadd.f32 %v6054, %v6133
      %v6260 = vadd.f32 %v6055, %v6136
      %v6261 = vadd.f32 %v6056, %v6141
      %v6262 = vadd.f32 %v6057, %v6144
      %v6263 = vadd.f32 %v6058, %v6149
      %v6264 = vadd.f32 %v6059, %v6152
      %v6265 = vadd.f32 %v6060, %v6157
      %v6266 = vadd.f32 %v6061, %v6160
      %v6267 = vadd.f32 %v6062, %v6165
      %v6268 = vadd.f32 %v6063, %v6168
      %v6269 = vadd.f32 %v6064, %v6173
      %v6270 = vadd.f32 %v6065, %v6176
      %v6271 = vadd.f32 %v6066, %v6181
      %v6272 = vadd.f32 %v6067, %v6184
      %v6273 = vadd.f32 %v6068, %v6189
      %v6274 = vadd.f32 %v6069, %v6192
      %v6275 = vadd.f32 %v6070, %v6197
      %v6276 = vadd.f32 %v6071, %v6200
      %v6277 = vadd.f32 %v6072, %v6205
      %v6278 = vadd.f32 %v6073, %v6208
      %v6279 = vadd.f32 %v6074, %v6213
      %v6280 = vadd.f32 %v6075, %v6216
      %v6281 = vadd.f32 %v6076, %v6221
      %v6282 = vadd.f32 %v6077, %v6224
      %v6283 = vadd.f32 %v6078, %v6229
      %v6284 = vadd.f32 %v6079, %v6232
      %v6285 = vadd.f32 %v6080, %v6237
      %v6286 = vadd.f32 %v6081, %v6240
      %v6287 = vadd.f32 %v6082, %v6245
      %v6288 = vadd.f32 %v6083, %v6248
      %v6289 = vadd.f32 %v6084, %v6253
      %v6290 = vadd.f32 %v6085, %v6256
      %s6291 = scalar_lea.vmem %s9, 12
      %v6292 = vld [vmem:[%s6291] sm:$0x3]
      %v6294 = vunpack.c.l.b16 %v1347
      %v6295 = vunpack.c.l.b16 %v1729
      %v6296 = vpack.c.b16 %v6295, %v6294
      %v6298 = vsel %vm1868, %v6296, 0
      %v6301 = vsel %vm1917, %v6292, 0
      %6303 = vmatprep.subr.bf16.mxu0 0
      %6304 = vmatpush1.bf16.msra.mxu0 %v6301
      %6305 = vmatprep.subr.bf16.mxu0 0
      %6306 = vmatpush1.bf16.msra.mxu0 0
      %6307 = vmatprep.subr.bf16.mxu0 0
      %6308 = vmatpush1.bf16.msra.mxu0 0
      %6309 = vmatprep.subr.bf16.mxu0 0
      %6310 = vmatpush1.bf16.msra.mxu0 0
      %6311 = vmatprep.subr.bf16.mxu0 0
      %6312 = vmatpush1.bf16.msra.mxu0 0
      %6313 = vmatprep.subr.bf16.mxu0 0
      %6314 = vmatpush1.bf16.msra.mxu0 0
      %6315 = vmatprep.subr.bf16.mxu0 0
      %6316 = vmatpush1.bf16.msra.mxu0 0
      %6317 = vmatprep.subr.bf16.mxu0 0
      %6318 = vmatpush1.bf16.msra.mxu0 0
      %6319 = vmatprep.subr.bf16.mxu0 0
      %6320 = vmatpush1.bf16.msra.mxu0 0
      %6321 = vmatprep.subr.bf16.mxu0 0
      %6322 = vmatpush1.bf16.msra.mxu0 0
      %6323 = vmatprep.subr.bf16.mxu0 0
      %6324 = vmatpush1.bf16.msra.mxu0 0
      %6325 = vmatprep.subr.bf16.mxu0 0
      %6326 = vmatpush1.bf16.msra.mxu0 0
      %6327 = vmatprep.subr.bf16.mxu0 0
      %6328 = vmatpush1.bf16.msra.mxu0 0
      %6329 = vmatprep.subr.bf16.mxu0 0
      %6330 = vmatpush1.bf16.msra.mxu0 0
      %6331 = vmatprep.subr.bf16.mxu0 0
      %6332 = vmatpush1.bf16.msra.mxu0 0
      %6333 = vmatprep.subr.bf16.mxu0 0
      %6334 = vmatpush1.bf16.msra.mxu0 0
      %6335 = vmatprep.mubr.bf16.mxu0 0
      %6336 = vmatmul.mubr.bf16.gmra.mrb[0].mxu0 %v1876
      %v6337 = vpop.f32.mrb[0].mxu0
      %v6338 = vadd.f32 0.0, %v6337
      %v6339 = vpop.f32.mrb[0].mxu0
      %v6340 = vpop.f32.mrb[0].mxu0
      %v6341 = vadd.f32 0.0, %v6340
      %v6342 = vpop.f32.mrb[0].mxu0
      %6343 = vmatprep.mubr.bf16.mxu0 0
      %6344 = vmatmul.mubr.bf16.gmra.mrb[0].mxu0 %v1879
      %v6345 = vpop.f32.mrb[0].mxu0
      %v6346 = vadd.f32 0.0, %v6345
      %v6347 = vpop.f32.mrb[0].mxu0
      %v6348 = vpop.f32.mrb[0].mxu0
      %v6349 = vadd.f32 0.0, %v6348
      %v6350 = vpop.f32.mrb[0].mxu0
      %6351 = vmatprep.mubr.bf16.mxu0 0
      %6352 = vmatmul.mubr.bf16.gmra.mrb[0].mxu0 %v1882
      %v6353 = vpop.f32.mrb[0].mxu0
      %v6354 = vadd.f32 0.0, %v6353
      %v6355 = vpop.f32.mrb[0].mxu0
      %v6356 = vpop.f32.mrb[0].mxu0
      %v6357 = vadd.f32 0.0, %v6356
      %v6358 = vpop.f32.mrb[0].mxu0
      %6359 = vmatprep.mubr.bf16.mxu0 0
      %6360 = vmatmul.mubr.bf16.gmra.mrb[0].mxu0 %v1885
      %v6361 = vpop.f32.mrb[0].mxu0
      %v6362 = vadd.f32 0.0, %v6361
      %v6363 = vpop.f32.mrb[0].mxu0
      %v6364 = vpop.f32.mrb[0].mxu0
      %v6365 = vadd.f32 0.0, %v6364
      %v6366 = vpop.f32.mrb[0].mxu0
      %6367 = vmatprep.mubr.bf16.mxu0 0
      %6368 = vmatmul.mubr.bf16.gmra.mrb[0].mxu0 %v1888
      %v6369 = vpop.f32.mrb[0].mxu0
      %v6370 = vadd.f32 0.0, %v6369
      %v6371 = vpop.f32.mrb[0].mxu0
      %v6372 = vpop.f32.mrb[0].mxu0
      %v6373 = vadd.f32 0.0, %v6372
      %v6374 = vpop.f32.mrb[0].mxu0
      %6375 = vmatprep.mubr.bf16.mxu0 0
      %6376 = vmatmul.mubr.bf16.gmra.mrb[0].mxu0 %v1891
      %v6377 = vpop.f32.mrb[0].mxu0
      %v6378 = vadd.f32 0.0, %v6377
      %v6379 = vpop.f32.mrb[0].mxu0
      %v6380 = vpop.f32.mrb[0].mxu0
      %v6381 = vadd.f32 0.0, %v6380
      %v6382 = vpop.f32.mrb[0].mxu0
      %6383 = vmatprep.mubr.bf16.mxu0 0
      %6384 = vmatmul.mubr.bf16.gmra.mrb[0].mxu0 %v1894
      %v6385 = vpop.f32.mrb[0].mxu0
      %v6386 = vadd.f32 0.0, %v6385
      %v6387 = vpop.f32.mrb[0].mxu0
      %v6388 = vpop.f32.mrb[0].mxu0
      %v6389 = vadd.f32 0.0, %v6388
      %v6390 = vpop.f32.mrb[0].mxu0
      %6391 = vmatprep.mubr.bf16.mxu0 0
      %6392 = vmatmul.mubr.bf16.gmra.mrb[0].mxu0 %v1897
      %v6393 = vpop.f32.mrb[0].mxu0
      %v6394 = vadd.f32 0.0, %v6393
      %v6395 = vpop.f32.mrb[0].mxu0
      %v6396 = vpop.f32.mrb[0].mxu0
      %v6397 = vadd.f32 0.0, %v6396
      %v6398 = vpop.f32.mrb[0].mxu0
      %6399 = vmatprep.mubr.bf16.mxu0 0
      %6400 = vmatmul.mubr.bf16.gmra.mrb[0].mxu0 %v1900
      %v6401 = vpop.f32.mrb[0].mxu0
      %v6402 = vadd.f32 0.0, %v6401
      %v6403 = vpop.f32.mrb[0].mxu0
      %v6404 = vpop.f32.mrb[0].mxu0
      %v6405 = vadd.f32 0.0, %v6404
      %v6406 = vpop.f32.mrb[0].mxu0
      %6407 = vmatprep.mubr.bf16.mxu0 0
      %6408 = vmatmul.mubr.bf16.gmra.mrb[0].mxu0 %v1903
      %v6409 = vpop.f32.mrb[0].mxu0
      %v6410 = vadd.f32 0.0, %v6409
      %v6411 = vpop.f32.mrb[0].mxu0
      %v6412 = vpop.f32.mrb[0].mxu0
      %v6413 = vadd.f32 0.0, %v6412
      %v6414 = vpop.f32.mrb[0].mxu0
      %6415 = vmatprep.mubr.bf16.mxu0 0
      %6416 = vmatmul.mubr.bf16.gmra.mrb[0].mxu0 %v1906
      %v6417 = vpop.f32.mrb[0].mxu0
      %v6418 = vadd.f32 0.0, %v6417
      %v6419 = vpop.f32.mrb[0].mxu0
      %v6420 = vpop.f32.mrb[0].mxu0
      %v6421 = vadd.f32 0.0, %v6420
      %v6422 = vpop.f32.mrb[0].mxu0
      %6423 = vmatprep.mubr.bf16.mxu0 0
      %6424 = vmatmul.mubr.bf16.gmra.mrb[0].mxu0 %v1909
      %v6425 = vpop.f32.mrb[0].mxu0
      %v6426 = vadd.f32 0.0, %v6425
      %v6427 = vpop.f32.mrb[0].mxu0
      %v6428 = vpop.f32.mrb[0].mxu0
      %v6429 = vadd.f32 0.0, %v6428
      %v6430 = vpop.f32.mrb[0].mxu0
      %6431 = vmatprep.mubr.bf16.mxu0 0
      %6432 = vmatmul.mubr.bf16.gmra.mrb[0].mxu0 %v1912
      %v6433 = vpop.f32.mrb[0].mxu0
      %v6434 = vadd.f32 0.0, %v6433
      %v6435 = vpop.f32.mrb[0].mxu0
      %v6436 = vpop.f32.mrb[0].mxu0
      %v6437 = vadd.f32 0.0, %v6436
      %v6438 = vpop.f32.mrb[0].mxu0
      %6439 = vmatprep.mubr.bf16.mxu0 0
      %6440 = vmatmul.mubr.bf16.gmra.mrb[0].mxu0 %v1915
      %v6441 = vpop.f32.mrb[0].mxu0
      %v6442 = vadd.f32 0.0, %v6441
      %v6443 = vpop.f32.mrb[0].mxu0
      %v6444 = vpop.f32.mrb[0].mxu0
      %v6445 = vadd.f32 0.0, %v6444
      %v6446 = vpop.f32.mrb[0].mxu0
      %6447 = vmatprep.mubr.bf16.mxu0 0
      %6448 = vmatmul.mubr.bf16.gmra.mrb[0].mxu0 %v4994
      %v6449 = vpop.f32.mrb[0].mxu0
      %v6450 = vadd.f32 0.0, %v6449
      %v6451 = vpop.f32.mrb[0].mxu0
      %v6452 = vpop.f32.mrb[0].mxu0
      %v6453 = vadd.f32 0.0, %v6452
      %v6454 = vpop.f32.mrb[0].mxu0
      %6455 = vmatprep.mubr.bf16.mxu0 0
      %6456 = vmatmul.mubr.bf16.gmra.mrb[0].mxu0 %v6298
      %v6457 = vpop.f32.mrb[0].mxu0
      %v6458 = vadd.f32 0.0, %v6457
      %v6459 = vpop.f32.mrb[0].mxu0
      %v6460 = vpop.f32.mrb[0].mxu0
      %v6461 = vadd.f32 0.0, %v6460
      %v6462 = vpop.f32.mrb[0].mxu0
      %6463 = vdwg.mxu0
      %v6464 = vadd.f32 %v6259, %v6338
      %v6465 = vadd.f32 %v6260, %v6341
      %v6466 = vadd.f32 %v6261, %v6346
      %v6467 = vadd.f32 %v6262, %v6349
      %v6468 = vadd.f32 %v6263, %v6354
      %v6469 = vadd.f32 %v6264, %v6357
      %v6470 = vadd.f32 %v6265, %v6362
      %v6471 = vadd.f32 %v6266, %v6365
      %v6472 = vadd.f32 %v6267, %v6370
      %v6473 = vadd.f32 %v6268, %v6373
      %v6474 = vadd.f32 %v6269, %v6378
      %v6475 = vadd.f32 %v6270, %v6381
      %v6476 = vadd.f32 %v6271, %v6386
      %v6477 = vadd.f32 %v6272, %v6389
      %v6478 = vadd.f32 %v6273, %v6394
      %v6479 = vadd.f32 %v6274, %v6397
      %v6480 = vadd.f32 %v6275, %v6402
      %v6481 = vadd.f32 %v6276, %v6405
      %v6482 = vadd.f32 %v6277, %v6410
      %v6483 = vadd.f32 %v6278, %v6413
      %v6484 = vadd.f32 %v6279, %v6418
      %v6485 = vadd.f32 %v6280, %v6421
      %v6486 = vadd.f32 %v6281, %v6426
      %v6487 = vadd.f32 %v6282, %v6429
      %v6488 = vadd.f32 %v6283, %v6434
      %v6489 = vadd.f32 %v6284, %v6437
      %v6490 = vadd.f32 %v6285, %v6442
      %v6491 = vadd.f32 %v6286, %v6445
      %v6492 = vadd.f32 %v6287, %v6450
      %v6493 = vadd.f32 %v6288, %v6453
      %v6494 = vadd.f32 %v6289, %v6458
      %v6495 = vadd.f32 %v6290, %v6461
      %v6497 = vunpack.c.l.b16 %v1253
      %v6498 = vunpack.c.h.b16 %v1253
      %v6499 = vunpack.c.h.b16 %v1254
      %v6500 = vpack.c.b16 %v6497, %v6497
      %v6501 = vpack.c.b16 %v6498, %v6498
      %v6502 = vpack.c.b16 %v6089, %v6089
      %v6503 = vpack.c.b16 %v6499, %v6499
      %v6505 = vshrl.u32 %v6500, 16
      %v6507 = vrot.slane %v6505, 4
      %v6508 = vshll.u32 %v6500, 16
      %v6510 = vrot.slane %v6508, 5
      %v6511 = vor.u32 %v6507, %v6510
      %v6512 = vrot.slane %v6511, 4
      %v6514 = vshll.u32 %v6501, 16
      %v6516 = vrot.slane %v6514, 5
      %v6517 = vsel %vm1477, %v6512, %v6516
      %v6519 = vshrl.u32 %v6502, 16
      %v6521 = vrot.slane %v6519, 4
      %v6522 = vshll.u32 %v6502, 16
      %v6524 = vrot.slane %v6522, 5
      %v6525 = vor.u32 %v6521, %v6524
      %v6526 = vrot.slane %v6525, 4
      %v6528 = vshll.u32 %v6503, 16
      %v6530 = vrot.slane %v6528, 5
      %v6531 = vsel %vm1477, %v6526, %v6530
      %v6533 = vshrl.u32 %v1347, 16
      %v6535 = vrot.slane %v6533, 4
      %v6536 = vshll.u32 %v1347, 16
      %v6538 = vrot.slane %v6536, 5
      %v6539 = vor.u32 %v6535, %v6538
      %v6540 = vrot.slane %v6539, 4
      %v6542 = vshll.u32 %v1348, 16
      %v6544 = vrot.slane %v6542, 5
      %v6545 = vsel %vm1477, %v6540, %v6544
      %s6546 = scalar_lea.vmem %s8, 14
      %v6547 = vld [vmem:[%s6546] sm:$0x3]
      %v6548 = vunpack.c.l.b16 %v6517
      %v6549 = vunpack.c.l.b16 %v6531
      %v6550 = vpack.c.b16 %v6549, %v6548
      %v6552 = vsel %vm1868, %v6550, 0
      %v6555 = vsel %vm1917, %v6547, 0
      %6557 = vmatprep.subr.bf16.mxu0 0
      %6558 = vmatpush1.bf16.msra.mxu0 %v6555
      %6559 = vmatprep.subr.bf16.mxu0 0
      %6560 = vmatpush1.bf16.msra.mxu0 0
      %6561 = vmatprep.subr.bf16.mxu0 0
      %6562 = vmatpush1.bf16.msra.mxu0 0
      %6563 = vmatprep.subr.bf16.mxu0 0
      %6564 = vmatpush1.bf16.msra.mxu0 0
      %6565 = vmatprep.subr.bf16.mxu0 0
      %6566 = vmatpush1.bf16.msra.mxu0 0
      %6567 = vmatprep.subr.bf16.mxu0 0
      %6568 = vmatpush1.bf16.msra.mxu0 0
      %6569 = vmatprep.subr.bf16.mxu0 0
      %6570 = vmatpush1.bf16.msra.mxu0 0
      %6571 = vmatprep.subr.bf16.mxu0 0
      %6572 = vmatpush1.bf16.msra.mxu0 0
      %6573 = vmatprep.subr.bf16.mxu0 0
      %6574 = vmatpush1.bf16.msra.mxu0 0
      %6575 = vmatprep.subr.bf16.mxu0 0
      %6576 = vmatpush1.bf16.msra.mxu0 0
      %6577 = vmatprep.subr.bf16.mxu0 0
      %6578 = vmatpush1.bf16.msra.mxu0 0
      %6579 = vmatprep.subr.bf16.mxu0 0
      %6580 = vmatpush1.bf16.msra.mxu0 0
      %6581 = vmatprep.subr.bf16.mxu0 0
      %6582 = vmatpush1.bf16.msra.mxu0 0
      %6583 = vmatprep.subr.bf16.mxu0 0
      %6584 = vmatpush1.bf16.msra.mxu0 0
      %6585 = vmatprep.subr.bf16.mxu0 0
      %6586 = vmatpush1.bf16.msra.mxu0 0
      %6587 = vmatprep.subr.bf16.mxu0 0
      %6588 = vmatpush1.bf16.msra.mxu0 0
      %6589 = vmatprep.mubr.bf16.mxu0 0
      %6590 = vmatmul.mubr.bf16.gmra.mrb[0].mxu0 %v3215
      %v6591 = vpop.f32.mrb[0].mxu0
      %v6592 = vadd.f32 0.0, %v6591
      %v6593 = vpop.f32.mrb[0].mxu0
      %v6594 = vpop.f32.mrb[0].mxu0
      %v6595 = vadd.f32 0.0, %v6594
      %v6596 = vpop.f32.mrb[0].mxu0
      %6597 = vmatprep.mubr.bf16.mxu0 0
      %6598 = vmatmul.mubr.bf16.gmra.mrb[0].mxu0 %v3218
      %v6599 = vpop.f32.mrb[0].mxu0
      %v6600 = vadd.f32 0.0, %v6599
      %v6601 = vpop.f32.mrb[0].mxu0
      %v6602 = vpop.f32.mrb[0].mxu0
      %v6603 = vadd.f32 0.0, %v6602
      %v6604 = vpop.f32.mrb[0].mxu0
      %6605 = vmatprep.mubr.bf16.mxu0 0
      %6606 = vmatmul.mubr.bf16.gmra.mrb[0].mxu0 %v3221
      %v6607 = vpop.f32.mrb[0].mxu0
      %v6608 = vadd.f32 0.0, %v6607
      %v6609 = vpop.f32.mrb[0].mxu0
      %v6610 = vpop.f32.mrb[0].mxu0
      %v6611 = vadd.f32 0.0, %v6610
      %v6612 = vpop.f32.mrb[0].mxu0
      %6613 = vmatprep.mubr.bf16.mxu0 0
      %6614 = vmatmul.mubr.bf16.gmra.mrb[0].mxu0 %v3224
      %v6615 = vpop.f32.mrb[0].mxu0
      %v6616 = vadd.f32 0.0, %v6615
      %v6617 = vpop.f32.mrb[0].mxu0
      %v6618 = vpop.f32.mrb[0].mxu0
      %v6619 = vadd.f32 0.0, %v6618
      %v6620 = vpop.f32.mrb[0].mxu0
      %6621 = vmatprep.mubr.bf16.mxu0 0
      %6622 = vmatmul.mubr.bf16.gmra.mrb[0].mxu0 %v3227
      %v6623 = vpop.f32.mrb[0].mxu0
      %v6624 = vadd.f32 0.0, %v6623
      %v6625 = vpop.f32.mrb[0].mxu0
      %v6626 = vpop.f32.mrb[0].mxu0
      %v6627 = vadd.f32 0.0, %v6626
      %v6628 = vpop.f32.mrb[0].mxu0
      %6629 = vmatprep.mubr.bf16.mxu0 0
      %6630 = vmatmul.mubr.bf16.gmra.mrb[0].mxu0 %v3230
      %v6631 = vpop.f32.mrb[0].mxu0
      %v6632 = vadd.f32 0.0, %v6631
      %v6633 = vpop.f32.mrb[0].mxu0
      %v6634 = vpop.f32.mrb[0].mxu0
      %v6635 = vadd.f32 0.0, %v6634
      %v6636 = vpop.f32.mrb[0].mxu0
      %6637 = vmatprep.mubr.bf16.mxu0 0
      %6638 = vmatmul.mubr.bf16.gmra.mrb[0].mxu0 %v3233
      %v6639 = vpop.f32.mrb[0].mxu0
      %v6640 = vadd.f32 0.0, %v6639
      %v6641 = vpop.f32.mrb[0].mxu0
      %v6642 = vpop.f32.mrb[0].mxu0
      %v6643 = vadd.f32 0.0, %v6642
      %v6644 = vpop.f32.mrb[0].mxu0
      %6645 = vmatprep.mubr.bf16.mxu0 0
      %6646 = vmatmul.mubr.bf16.gmra.mrb[0].mxu0 %v3236
      %v6647 = vpop.f32.mrb[0].mxu0
      %v6648 = vadd.f32 0.0, %v6647
      %v6649 = vpop.f32.mrb[0].mxu0
      %v6650 = vpop.f32.mrb[0].mxu0
      %v6651 = vadd.f32 0.0, %v6650
      %v6652 = vpop.f32.mrb[0].mxu0
      %6653 = vmatprep.mubr.bf16.mxu0 0
      %6654 = vmatmul.mubr.bf16.gmra.mrb[0].mxu0 %v3239
      %v6655 = vpop.f32.mrb[0].mxu0
      %v6656 = vadd.f32 0.0, %v6655
      %v6657 = vpop.f32.mrb[0].mxu0
      %v6658 = vpop.f32.mrb[0].mxu0
      %v6659 = vadd.f32 0.0, %v6658
      %v6660 = vpop.f32.mrb[0].mxu0
      %6661 = vmatprep.mubr.bf16.mxu0 0
      %6662 = vmatmul.mubr.bf16.gmra.mrb[0].mxu0 %v3242
      %v6663 = vpop.f32.mrb[0].mxu0
      %v6664 = vadd.f32 0.0, %v6663
      %v6665 = vpop.f32.mrb[0].mxu0
      %v6666 = vpop.f32.mrb[0].mxu0
      %v6667 = vadd.f32 0.0, %v6666
      %v6668 = vpop.f32.mrb[0].mxu0
      %6669 = vmatprep.mubr.bf16.mxu0 0
      %6670 = vmatmul.mubr.bf16.gmra.mrb[0].mxu0 %v3245
      %v6671 = vpop.f32.mrb[0].mxu0
      %v6672 = vadd.f32 0.0, %v6671
      %v6673 = vpop.f32.mrb[0].mxu0
      %v6674 = vpop.f32.mrb[0].mxu0
      %v6675 = vadd.f32 0.0, %v6674
      %v6676 = vpop.f32.mrb[0].mxu0
      %6677 = vmatprep.mubr.bf16.mxu0 0
      %6678 = vmatmul.mubr.bf16.gmra.mrb[0].mxu0 %v3248
      %v6679 = vpop.f32.mrb[0].mxu0
      %v6680 = vadd.f32 0.0, %v6679
      %v6681 = vpop.f32.mrb[0].mxu0
      %v6682 = vpop.f32.mrb[0].mxu0
      %v6683 = vadd.f32 0.0, %v6682
      %v6684 = vpop.f32.mrb[0].mxu0
      %6685 = vmatprep.mubr.bf16.mxu0 0
      %6686 = vmatmul.mubr.bf16.gmra.mrb[0].mxu0 %v3251
      %v6687 = vpop.f32.mrb[0].mxu0
      %v6688 = vadd.f32 0.0, %v6687
      %v6689 = vpop.f32.mrb[0].mxu0
      %v6690 = vpop.f32.mrb[0].mxu0
      %v6691 = vadd.f32 0.0, %v6690
      %v6692 = vpop.f32.mrb[0].mxu0
      %6693 = vmatprep.mubr.bf16.mxu0 0
      %6694 = vmatmul.mubr.bf16.gmra.mrb[0].mxu0 %v3254
      %v6695 = vpop.f32.mrb[0].mxu0
      %v6696 = vadd.f32 0.0, %v6695
      %v6697 = vpop.f32.mrb[0].mxu0
      %v6698 = vpop.f32.mrb[0].mxu0
      %v6699 = vadd.f32 0.0, %v6698
      %v6700 = vpop.f32.mrb[0].mxu0
      %6701 = vmatprep.mubr.bf16.mxu0 0
      %6702 = vmatmul.mubr.bf16.gmra.mrb[0].mxu0 %v5248
      %v6703 = vpop.f32.mrb[0].mxu0
      %v6704 = vadd.f32 0.0, %v6703
      %v6705 = vpop.f32.mrb[0].mxu0
      %v6706 = vpop.f32.mrb[0].mxu0
      %v6707 = vadd.f32 0.0, %v6706
      %v6708 = vpop.f32.mrb[0].mxu0
      %6709 = vmatprep.mubr.bf16.mxu0 0
      %6710 = vmatmul.mubr.bf16.gmra.mrb[0].mxu0 %v6552
      %v6711 = vpop.f32.mrb[0].mxu0
      %v6712 = vadd.f32 0.0, %v6711
      %v6713 = vpop.f32.mrb[0].mxu0
      %v6714 = vpop.f32.mrb[0].mxu0
      %v6715 = vadd.f32 0.0, %v6714
      %v6716 = vpop.f32.mrb[0].mxu0
      %6717 = vdwg.mxu0
      %v6718 = vadd.f32 %v6464, %v6592
      %v6719 = vadd.f32 %v6465, %v6595
      %v6720 = vadd.f32 %v6466, %v6600
      %v6721 = vadd.f32 %v6467, %v6603
      %v6722 = vadd.f32 %v6468, %v6608
      %v6723 = vadd.f32 %v6469, %v6611
      %v6724 = vadd.f32 %v6470, %v6616
      %v6725 = vadd.f32 %v6471, %v6619
      %v6726 = vadd.f32 %v6472, %v6624
      %v6727 = vadd.f32 %v6473, %v6627
      %v6728 = vadd.f32 %v6474, %v6632
      %v6729 = vadd.f32 %v6475, %v6635
      %v6730 = vadd.f32 %v6476, %v6640
      %v6731 = vadd.f32 %v6477, %v6643
      %v6732 = vadd.f32 %v6478, %v6648
      %v6733 = vadd.f32 %v6479, %v6651
      %v6734 = vadd.f32 %v6480, %v6656
      %v6735 = vadd.f32 %v6481, %v6659
      %v6736 = vadd.f32 %v6482, %v6664
      %v6737 = vadd.f32 %v6483, %v6667
      %v6738 = vadd.f32 %v6484, %v6672
      %v6739 = vadd.f32 %v6485, %v6675
      %v6740 = vadd.f32 %v6486, %v6680
      %v6741 = vadd.f32 %v6487, %v6683
      %v6742 = vadd.f32 %v6488, %v6688
      %v6743 = vadd.f32 %v6489, %v6691
      %v6744 = vadd.f32 %v6490, %v6696
      %v6745 = vadd.f32 %v6491, %v6699
      %v6746 = vadd.f32 %v6492, %v6704
      %v6747 = vadd.f32 %v6493, %v6707
      %v6748 = vadd.f32 %v6494, %v6712
      %v6749 = vadd.f32 %v6495, %v6715
      %s6750 = scalar_lea.vmem %s9, 14
      %v6751 = vld [vmem:[%s6750] sm:$0x3]
      %v6752 = vunpack.c.l.b16 %v6545
      %v6753 = vpack.c.b16 %v6752, %v6295
      %v6755 = vsel %vm1868, %v6753, 0
      %v6758 = vsel %vm1917, %v6751, 0
      %6760 = vmatprep.subr.bf16.mxu0 0
      %6761 = vmatpush1.bf16.msra.mxu0 %v6758
      %6762 = vmatprep.subr.bf16.mxu0 0
      %6763 = vmatpush1.bf16.msra.mxu0 0
      %6764 = vmatprep.subr.bf16.mxu0 0
      %6765 = vmatpush1.bf16.msra.mxu0 0
      %6766 = vmatprep.subr.bf16.mxu0 0
      %6767 = vmatpush1.bf16.msra.mxu0 0
      %6768 = vmatprep.subr.bf16.mxu0 0
      %6769 = vmatpush1.bf16.msra.mxu0 0
      %6770 = vmatprep.subr.bf16.mxu0 0
      %6771 = vmatpush1.bf16.msra.mxu0 0
      %6772 = vmatprep.subr.bf16.mxu0 0
      %6773 = vmatpush1.bf16.msra.mxu0 0
      %6774 = vmatprep.subr.bf16.mxu0 0
      %6775 = vmatpush1.bf16.msra.mxu0 0
      %6776 = vmatprep.subr.bf16.mxu0 0
      %6777 = vmatpush1.bf16.msra.mxu0 0
      %6778 = vmatprep.subr.bf16.mxu0 0
      %6779 = vmatpush1.bf16.msra.mxu0 0
      %6780 = vmatprep.subr.bf16.mxu0 0
      %6781 = vmatpush1.bf16.msra.mxu0 0
      %6782 = vmatprep.subr.bf16.mxu0 0
      %6783 = vmatpush1.bf16.msra.mxu0 0
      %6784 = vmatprep.subr.bf16.mxu0 0
      %6785 = vmatpush1.bf16.msra.mxu0 0
      %6786 = vmatprep.subr.bf16.mxu0 0
      %6787 = vmatpush1.bf16.msra.mxu0 0
      %6788 = vmatprep.subr.bf16.mxu0 0
      %6789 = vmatpush1.bf16.msra.mxu0 0
      %6790 = vmatprep.subr.bf16.mxu0 0
      %6791 = vmatpush1.bf16.msra.mxu0 0
      %6792 = vmatprep.mubr.bf16.mxu0 0
      %6793 = vmatmul.mubr.bf16.gmra.mrb[0].mxu0 %v3493
      %v6794 = vpop.f32.mrb[0].mxu0
      %v6795 = vadd.f32 0.0, %v6794
      %v6796 = vpop.f32.mrb[0].mxu0
      %v6797 = vpop.f32.mrb[0].mxu0
      %v6798 = vadd.f32 0.0, %v6797
      %v6799 = vpop.f32.mrb[0].mxu0
      %6800 = vmatprep.mubr.bf16.mxu0 0
      %6801 = vmatmul.mubr.bf16.gmra.mrb[0].mxu0 %v3496
      %v6802 = vpop.f32.mrb[0].mxu0
      %v6803 = vadd.f32 0.0, %v6802
      %v6804 = vpop.f32.mrb[0].mxu0
      %v6805 = vpop.f32.mrb[0].mxu0
      %v6806 = vadd.f32 0.0, %v6805
      %v6807 = vpop.f32.mrb[0].mxu0
      %6808 = vmatprep.mubr.bf16.mxu0 0
      %6809 = vmatmul.mubr.bf16.gmra.mrb[0].mxu0 %v3499
      %v6810 = vpop.f32.mrb[0].mxu0
      %v6811 = vadd.f32 0.0, %v6810
      %v6812 = vpop.f32.mrb[0].mxu0
      %v6813 = vpop.f32.mrb[0].mxu0
      %v6814 = vadd.f32 0.0, %v6813
      %v6815 = vpop.f32.mrb[0].mxu0
      %6816 = vmatprep.mubr.bf16.mxu0 0
      %6817 = vmatmul.mubr.bf16.gmra.mrb[0].mxu0 %v3502
      %v6818 = vpop.f32.mrb[0].mxu0
      %v6819 = vadd.f32 0.0, %v6818
      %v6820 = vpop.f32.mrb[0].mxu0
      %v6821 = vpop.f32.mrb[0].mxu0
      %v6822 = vadd.f32 0.0, %v6821
      %v6823 = vpop.f32.mrb[0].mxu0
      %6824 = vmatprep.mubr.bf16.mxu0 0
      %6825 = vmatmul.mubr.bf16.gmra.mrb[0].mxu0 %v3505
      %v6826 = vpop.f32.mrb[0].mxu0
      %v6827 = vadd.f32 0.0, %v6826
      %v6828 = vpop.f32.mrb[0].mxu0
      %v6829 = vpop.f32.mrb[0].mxu0
      %v6830 = vadd.f32 0.0, %v6829
      %v6831 = vpop.f32.mrb[0].mxu0
      %6832 = vmatprep.mubr.bf16.mxu0 0
      %6833 = vmatmul.mubr.bf16.gmra.mrb[0].mxu0 %v3508
      %v6834 = vpop.f32.mrb[0].mxu0
      %v6835 = vadd.f32 0.0, %v6834
      %v6836 = vpop.f32.mrb[0].mxu0
      %v6837 = vpop.f32.mrb[0].mxu0
      %v6838 = vadd.f32 0.0, %v6837
      %v6839 = vpop.f32.mrb[0].mxu0
      %6840 = vmatprep.mubr.bf16.mxu0 0
      %6841 = vmatmul.mubr.bf16.gmra.mrb[0].mxu0 %v3511
      %v6842 = vpop.f32.mrb[0].mxu0
      %v6843 = vadd.f32 0.0, %v6842
      %v6844 = vpop.f32.mrb[0].mxu0
      %v6845 = vpop.f32.mrb[0].mxu0
      %v6846 = vadd.f32 0.0, %v6845
      %v6847 = vpop.f32.mrb[0].mxu0
      %6848 = vmatprep.mubr.bf16.mxu0 0
      %6849 = vmatmul.mubr.bf16.gmra.mrb[0].mxu0 %v3514
      %v6850 = vpop.f32.mrb[0].mxu0
      %v6851 = vadd.f32 0.0, %v6850
      %v6852 = vpop.f32.mrb[0].mxu0
      %v6853 = vpop.f32.mrb[0].mxu0
      %v6854 = vadd.f32 0.0, %v6853
      %v6855 = vpop.f32.mrb[0].mxu0
      %6856 = vmatprep.mubr.bf16.mxu0 0
      %6857 = vmatmul.mubr.bf16.gmra.mrb[0].mxu0 %v3517
      %v6858 = vpop.f32.mrb[0].mxu0
      %v6859 = vadd.f32 0.0, %v6858
      %v6860 = vpop.f32.mrb[0].mxu0
      %v6861 = vpop.f32.mrb[0].mxu0
      %v6862 = vadd.f32 0.0, %v6861
      %v6863 = vpop.f32.mrb[0].mxu0
      %6864 = vmatprep.mubr.bf16.mxu0 0
      %6865 = vmatmul.mubr.bf16.gmra.mrb[0].mxu0 %v3520
      %v6866 = vpop.f32.mrb[0].mxu0
      %v6867 = vadd.f32 0.0, %v6866
      %v6868 = vpop.f32.mrb[0].mxu0
      %v6869 = vpop.f32.mrb[0].mxu0
      %v6870 = vadd.f32 0.0, %v6869
      %v6871 = vpop.f32.mrb[0].mxu0
      %6872 = vmatprep.mubr.bf16.mxu0 0
      %6873 = vmatmul.mubr.bf16.gmra.mrb[0].mxu0 %v3523
      %v6874 = vpop.f32.mrb[0].mxu0
      %v6875 = vadd.f32 0.0, %v6874
      %v6876 = vpop.f32.mrb[0].mxu0
      %v6877 = vpop.f32.mrb[0].mxu0
      %v6878 = vadd.f32 0.0, %v6877
      %v6879 = vpop.f32.mrb[0].mxu0
      %6880 = vmatprep.mubr.bf16.mxu0 0
      %6881 = vmatmul.mubr.bf16.gmra.mrb[0].mxu0 %v3526
      %v6882 = vpop.f32.mrb[0].mxu0
      %v6883 = vadd.f32 0.0, %v6882
      %v6884 = vpop.f32.mrb[0].mxu0
      %v6885 = vpop.f32.mrb[0].mxu0
      %v6886 = vadd.f32 0.0, %v6885
      %v6887 = vpop.f32.mrb[0].mxu0
      %6888 = vmatprep.mubr.bf16.mxu0 0
      %6889 = vmatmul.mubr.bf16.gmra.mrb[0].mxu0 %v3529
      %v6890 = vpop.f32.mrb[0].mxu0
      %v6891 = vadd.f32 0.0, %v6890
      %v6892 = vpop.f32.mrb[0].mxu0
      %v6893 = vpop.f32.mrb[0].mxu0
      %v6894 = vadd.f32 0.0, %v6893
      %v6895 = vpop.f32.mrb[0].mxu0
      %6896 = vmatprep.mubr.bf16.mxu0 0
      %6897 = vmatmul.mubr.bf16.gmra.mrb[0].mxu0 %v3532
      %v6898 = vpop.f32.mrb[0].mxu0
      %v6899 = vadd.f32 0.0, %v6898
      %v6900 = vpop.f32.mrb[0].mxu0
      %v6901 = vpop.f32.mrb[0].mxu0
      %v6902 = vadd.f32 0.0, %v6901
      %v6903 = vpop.f32.mrb[0].mxu0
      %6904 = vmatprep.mubr.bf16.mxu0 0
      %6905 = vmatmul.mubr.bf16.gmra.mrb[0].mxu0 %v5451
      %v6906 = vpop.f32.mrb[0].mxu0
      %v6907 = vadd.f32 0.0, %v6906
      %v6908 = vpop.f32.mrb[0].mxu0
      %v6909 = vpop.f32.mrb[0].mxu0
      %v6910 = vadd.f32 0.0, %v6909
      %v6911 = vpop.f32.mrb[0].mxu0
      %6912 = vmatprep.mubr.bf16.mxu0 0
      %6913 = vmatmul.mubr.bf16.gmra.mrb[0].mxu0 %v6755
      %v6914 = vpop.f32.mrb[0].mxu0
      %v6915 = vadd.f32 0.0, %v6914
      %v6916 = vpop.f32.mrb[0].mxu0
      %v6917 = vpop.f32.mrb[0].mxu0
      %v6918 = vadd.f32 0.0, %v6917
      %v6919 = vpop.f32.mrb[0].mxu0
      %6920 = vdwg.mxu0
      %v6921 = vadd.f32 %v6718, %v6795
      %v6922 = vadd.f32 %v6719, %v6798
      %v6923 = vadd.f32 %v6720, %v6803
      %v6924 = vadd.f32 %v6721, %v6806
      %v6925 = vadd.f32 %v6722, %v6811
      %v6926 = vadd.f32 %v6723, %v6814
      %v6927 = vadd.f32 %v6724, %v6819
      %v6928 = vadd.f32 %v6725, %v6822
      %v6929 = vadd.f32 %v6726, %v6827
      %v6930 = vadd.f32 %v6727, %v6830
      %v6931 = vadd.f32 %v6728, %v6835
      %v6932 = vadd.f32 %v6729, %v6838
      %v6933 = vadd.f32 %v6730, %v6843
      %v6934 = vadd.f32 %v6731, %v6846
      %v6935 = vadd.f32 %v6732, %v6851
      %v6936 = vadd.f32 %v6733, %v6854
      %v6937 = vadd.f32 %v6734, %v6859
      %v6938 = vadd.f32 %v6735, %v6862
      %v6939 = vadd.f32 %v6736, %v6867
      %v6940 = vadd.f32 %v6737, %v6870
      %v6941 = vadd.f32 %v6738, %v6875
      %v6942 = vadd.f32 %v6739, %v6878
      %v6943 = vadd.f32 %v6740, %v6883
      %v6944 = vadd.f32 %v6741, %v6886
      %v6945 = vadd.f32 %v6742, %v6891
      %v6946 = vadd.f32 %v6743, %v6894
      %v6947 = vadd.f32 %v6744, %v6899
      %v6948 = vadd.f32 %v6745, %v6902
      %v6949 = vadd.f32 %v6746, %v6907
      %v6950 = vadd.f32 %v6747, %v6910
      %v6951 = vadd.f32 %v6748, %v6915
      %v6952 = vadd.f32 %v6749, %v6918
      %v6953 = vunpack.c.h.b16 %v1474
      %v6954 = vpack.c.b16 %v6090, %v6090
      %v6955 = vpack.c.b16 %v6953, %v6953
      %v6957 = vshrl.u32 %v6954, 16
      %v6959 = vrot.slane %v6957, 4
      %v6960 = vshll.u32 %v6954, 16
      %v6962 = vrot.slane %v6960, 5
      %v6963 = vor.u32 %v6959, %v6962
      %v6964 = vrot.slane %v6963, 4
      %v6966 = vshll.u32 %v6955, 16
      %v6968 = vrot.slane %v6966, 5
      %v6969 = vsel %vm1477, %v6964, %v6968
      %v6971 = vshrl.u32 %v1729, 16
      %v6973 = vrot.slane %v6971, 4
      %v6974 = vshll.u32 %v1729, 16
      %v6976 = vrot.slane %v6974, 5
      %v6977 = vor.u32 %v6973, %v6976
      %v6978 = vrot.slane %v6977, 4
      %v6980 = vshll.u32 %v1801, 16
      %v6982 = vrot.slane %v6980, 5
      %v6983 = vsel %vm1477, %v6978, %v6982
      %s6984 = scalar_lea.vmem %s8, 16
      %v6985 = vld [vmem:[%s6984] sm:$0x3]
      %v6986 = vunpack.c.l.b16 %v6969
      %v6987 = vpack.c.b16 %v6986, %v6549
      %v6989 = vsel %vm1868, %v6987, 0
      %v6992 = vsel %vm1917, %v6985, 0
      %6994 = vmatprep.subr.bf16.mxu0 0
      %6995 = vmatpush1.bf16.msra.mxu0 %v6992
      %6996 = vmatprep.subr.bf16.mxu0 0
      %6997 = vmatpush1.bf16.msra.mxu0 0
      %6998 = vmatprep.subr.bf16.mxu0 0
      %6999 = vmatpush1.bf16.msra.mxu0 0
      %7000 = vmatprep.subr.bf16.mxu0 0
      %7001 = vmatpush1.bf16.msra.mxu0 0
      %7002 = vmatprep.subr.bf16.mxu0 0
      %7003 = vmatpush1.bf16.msra.mxu0 0
      %7004 = vmatprep.subr.bf16.mxu0 0
      %7005 = vmatpush1.bf16.msra.mxu0 0
      %7006 = vmatprep.subr.bf16.mxu0 0
      %7007 = vmatpush1.bf16.msra.mxu0 0
      %7008 = vmatprep.subr.bf16.mxu0 0
      %7009 = vmatpush1.bf16.msra.mxu0 0
      %7010 = vmatprep.subr.bf16.mxu0 0
      %7011 = vmatpush1.bf16.msra.mxu0 0
      %7012 = vmatprep.subr.bf16.mxu0 0
      %7013 = vmatpush1.bf16.msra.mxu0 0
      %7014 = vmatprep.subr.bf16.mxu0 0
      %7015 = vmatpush1.bf16.msra.mxu0 0
      %7016 = vmatprep.subr.bf16.mxu0 0
      %7017 = vmatpush1.bf16.msra.mxu0 0
      %7018 = vmatprep.subr.bf16.mxu0 0
      %7019 = vmatpush1.bf16.msra.mxu0 0
      %7020 = vmatprep.subr.bf16.mxu0 0
      %7021 = vmatpush1.bf16.msra.mxu0 0
      %7022 = vmatprep.subr.bf16.mxu0 0
      %7023 = vmatpush1.bf16.msra.mxu0 0
      %7024 = vmatprep.subr.bf16.mxu0 0
      %7025 = vmatpush1.bf16.msra.mxu0 0
      %7026 = vmatprep.mubr.bf16.mxu0 0
      %7027 = vmatmul.mubr.bf16.gmra.mrb[0].mxu0 %v4267
      %v7028 = vpop.f32.mrb[0].mxu0
      %v7029 = vadd.f32 0.0, %v7028
      %v7030 = vpop.f32.mrb[0].mxu0
      %v7031 = vpop.f32.mrb[0].mxu0
      %v7032 = vadd.f32 0.0, %v7031
      %v7033 = vpop.f32.mrb[0].mxu0
      %7034 = vmatprep.mubr.bf16.mxu0 0
      %7035 = vmatmul.mubr.bf16.gmra.mrb[0].mxu0 %v4270
      %v7036 = vpop.f32.mrb[0].mxu0
      %v7037 = vadd.f32 0.0, %v7036
      %v7038 = vpop.f32.mrb[0].mxu0
      %v7039 = vpop.f32.mrb[0].mxu0
      %v7040 = vadd.f32 0.0, %v7039
      %v7041 = vpop.f32.mrb[0].mxu0
      %7042 = vmatprep.mubr.bf16.mxu0 0
      %7043 = vmatmul.mubr.bf16.gmra.mrb[0].mxu0 %v4273
      %v7044 = vpop.f32.mrb[0].mxu0
      %v7045 = vadd.f32 0.0, %v7044
      %v7046 = vpop.f32.mrb[0].mxu0
      %v7047 = vpop.f32.mrb[0].mxu0
      %v7048 = vadd.f32 0.0, %v7047
      %v7049 = vpop.f32.mrb[0].mxu0
      %7050 = vmatprep.mubr.bf16.mxu0 0
      %7051 = vmatmul.mubr.bf16.gmra.mrb[0].mxu0 %v4276
      %v7052 = vpop.f32.mrb[0].mxu0
      %v7053 = vadd.f32 0.0, %v7052
      %v7054 = vpop.f32.mrb[0].mxu0
      %v7055 = vpop.f32.mrb[0].mxu0
      %v7056 = vadd.f32 0.0, %v7055
      %v7057 = vpop.f32.mrb[0].mxu0
      %7058 = vmatprep.mubr.bf16.mxu0 0
      %7059 = vmatmul.mubr.bf16.gmra.mrb[0].mxu0 %v4279
      %v7060 = vpop.f32.mrb[0].mxu0
      %v7061 = vadd.f32 0.0, %v7060
      %v7062 = vpop.f32.mrb[0].mxu0
      %v7063 = vpop.f32.mrb[0].mxu0
      %v7064 = vadd.f32 0.0, %v7063
      %v7065 = vpop.f32.mrb[0].mxu0
      %7066 = vmatprep.mubr.bf16.mxu0 0
      %7067 = vmatmul.mubr.bf16.gmra.mrb[0].mxu0 %v4282
      %v7068 = vpop.f32.mrb[0].mxu0
      %v7069 = vadd.f32 0.0, %v7068
      %v7070 = vpop.f32.mrb[0].mxu0
      %v7071 = vpop.f32.mrb[0].mxu0
      %v7072 = vadd.f32 0.0, %v7071
      %v7073 = vpop.f32.mrb[0].mxu0
      %7074 = vmatprep.mubr.bf16.mxu0 0
      %7075 = vmatmul.mubr.bf16.gmra.mrb[0].mxu0 %v4285
      %v7076 = vpop.f32.mrb[0].mxu0
      %v7077 = vadd.f32 0.0, %v7076
      %v7078 = vpop.f32.mrb[0].mxu0
      %v7079 = vpop.f32.mrb[0].mxu0
      %v7080 = vadd.f32 0.0, %v7079
      %v7081 = vpop.f32.mrb[0].mxu0
      %7082 = vmatprep.mubr.bf16.mxu0 0
      %7083 = vmatmul.mubr.bf16.gmra.mrb[0].mxu0 %v4288
      %v7084 = vpop.f32.mrb[0].mxu0
      %v7085 = vadd.f32 0.0, %v7084
      %v7086 = vpop.f32.mrb[0].mxu0
      %v7087 = vpop.f32.mrb[0].mxu0
      %v7088 = vadd.f32 0.0, %v7087
      %v7089 = vpop.f32.mrb[0].mxu0
      %7090 = vmatprep.mubr.bf16.mxu0 0
      %7091 = vmatmul.mubr.bf16.gmra.mrb[0].mxu0 %v4291
      %v7092 = vpop.f32.mrb[0].mxu0
      %v7093 = vadd.f32 0.0, %v7092
      %v7094 = vpop.f32.mrb[0].mxu0
      %v7095 = vpop.f32.mrb[0].mxu0
      %v7096 = vadd.f32 0.0, %v7095
      %v7097 = vpop.f32.mrb[0].mxu0
      %7098 = vmatprep.mubr.bf16.mxu0 0
      %7099 = vmatmul.mubr.bf16.gmra.mrb[0].mxu0 %v4294
      %v7100 = vpop.f32.mrb[0].mxu0
      %v7101 = vadd.f32 0.0, %v7100
      %v7102 = vpop.f32.mrb[0].mxu0
      %v7103 = vpop.f32.mrb[0].mxu0
      %v7104 = vadd.f32 0.0, %v7103
      %v7105 = vpop.f32.mrb[0].mxu0
      %7106 = vmatprep.mubr.bf16.mxu0 0
      %7107 = vmatmul.mubr.bf16.gmra.mrb[0].mxu0 %v4297
      %v7108 = vpop.f32.mrb[0].mxu0
      %v7109 = vadd.f32 0.0, %v7108
      %v7110 = vpop.f32.mrb[0].mxu0
      %v7111 = vpop.f32.mrb[0].mxu0
      %v7112 = vadd.f32 0.0, %v7111
      %v7113 = vpop.f32.mrb[0].mxu0
      %7114 = vmatprep.mubr.bf16.mxu0 0
      %7115 = vmatmul.mubr.bf16.gmra.mrb[0].mxu0 %v4300
      %v7116 = vpop.f32.mrb[0].mxu0
      %v7117 = vadd.f32 0.0, %v7116
      %v7118 = vpop.f32.mrb[0].mxu0
      %v7119 = vpop.f32.mrb[0].mxu0
      %v7120 = vadd.f32 0.0, %v7119
      %v7121 = vpop.f32.mrb[0].mxu0
      %7122 = vmatprep.mubr.bf16.mxu0 0
      %7123 = vmatmul.mubr.bf16.gmra.mrb[0].mxu0 %v4303
      %v7124 = vpop.f32.mrb[0].mxu0
      %v7125 = vadd.f32 0.0, %v7124
      %v7126 = vpop.f32.mrb[0].mxu0
      %v7127 = vpop.f32.mrb[0].mxu0
      %v7128 = vadd.f32 0.0, %v7127
      %v7129 = vpop.f32.mrb[0].mxu0
      %7130 = vmatprep.mubr.bf16.mxu0 0
      %7131 = vmatmul.mubr.bf16.gmra.mrb[0].mxu0 %v4306
      %v7132 = vpop.f32.mrb[0].mxu0
      %v7133 = vadd.f32 0.0, %v7132
      %v7134 = vpop.f32.mrb[0].mxu0
      %v7135 = vpop.f32.mrb[0].mxu0
      %v7136 = vadd.f32 0.0, %v7135
      %v7137 = vpop.f32.mrb[0].mxu0
      %7138 = vmatprep.mubr.bf16.mxu0 0
      %7139 = vmatmul.mubr.bf16.gmra.mrb[0].mxu0 %v5685
      %v7140 = vpop.f32.mrb[0].mxu0
      %v7141 = vadd.f32 0.0, %v7140
      %v7142 = vpop.f32.mrb[0].mxu0
      %v7143 = vpop.f32.mrb[0].mxu0
      %v7144 = vadd.f32 0.0, %v7143
      %v7145 = vpop.f32.mrb[0].mxu0
      %7146 = vmatprep.mubr.bf16.mxu0 0
      %7147 = vmatmul.mubr.bf16.gmra.mrb[0].mxu0 %v6989
      %v7148 = vpop.f32.mrb[0].mxu0
      %v7149 = vadd.f32 0.0, %v7148
      %v7150 = vpop.f32.mrb[0].mxu0
      %v7151 = vpop.f32.mrb[0].mxu0
      %v7152 = vadd.f32 0.0, %v7151
      %v7153 = vpop.f32.mrb[0].mxu0
      %7154 = vdwg.mxu0
      %v7155 = vadd.f32 %v6921, %v7029
      %v7156 = vadd.f32 %v6922, %v7032
      %v7157 = vadd.f32 %v6923, %v7037
      %v7158 = vadd.f32 %v6924, %v7040
      %v7159 = vadd.f32 %v6925, %v7045
      %v7160 = vadd.f32 %v6926, %v7048
      %v7161 = vadd.f32 %v6927, %v7053
      %v7162 = vadd.f32 %v6928, %v7056
      %v7163 = vadd.f32 %v6929, %v7061
      %v7164 = vadd.f32 %v6930, %v7064
      %v7165 = vadd.f32 %v6931, %v7069
      %v7166 = vadd.f32 %v6932, %v7072
      %v7167 = vadd.f32 %v6933, %v7077
      %v7168 = vadd.f32 %v6934, %v7080
      %v7169 = vadd.f32 %v6935, %v7085
      %v7170 = vadd.f32 %v6936, %v7088
      %v7171 = vadd.f32 %v6937, %v7093
      %v7172 = vadd.f32 %v6938, %v7096
      %v7173 = vadd.f32 %v6939, %v7101
      %v7174 = vadd.f32 %v6940, %v7104
      %v7175 = vadd.f32 %v6941, %v7109
      %v7176 = vadd.f32 %v6942, %v7112
      %v7177 = vadd.f32 %v6943, %v7117
      %v7178 = vadd.f32 %v6944, %v7120
      %v7179 = vadd.f32 %v6945, %v7125
      %v7180 = vadd.f32 %v6946, %v7128
      %v7181 = vadd.f32 %v6947, %v7133
      %v7182 = vadd.f32 %v6948, %v7136
      %v7183 = vadd.f32 %v6949, %v7141
      %v7184 = vadd.f32 %v6950, %v7144
      %v7185 = vadd.f32 %v6951, %v7149
      %v7186 = vadd.f32 %v6952, %v7152
      %s7187 = scalar_lea.vmem %s9, 16
      %v7188 = vld [vmem:[%s7187] sm:$0x3]
      %v7189 = vunpack.c.l.b16 %v6983
      %v7190 = vpack.c.b16 %v7189, %v6752
      %v7192 = vsel %vm1868, %v7190, 0
      %v7195 = vsel %vm1917, %v7188, 0
      %7197 = vmatprep.subr.bf16.mxu0 0
      %7198 = vmatpush1.bf16.msra.mxu0 %v7195
      %7199 = vmatprep.subr.bf16.mxu0 0
      %7200 = vmatpush1.bf16.msra.mxu0 0
      %7201 = vmatprep.subr.bf16.mxu0 0
      %7202 = vmatpush1.bf16.msra.mxu0 0
      %7203 = vmatprep.subr.bf16.mxu0 0
      %7204 = vmatpush1.bf16.msra.mxu0 0
      %7205 = vmatprep.subr.bf16.mxu0 0
      %7206 = vmatpush1.bf16.msra.mxu0 0
      %7207 = vmatprep.subr.bf16.mxu0 0
      %7208 = vmatpush1.bf16.msra.mxu0 0
      %7209 = vmatprep.subr.bf16.mxu0 0
      %7210 = vmatpush1.bf16.msra.mxu0 0
      %7211 = vmatprep.subr.bf16.mxu0 0
      %7212 = vmatpush1.bf16.msra.mxu0 0
      %7213 = vmatprep.subr.bf16.mxu0 0
      %7214 = vmatpush1.bf16.msra.mxu0 0
      %7215 = vmatprep.subr.bf16.mxu0 0
      %7216 = vmatpush1.bf16.msra.mxu0 0
      %7217 = vmatprep.subr.bf16.mxu0 0
      %7218 = vmatpush1.bf16.msra.mxu0 0
      %7219 = vmatprep.subr.bf16.mxu0 0
      %7220 = vmatpush1.bf16.msra.mxu0 0
      %7221 = vmatprep.subr.bf16.mxu0 0
      %7222 = vmatpush1.bf16.msra.mxu0 0
      %7223 = vmatprep.subr.bf16.mxu0 0
      %7224 = vmatpush1.bf16.msra.mxu0 0
      %7225 = vmatprep.subr.bf16.mxu0 0
      %7226 = vmatpush1.bf16.msra.mxu0 0
      %7227 = vmatprep.subr.bf16.mxu0 0
      %7228 = vmatpush1.bf16.msra.mxu0 0
      %7229 = vmatprep.mubr.bf16.mxu0 0
      %7230 = vmatmul.mubr.bf16.gmra.mrb[0].mxu0 %v4545
      %v7231 = vpop.f32.mrb[0].mxu0
      %v7232 = vadd.f32 0.0, %v7231
      %v7233 = vpop.f32.mrb[0].mxu0
      %v7234 = vpop.f32.mrb[0].mxu0
      %v7235 = vadd.f32 0.0, %v7234
      %v7236 = vpop.f32.mrb[0].mxu0
      %7237 = vmatprep.mubr.bf16.mxu0 0
      %7238 = vmatmul.mubr.bf16.gmra.mrb[0].mxu0 %v4548
      %v7239 = vpop.f32.mrb[0].mxu0
      %v7240 = vadd.f32 0.0, %v7239
      %v7241 = vpop.f32.mrb[0].mxu0
      %v7242 = vpop.f32.mrb[0].mxu0
      %v7243 = vadd.f32 0.0, %v7242
      %v7244 = vpop.f32.mrb[0].mxu0
      %7245 = vmatprep.mubr.bf16.mxu0 0
      %7246 = vmatmul.mubr.bf16.gmra.mrb[0].mxu0 %v4551
      %v7247 = vpop.f32.mrb[0].mxu0
      %v7248 = vadd.f32 0.0, %v7247
      %v7249 = vpop.f32.mrb[0].mxu0
      %v7250 = vpop.f32.mrb[0].mxu0
      %v7251 = vadd.f32 0.0, %v7250
      %v7252 = vpop.f32.mrb[0].mxu0
      %7253 = vmatprep.mubr.bf16.mxu0 0
      %7254 = vmatmul.mubr.bf16.gmra.mrb[0].mxu0 %v4554
      %v7255 = vpop.f32.mrb[0].mxu0
      %v7256 = vadd.f32 0.0, %v7255
      %v7257 = vpop.f32.mrb[0].mxu0
      %v7258 = vpop.f32.mrb[0].mxu0
      %v7259 = vadd.f32 0.0, %v7258
      %v7260 = vpop.f32.mrb[0].mxu0
      %7261 = vmatprep.mubr.bf16.mxu0 0
      %7262 = vmatmul.mubr.bf16.gmra.mrb[0].mxu0 %v4557
      %v7263 = vpop.f32.mrb[0].mxu0
      %v7264 = vadd.f32 0.0, %v7263
      %v7265 = vpop.f32.mrb[0].mxu0
      %v7266 = vpop.f32.mrb[0].mxu0
      %v7267 = vadd.f32 0.0, %v7266
      %v7268 = vpop.f32.mrb[0].mxu0
      %7269 = vmatprep.mubr.bf16.mxu0 0
      %7270 = vmatmul.mubr.bf16.gmra.mrb[0].mxu0 %v4560
      %v7271 = vpop.f32.mrb[0].mxu0
      %v7272 = vadd.f32 0.0, %v7271
      %v7273 = vpop.f32.mrb[0].mxu0
      %v7274 = vpop.f32.mrb[0].mxu0
      %v7275 = vadd.f32 0.0, %v7274
      %v7276 = vpop.f32.mrb[0].mxu0
      %7277 = vmatprep.mubr.bf16.mxu0 0
      %7278 = vmatmul.mubr.bf16.gmra.mrb[0].mxu0 %v4563
      %v7279 = vpop.f32.mrb[0].mxu0
      %v7280 = vadd.f32 0.0, %v7279
      %v7281 = vpop.f32.mrb[0].mxu0
      %v7282 = vpop.f32.mrb[0].mxu0
      %v7283 = vadd.f32 0.0, %v7282
      %v7284 = vpop.f32.mrb[0].mxu0
      %7285 = vmatprep.mubr.bf16.mxu0 0
      %7286 = vmatmul.mubr.bf16.gmra.mrb[0].mxu0 %v4566
      %v7287 = vpop.f32.mrb[0].mxu0
      %v7288 = vadd.f32 0.0, %v7287
      %v7289 = vpop.f32.mrb[0].mxu0
      %v7290 = vpop.f32.mrb[0].mxu0
      %v7291 = vadd.f32 0.0, %v7290
      %v7292 = vpop.f32.mrb[0].mxu0
      %7293 = vmatprep.mubr.bf16.mxu0 0
      %7294 = vmatmul.mubr.bf16.gmra.mrb[0].mxu0 %v4569
      %v7295 = vpop.f32.mrb[0].mxu0
      %v7296 = vadd.f32 0.0, %v7295
      %v7297 = vpop.f32.mrb[0].mxu0
      %v7298 = vpop.f32.mrb[0].mxu0
      %v7299 = vadd.f32 0.0, %v7298
      %v7300 = vpop.f32.mrb[0].mxu0
      %7301 = vmatprep.mubr.bf16.mxu0 0
      %7302 = vmatmul.mubr.bf16.gmra.mrb[0].mxu0 %v4572
      %v7303 = vpop.f32.mrb[0].mxu0
      %v7304 = vadd.f32 0.0, %v7303
      %v7305 = vpop.f32.mrb[0].mxu0
      %v7306 = vpop.f32.mrb[0].mxu0
      %v7307 = vadd.f32 0.0, %v7306
      %v7308 = vpop.f32.mrb[0].mxu0
      %7309 = vmatprep.mubr.bf16.mxu0 0
      %7310 = vmatmul.mubr.bf16.gmra.mrb[0].mxu0 %v4575
      %v7311 = vpop.f32.mrb[0].mxu0
      %v7312 = vadd.f32 0.0, %v7311
      %v7313 = vpop.f32.mrb[0].mxu0
      %v7314 = vpop.f32.mrb[0].mxu0
      %v7315 = vadd.f32 0.0, %v7314
      %v7316 = vpop.f32.mrb[0].mxu0
      %7317 = vmatprep.mubr.bf16.mxu0 0
      %7318 = vmatmul.mubr.bf16.gmra.mrb[0].mxu0 %v4578
      %v7319 = vpop.f32.mrb[0].mxu0
      %v7320 = vadd.f32 0.0, %v7319
      %v7321 = vpop.f32.mrb[0].mxu0
      %v7322 = vpop.f32.mrb[0].mxu0
      %v7323 = vadd.f32 0.0, %v7322
      %v7324 = vpop.f32.mrb[0].mxu0
      %7325 = vmatprep.mubr.bf16.mxu0 0
      %7326 = vmatmul.mubr.bf16.gmra.mrb[0].mxu0 %v4581
      %v7327 = vpop.f32.mrb[0].mxu0
      %v7328 = vadd.f32 0.0, %v7327
      %v7329 = vpop.f32.mrb[0].mxu0
      %v7330 = vpop.f32.mrb[0].mxu0
      %v7331 = vadd.f32 0.0, %v7330
      %v7332 = vpop.f32.mrb[0].mxu0
      %7333 = vmatprep.mubr.bf16.mxu0 0
      %7334 = vmatmul.mubr.bf16.gmra.mrb[0].mxu0 %v4584
      %v7335 = vpop.f32.mrb[0].mxu0
      %v7336 = vadd.f32 0.0, %v7335
      %v7337 = vpop.f32.mrb[0].mxu0
      %v7338 = vpop.f32.mrb[0].mxu0
      %v7339 = vadd.f32 0.0, %v7338
      %v7340 = vpop.f32.mrb[0].mxu0
      %7341 = vmatprep.mubr.bf16.mxu0 0
      %7342 = vmatmul.mubr.bf16.gmra.mrb[0].mxu0 %v5888
      %v7343 = vpop.f32.mrb[0].mxu0
      %v7344 = vadd.f32 0.0, %v7343
      %v7345 = vpop.f32.mrb[0].mxu0
      %v7346 = vpop.f32.mrb[0].mxu0
      %v7347 = vadd.f32 0.0, %v7346
      %v7348 = vpop.f32.mrb[0].mxu0
      %7349 = vmatprep.mubr.bf16.mxu0 0
      %7350 = vmatmul.mubr.bf16.gmra.mrb[0].mxu0 %v7192
      %v7351 = vpop.f32.mrb[0].mxu0
      %v7352 = vadd.f32 0.0, %v7351
      %v7353 = vpop.f32.mrb[0].mxu0
      %v7354 = vpop.f32.mrb[0].mxu0
      %v7355 = vadd.f32 0.0, %v7354
      %v7356 = vpop.f32.mrb[0].mxu0
      %7357 = vdwg.mxu0
      %v7358 = vadd.f32 %v7155, %v7232
      %v7359 = vadd.f32 %v7156, %v7235
      %v7360 = vadd.f32 %v7157, %v7240
      %v7361 = vadd.f32 %v7158, %v7243
      %v7362 = vadd.f32 %v7159, %v7248
      %v7363 = vadd.f32 %v7160, %v7251
      %v7364 = vadd.f32 %v7161, %v7256
      %v7365 = vadd.f32 %v7162, %v7259
      %v7366 = vadd.f32 %v7163, %v7264
      %v7367 = vadd.f32 %v7164, %v7267
      %v7368 = vadd.f32 %v7165, %v7272
      %v7369 = vadd.f32 %v7166, %v7275
      %v7370 = vadd.f32 %v7167, %v7280
      %v7371 = vadd.f32 %v7168, %v7283
      %v7372 = vadd.f32 %v7169, %v7288
      %v7373 = vadd.f32 %v7170, %v7291
      %v7374 = vadd.f32 %v7171, %v7296
      %v7375 = vadd.f32 %v7172, %v7299
      %v7376 = vadd.f32 %v7173, %v7304
      %v7377 = vadd.f32 %v7174, %v7307
      %v7378 = vadd.f32 %v7175, %v7312
      %v7379 = vadd.f32 %v7176, %v7315
      %v7380 = vadd.f32 %v7177, %v7320
      %v7381 = vadd.f32 %v7178, %v7323
      %v7382 = vadd.f32 %v7179, %v7328
      %v7383 = vadd.f32 %v7180, %v7331
      %v7384 = vadd.f32 %v7181, %v7336
      %v7385 = vadd.f32 %v7182, %v7339
      %v7386 = vadd.f32 %v7183, %v7344
      %v7387 = vadd.f32 %v7184, %v7347
      %v7388 = vadd.f32 %v7185, %v7352
      %v7389 = vadd.f32 %v7186, %v7355
      %v7390 = vsel %vm1868, %v7358, 0.0
      %v7391 = vsel %vm1868, %v7359, 0.0
      %v7392 = vadd.f32 %v7390, %v7391
      %v7393 = vsel %vm1868, %v7360, 0.0
      %v7394 = vadd.f32 %v7392, %v7393
      %v7395 = vsel %vm1868, %v7361, 0.0
      %v7396 = vadd.f32 %v7394, %v7395
      %v7397 = vsel %vm1868, %v7362, 0.0
      %v7398 = vadd.f32 %v7396, %v7397
      %v7399 = vsel %vm1868, %v7363, 0.0
      %v7400 = vadd.f32 %v7398, %v7399
      %v7401 = vsel %vm1868, %v7364, 0.0
      %v7402 = vadd.f32 %v7400, %v7401
      %v7403 = vsel %vm1868, %v7365, 0.0
      %v7404 = vadd.f32 %v7402, %v7403
      %v7405 = vsel %vm1868, %v7366, 0.0
      %v7406 = vadd.f32 %v7404, %v7405
      %v7407 = vsel %vm1868, %v7367, 0.0
      %v7408 = vadd.f32 %v7406, %v7407
      %v7409 = vsel %vm1868, %v7368, 0.0
      %v7410 = vadd.f32 %v7408, %v7409
      %v7411 = vsel %vm1868, %v7369, 0.0
      %v7412 = vadd.f32 %v7410, %v7411
      %v7413 = vsel %vm1868, %v7370, 0.0
      %v7414 = vadd.f32 %v7412, %v7413
      %v7415 = vsel %vm1868, %v7371, 0.0
      %v7416 = vadd.f32 %v7414, %v7415
      %v7417 = vsel %vm1868, %v7372, 0.0
      %v7418 = vadd.f32 %v7416, %v7417
      %v7419 = vsel %vm1868, %v7373, 0.0
      %v7420 = vadd.f32 %v7418, %v7419
      %v7421 = vsel %vm1868, %v7374, 0.0
      %v7422 = vadd.f32 %v7420, %v7421
      %v7423 = vsel %vm1868, %v7375, 0.0
      %v7424 = vadd.f32 %v7422, %v7423
      %v7425 = vsel %vm1868, %v7376, 0.0
      %v7426 = vadd.f32 %v7424, %v7425
      %v7427 = vsel %vm1868, %v7377, 0.0
      %v7428 = vadd.f32 %v7426, %v7427
      %v7429 = vsel %vm1868, %v7378, 0.0
      %v7430 = vadd.f32 %v7428, %v7429
      %v7431 = vsel %vm1868, %v7379, 0.0
      %v7432 = vadd.f32 %v7430, %v7431
      %v7433 = vsel %vm1868, %v7380, 0.0
      %v7434 = vadd.f32 %v7432, %v7433
      %v7435 = vsel %vm1868, %v7381, 0.0
      %v7436 = vadd.f32 %v7434, %v7435
      %v7437 = vsel %vm1868, %v7382, 0.0
      %v7438 = vadd.f32 %v7436, %v7437
      %v7439 = vsel %vm1868, %v7383, 0.0
      %v7440 = vadd.f32 %v7438, %v7439
      %v7441 = vsel %vm1868, %v7384, 0.0
      %v7442 = vadd.f32 %v7440, %v7441
      %v7443 = vsel %vm1868, %v7385, 0.0
      %v7444 = vadd.f32 %v7442, %v7443
      %v7445 = vsel %vm1868, %v7386, 0.0
      %v7446 = vadd.f32 %v7444, %v7445
      %v7447 = vsel %vm1868, %v7387, 0.0
      %v7448 = vadd.f32 %v7446, %v7447
      %v7449 = vsel %vm1868, %v7388, 0.0
      %v7450 = vadd.f32 %v7448, %v7449
      %v7451 = vsel %vm1868, %v7389, 0.0
      %v7452 = vadd.f32 %v7450, %v7451
      %v7453 = vrot.slane %v7452, 4
      %v7454 = vadd.f32 %v7452, %v7453
      %v7455 = vrot.slane %v7454, 2
      %v7456 = vadd.f32 %v7454, %v7455
      %v7457 = vrot.slane %v7456, 1
      %v7458 = vadd.f32 %v7456, %v7457
      %vm7459 = vcmask 24576
      %7460 = vst.msk [vmem:[%s771] sm:$0x1] %vm7459, %v7458
      %v7461 = vmul.f32 %v7358, %v7358
      %v7462 = vmul.f32 %v7359, %v7359
      %v7463 = vmul.f32 %v7360, %v7360
      %v7464 = vmul.f32 %v7361, %v7361
      %v7465 = vmul.f32 %v7362, %v7362
      %v7466 = vmul.f32 %v7363, %v7363
      %v7467 = vmul.f32 %v7364, %v7364
      %v7468 = vmul.f32 %v7365, %v7365
      %v7469 = vmul.f32 %v7366, %v7366
      %v7470 = vmul.f32 %v7367, %v7367
      %v7471 = vmul.f32 %v7368, %v7368
      %v7472 = vmul.f32 %v7369, %v7369
      %v7473 = vmul.f32 %v7370, %v7370
      %v7474 = vmul.f32 %v7371, %v7371
      %v7475 = vmul.f32 %v7372, %v7372
      %v7476 = vmul.f32 %v7373, %v7373
      %v7477 = vmul.f32 %v7374, %v7374
      %v7478 = vmul.f32 %v7375, %v7375
      %v7479 = vmul.f32 %v7376, %v7376
      %v7480 = vmul.f32 %v7377, %v7377
      %v7481 = vmul.f32 %v7378, %v7378
      %v7482 = vmul.f32 %v7379, %v7379
      %v7483 = vmul.f32 %v7380, %v7380
      %v7484 = vmul.f32 %v7381, %v7381
      %v7485 = vmul.f32 %v7382, %v7382
      %v7486 = vmul.f32 %v7383, %v7383
      %v7487 = vmul.f32 %v7384, %v7384
      %v7488 = vmul.f32 %v7385, %v7385
      %v7489 = vmul.f32 %v7386, %v7386
      %v7490 = vmul.f32 %v7387, %v7387
      %v7491 = vmul.f32 %v7388, %v7388
      %v7492 = vmul.f32 %v7389, %v7389
      %v7493 = vsel %vm1868, %v7461, 0.0
      %v7494 = vsel %vm1868, %v7462, 0.0
      %v7495 = vadd.f32 %v7493, %v7494
      %v7496 = vsel %vm1868, %v7463, 0.0
      %v7497 = vadd.f32 %v7495, %v7496
      %v7498 = vsel %vm1868, %v7464, 0.0
      %v7499 = vadd.f32 %v7497, %v7498
      %v7500 = vsel %vm1868, %v7465, 0.0
      %v7501 = vadd.f32 %v7499, %v7500
      %v7502 = vsel %vm1868, %v7466, 0.0
      %v7503 = vadd.f32 %v7501, %v7502
      %v7504 = vsel %vm1868, %v7467, 0.0
      %v7505 = vadd.f32 %v7503, %v7504
      %v7506 = vsel %vm1868, %v7468, 0.0
      %v7507 = vadd.f32 %v7505, %v7506
      %v7508 = vsel %vm1868, %v7469, 0.0
      %v7509 = vadd.f32 %v7507, %v7508
      %v7510 = vsel %vm1868, %v7470, 0.0
      %v7511 = vadd.f32 %v7509, %v7510
      %v7512 = vsel %vm1868, %v7471, 0.0
      %v7513 = vadd.f32 %v7511, %v7512
      %v7514 = vsel %vm1868, %v7472, 0.0
      %v7515 = vadd.f32 %v7513, %v7514
      %v7516 = vsel %vm1868, %v7473, 0.0
      %v7517 = vadd.f32 %v7515, %v7516
      %v7518 = vsel %vm1868, %v7474, 0.0
      %v7519 = vadd.f32 %v7517, %v7518
      %v7520 = vsel %vm1868, %v7475, 0.0
      %v7521 = vadd.f32 %v7519, %v7520
      %v7522 = vsel %vm1868, %v7476, 0.0
      %v7523 = vadd.f32 %v7521, %v7522
      %v7524 = vsel %vm1868, %v7477, 0.0
      %v7525 = vadd.f32 %v7523, %v7524
      %v7526 = vsel %vm1868, %v7478, 0.0
      %v7527 = vadd.f32 %v7525, %v7526
      %v7528 = vsel %vm1868, %v7479, 0.0
      %v7529 = vadd.f32 %v7527, %v7528
      %v7530 = vsel %vm1868, %v7480, 0.0
      %v7531 = vadd.f32 %v7529, %v7530
      %v7532 = vsel %vm1868, %v7481, 0.0
      %v7533 = vadd.f32 %v7531, %v7532
      %v7534 = vsel %vm1868, %v7482, 0.0
      %v7535 = vadd.f32 %v7533, %v7534
      %v7536 = vsel %vm1868, %v7483, 0.0
      %v7537 = vadd.f32 %v7535, %v7536
      %v7538 = vsel %vm1868, %v7484, 0.0
      %v7539 = vadd.f32 %v7537, %v7538
      %v7540 = vsel %vm1868, %v7485, 0.0
      %v7541 = vadd.f32 %v7539, %v7540
      %v7542 = vsel %vm1868, %v7486, 0.0
      %v7543 = vadd.f32 %v7541, %v7542
      %v7544 = vsel %vm1868, %v7487, 0.0
      %v7545 = vadd.f32 %v7543, %v7544
      %v7546 = vsel %vm1868, %v7488, 0.0
      %v7547 = vadd.f32 %v7545, %v7546
      %v7548 = vsel %vm1868, %v7489, 0.0
      %v7549 = vadd.f32 %v7547, %v7548
      %v7550 = vsel %vm1868, %v7490, 0.0
      %v7551 = vadd.f32 %v7549, %v7550
      %v7552 = vsel %vm1868, %v7491, 0.0
      %v7553 = vadd.f32 %v7551, %v7552
      %v7554 = vsel %vm1868, %v7492, 0.0
      %v7555 = vadd.f32 %v7553, %v7554
      %v7556 = vrot.slane %v7555, 4
      %v7557 = vadd.f32 %v7555, %v7556
      %v7558 = vrot.slane %v7557, 2
      %v7559 = vadd.f32 %v7557, %v7558
      %v7560 = vrot.slane %v7559, 1
      %v7561 = vadd.f32 %v7559, %v7560
      %7562 = vst.msk [vmem:[%s777] sm:$0x1] %vm7459, %v7561
      %v7563 = vpack.c.bf16 %v7358, %v7358
      %v7564 = vpack.c.bf16 %v7359, %v7359
      %v7565 = vpack.c.bf16 %v7360, %v7360
      %v7566 = vpack.c.bf16 %v7361, %v7361
      %v7567 = vpack.c.bf16 %v7362, %v7362
      %v7568 = vpack.c.bf16 %v7363, %v7363
      %v7569 = vpack.c.bf16 %v7364, %v7364
      %v7570 = vpack.c.bf16 %v7365, %v7365
      %v7571 = vpack.c.bf16 %v7366, %v7366
      %v7572 = vpack.c.bf16 %v7367, %v7367
      %v7573 = vpack.c.bf16 %v7368, %v7368
      %v7574 = vpack.c.bf16 %v7369, %v7369
      %v7575 = vpack.c.bf16 %v7370, %v7370
      %v7576 = vpack.c.bf16 %v7371, %v7371
      %v7577 = vpack.c.bf16 %v7372, %v7372
      %v7578 = vpack.c.bf16 %v7373, %v7373
      %v7579 = vpack.c.bf16 %v7374, %v7374
      %v7580 = vpack.c.bf16 %v7375, %v7375
      %v7581 = vpack.c.bf16 %v7376, %v7376
      %v7582 = vpack.c.bf16 %v7377, %v7377
      %v7583 = vpack.c.bf16 %v7378, %v7378
      %v7584 = vpack.c.bf16 %v7379, %v7379
      %v7585 = vpack.c.bf16 %v7380, %v7380
      %v7586 = vpack.c.bf16 %v7381, %v7381
      %v7587 = vpack.c.bf16 %v7382, %v7382
      %v7588 = vpack.c.bf16 %v7383, %v7383
      %v7589 = vpack.c.bf16 %v7384, %v7384
      %v7590 = vpack.c.bf16 %v7385, %v7385
      %v7591 = vpack.c.bf16 %v7386, %v7386
      %v7592 = vpack.c.bf16 %v7387, %v7387
      %v7593 = vpack.c.bf16 %v7388, %v7388
      %v7594 = vpack.c.bf16 %v7389, %v7389
      %vm7595 = vcmask 27648
      %7596 = vst.msk [vmem:[%s764] sm:$0xf] %vm7595, %v7563
      %7597 = vst.msk [vmem:[%s764 + $0x4] sm:$0xf] %vm7595, %v7564
      %7598 = vst.msk [vmem:[%s764 + $0x8] sm:$0xf] %vm7595, %v7565
      %7599 = vst.msk [vmem:[%s764 + $0xc] sm:$0xf] %vm7595, %v7566
      %7600 = vst.msk [vmem:[%s764 + $0x10] sm:$0xf] %vm7595, %v7567
      %7601 = vst.msk [vmem:[%s764 + $0x14] sm:$0xf] %vm7595, %v7568
      %7602 = vst.msk [vmem:[%s764 + $0x18] sm:$0xf] %vm7595, %v7569
      %7603 = vst.msk [vmem:[%s764 + $0x1c] sm:$0xf] %vm7595, %v7570
      %7604 = vst.msk [vmem:[%s764 + $0x20] sm:$0xf] %vm7595, %v7571
      %7605 = vst.msk [vmem:[%s764 + $0x24] sm:$0xf] %vm7595, %v7572
      %7606 = vst.msk [vmem:[%s764 + $0x28] sm:$0xf] %vm7595, %v7573
      %7607 = vst.msk [vmem:[%s764 + $0x2c] sm:$0xf] %vm7595, %v7574
      %7608 = vst.msk [vmem:[%s764 + $0x30] sm:$0xf] %vm7595, %v7575
      %7609 = vst.msk [vmem:[%s764 + $0x34] sm:$0xf] %vm7595, %v7576
      %7610 = vst.msk [vmem:[%s764 + $0x38] sm:$0xf] %vm7595, %v7577
      %7611 = vst.msk [vmem:[%s764 + $0x3c] sm:$0xf] %vm7595, %v7578
      %7612 = vst.msk [vmem:[%s764 + $0x40] sm:$0xf] %vm7595, %v7579
      %7613 = vst.msk [vmem:[%s764 + $0x44] sm:$0xf] %vm7595, %v7580
      %7614 = vst.msk [vmem:[%s764 + $0x48] sm:$0xf] %vm7595, %v7581
      %7615 = vst.msk [vmem:[%s764 + $0x4c] sm:$0xf] %vm7595, %v7582
      %7616 = vst.msk [vmem:[%s764 + $0x50] sm:$0xf] %vm7595, %v7583
      %7617 = vst.msk [vmem:[%s764 + $0x54] sm:$0xf] %vm7595, %v7584
      %7618 = vst.msk [vmem:[%s764 + $0x58] sm:$0xf] %vm7595, %v7585
      %7619 = vst.msk [vmem:[%s764 + $0x5c] sm:$0xf] %vm7595, %v7586
      %7620 = vst.msk [vmem:[%s764 + $0x60] sm:$0xf] %vm7595, %v7587
      %7621 = vst.msk [vmem:[%s764 + $0x64] sm:$0xf] %vm7595, %v7588
      %7622 = vst.msk [vmem:[%s764 + $0x68] sm:$0xf] %vm7595, %v7589
      %7623 = vst.msk [vmem:[%s764 + $0x6c] sm:$0xf] %vm7595, %v7590
      %7624 = vst.msk [vmem:[%s764 + $0x70] sm:$0xf] %vm7595, %v7591
      %7625 = vst.msk [vmem:[%s764 + $0x74] sm:$0xf] %vm7595, %v7592
      %7626 = vst.msk [vmem:[%s764 + $0x78] sm:$0xf] %vm7595, %v7593
      %7627 = vst.msk [vmem:[%s764 + $0x7c] sm:$0xf] %vm7595, %v7594
      %s7628 = smul.u32 16, %s29
      %p7629 = scmp.lt.s32.totalorder %s28, 1
      %s7630 = scalar_select %p7629, %s28, 1
      %p7631 = scmp.lt.s32.totalorder %s7628, 15
      %s7632 = scalar_select %p7631, %s7628, 15
      %s7633 = smul.addr %s7632, 2
      %s7634 = smul.addr %s7630, 32
      %s7635 = sadd.s32 %s7633, %s7634
      %s7636 = smul.addr %s7635, 4
      %s7637 = scalar_lea.vmem %s10, %s7636
      %p7638 = scmp.lt.s32.totalorder %s28, 1
      %s7639 = scalar_select %p7638, %s28, 1
      %p7640 = scmp.lt.s32.totalorder %s29, 0
      %s7641 = scalar_select %p7640, %s29, 0
      %s7642 = sadd.s32 %s7641, %s7639
      %s7643 = scalar_lea.vmem %s11, %s7642
      %p7644 = scmp.lt.s32.totalorder %s28, 1
      %s7645 = scalar_select %p7644, %s28, 1
      %p7646 = scmp.lt.s32.totalorder %s29, 0
      %s7647 = scalar_select %p7646, %s29, 0
      %s7648 = sadd.s32 %s7647, %s7645
      %s7649 = scalar_lea.vmem %s12, %s7648
      // Predicated region
      $region61: #{deconv2d_block_forward.4} parent=59 // pred_check
        %p7650 = pneg %p340
      $region62: #{deconv2d_block_forward.4} parent=59 // pred_check_branch
        %7652 = sbr.rel (%p7650) target = $region64
      $region63: #{deconv2d_block_forward.4} parent=59 // pred_region
        %s7653 = smul.u32 16, %s29
      $region64: #{deconv2d_block_forward.4} parent=59 // pred_fallthru
        _
      // Predicated region
      $region65: #{deconv2d_block_forward.4} parent=59 // pred_check
        %p7654 = pneg %p368
      $region66: #{deconv2d_block_forward.4} parent=59 // pred_check_branch
        %7656 = sbr.rel (%p7654) target = $region68
      $region67: #{deconv2d_block_forward.4} parent=59 // pred_region
        _
      $region68: #{deconv2d_block_forward.4} parent=59 // pred_fallthru
        _
      // Predicated region
      $region69: #{deconv2d_block_forward.4} parent=59 // pred_check
        %p7657 = pneg %p396
      $region70: #{deconv2d_block_forward.4} parent=59 // pred_check_branch
        %7659 = sbr.rel (%p7657) target = $region72
      $region71: #{deconv2d_block_forward.4} parent=59 // pred_region
        _
      $region72: #{deconv2d_block_forward.4} parent=59 // pred_fallthru
        _
    $region60: #{deconv2d_block_forward.4} parent=5 // pred_fallthru
      _
    %p7660 = scmp.le.s32.totalorder 2, %s19
    // Predicated region
    $region73: #{deconv2d_block_forward.4} parent=5 // pred_check
      %p7661 = pneg %p7660
    $region74: #{deconv2d_block_forward.4} parent=5 // pred_check_branch
      %7663 = sbr.rel (%p7661) target = $region76
    $region75: #{deconv2d_block_forward.4} parent=5 // pred_region
      %s7664 = ssub.s32 %s19, 2
      // Predicated region
      $region77: #{deconv2d_block_forward.4} parent=75 // pred_check
        %p7665 = pneg %p346
      $region78: #{deconv2d_block_forward.4} parent=75 // pred_check_branch
        %7667 = sbr.rel (%p7665) target = $region80
      $region79: #{deconv2d_block_forward.4} parent=75 // pred_region
        %s7668 = smul.u32 16, %s31
        %p7669 = scmp.lt.s32.totalorder %s30, 1
        %s7670 = scalar_select %p7669, %s30, 1
        %p7671 = scmp.lt.s32.totalorder %s7668, 15
        %s7672 = scalar_select %p7671, %s7668, 15
        %s7673 = smul.addr %s7672, 2
        %s7674 = smul.addr %s7670, 32
        %s7675 = sadd.s32 %s7673, %s7674
        %s7676 = smul.addr %s7675, 4
        %s7677 = scalar_lea.vmem %s10, %s7676
      $region80: #{deconv2d_block_forward.4} parent=75 // pred_fallthru
        _
      // Predicated region
      $region81: #{deconv2d_block_forward.4} parent=75 // pred_check
        %p7678 = pneg %p374
      $region82: #{deconv2d_block_forward.4} parent=75 // pred_check_branch
        %7680 = sbr.rel (%p7678) target = $region84
      $region83: #{deconv2d_block_forward.4} parent=75 // pred_region
        %p7681 = scmp.lt.s32.totalorder %s30, 1
        %s7682 = scalar_select %p7681, %s30, 1
        %p7683 = scmp.lt.s32.totalorder %s31, 0
        %s7684 = scalar_select %p7683, %s31, 0
        %s7685 = sadd.s32 %s7684, %s7682
        %s7686 = scalar_lea.vmem %s11, %s7685
      $region84: #{deconv2d_block_forward.4} parent=75 // pred_fallthru
        _
      // Predicated region
      $region85: #{deconv2d_block_forward.4} parent=75 // pred_check
        %p7687 = pneg %p402
      $region86: #{deconv2d_block_forward.4} parent=75 // pred_check_branch
        %7689 = sbr.rel (%p7687) target = $region88
      $region87: #{deconv2d_block_forward.4} parent=75 // pred_region
        %p7690 = scmp.lt.s32.totalorder %s30, 1
        %s7691 = scalar_select %p7690, %s30, 1
        %p7692 = scmp.lt.s32.totalorder %s31, 0
        %s7693 = scalar_select %p7692, %s31, 0
        %s7694 = sadd.s32 %s7693, %s7691
        %s7695 = scalar_lea.vmem %s12, %s7694
      $region88: #{deconv2d_block_forward.4} parent=75 // pred_fallthru
        _
    $region76: #{deconv2d_block_forward.4} parent=5 // pred_fallthru
      _
  $region6: #{deconv2d_block_forward.4} parent=0 // loop_footer
    %s23 = sadd.s32 1, %s19
  $region7: #{deconv2d_block_forward.4} parent=0 // loop_footer_branch
    %18 = sbr.rel target = $region3
  $region8: #{deconv2d_block_forward.4} parent=0 // loop_exit
    _

</llo_original>
